<compile_context>
chip_gen: v7x
topology: tpu7x:2x2x1
jax: 0.10.0
libtpu: 0.0.40
codegen_flags: <defaults>
</compile_context>

<pallas_src>
import functools

import jax
import jax.numpy as jnp
from jax.experimental import pallas as pl
from jax.experimental.pallas import tpu as pltpu

LEAKY_SLOPE = 0.01   # nn.LeakyReLU default
BN_EPS = 1e-5        # nn.BatchNorm2d default


def _round_up(x, m):
    return ((x + m - 1) // m) * m


def _shift_rows(x, k):
    """out[r] = x[(r + k) % L] along axis 0, for a static python int k."""
    if k == 0:
        return x
    return jnp.concatenate([x[k:, :], x[:k, :]], axis=0)


def _conv9(x, w, shifts):
    """3x3 conv on one spatially padded, flattened image tile.

    x: (L8, C_in) bf16, flat padded coords r = u*(W+2) + v
    w: (9, C_in, CP) bf16, tap t = i*3 + j
    Returns (L8, CP) f32; rows that are not real output pixels hold garbage and
    are masked (pass 1) or cropped by the wrapper (pass 2).
    """
    acc = None
    for t in range(9):
        xs = _shift_rows(x, shifts[t])
        z = jnp.dot(xs, w[t], preferred_element_type=jnp.float32)
        acc = z if acc is None else acc + z
    return acc


def _conv_stats_kernel(x_ref, w_ref, mask_ref, sum_ref, sq_ref, *, shifts):
    """Pass 1: per-image conv + masked per-channel sum / sum-of-squares."""
    acc = _conv9(x_ref[...], w_ref[...], shifts)        # (L8, CP) f32
    m = mask_ref[...]                                    # (L8, 1) f32: 1.0 on real pixels
    am = acc * m
    sum_ref[...] = jnp.sum(am, axis=0, keepdims=True)[None]
    sq_ref[...] = jnp.sum(am * acc, axis=0, keepdims=True)[None]


def _conv_apply_kernel(x_ref, w_ref, scale_ref, shift_ref, o_ref, *, shifts):
    """Pass 2: recompute the conv tile, apply fused BN affine + LeakyReLU."""
    acc = _conv9(x_ref[...], w_ref[...], shifts)
    y = acc * scale_ref[...] + shift_ref[...]
    o_ref[...] = jnp.where(y >= 0, y, LEAKY_SLOPE * y).astype(o_ref.dtype)


@jax.jit
def conv_module_forward(x, weight, bias, gamma, beta):
    """ConvModule forward: Conv2d(3x3, pad=1) -> BatchNorm2d(train) -> LeakyReLU.

    x:      (N, C_in, H, W)   NCHW (PyTorch convention)
    weight: (C_out, C_in, 3, 3)
    bias:   (C_out,)  -- unused: cancels exactly under training-mode BatchNorm
    gamma, beta: (C_out,)
    returns (N, C_out, H, W) float32
    """
    del bias
    N, C_in, H, W = x.shape
    C_out = weight.shape[0]
    Hp, Wp = H + 2, W + 2
    Lp = Hp * Wp
    L8 = _round_up(Lp, 8)                # sublane-aligned per-image row count
    CP = _round_up(C_out, 128)           # lane-dense output channel count

    # --- wrapper glue: a single ~1x pass over the input, NO im2col ----------
    xn = jnp.transpose(x, (0, 2, 3, 1))                        # NHWC
    xp = jnp.pad(xn, ((0, 0), (1, 1), (1, 1), (0, 0)))         # spatial pad = 1
    xf = jnp.pad(xp.reshape(N, Lp, C_in), ((0, 0), (0, L8 - Lp), (0, 0)))
    xf = xf.astype(jnp.bfloat16).reshape(N * L8, C_in)

    # per-tap weight slabs: (C_out, C_in, 3, 3) -> (9, C_in, CP), tap t = i*3+j
    wt = jnp.transpose(weight, (2, 3, 1, 0)).reshape(9, C_in, C_out)
    wt = jnp.pad(wt, ((0, 0), (0, 0), (0, CP - C_out))).astype(jnp.bfloat16)

    # mask of flat padded rows that correspond to real output pixels
    r = jnp.arange(L8, dtype=jnp.int32)
    u, v = r // Wp, r % Wp
    valid = (r < Lp) & (u >= 1) & (u <= H) & (v >= 1) & (v <= W)
    mask = valid.astype(jnp.float32).reshape(L8, 1)

    # tap (i, j) reads x_pad[u+i-1, v+j-1]  ==  a static row shift in flat coords
    shifts = tuple(((i - 1) * Wp + (j - 1)) % L8
                   for i in range(3) for j in range(3))

    x_spec = pl.BlockSpec((L8, C_in), lambda n: (n, 0))
    # constant-index operands: resident after first fetch -> single buffer
    w_spec = pl.BlockSpec((9, C_in, CP), lambda n: (0, 0, 0),
                          pipeline_mode=pl.Buffered(1))
    mask_spec = pl.BlockSpec((L8, 1), lambda n: (0, 0),
                             pipeline_mode=pl.Buffered(1))
    vec_spec = pl.BlockSpec((1, CP), lambda n: (0, 0),
                            pipeline_mode=pl.Buffered(1))
    stat_spec = pl.BlockSpec((1, 1, CP), lambda n: (n, 0, 0))

    # 32 MiB scoped VMEM fits v5e (16 MiB default), v6e, and v7x's 64 MiB/TC.
    params = pltpu.CompilerParams(dimension_semantics=("parallel",),
                                  vmem_limit_bytes=32 * 1024 * 1024)

    stats_kernel = functools.partial(_conv_stats_kernel, shifts=shifts)
    apply_kernel = functools.partial(_conv_apply_kernel, shifts=shifts)

    # --- pass 1: per-image partial BN statistics (megacore-parallel) --------
    sums, sqs = pl.pallas_call(
        stats_kernel,
        out_shape=(jax.ShapeDtypeStruct((N, 1, CP), jnp.float32),
                   jax.ShapeDtypeStruct((N, 1, CP), jnp.float32)),
        grid_spec=pltpu.PrefetchScalarGridSpec(
            num_scalar_prefetch=0,
            grid=(N,),
            in_specs=[x_spec, w_spec, mask_spec],
            out_specs=[stat_spec, stat_spec]),
        compiler_params=params,
    )(xf, wt, mask)

    # fold batch stats + gamma/beta into one fused per-channel affine (tiny XLA)
    count = float(N * H * W)
    mean = jnp.sum(sums[:, 0, :], axis=0) / count
    var = jnp.maximum(jnp.sum(sqs[:, 0, :], axis=0) / count - mean * mean, 0.0)
    gamma_p = jnp.pad(gamma.astype(jnp.float32), (0, CP - C_out))
    beta_p = jnp.pad(beta.astype(jnp.float32), (0, CP - C_out))
    scale = gamma_p * jax.lax.rsqrt(var + BN_EPS)
    shift = beta_p - mean * scale
    scale_row = scale.reshape(1, CP)
    shift_row = shift.reshape(1, CP)

    # --- pass 2: recompute conv + fused BN affine + LeakyReLU, bf16 store ---
    out_flat = pl.pallas_call(
        apply_kernel,
        out_shape=jax.ShapeDtypeStruct((N * L8, CP), jnp.bfloat16),
        grid_spec=pltpu.PrefetchScalarGridSpec(
            num_scalar_prefetch=0,
            grid=(N,),
            in_specs=[x_spec, w_spec, vec_spec, vec_spec],
            out_specs=pl.BlockSpec((L8, CP), lambda n: (n, 0))),
        compiler_params=params,
    )(xf, wt, scale_row, shift_row)

    # strip spatial/channel padding, back to NCHW float32 (module boundary)
    out = out_flat.reshape(N, L8, CP)[:, :Lp, :C_out]
    out = out.reshape(N, Hp, Wp, C_out)[:, 1:H + 1, 1:W + 1, :]
    return jnp.transpose(out, (0, 3, 1, 2)).astype(jnp.float32)


def _reference(x, weight, bias, gamma, beta):
    """Pure-JAX reference (f32 conv -> training-mode BN -> LeakyReLU)."""
    y = jax.lax.conv_general_dilated(
        x, weight, window_strides=(1, 1), padding=((1, 1), (1, 1)),
        dimension_numbers=("NCHW", "OIHW", "NCHW"))
    y = y + bias.reshape(1, -1, 1, 1)
    mean = jnp.mean(y, axis=(0, 2, 3), keepdims=True)
    var = jnp.mean((y - mean) ** 2, axis=(0, 2, 3), keepdims=True)  # biased
    yn = (y - mean) * jax.lax.rsqrt(var + BN_EPS)
    yn = yn * gamma.reshape(1, -1, 1, 1) + beta.reshape(1, -1, 1, 1)
    return jnp.where(yn >= 0, yn, LEAKY_SLOPE * yn)


if __name__ == "__main__":
    key = jax.random.PRNGKey(0)
    k_x, k_w, k_b = jax.random.split(key, 3)

    N, C_in, H, W = 2, 4, 16, 16
    C_out, kh, kw = 8, 3, 3

    x = jax.random.normal(k_x, (N, C_in, H, W), dtype=jnp.float32)

    # deterministic PyTorch-like uniform fan-in init
    fan_in = C_in * kh * kw
    bound = 1.0 / (fan_in ** 0.5)
    weight = jax.random.uniform(k_w, (C_out, C_in, kh, kw),
                                minval=-bound, maxval=bound, dtype=jnp.float32)
    bias = jax.random.uniform(k_b, (C_out,), minval=-bound, maxval=bound,
                              dtype=jnp.float32)
    gamma = jnp.ones((C_out,), jnp.float32)   # BatchNorm2d default affine init
    beta = jnp.zeros((C_out,), jnp.float32)

    out = conv_module_forward(x, weight, bias, gamma, beta)
    jax.block_until_ready(out)
    assert out.shape == (N, C_out, H, W)
    assert bool(jnp.all(jnp.isfinite(out)))

    # loose tolerance: kernel runs the conv in bf16 (f32 accumulate) + bf16 store
    ref = _reference(x, weight, bias, gamma, beta)
    err = float(jnp.max(jnp.abs(out - ref)))
    assert err < 0.1, f"max abs error vs reference: {err}"
    print("KERNEL_OK")
</pallas_src>

<mosaic_0001>
module attributes {stable_mosaic.version = 11 : i64} {
  func.func @_conv_stats_kernel(%arg0: i32, %arg1: memref<328x4xbf16, #tpu.memory_space<vmem>>, %arg2: memref<9x4x128xbf16, #tpu.memory_space<vmem>>, %arg3: memref<328x1xf32, #tpu.memory_space<vmem>>, %arg4: memref<1x1x128xf32, #tpu.memory_space<vmem>>, %arg5: memref<1x1x128xf32, #tpu.memory_space<vmem>>) attributes {dimension_semantics = [#tpu.dimension_semantics<parallel>], iteration_bounds = array<i64: 2>, scalar_prefetch = 0 : i64, scratch_operands = 0 : i64, tpu.core_type = #tpu.core_type<tc>, window_params = [{transform_indices = @transform_0, window_bounds = array<i64: 328, 4>}, {pipeline_mode = #tpu.pipeline_mode<synchronous>, transform_indices = @transform_1, window_bounds = array<i64: 9, 4, 128>}, {pipeline_mode = #tpu.pipeline_mode<synchronous>, transform_indices = @transform_2, window_bounds = array<i64: 328, 1>}, {transform_indices = @transform_3, window_bounds = array<i64: 1, 1, 128>}, {transform_indices = @transform_4, window_bounds = array<i64: 1, 1, 128>}]} {
    %c0 = arith.constant 0 : index
    %c0_0 = arith.constant 0 : index
    %0 = vector.load %arg1[%c0, %c0_0] : memref<328x4xbf16, #tpu.memory_space<vmem>>, vector<328x4xbf16>
    %c0_1 = arith.constant 0 : index
    %c0_2 = arith.constant 0 : index
    %c0_3 = arith.constant 0 : index
    %1 = vector.load %arg2[%c0_1, %c0_2, %c0_3] : memref<9x4x128xbf16, #tpu.memory_space<vmem>>, vector<9x4x128xbf16>
    %2 = vector.extract_strided_slice %0 {offsets = [309, 0], sizes = [19, 4], strides = [1, 1]} : vector<328x4xbf16> to vector<19x4xbf16>
    %3 = vector.extract_strided_slice %0 {offsets = [0, 0], sizes = [309, 4], strides = [1, 1]} : vector<328x4xbf16> to vector<309x4xbf16>
    %4 = tpu.concatenate %2, %3 in 0 : vector<19x4xbf16>, vector<309x4xbf16> -> vector<328x4xbf16>
    %5 = vector.extract_strided_slice %1 {offsets = [0, 0, 0], sizes = [1, 4, 128], strides = [1, 1, 1]} : vector<9x4x128xbf16> to vector<1x4x128xbf16>
    %6 = vector.shape_cast %5 : vector<1x4x128xbf16> to vector<4x128xbf16>
    %cst = arith.constant dense<0.000000e+00> : vector<328x128xf32>
    %7 = tpu.matmul %4, %6, %cst {dimension_numbers = #tpu.dot_dimension_numbers<[1], [0], [0], [1], [0, 0, 1, 1], [], []>} : vector<328x4xbf16>, vector<4x128xbf16>, vector<328x128xf32> -> vector<328x128xf32>
    %8 = vector.extract_strided_slice %0 {offsets = [310, 0], sizes = [18, 4], strides = [1, 1]} : vector<328x4xbf16> to vector<18x4xbf16>
    %9 = vector.extract_strided_slice %0 {offsets = [0, 0], sizes = [310, 4], strides = [1, 1]} : vector<328x4xbf16> to vector<310x4xbf16>
    %10 = tpu.concatenate %8, %9 in 0 : vector<18x4xbf16>, vector<310x4xbf16> -> vector<328x4xbf16>
    %11 = vector.extract_strided_slice %1 {offsets = [1, 0, 0], sizes = [1, 4, 128], strides = [1, 1, 1]} : vector<9x4x128xbf16> to vector<1x4x128xbf16>
    %12 = vector.shape_cast %11 : vector<1x4x128xbf16> to vector<4x128xbf16>
    %cst_4 = arith.constant dense<0.000000e+00> : vector<328x128xf32>
    %13 = tpu.matmul %10, %12, %cst_4 {dimension_numbers = #tpu.dot_dimension_numbers<[1], [0], [0], [1], [0, 0, 1, 1], [], []>} : vector<328x4xbf16>, vector<4x128xbf16>, vector<328x128xf32> -> vector<328x128xf32>
    %14 = arith.addf %7, %13 : vector<328x128xf32>
    %15 = vector.extract_strided_slice %0 {offsets = [311, 0], sizes = [17, 4], strides = [1, 1]} : vector<328x4xbf16> to vector<17x4xbf16>
    %16 = vector.extract_strided_slice %0 {offsets = [0, 0], sizes = [311, 4], strides = [1, 1]} : vector<328x4xbf16> to vector<311x4xbf16>
    %17 = tpu.concatenate %15, %16 in 0 : vector<17x4xbf16>, vector<311x4xbf16> -> vector<328x4xbf16>
    %18 = vector.extract_strided_slice %1 {offsets = [2, 0, 0], sizes = [1, 4, 128], strides = [1, 1, 1]} : vector<9x4x128xbf16> to vector<1x4x128xbf16>
    %19 = vector.shape_cast %18 : vector<1x4x128xbf16> to vector<4x128xbf16>
    %cst_5 = arith.constant dense<0.000000e+00> : vector<328x128xf32>
    %20 = tpu.matmul %17, %19, %cst_5 {dimension_numbers = #tpu.dot_dimension_numbers<[1], [0], [0], [1], [0, 0, 1, 1], [], []>} : vector<328x4xbf16>, vector<4x128xbf16>, vector<328x128xf32> -> vector<328x128xf32>
    %21 = arith.addf %14, %20 : vector<328x128xf32>
    %22 = vector.extract_strided_slice %0 {offsets = [327, 0], sizes = [1, 4], strides = [1, 1]} : vector<328x4xbf16> to vector<1x4xbf16>
    %23 = vector.extract_strided_slice %0 {offsets = [0, 0], sizes = [327, 4], strides = [1, 1]} : vector<328x4xbf16> to vector<327x4xbf16>
    %24 = tpu.concatenate %22, %23 in 0 : vector<1x4xbf16>, vector<327x4xbf16> -> vector<328x4xbf16>
    %25 = vector.extract_strided_slice %1 {offsets = [3, 0, 0], sizes = [1, 4, 128], strides = [1, 1, 1]} : vector<9x4x128xbf16> to vector<1x4x128xbf16>
    %26 = vector.shape_cast %25 : vector<1x4x128xbf16> to vector<4x128xbf16>
    %cst_6 = arith.constant dense<0.000000e+00> : vector<328x128xf32>
    %27 = tpu.matmul %24, %26, %cst_6 {dimension_numbers = #tpu.dot_dimension_numbers<[1], [0], [0], [1], [0, 0, 1, 1], [], []>} : vector<328x4xbf16>, vector<4x128xbf16>, vector<328x128xf32> -> vector<328x128xf32>
    %28 = arith.addf %21, %27 : vector<328x128xf32>
    %29 = vector.extract_strided_slice %1 {offsets = [4, 0, 0], sizes = [1, 4, 128], strides = [1, 1, 1]} : vector<9x4x128xbf16> to vector<1x4x128xbf16>
    %30 = vector.shape_cast %29 : vector<1x4x128xbf16> to vector<4x128xbf16>
    %cst_7 = arith.constant dense<0.000000e+00> : vector<328x128xf32>
    %31 = tpu.matmul %0, %30, %cst_7 {dimension_numbers = #tpu.dot_dimension_numbers<[1], [0], [0], [1], [0, 0, 1, 1], [], []>} : vector<328x4xbf16>, vector<4x128xbf16>, vector<328x128xf32> -> vector<328x128xf32>
    %32 = arith.addf %28, %31 : vector<328x128xf32>
    %33 = vector.extract_strided_slice %0 {offsets = [1, 0], sizes = [327, 4], strides = [1, 1]} : vector<328x4xbf16> to vector<327x4xbf16>
    %34 = vector.extract_strided_slice %0 {offsets = [0, 0], sizes = [1, 4], strides = [1, 1]} : vector<328x4xbf16> to vector<1x4xbf16>
    %35 = tpu.concatenate %33, %34 in 0 : vector<327x4xbf16>, vector<1x4xbf16> -> vector<328x4xbf16>
    %36 = vector.extract_strided_slice %1 {offsets = [5, 0, 0], sizes = [1, 4, 128], strides = [1, 1, 1]} : vector<9x4x128xbf16> to vector<1x4x128xbf16>
    %37 = vector.shape_cast %36 : vector<1x4x128xbf16> to vector<4x128xbf16>
    %cst_8 = arith.constant dense<0.000000e+00> : vector<328x128xf32>
    %38 = tpu.matmul %35, %37, %cst_8 {dimension_numbers = #tpu.dot_dimension_numbers<[1], [0], [0], [1], [0, 0, 1, 1], [], []>} : vector<328x4xbf16>, vector<4x128xbf16>, vector<328x128xf32> -> vector<328x128xf32>
    %39 = arith.addf %32, %38 : vector<328x128xf32>
    %40 = vector.extract_strided_slice %0 {offsets = [17, 0], sizes = [311, 4], strides = [1, 1]} : vector<328x4xbf16> to vector<311x4xbf16>
    %41 = vector.extract_strided_slice %0 {offsets = [0, 0], sizes = [17, 4], strides = [1, 1]} : vector<328x4xbf16> to vector<17x4xbf16>
    %42 = tpu.concatenate %40, %41 in 0 : vector<311x4xbf16>, vector<17x4xbf16> -> vector<328x4xbf16>
    %43 = vector.extract_strided_slice %1 {offsets = [6, 0, 0], sizes = [1, 4, 128], strides = [1, 1, 1]} : vector<9x4x128xbf16> to vector<1x4x128xbf16>
    %44 = vector.shape_cast %43 : vector<1x4x128xbf16> to vector<4x128xbf16>
    %cst_9 = arith.constant dense<0.000000e+00> : vector<328x128xf32>
    %45 = tpu.matmul %42, %44, %cst_9 {dimension_numbers = #tpu.dot_dimension_numbers<[1], [0], [0], [1], [0, 0, 1, 1], [], []>} : vector<328x4xbf16>, vector<4x128xbf16>, vector<328x128xf32> -> vector<328x128xf32>
    %46 = arith.addf %39, %45 : vector<328x128xf32>
    %47 = vector.extract_strided_slice %0 {offsets = [18, 0], sizes = [310, 4], strides = [1, 1]} : vector<328x4xbf16> to vector<310x4xbf16>
    %48 = vector.extract_strided_slice %0 {offsets = [0, 0], sizes = [18, 4], strides = [1, 1]} : vector<328x4xbf16> to vector<18x4xbf16>
    %49 = tpu.concatenate %47, %48 in 0 : vector<310x4xbf16>, vector<18x4xbf16> -> vector<328x4xbf16>
    %50 = vector.extract_strided_slice %1 {offsets = [7, 0, 0], sizes = [1, 4, 128], strides = [1, 1, 1]} : vector<9x4x128xbf16> to vector<1x4x128xbf16>
    %51 = vector.shape_cast %50 : vector<1x4x128xbf16> to vector<4x128xbf16>
    %cst_10 = arith.constant dense<0.000000e+00> : vector<328x128xf32>
    %52 = tpu.matmul %49, %51, %cst_10 {dimension_numbers = #tpu.dot_dimension_numbers<[1], [0], [0], [1], [0, 0, 1, 1], [], []>} : vector<328x4xbf16>, vector<4x128xbf16>, vector<328x128xf32> -> vector<328x128xf32>
    %53 = arith.addf %46, %52 : vector<328x128xf32>
    %54 = vector.extract_strided_slice %0 {offsets = [19, 0], sizes = [309, 4], strides = [1, 1]} : vector<328x4xbf16> to vector<309x4xbf16>
    %55 = vector.extract_strided_slice %0 {offsets = [0, 0], sizes = [19, 4], strides = [1, 1]} : vector<328x4xbf16> to vector<19x4xbf16>
    %56 = tpu.concatenate %54, %55 in 0 : vector<309x4xbf16>, vector<19x4xbf16> -> vector<328x4xbf16>
    %57 = vector.extract_strided_slice %1 {offsets = [8, 0, 0], sizes = [1, 4, 128], strides = [1, 1, 1]} : vector<9x4x128xbf16> to vector<1x4x128xbf16>
    %58 = vector.shape_cast %57 : vector<1x4x128xbf16> to vector<4x128xbf16>
    %cst_11 = arith.constant dense<0.000000e+00> : vector<328x128xf32>
    %59 = tpu.matmul %56, %58, %cst_11 {dimension_numbers = #tpu.dot_dimension_numbers<[1], [0], [0], [1], [0, 0, 1, 1], [], []>} : vector<328x4xbf16>, vector<4x128xbf16>, vector<328x128xf32> -> vector<328x128xf32>
    %60 = arith.addf %53, %59 : vector<328x128xf32>
    %c0_12 = arith.constant 0 : index
    %c0_13 = arith.constant 0 : index
    %61 = vector.load %arg3[%c0_12, %c0_13] : memref<328x1xf32, #tpu.memory_space<vmem>>, vector<328x1xf32>
    %62 = vector.broadcast %61 : vector<328x1xf32> to vector<328x128xf32>
    %63 = arith.mulf %60, %62 : vector<328x128xf32>
    %cst_14 = arith.constant dense<0.000000e+00> : vector<128xf32>
    %64 = vector.multi_reduction <add>, %63, %cst_14 [0] : vector<328x128xf32> to vector<128xf32>
    %65 = vector.shape_cast %64 : vector<128xf32> to vector<1x128xf32>
    %66 = vector.shape_cast %65 : vector<1x128xf32> to vector<1x1x128xf32>
    %c0_15 = arith.constant 0 : index
    %c0_16 = arith.constant 0 : index
    %c0_17 = arith.constant 0 : index
    %67 = vector.load %arg4[%c0_15, %c0_16, %c0_17] : memref<1x1x128xf32, #tpu.memory_space<vmem>>, vector<1x1x128xf32>
    tpu.vector_store %arg4[%c0_15, %c0_16, %c0_17], %66 {strides = array<i32>} : memref<1x1x128xf32, #tpu.memory_space<vmem>>, vector<1x1x128xf32>,
    %68 = arith.mulf %63, %60 : vector<328x128xf32>
    %cst_18 = arith.constant dense<0.000000e+00> : vector<128xf32>
    %69 = vector.multi_reduction <add>, %68, %cst_18 [0] : vector<328x128xf32> to vector<128xf32>
    %70 = vector.shape_cast %69 : vector<128xf32> to vector<1x128xf32>
    %71 = vector.shape_cast %70 : vector<1x128xf32> to vector<1x1x128xf32>
    %c0_19 = arith.constant 0 : index
    %c0_20 = arith.constant 0 : index
    %c0_21 = arith.constant 0 : index
    %72 = vector.load %arg5[%c0_19, %c0_20, %c0_21] : memref<1x1x128xf32, #tpu.memory_space<vmem>>, vector<1x1x128xf32>
    tpu.vector_store %arg5[%c0_19, %c0_20, %c0_21], %71 {strides = array<i32>} : memref<1x1x128xf32, #tpu.memory_space<vmem>>, vector<1x1x128xf32>,
    return
  }
  func.func @transform_0(%arg0: i32) -> (i32, i32) {
    %c0_i32 = arith.constant 0 : i32
    %c0_i32_0 = arith.constant 0 : i32
    return %arg0, %c0_i32 : i32, i32
  }
  func.func @transform_1(%arg0: i32) -> (i32, i32, i32) {
    %c0_i32 = arith.constant 0 : i32
    %c0_i32_0 = arith.constant 0 : i32
    %c0_i32_1 = arith.constant 0 : i32
    %c0_i32_2 = arith.constant 0 : i32
    return %c0_i32, %c0_i32_0, %c0_i32_1 : i32, i32, i32
  }
  func.func @transform_2(%arg0: i32) -> (i32, i32) {
    %c0_i32 = arith.constant 0 : i32
    %c0_i32_0 = arith.constant 0 : i32
    %c0_i32_1 = arith.constant 0 : i32
    return %c0_i32, %c0_i32_0 : i32, i32
  }
  func.func @transform_3(%arg0: i32) -> (i32, i32, i32) {
    %c0_i32 = arith.constant 0 : i32
    %c0_i32_0 = arith.constant 0 : i32
    %c0_i32_1 = arith.constant 0 : i32
    return %arg0, %c0_i32, %c0_i32_0 : i32, i32, i32
  }
  func.func @transform_4(%arg0: i32) -> (i32, i32, i32) {
    %c0_i32 = arith.constant 0 : i32
    %c0_i32_0 = arith.constant 0 : i32
    %c0_i32_1 = arith.constant 0 : i32
    return %arg0, %c0_i32, %c0_i32_0 : i32, i32, i32
  }
}

module attributes {stable_mosaic.version = 11 : i64} {
  func.func @_conv_apply_kernel(%arg0: i32, %arg1: memref<328x4xbf16, #tpu.memory_space<vmem>>, %arg2: memref<9x4x128xbf16, #tpu.memory_space<vmem>>, %arg3: memref<1x128xf32, #tpu.memory_space<vmem>>, %arg4: memref<1x128xf32, #tpu.memory_space<vmem>>, %arg5: memref<328x128xbf16, #tpu.memory_space<vmem>>) attributes {dimension_semantics = [#tpu.dimension_semantics<parallel>], iteration_bounds = array<i64: 2>, scalar_prefetch = 0 : i64, scratch_operands = 0 : i64, tpu.core_type = #tpu.core_type<tc>, window_params = [{transform_indices = @transform_0, window_bounds = array<i64: 328, 4>}, {pipeline_mode = #tpu.pipeline_mode<synchronous>, transform_indices = @transform_1, window_bounds = array<i64: 9, 4, 128>}, {pipeline_mode = #tpu.pipeline_mode<synchronous>, transform_indices = @transform_2, window_bounds = array<i64: 1, 128>}, {pipeline_mode = #tpu.pipeline_mode<synchronous>, transform_indices = @transform_3, window_bounds = array<i64: 1, 128>}, {transform_indices = @transform_4, window_bounds = array<i64: 328, 128>}]} {
    %c0 = arith.constant 0 : index
    %c0_0 = arith.constant 0 : index
    %0 = vector.load %arg1[%c0, %c0_0] : memref<328x4xbf16, #tpu.memory_space<vmem>>, vector<328x4xbf16>
    %c0_1 = arith.constant 0 : index
    %c0_2 = arith.constant 0 : index
    %c0_3 = arith.constant 0 : index
    %1 = vector.load %arg2[%c0_1, %c0_2, %c0_3] : memref<9x4x128xbf16, #tpu.memory_space<vmem>>, vector<9x4x128xbf16>
    %2 = vector.extract_strided_slice %0 {offsets = [309, 0], sizes = [19, 4], strides = [1, 1]} : vector<328x4xbf16> to vector<19x4xbf16>
    %3 = vector.extract_strided_slice %0 {offsets = [0, 0], sizes = [309, 4], strides = [1, 1]} : vector<328x4xbf16> to vector<309x4xbf16>
    %4 = tpu.concatenate %2, %3 in 0 : vector<19x4xbf16>, vector<309x4xbf16> -> vector<328x4xbf16>
    %5 = vector.extract_strided_slice %1 {offsets = [0, 0, 0], sizes = [1, 4, 128], strides = [1, 1, 1]} : vector<9x4x128xbf16> to vector<1x4x128xbf16>
    %6 = vector.shape_cast %5 : vector<1x4x128xbf16> to vector<4x128xbf16>
    %cst = arith.constant dense<0.000000e+00> : vector<328x128xf32>
    %7 = tpu.matmul %4, %6, %cst {dimension_numbers = #tpu.dot_dimension_numbers<[1], [0], [0], [1], [0, 0, 1, 1], [], []>} : vector<328x4xbf16>, vector<4x128xbf16>, vector<328x128xf32> -> vector<328x128xf32>
    %8 = vector.extract_strided_slice %0 {offsets = [310, 0], sizes = [18, 4], strides = [1, 1]} : vector<328x4xbf16> to vector<18x4xbf16>
    %9 = vector.extract_strided_slice %0 {offsets = [0, 0], sizes = [310, 4], strides = [1, 1]} : vector<328x4xbf16> to vector<310x4xbf16>
    %10 = tpu.concatenate %8, %9 in 0 : vector<18x4xbf16>, vector<310x4xbf16> -> vector<328x4xbf16>
    %11 = vector.extract_strided_slice %1 {offsets = [1, 0, 0], sizes = [1, 4, 128], strides = [1, 1, 1]} : vector<9x4x128xbf16> to vector<1x4x128xbf16>
    %12 = vector.shape_cast %11 : vector<1x4x128xbf16> to vector<4x128xbf16>
    %cst_4 = arith.constant dense<0.000000e+00> : vector<328x128xf32>
    %13 = tpu.matmul %10, %12, %cst_4 {dimension_numbers = #tpu.dot_dimension_numbers<[1], [0], [0], [1], [0, 0, 1, 1], [], []>} : vector<328x4xbf16>, vector<4x128xbf16>, vector<328x128xf32> -> vector<328x128xf32>
    %14 = arith.addf %7, %13 : vector<328x128xf32>
    %15 = vector.extract_strided_slice %0 {offsets = [311, 0], sizes = [17, 4], strides = [1, 1]} : vector<328x4xbf16> to vector<17x4xbf16>
    %16 = vector.extract_strided_slice %0 {offsets = [0, 0], sizes = [311, 4], strides = [1, 1]} : vector<328x4xbf16> to vector<311x4xbf16>
    %17 = tpu.concatenate %15, %16 in 0 : vector<17x4xbf16>, vector<311x4xbf16> -> vector<328x4xbf16>
    %18 = vector.extract_strided_slice %1 {offsets = [2, 0, 0], sizes = [1, 4, 128], strides = [1, 1, 1]} : vector<9x4x128xbf16> to vector<1x4x128xbf16>
    %19 = vector.shape_cast %18 : vector<1x4x128xbf16> to vector<4x128xbf16>
    %cst_5 = arith.constant dense<0.000000e+00> : vector<328x128xf32>
    %20 = tpu.matmul %17, %19, %cst_5 {dimension_numbers = #tpu.dot_dimension_numbers<[1], [0], [0], [1], [0, 0, 1, 1], [], []>} : vector<328x4xbf16>, vector<4x128xbf16>, vector<328x128xf32> -> vector<328x128xf32>
    %21 = arith.addf %14, %20 : vector<328x128xf32>
    %22 = vector.extract_strided_slice %0 {offsets = [327, 0], sizes = [1, 4], strides = [1, 1]} : vector<328x4xbf16> to vector<1x4xbf16>
    %23 = vector.extract_strided_slice %0 {offsets = [0, 0], sizes = [327, 4], strides = [1, 1]} : vector<328x4xbf16> to vector<327x4xbf16>
    %24 = tpu.concatenate %22, %23 in 0 : vector<1x4xbf16>, vector<327x4xbf16> -> vector<328x4xbf16>
    %25 = vector.extract_strided_slice %1 {offsets = [3, 0, 0], sizes = [1, 4, 128], strides = [1, 1, 1]} : vector<9x4x128xbf16> to vector<1x4x128xbf16>
    %26 = vector.shape_cast %25 : vector<1x4x128xbf16> to vector<4x128xbf16>
    %cst_6 = arith.constant dense<0.000000e+00> : vector<328x128xf32>
    %27 = tpu.matmul %24, %26, %cst_6 {dimension_numbers = #tpu.dot_dimension_numbers<[1], [0], [0], [1], [0, 0, 1, 1], [], []>} : vector<328x4xbf16>, vector<4x128xbf16>, vector<328x128xf32> -> vector<328x128xf32>
    %28 = arith.addf %21, %27 : vector<328x128xf32>
    %29 = vector.extract_strided_slice %1 {offsets = [4, 0, 0], sizes = [1, 4, 128], strides = [1, 1, 1]} : vector<9x4x128xbf16> to vector<1x4x128xbf16>
    %30 = vector.shape_cast %29 : vector<1x4x128xbf16> to vector<4x128xbf16>
    %cst_7 = arith.constant dense<0.000000e+00> : vector<328x128xf32>
    %31 = tpu.matmul %0, %30, %cst_7 {dimension_numbers = #tpu.dot_dimension_numbers<[1], [0], [0], [1], [0, 0, 1, 1], [], []>} : vector<328x4xbf16>, vector<4x128xbf16>, vector<328x128xf32> -> vector<328x128xf32>
    %32 = arith.addf %28, %31 : vector<328x128xf32>
    %33 = vector.extract_strided_slice %0 {offsets = [1, 0], sizes = [327, 4], strides = [1, 1]} : vector<328x4xbf16> to vector<327x4xbf16>
    %34 = vector.extract_strided_slice %0 {offsets = [0, 0], sizes = [1, 4], strides = [1, 1]} : vector<328x4xbf16> to vector<1x4xbf16>
    %35 = tpu.concatenate %33, %34 in 0 : vector<327x4xbf16>, vector<1x4xbf16> -> vector<328x4xbf16>
    %36 = vector.extract_strided_slice %1 {offsets = [5, 0, 0], sizes = [1, 4, 128], strides = [1, 1, 1]} : vector<9x4x128xbf16> to vector<1x4x128xbf16>
    %37 = vector.shape_cast %36 : vector<1x4x128xbf16> to vector<4x128xbf16>
    %cst_8 = arith.constant dense<0.000000e+00> : vector<328x128xf32>
    %38 = tpu.matmul %35, %37, %cst_8 {dimension_numbers = #tpu.dot_dimension_numbers<[1], [0], [0], [1], [0, 0, 1, 1], [], []>} : vector<328x4xbf16>, vector<4x128xbf16>, vector<328x128xf32> -> vector<328x128xf32>
    %39 = arith.addf %32, %38 : vector<328x128xf32>
    %40 = vector.extract_strided_slice %0 {offsets = [17, 0], sizes = [311, 4], strides = [1, 1]} : vector<328x4xbf16> to vector<311x4xbf16>
    %41 = vector.extract_strided_slice %0 {offsets = [0, 0], sizes = [17, 4], strides = [1, 1]} : vector<328x4xbf16> to vector<17x4xbf16>
    %42 = tpu.concatenate %40, %41 in 0 : vector<311x4xbf16>, vector<17x4xbf16> -> vector<328x4xbf16>
    %43 = vector.extract_strided_slice %1 {offsets = [6, 0, 0], sizes = [1, 4, 128], strides = [1, 1, 1]} : vector<9x4x128xbf16> to vector<1x4x128xbf16>
    %44 = vector.shape_cast %43 : vector<1x4x128xbf16> to vector<4x128xbf16>
    %cst_9 = arith.constant dense<0.000000e+00> : vector<328x128xf32>
    %45 = tpu.matmul %42, %44, %cst_9 {dimension_numbers = #tpu.dot_dimension_numbers<[1], [0], [0], [1], [0, 0, 1, 1], [], []>} : vector<328x4xbf16>, vector<4x128xbf16>, vector<328x128xf32> -> vector<328x128xf32>
    %46 = arith.addf %39, %45 : vector<328x128xf32>
    %47 = vector.extract_strided_slice %0 {offsets = [18, 0], sizes = [310, 4], strides = [1, 1]} : vector<328x4xbf16> to vector<310x4xbf16>
    %48 = vector.extract_strided_slice %0 {offsets = [0, 0], sizes = [18, 4], strides = [1, 1]} : vector<328x4xbf16> to vector<18x4xbf16>
    %49 = tpu.concatenate %47, %48 in 0 : vector<310x4xbf16>, vector<18x4xbf16> -> vector<328x4xbf16>
    %50 = vector.extract_strided_slice %1 {offsets = [7, 0, 0], sizes = [1, 4, 128], strides = [1, 1, 1]} : vector<9x4x128xbf16> to vector<1x4x128xbf16>
    %51 = vector.shape_cast %50 : vector<1x4x128xbf16> to vector<4x128xbf16>
    %cst_10 = arith.constant dense<0.000000e+00> : vector<328x128xf32>
    %52 = tpu.matmul %49, %51, %cst_10 {dimension_numbers = #tpu.dot_dimension_numbers<[1], [0], [0], [1], [0, 0, 1, 1], [], []>} : vector<328x4xbf16>, vector<4x128xbf16>, vector<328x128xf32> -> vector<328x128xf32>
    %53 = arith.addf %46, %52 : vector<328x128xf32>
    %54 = vector.extract_strided_slice %0 {offsets = [19, 0], sizes = [309, 4], strides = [1, 1]} : vector<328x4xbf16> to vector<309x4xbf16>
    %55 = vector.extract_strided_slice %0 {offsets = [0, 0], sizes = [19, 4], strides = [1, 1]} : vector<328x4xbf16> to vector<19x4xbf16>
    %56 = tpu.concatenate %54, %55 in 0 : vector<309x4xbf16>, vector<19x4xbf16> -> vector<328x4xbf16>
    %57 = vector.extract_strided_slice %1 {offsets = [8, 0, 0], sizes = [1, 4, 128], strides = [1, 1, 1]} : vector<9x4x128xbf16> to vector<1x4x128xbf16>
    %58 = vector.shape_cast %57 : vector<1x4x128xbf16> to vector<4x128xbf16>
    %cst_11 = arith.constant dense<0.000000e+00> : vector<328x128xf32>
    %59 = tpu.matmul %56, %58, %cst_11 {dimension_numbers = #tpu.dot_dimension_numbers<[1], [0], [0], [1], [0, 0, 1, 1], [], []>} : vector<328x4xbf16>, vector<4x128xbf16>, vector<328x128xf32> -> vector<328x128xf32>
    %60 = arith.addf %53, %59 : vector<328x128xf32>
    %c0_12 = arith.constant 0 : index
    %c0_13 = arith.constant 0 : index
    %61 = vector.load %arg3[%c0_12, %c0_13] : memref<1x128xf32, #tpu.memory_space<vmem>>, vector<1x128xf32>
    %62 = vector.broadcast %61 : vector<1x128xf32> to vector<328x128xf32>
    %63 = arith.mulf %60, %62 : vector<328x128xf32>
    %c0_14 = arith.constant 0 : index
    %c0_15 = arith.constant 0 : index
    %64 = vector.load %arg4[%c0_14, %c0_15] : memref<1x128xf32, #tpu.memory_space<vmem>>, vector<1x128xf32>
    %65 = vector.broadcast %64 : vector<1x128xf32> to vector<328x128xf32>
    %66 = arith.addf %63, %65 : vector<328x128xf32>
    %cst_16 = arith.constant 0.000000e+00 : f32
    %67 = vector.broadcast %cst_16 : f32 to vector<328x128xf32>
    %68 = arith.cmpf oge, %66, %67 : vector<328x128xf32>
    %cst_17 = arith.constant 0.00999999977 : f32
    %69 = vector.broadcast %cst_17 : f32 to vector<328x128xf32>
    %70 = arith.mulf %69, %66 : vector<328x128xf32>
    %71 = arith.select %68, %66, %70 : vector<328x128xi1>, vector<328x128xf32>
    %72 = arith.truncf %71 : vector<328x128xf32> to vector<328x128xbf16>
    %c0_18 = arith.constant 0 : index
    %c0_19 = arith.constant 0 : index
    %73 = vector.load %arg5[%c0_18, %c0_19] : memref<328x128xbf16, #tpu.memory_space<vmem>>, vector<328x128xbf16>
    tpu.vector_store %arg5[%c0_18, %c0_19], %72 {strides = array<i32>} : memref<328x128xbf16, #tpu.memory_space<vmem>>, vector<328x128xbf16>,
    return
  }
  func.func @transform_0(%arg0: i32) -> (i32, i32) {
    %c0_i32 = arith.constant 0 : i32
    %c0_i32_0 = arith.constant 0 : i32
    return %arg0, %c0_i32 : i32, i32
  }
  func.func @transform_1(%arg0: i32) -> (i32, i32, i32) {
    %c0_i32 = arith.constant 0 : i32
    %c0_i32_0 = arith.constant 0 : i32
    %c0_i32_1 = arith.constant 0 : i32
    %c0_i32_2 = arith.constant 0 : i32
    return %c0_i32, %c0_i32_0, %c0_i32_1 : i32, i32, i32
  }
  func.func @transform_2(%arg0: i32) -> (i32, i32) {
    %c0_i32 = arith.constant 0 : i32
    %c0_i32_0 = arith.constant 0 : i32
    %c0_i32_1 = arith.constant 0 : i32
    return %c0_i32, %c0_i32_0 : i32, i32
  }
  func.func @transform_3(%arg0: i32) -> (i32, i32) {
    %c0_i32 = arith.constant 0 : i32
    %c0_i32_0 = arith.constant 0 : i32
    %c0_i32_1 = arith.constant 0 : i32
    return %c0_i32, %c0_i32_0 : i32, i32
  }
  func.func @transform_4(%arg0: i32) -> (i32, i32) {
    %c0_i32 = arith.constant 0 : i32
    %c0_i32_0 = arith.constant 0 : i32
    return %arg0, %c0_i32 : i32, i32
  }
}

</mosaic_0001>

<llo_original>
// kernel: conv_module_forward.3
$region0: #{conv_module_forward.3}
  #allocation0 [shape = 'u32[]', space=smem, size = 0x4, offset = 0x4, fixed_abs, tag = 'smem constant byte address 0x4 - core index']
  #allocation1 [shape = 'u32[144,128]{1,0:T(1,128)}', space=vmem, size = 0x12000, scoped, tag = 'internal scratch']
  %s0 = inlined_call_operand.vmem [shape: bf16[656,4], index: 0, kind: input, shape index: {}]
  %s1 = inlined_call_operand.vmem [shape: bf16[9,4,128], index: 1, kind: input, shape index: {}]
  %s2 = inlined_call_operand.vmem [shape: f32[1,128], index: 2, kind: input, shape index: {}]
  %s3 = inlined_call_operand.vmem [shape: f32[1,128], index: 3, kind: input, shape index: {}]
  %s4 = inlined_call_operand.vmem [shape: bf16[656,128], index: 4, kind: output, shape index: {}]
  %s5 = sld [smem:[#allocation0]]
  $region49: #{conv_module_forward.3} parent=0
    _
  %s7 = ssub.s32 1, %s5
  %s8 = scalar_select 0, %s7, %s5
  loop: start=0, step=1, limit=4
  $region2: #{conv_module_forward.3} parent=0 // loop_pre_header
    _
  $region3: #{conv_module_forward.3} parent=0 // loop_header
    %s10 = sphi 0, %s14
    %p11 = scmp.ge.s32.totalorder %s10, 4
    %s20 = sphi 0, %s22
    %s23 = sphi 0, %s20
    %s24 = sphi 0, %s23
    %s40 = sphi 0, %s24
    %s44 = sphi 0, %s44
    %s46 = sphi 0, %s44
    %s47 = sphi 0, %s46
    %s61 = sphi 0, %s47
    %s65 = sphi 0, %s65
    %s67 = sphi 0, %s65
    %s68 = sphi 0, %s67
    %s82 = sphi 0, %s68
    %s86 = sphi 0, %s86
    %s88 = sphi 0, %s86
    %s89 = sphi 0, %s88
    %s103 = sphi 0, %s89
    %s109 = sphi 0, %s111
    %s112 = sphi 0, %s109
    %s113 = sphi 0, %s112
    %s129 = sphi 0, %s113
  $region4: #{conv_module_forward.3} parent=0 // loop_header_branch
    %13 = sbr.rel (%p11) target = $region8
  $region5: #{conv_module_forward.3} parent=0 // loop_body
    %s15 = ssub.s32 %s10, 1
    %s16 = ssub.s32 %s10, 2
    %s17 = sadd.s32 %s10, 1
    %s18 = ssub.s32 %s10, %s17
    %p19 = scmp.eq.s32.totalorder %s18, 0
    %s21 = sadd.s32 %s20, 1
    %s22 = scalar_select %p19, %s20, %s21
    %p25 = pneg %p19
    %p26 = scmp.eq.s32.totalorder %s10, 1
    %p27 = por %p25, %p26
    %p28 = scmp.ne.s32.totalorder %s20, %s23
    %p29 = scmp.eq.s32.totalorder %s10, 0
    %p30 = por %p28, %p29
    %p31 = scmp.ne.s32.totalorder %s20, %s23
    %p32 = scmp.eq.s32.totalorder %s15, 1
    %p33 = por %p31, %p32
    %p34 = scmp.ne.s32.totalorder %s23, %s24
    %p35 = scmp.eq.s32.totalorder %s15, 0
    %p36 = por %p34, %p35
    %p37 = scmp.ne.s32.totalorder %s23, %s24
    %p38 = scmp.eq.s32.totalorder %s16, 1
    %p39 = por %p37, %p38
    %p41 = scmp.ne.s32.totalorder %s24, %s40
    %p42 = scmp.eq.s32.totalorder %s16, 0
    %p43 = por %p41, %p42
    %s45 = sadd.s32 %s44, 1
    %p48 = scmp.eq.s32.totalorder %s10, 1
    %p49 = scmp.ne.s32.totalorder %s44, %s46
    %p50 = scmp.eq.s32.totalorder %s10, 0
    %p51 = por %p49, %p50
    %p52 = scmp.ne.s32.totalorder %s44, %s46
    %p53 = scmp.eq.s32.totalorder %s15, 1
    %p54 = por %p52, %p53
    %p55 = scmp.ne.s32.totalorder %s46, %s47
    %p56 = scmp.eq.s32.totalorder %s15, 0
    %p57 = por %p55, %p56
    %p58 = scmp.ne.s32.totalorder %s46, %s47
    %p59 = scmp.eq.s32.totalorder %s16, 1
    %p60 = por %p58, %p59
    %p62 = scmp.ne.s32.totalorder %s47, %s61
    %p63 = scmp.eq.s32.totalorder %s16, 0
    %p64 = por %p62, %p63
    %s66 = sadd.s32 %s65, 1
    %p69 = scmp.eq.s32.totalorder %s10, 1
    %p70 = scmp.ne.s32.totalorder %s65, %s67
    %p71 = scmp.eq.s32.totalorder %s10, 0
    %p72 = por %p70, %p71
    %p73 = scmp.ne.s32.totalorder %s65, %s67
    %p74 = scmp.eq.s32.totalorder %s15, 1
    %p75 = por %p73, %p74
    %p76 = scmp.ne.s32.totalorder %s67, %s68
    %p77 = scmp.eq.s32.totalorder %s15, 0
    %p78 = por %p76, %p77
    %p79 = scmp.ne.s32.totalorder %s67, %s68
    %p80 = scmp.eq.s32.totalorder %s16, 1
    %p81 = por %p79, %p80
    %p83 = scmp.ne.s32.totalorder %s68, %s82
    %p84 = scmp.eq.s32.totalorder %s16, 0
    %p85 = por %p83, %p84
    %s87 = sadd.s32 %s86, 1
    %p90 = scmp.eq.s32.totalorder %s10, 1
    %p91 = scmp.ne.s32.totalorder %s86, %s88
    %p92 = scmp.eq.s32.totalorder %s10, 0
    %p93 = por %p91, %p92
    %p94 = scmp.ne.s32.totalorder %s86, %s88
    %p95 = scmp.eq.s32.totalorder %s15, 1
    %p96 = por %p94, %p95
    %p97 = scmp.ne.s32.totalorder %s88, %s89
    %p98 = scmp.eq.s32.totalorder %s15, 0
    %p99 = por %p97, %p98
    %p100 = scmp.ne.s32.totalorder %s88, %s89
    %p101 = scmp.eq.s32.totalorder %s16, 1
    %p102 = por %p100, %p101
    %p104 = scmp.ne.s32.totalorder %s89, %s103
    %p105 = scmp.eq.s32.totalorder %s16, 0
    %p106 = por %p104, %p105
    %s107 = ssub.s32 %s10, %s17
    %p108 = scmp.eq.s32.totalorder %s107, 0
    %s110 = sadd.s32 %s109, 1
    %s111 = scalar_select %p108, %s109, %s110
    %p114 = pneg %p108
    %p115 = scmp.eq.s32.totalorder %s10, 1
    %p116 = por %p114, %p115
    %p117 = scmp.ne.s32.totalorder %s109, %s112
    %p118 = scmp.eq.s32.totalorder %s10, 0
    %p119 = por %p117, %p118
    %p120 = scmp.ne.s32.totalorder %s109, %s112
    %p121 = scmp.eq.s32.totalorder %s15, 1
    %p122 = por %p120, %p121
    %p123 = scmp.ne.s32.totalorder %s112, %s113
    %p124 = scmp.eq.s32.totalorder %s15, 0
    %p125 = por %p123, %p124
    %p126 = scmp.ne.s32.totalorder %s112, %s113
    %p127 = scmp.eq.s32.totalorder %s16, 1
    %p128 = por %p126, %p127
    %p130 = scmp.ne.s32.totalorder %s113, %s129
    %p131 = scmp.eq.s32.totalorder %s16, 0
    %p132 = por %p130, %p131
    %p133 = scmp.le.s32.totalorder 1, %s10
    %p134 = scmp.lt.s32.totalorder %s10, 3
    %p135 = pnand %p133, %p134
    %p136 = pneg %p135
    // Predicated region
    $region9: #{conv_module_forward.3} parent=5 // pred_check
      _
    $region10: #{conv_module_forward.3} parent=5 // pred_check_branch
      %138 = sbr.rel (%p135) target = $region12
    $region11: #{conv_module_forward.3} parent=5 // pred_region
      %s139 = ssub.s32 %s10, 1
      // Predicated region
      $region13: #{conv_module_forward.3} parent=11 // pred_check
        %p140 = pneg %p57
      $region14: #{conv_module_forward.3} parent=11 // pred_check_branch
        %142 = sbr.rel (%p140) target = $region16
      $region15: #{conv_module_forward.3} parent=11 // pred_region
        _
      $region16: #{conv_module_forward.3} parent=11 // pred_fallthru
        _
      // Predicated region
      $region17: #{conv_module_forward.3} parent=11 // pred_check
        %p143 = pneg %p78
      $region18: #{conv_module_forward.3} parent=11 // pred_check_branch
        %145 = sbr.rel (%p143) target = $region20
      $region19: #{conv_module_forward.3} parent=11 // pred_region
        _
      $region20: #{conv_module_forward.3} parent=11 // pred_fallthru
        _
      // Predicated region
      $region21: #{conv_module_forward.3} parent=11 // pred_check
        %p146 = pneg %p99
      $region22: #{conv_module_forward.3} parent=11 // pred_check_branch
        %148 = sbr.rel (%p146) target = $region24
      $region23: #{conv_module_forward.3} parent=11 // pred_region
        _
      $region24: #{conv_module_forward.3} parent=11 // pred_fallthru
        _
    $region12: #{conv_module_forward.3} parent=5 // pred_fallthru
      _
    %p149 = scmp.lt.s32.totalorder %s10, 2
    // Predicated region
    $region25: #{conv_module_forward.3} parent=5 // pred_check
      %p150 = pneg %p149
    $region26: #{conv_module_forward.3} parent=5 // pred_check_branch
      %152 = sbr.rel (%p150) target = $region28
    $region27: #{conv_module_forward.3} parent=5 // pred_region
      // Predicated region
      $region29: #{conv_module_forward.3} parent=27 // pred_check
        %p153 = pneg %p30
      $region30: #{conv_module_forward.3} parent=27 // pred_check_branch
        %155 = sbr.rel (%p153) target = $region32
      $region31: #{conv_module_forward.3} parent=27 // pred_region
        %s156 = smul.u32 41, %s10
        %p157 = scmp.lt.s32.totalorder %s156, 81
        %s158 = scalar_select %p157, %s156, 81
        %s159 = smul.addr %s158, 4
        %s160 = scalar_lea.vmem %s0, %s159
        %s161 = smul.u32 41, %s10
      $region32: #{conv_module_forward.3} parent=27 // pred_fallthru
        _
    $region28: #{conv_module_forward.3} parent=5 // pred_fallthru
      _
    %p162 = scmp.le.s32.totalorder 1, %s10
    %p163 = scmp.lt.s32.totalorder %s10, 3
    %p164 = pnand %p162, %p163
    %p165 = pneg %p164
    // Predicated region
    $region33: #{conv_module_forward.3} parent=5 // pred_check
      _
    $region34: #{conv_module_forward.3} parent=5 // pred_check_branch
      %167 = sbr.rel (%p164) target = $region36
    $region35: #{conv_module_forward.3} parent=5 // pred_region
      %s168 = ssub.s32 %s10, 1
      %s169 = smul.u32 41, %s15
      %p170 = scmp.lt.s32.totalorder %s169, 81
      %s171 = scalar_select %p170, %s169, 81
      %s172 = smul.addr %s171, 4
      %s173 = scalar_lea.vmem %s0, %s172
      %p174 = pneg %p36
      %p175 = pneg %p33
      %p176 = pneg %p57
      %p177 = pneg %p54
      %p178 = pneg %p78
      %p179 = pneg %p75
      %p180 = pneg %p99
      %p181 = pneg %p96
      %p182 = pneg %p125
      %p183 = pneg %p122
      %s184 = smul.u32 41, %s15
      %p185 = scmp.lt.s32.totalorder %s184, 81
      %s186 = scalar_select %p185, %s184, 81
      %s187 = smul.addr %s186, 4
      %s188 = scalar_lea.vmem %s4, %s187
      %s189 = smul.u32 41, %s15
      %p190 = scmp.lt.s32.totalorder %s189, 81
      %s191 = scalar_select %p190, %s189, 81
      %s192 = smul.addr %s191, 4
      %s193 = scalar_lea.vmem %s0, %s192
      %s194 = smul.u32 41, %s15
      %s195 = smul.u32 41, %s15
      %p196 = scmp.lt.s32.totalorder %s195, 81
      %s197 = scalar_select %p196, %s195, 81
      %s198 = smul.addr %s197, 4
      %s199 = scalar_lea.vmem %s4, %s198
      %s200 = smul.u32 41, %s15
      %v202 = vld [vmem:[%s193] sm:$0xf]
      %v203 = vld [vmem:[%s193 + $0x4] sm:$0xf]
      %v204 = vld [vmem:[%s193 + $0x8] sm:$0xf]
      %v205 = vld [vmem:[%s193 + $0xc] sm:$0xf]
      %v206 = vld [vmem:[%s193 + $0x10] sm:$0xf]
      %v207 = vld [vmem:[%s193 + $0x14] sm:$0xf]
      %v208 = vld [vmem:[%s193 + $0x18] sm:$0xf]
      %v209 = vld [vmem:[%s193 + $0x1c] sm:$0xf]
      %v210 = vld [vmem:[%s193 + $0x20] sm:$0xf]
      %v211 = vld [vmem:[%s193 + $0x24] sm:$0xf]
      %v212 = vld [vmem:[%s193 + $0x28] sm:$0xf]
      %v213 = vld [vmem:[%s193 + $0x2c] sm:$0xf]
      %v214 = vld [vmem:[%s193 + $0x30] sm:$0xf]
      %v215 = vld [vmem:[%s193 + $0x34] sm:$0xf]
      %v216 = vld [vmem:[%s193 + $0x38] sm:$0xf]
      %v217 = vld [vmem:[%s193 + $0x3c] sm:$0xf]
      %v218 = vld [vmem:[%s193 + $0x40] sm:$0xf]
      %v219 = vld [vmem:[%s193 + $0x44] sm:$0xf]
      %v220 = vld [vmem:[%s193 + $0x48] sm:$0xf]
      %v221 = vld [vmem:[%s193 + $0x4c] sm:$0xf]
      %v222 = vld [vmem:[%s193 + $0x50] sm:$0xf]
      %v223 = vld [vmem:[%s193 + $0x54] sm:$0xf]
      %v224 = vld [vmem:[%s193 + $0x58] sm:$0xf]
      %v225 = vld [vmem:[%s193 + $0x5c] sm:$0xf]
      %v226 = vld [vmem:[%s193 + $0x60] sm:$0xf]
      %v227 = vld [vmem:[%s193 + $0x64] sm:$0xf]
      %v228 = vld [vmem:[%s193 + $0x68] sm:$0xf]
      %v229 = vld [vmem:[%s193 + $0x6c] sm:$0xf]
      %v230 = vld [vmem:[%s193 + $0x70] sm:$0xf]
      %v231 = vld [vmem:[%s193 + $0x74] sm:$0xf]
      %v232 = vld [vmem:[%s193 + $0x78] sm:$0xf]
      %v233 = vld [vmem:[%s193 + $0x7c] sm:$0xf]
      %v234 = vld [vmem:[%s193 + $0x80] sm:$0xf]
      %v235 = vld [vmem:[%s193 + $0x84] sm:$0xf]
      %v236 = vld [vmem:[%s193 + $0x88] sm:$0xf]
      %v237 = vld [vmem:[%s193 + $0x8c] sm:$0xf]
      %v238 = vld [vmem:[%s193 + $0x90] sm:$0xf]
      %v239 = vld [vmem:[%s193 + $0x94] sm:$0xf]
      %v240 = vld [vmem:[%s193 + $0x98] sm:$0xf]
      %v241 = vld [vmem:[%s193 + $0x9c] sm:$0xf]
      %v242 = vld [vmem:[%s193 + $0xa0] sm:$0xf]
      %v243 = vld [vmem:[%s1] sm:$0x3]
      %v244 = vld [vmem:[%s1 + $0x2] sm:$0x3]
      %v245 = vld [vmem:[%s1 + $0x4] sm:$0x3]
      %v246 = vld [vmem:[%s1 + $0x6] sm:$0x3]
      %v247 = vld [vmem:[%s1 + $0x8] sm:$0x3]
      %v248 = vld [vmem:[%s1 + $0xa] sm:$0x3]
      %v249 = vld [vmem:[%s1 + $0xc] sm:$0x3]
      %v250 = vld [vmem:[%s1 + $0xe] sm:$0x3]
      %v251 = vld [vmem:[%s1 + $0x10] sm:$0x3]
      %v255 = vunpack.c.l.b16 %v240
      %v256 = vunpack.c.l.b16 %v241
      %v257 = vunpack.c.l.b16 %v242
      %v258 = vpack.c.b16 %v256, %v255
      %v259 = vpack.c.b16 %v257, %v257
      %vm260 = vsmask.f32 5376
      %v262 = vshrl.u32 %v258, 16
      %v264 = vrot.slane %v262, 2
      %v265 = vshll.u32 %v258, 16
      %v267 = vrot.slane %v265, 3
      %v268 = vor.u32 %v264, %v267
      %v270 = vshrl.u32 %v259, 16
      %v272 = vrot.slane %v270, 2
      %v273 = vshll.u32 %v259, 16
      %v275 = vrot.slane %v273, 3
      %v276 = vor.u32 %v272, %v275
      %v277 = vsel %vm260, %v268, %v276
      %v317 = vunpack.c.l.b16 %v202
      %v318 = vunpack.c.l.b16 %v203
      %v319 = vunpack.c.l.b16 %v204
      %v320 = vunpack.c.l.b16 %v205
      %v321 = vunpack.c.l.b16 %v206
      %v322 = vunpack.c.l.b16 %v207
      %v323 = vunpack.c.l.b16 %v208
      %v324 = vunpack.c.l.b16 %v209
      %v325 = vunpack.c.l.b16 %v210
      %v326 = vunpack.c.l.b16 %v211
      %v327 = vunpack.c.l.b16 %v212
      %v328 = vunpack.c.l.b16 %v213
      %v329 = vunpack.c.l.b16 %v214
      %v330 = vunpack.c.l.b16 %v215
      %v331 = vunpack.c.l.b16 %v216
      %v332 = vunpack.c.l.b16 %v217
      %v333 = vunpack.c.l.b16 %v218
      %v334 = vunpack.c.l.b16 %v219
      %v335 = vunpack.c.l.b16 %v220
      %v336 = vunpack.c.l.b16 %v221
      %v337 = vunpack.c.l.b16 %v222
      %v338 = vunpack.c.l.b16 %v223
      %v339 = vunpack.c.l.b16 %v224
      %v340 = vunpack.c.l.b16 %v225
      %v341 = vunpack.c.l.b16 %v226
      %v342 = vunpack.c.l.b16 %v227
      %v343 = vunpack.c.l.b16 %v228
      %v344 = vunpack.c.l.b16 %v229
      %v345 = vunpack.c.l.b16 %v230
      %v346 = vunpack.c.l.b16 %v231
      %v347 = vunpack.c.l.b16 %v232
      %v348 = vunpack.c.l.b16 %v233
      %v349 = vunpack.c.l.b16 %v234
      %v350 = vunpack.c.l.b16 %v235
      %v351 = vunpack.c.l.b16 %v236
      %v352 = vunpack.c.l.b16 %v237
      %v353 = vunpack.c.l.b16 %v238
      %v354 = vunpack.c.l.b16 %v239
      %v355 = vpack.c.b16 %v318, %v317
      %v356 = vpack.c.b16 %v320, %v319
      %v357 = vpack.c.b16 %v322, %v321
      %v358 = vpack.c.b16 %v324, %v323
      %v359 = vpack.c.b16 %v326, %v325
      %v360 = vpack.c.b16 %v328, %v327
      %v361 = vpack.c.b16 %v330, %v329
      %v362 = vpack.c.b16 %v332, %v331
      %v363 = vpack.c.b16 %v334, %v333
      %v364 = vpack.c.b16 %v336, %v335
      %v365 = vpack.c.b16 %v338, %v337
      %v366 = vpack.c.b16 %v340, %v339
      %v367 = vpack.c.b16 %v342, %v341
      %v368 = vpack.c.b16 %v344, %v343
      %v369 = vpack.c.b16 %v346, %v345
      %v370 = vpack.c.b16 %v348, %v347
      %v371 = vpack.c.b16 %v350, %v349
      %v372 = vpack.c.b16 %v352, %v351
      %v373 = vpack.c.b16 %v354, %v353
      %v374 = vpack.c.b16 %v255, %v255
      %vm375 = vsmask.f32 1280
      %v377 = vshrl.u32 %v355, 16
      %v379 = vrot.slane %v377, 6
      %v380 = vshll.u32 %v355, 16
      %v382 = vrot.slane %v380, 7
      %v383 = vor.u32 %v379, %v382
      %v385 = vshrl.u32 %v356, 16
      %v387 = vrot.slane %v385, 6
      %v388 = vshll.u32 %v356, 16
      %v390 = vrot.slane %v388, 7
      %v391 = vor.u32 %v387, %v390
      %v392 = vsel %vm375, %v383, %v391
      %v394 = vshrl.u32 %v357, 16
      %v396 = vrot.slane %v394, 6
      %v397 = vshll.u32 %v357, 16
      %v399 = vrot.slane %v397, 7
      %v400 = vor.u32 %v396, %v399
      %v401 = vsel %vm375, %v391, %v400
      %v403 = vshrl.u32 %v358, 16
      %v405 = vrot.slane %v403, 6
      %v406 = vshll.u32 %v358, 16
      %v408 = vrot.slane %v406, 7
      %v409 = vor.u32 %v405, %v408
      %v410 = vsel %vm375, %v400, %v409
      %v412 = vshrl.u32 %v359, 16
      %v414 = vrot.slane %v412, 6
      %v415 = vshll.u32 %v359, 16
      %v417 = vrot.slane %v415, 7
      %v418 = vor.u32 %v414, %v417
      %v419 = vsel %vm375, %v409, %v418
      %v421 = vshrl.u32 %v360, 16
      %v423 = vrot.slane %v421, 6
      %v424 = vshll.u32 %v360, 16
      %v426 = vrot.slane %v424, 7
      %v427 = vor.u32 %v423, %v426
      %v428 = vsel %vm375, %v418, %v427
      %v430 = vshrl.u32 %v361, 16
      %v432 = vrot.slane %v430, 6
      %v433 = vshll.u32 %v361, 16
      %v435 = vrot.slane %v433, 7
      %v436 = vor.u32 %v432, %v435
      %v437 = vsel %vm375, %v427, %v436
      %v439 = vshrl.u32 %v362, 16
      %v441 = vrot.slane %v439, 6
      %v442 = vshll.u32 %v362, 16
      %v444 = vrot.slane %v442, 7
      %v445 = vor.u32 %v441, %v444
      %v446 = vsel %vm375, %v436, %v445
      %v448 = vshrl.u32 %v363, 16
      %v450 = vrot.slane %v448, 6
      %v451 = vshll.u32 %v363, 16
      %v453 = vrot.slane %v451, 7
      %v454 = vor.u32 %v450, %v453
      %v455 = vsel %vm375, %v445, %v454
      %v457 = vshrl.u32 %v364, 16
      %v459 = vrot.slane %v457, 6
      %v460 = vshll.u32 %v364, 16
      %v462 = vrot.slane %v460, 7
      %v463 = vor.u32 %v459, %v462
      %v464 = vsel %vm375, %v454, %v463
      %v466 = vshrl.u32 %v365, 16
      %v468 = vrot.slane %v466, 6
      %v469 = vshll.u32 %v365, 16
      %v471 = vrot.slane %v469, 7
      %v472 = vor.u32 %v468, %v471
      %v473 = vsel %vm375, %v463, %v472
      %v475 = vshrl.u32 %v366, 16
      %v477 = vrot.slane %v475, 6
      %v478 = vshll.u32 %v366, 16
      %v480 = vrot.slane %v478, 7
      %v481 = vor.u32 %v477, %v480
      %v482 = vsel %vm375, %v472, %v481
      %v484 = vshrl.u32 %v367, 16
      %v486 = vrot.slane %v484, 6
      %v487 = vshll.u32 %v367, 16
      %v489 = vrot.slane %v487, 7
      %v490 = vor.u32 %v486, %v489
      %v491 = vsel %vm375, %v481, %v490
      %v493 = vshrl.u32 %v368, 16
      %v495 = vrot.slane %v493, 6
      %v496 = vshll.u32 %v368, 16
      %v498 = vrot.slane %v496, 7
      %v499 = vor.u32 %v495, %v498
      %v500 = vsel %vm375, %v490, %v499
      %v502 = vshrl.u32 %v369, 16
      %v504 = vrot.slane %v502, 6
      %v505 = vshll.u32 %v369, 16
      %v507 = vrot.slane %v505, 7
      %v508 = vor.u32 %v504, %v507
      %v509 = vsel %vm375, %v499, %v508
      %v511 = vshrl.u32 %v370, 16
      %v513 = vrot.slane %v511, 6
      %v514 = vshll.u32 %v370, 16
      %v516 = vrot.slane %v514, 7
      %v517 = vor.u32 %v513, %v516
      %v518 = vsel %vm375, %v508, %v517
      %v520 = vshrl.u32 %v371, 16
      %v522 = vrot.slane %v520, 6
      %v523 = vshll.u32 %v371, 16
      %v525 = vrot.slane %v523, 7
      %v526 = vor.u32 %v522, %v525
      %v527 = vsel %vm375, %v517, %v526
      %v529 = vshrl.u32 %v372, 16
      %v531 = vrot.slane %v529, 6
      %v532 = vshll.u32 %v372, 16
      %v534 = vrot.slane %v532, 7
      %v535 = vor.u32 %v531, %v534
      %v536 = vsel %vm375, %v526, %v535
      %v538 = vshrl.u32 %v373, 16
      %v540 = vrot.slane %v538, 6
      %v541 = vshll.u32 %v373, 16
      %v543 = vrot.slane %v541, 7
      %v544 = vor.u32 %v540, %v543
      %v545 = vsel %vm375, %v535, %v544
      %v547 = vshrl.u32 %v374, 16
      %v549 = vrot.slane %v547, 6
      %v550 = vshll.u32 %v374, 16
      %v552 = vrot.slane %v550, 7
      %v553 = vor.u32 %v549, %v552
      %v554 = vsel %vm375, %v544, %v553
      %vm556 = vcmask 1041408
      %vm557 = vmand %vm556, %vm375
      %v558 = vsel %vm557, %v276, %v383
      %vm559 = vcmask 1044480
      %v560 = vrot.slane %v258, 3
      %v561 = vrot.slane %v259, 3
      %v562 = vsel %vm559, %v560, %v561
      %vm563 = vcmask 1040384
      %v564 = vrot.slane %v355, 7
      %v565 = vrot.slane %v356, 7
      %v566 = vsel %vm563, %v564, %v565
      %v567 = vrot.slane %v357, 7
      %v568 = vsel %vm563, %v565, %v567
      %v569 = vrot.slane %v358, 7
      %v570 = vsel %vm563, %v567, %v569
      %v571 = vrot.slane %v359, 7
      %v572 = vsel %vm563, %v569, %v571
      %v573 = vrot.slane %v360, 7
      %v574 = vsel %vm563, %v571, %v573
      %v575 = vrot.slane %v361, 7
      %v576 = vsel %vm563, %v573, %v575
      %v577 = vrot.slane %v362, 7
      %v578 = vsel %vm563, %v575, %v577
      %v579 = vrot.slane %v363, 7
      %v580 = vsel %vm563, %v577, %v579
      %v581 = vrot.slane %v364, 7
      %v582 = vsel %vm563, %v579, %v581
      %v583 = vrot.slane %v365, 7
      %v584 = vsel %vm563, %v581, %v583
      %v585 = vrot.slane %v366, 7
      %v586 = vsel %vm563, %v583, %v585
      %v587 = vrot.slane %v367, 7
      %v588 = vsel %vm563, %v585, %v587
      %v589 = vrot.slane %v368, 7
      %v590 = vsel %vm563, %v587, %v589
      %v591 = vrot.slane %v369, 7
      %v592 = vsel %vm563, %v589, %v591
      %v593 = vrot.slane %v370, 7
      %v594 = vsel %vm563, %v591, %v593
      %v595 = vrot.slane %v371, 7
      %v596 = vsel %vm563, %v593, %v595
      %v597 = vrot.slane %v372, 7
      %v598 = vsel %vm563, %v595, %v597
      %v599 = vrot.slane %v373, 7
      %v600 = vsel %vm563, %v597, %v599
      %v601 = vrot.slane %v374, 7
      %v602 = vsel %vm563, %v599, %v601
      %vm603 = vcmask 1040384
      %v606 = vsel %vm603, %v561, %v564
      %vm607 = vcmask 31744
      %v609 = vsel %vm607, %v562, 0
      %v611 = vsel %vm607, %v606, 0
      %v614 = vsel %vm607, %v566, 0
      %v617 = vsel %vm607, %v568, 0
      %v620 = vsel %vm607, %v570, 0
      %v623 = vsel %vm607, %v572, 0
      %v626 = vsel %vm607, %v574, 0
      %v629 = vsel %vm607, %v576, 0
      %v632 = vsel %vm607, %v578, 0
      %v635 = vsel %vm607, %v580, 0
      %v638 = vsel %vm607, %v582, 0
      %v641 = vsel %vm607, %v584, 0
      %v644 = vsel %vm607, %v586, 0
      %v647 = vsel %vm607, %v588, 0
      %v650 = vsel %vm607, %v590, 0
      %v653 = vsel %vm607, %v592, 0
      %v656 = vsel %vm607, %v594, 0
      %v659 = vsel %vm607, %v596, 0
      %v662 = vsel %vm607, %v598, 0
      %v665 = vsel %vm607, %v600, 0
      %v668 = vsel %vm607, %v602, 0
      %vm670 = vcmask 1041408
      %v672 = vsel %vm670, %v244, 0
      %674 = vmatprep.subr.bf16.mxu0 0
      %675 = vmatpush1.bf16.msra.mxu0 %v672
      %676 = vmatprep.subr.bf16.mxu0 0
      %677 = vmatpush1.bf16.msra.mxu0 0
      %678 = vmatprep.subr.bf16.mxu0 0
      %679 = vmatpush1.bf16.msra.mxu0 0
      %680 = vmatprep.subr.bf16.mxu0 0
      %681 = vmatpush1.bf16.msra.mxu0 0
      %682 = vmatprep.subr.bf16.mxu0 0
      %683 = vmatpush1.bf16.msra.mxu0 0
      %684 = vmatprep.subr.bf16.mxu0 0
      %685 = vmatpush1.bf16.msra.mxu0 0
      %686 = vmatprep.subr.bf16.mxu0 0
      %687 = vmatpush1.bf16.msra.mxu0 0
      %688 = vmatprep.subr.bf16.mxu0 0
      %689 = vmatpush1.bf16.msra.mxu0 0
      %690 = vmatprep.subr.bf16.mxu0 0
      %691 = vmatpush1.bf16.msra.mxu0 0
      %692 = vmatprep.subr.bf16.mxu0 0
      %693 = vmatpush1.bf16.msra.mxu0 0
      %694 = vmatprep.subr.bf16.mxu0 0
      %695 = vmatpush1.bf16.msra.mxu0 0
      %696 = vmatprep.subr.bf16.mxu0 0
      %697 = vmatpush1.bf16.msra.mxu0 0
      %698 = vmatprep.subr.bf16.mxu0 0
      %699 = vmatpush1.bf16.msra.mxu0 0
      %700 = vmatprep.subr.bf16.mxu0 0
      %701 = vmatpush1.bf16.msra.mxu0 0
      %702 = vmatprep.subr.bf16.mxu0 0
      %703 = vmatpush1.bf16.msra.mxu0 0
      %704 = vmatprep.subr.bf16.mxu0 0
      %705 = vmatpush1.bf16.msra.mxu0 0
      %706 = vmatprep.mubr.bf16.mxu0 0
      %707 = vmatmul.mubr.bf16.gmra.mrb[0].mxu0 %v609
      %v708 = vpop.f32.mrb[0].mxu0
      %v709 = vadd.f32 0.0, %v708
      %v710 = vpop.f32.mrb[0].mxu0
      %v711 = vpop.f32.mrb[0].mxu0
      %v712 = vadd.f32 0.0, %v711
      %v713 = vpop.f32.mrb[0].mxu0
      %714 = vmatprep.mubr.bf16.mxu0 0
      %715 = vmatmul.mubr.bf16.gmra.mrb[0].mxu0 %v611
      %v716 = vpop.f32.mrb[0].mxu0
      %v717 = vadd.f32 0.0, %v716
      %v718 = vpop.f32.mrb[0].mxu0
      %v719 = vpop.f32.mrb[0].mxu0
      %v720 = vadd.f32 0.0, %v719
      %v721 = vpop.f32.mrb[0].mxu0
      %722 = vmatprep.mubr.bf16.mxu0 0
      %723 = vmatmul.mubr.bf16.gmra.mrb[0].mxu0 %v614
      %v724 = vpop.f32.mrb[0].mxu0
      %v725 = vadd.f32 0.0, %v724
      %v726 = vpop.f32.mrb[0].mxu0
      %v727 = vpop.f32.mrb[0].mxu0
      %v728 = vadd.f32 0.0, %v727
      %v729 = vpop.f32.mrb[0].mxu0
      %730 = vmatprep.mubr.bf16.mxu0 0
      %731 = vmatmul.mubr.bf16.gmra.mrb[0].mxu0 %v617
      %v732 = vpop.f32.mrb[0].mxu0
      %v733 = vadd.f32 0.0, %v732
      %v734 = vpop.f32.mrb[0].mxu0
      %v735 = vpop.f32.mrb[0].mxu0
      %v736 = vadd.f32 0.0, %v735
      %v737 = vpop.f32.mrb[0].mxu0
      %738 = vmatprep.mubr.bf16.mxu0 0
      %739 = vmatmul.mubr.bf16.gmra.mrb[0].mxu0 %v620
      %v740 = vpop.f32.mrb[0].mxu0
      %v741 = vadd.f32 0.0, %v740
      %v742 = vpop.f32.mrb[0].mxu0
      %v743 = vpop.f32.mrb[0].mxu0
      %v744 = vadd.f32 0.0, %v743
      %v745 = vpop.f32.mrb[0].mxu0
      %746 = vmatprep.mubr.bf16.mxu0 0
      %747 = vmatmul.mubr.bf16.gmra.mrb[0].mxu0 %v623
      %v748 = vpop.f32.mrb[0].mxu0
      %v749 = vadd.f32 0.0, %v748
      %v750 = vpop.f32.mrb[0].mxu0
      %v751 = vpop.f32.mrb[0].mxu0
      %v752 = vadd.f32 0.0, %v751
      %v753 = vpop.f32.mrb[0].mxu0
      %754 = vmatprep.mubr.bf16.mxu0 0
      %755 = vmatmul.mubr.bf16.gmra.mrb[0].mxu0 %v626
      %v756 = vpop.f32.mrb[0].mxu0
      %v757 = vadd.f32 0.0, %v756
      %v758 = vpop.f32.mrb[0].mxu0
      %v759 = vpop.f32.mrb[0].mxu0
      %v760 = vadd.f32 0.0, %v759
      %v761 = vpop.f32.mrb[0].mxu0
      %762 = vmatprep.mubr.bf16.mxu0 0
      %763 = vmatmul.mubr.bf16.gmra.mrb[0].mxu0 %v629
      %v764 = vpop.f32.mrb[0].mxu0
      %v765 = vadd.f32 0.0, %v764
      %v766 = vpop.f32.mrb[0].mxu0
      %v767 = vpop.f32.mrb[0].mxu0
      %v768 = vadd.f32 0.0, %v767
      %v769 = vpop.f32.mrb[0].mxu0
      %770 = vmatprep.mubr.bf16.mxu0 0
      %771 = vmatmul.mubr.bf16.gmra.mrb[0].mxu0 %v632
      %v772 = vpop.f32.mrb[0].mxu0
      %v773 = vadd.f32 0.0, %v772
      %v774 = vpop.f32.mrb[0].mxu0
      %v775 = vpop.f32.mrb[0].mxu0
      %v776 = vadd.f32 0.0, %v775
      %v777 = vpop.f32.mrb[0].mxu0
      %778 = vmatprep.mubr.bf16.mxu0 0
      %779 = vmatmul.mubr.bf16.gmra.mrb[0].mxu0 %v635
      %v780 = vpop.f32.mrb[0].mxu0
      %v781 = vadd.f32 0.0, %v780
      %v782 = vpop.f32.mrb[0].mxu0
      %v783 = vpop.f32.mrb[0].mxu0
      %v784 = vadd.f32 0.0, %v783
      %v785 = vpop.f32.mrb[0].mxu0
      %786 = vmatprep.mubr.bf16.mxu0 0
      %787 = vmatmul.mubr.bf16.gmra.mrb[0].mxu0 %v638
      %v788 = vpop.f32.mrb[0].mxu0
      %v789 = vadd.f32 0.0, %v788
      %v790 = vpop.f32.mrb[0].mxu0
      %v791 = vpop.f32.mrb[0].mxu0
      %v792 = vadd.f32 0.0, %v791
      %v793 = vpop.f32.mrb[0].mxu0
      %794 = vmatprep.mubr.bf16.mxu0 0
      %795 = vmatmul.mubr.bf16.gmra.mrb[0].mxu0 %v641
      %v796 = vpop.f32.mrb[0].mxu0
      %v797 = vadd.f32 0.0, %v796
      %v798 = vpop.f32.mrb[0].mxu0
      %v799 = vpop.f32.mrb[0].mxu0
      %v800 = vadd.f32 0.0, %v799
      %v801 = vpop.f32.mrb[0].mxu0
      %802 = vmatprep.mubr.bf16.mxu0 0
      %803 = vmatmul.mubr.bf16.gmra.mrb[0].mxu0 %v644
      %v804 = vpop.f32.mrb[0].mxu0
      %v805 = vadd.f32 0.0, %v804
      %v806 = vpop.f32.mrb[0].mxu0
      %v807 = vpop.f32.mrb[0].mxu0
      %v808 = vadd.f32 0.0, %v807
      %v809 = vpop.f32.mrb[0].mxu0
      %810 = vmatprep.mubr.bf16.mxu0 0
      %811 = vmatmul.mubr.bf16.gmra.mrb[0].mxu0 %v647
      %v812 = vpop.f32.mrb[0].mxu0
      %v813 = vadd.f32 0.0, %v812
      %v814 = vpop.f32.mrb[0].mxu0
      %v815 = vpop.f32.mrb[0].mxu0
      %v816 = vadd.f32 0.0, %v815
      %v817 = vpop.f32.mrb[0].mxu0
      %818 = vmatprep.mubr.bf16.mxu0 0
      %819 = vmatmul.mubr.bf16.gmra.mrb[0].mxu0 %v650
      %v820 = vpop.f32.mrb[0].mxu0
      %v821 = vadd.f32 0.0, %v820
      %v822 = vpop.f32.mrb[0].mxu0
      %v823 = vpop.f32.mrb[0].mxu0
      %v824 = vadd.f32 0.0, %v823
      %v825 = vpop.f32.mrb[0].mxu0
      %826 = vmatprep.mubr.bf16.mxu0 0
      %827 = vmatmul.mubr.bf16.gmra.mrb[0].mxu0 %v653
      %v828 = vpop.f32.mrb[0].mxu0
      %v829 = vadd.f32 0.0, %v828
      %v830 = vpop.f32.mrb[0].mxu0
      %v831 = vpop.f32.mrb[0].mxu0
      %v832 = vadd.f32 0.0, %v831
      %v833 = vpop.f32.mrb[0].mxu0
      %834 = vmatprep.mubr.bf16.mxu0 0
      %835 = vmatmul.mubr.bf16.gmra.mrb[0].mxu0 %v656
      %v836 = vpop.f32.mrb[0].mxu0
      %v837 = vadd.f32 0.0, %v836
      %v838 = vpop.f32.mrb[0].mxu0
      %v839 = vpop.f32.mrb[0].mxu0
      %v840 = vadd.f32 0.0, %v839
      %v841 = vpop.f32.mrb[0].mxu0
      %842 = vmatprep.mubr.bf16.mxu0 0
      %843 = vmatmul.mubr.bf16.gmra.mrb[0].mxu0 %v659
      %v844 = vpop.f32.mrb[0].mxu0
      %v845 = vadd.f32 0.0, %v844
      %v846 = vpop.f32.mrb[0].mxu0
      %v847 = vpop.f32.mrb[0].mxu0
      %v848 = vadd.f32 0.0, %v847
      %v849 = vpop.f32.mrb[0].mxu0
      %850 = vmatprep.mubr.bf16.mxu0 0
      %851 = vmatmul.mubr.bf16.gmra.mrb[0].mxu0 %v662
      %v852 = vpop.f32.mrb[0].mxu0
      %v853 = vadd.f32 0.0, %v852
      %v854 = vpop.f32.mrb[0].mxu0
      %v855 = vpop.f32.mrb[0].mxu0
      %v856 = vadd.f32 0.0, %v855
      %v857 = vpop.f32.mrb[0].mxu0
      %858 = vmatprep.mubr.bf16.mxu0 0
      %859 = vmatmul.mubr.bf16.gmra.mrb[0].mxu0 %v665
      %v860 = vpop.f32.mrb[0].mxu0
      %v861 = vadd.f32 0.0, %v860
      %v862 = vpop.f32.mrb[0].mxu0
      %v863 = vpop.f32.mrb[0].mxu0
      %v864 = vadd.f32 0.0, %v863
      %v865 = vpop.f32.mrb[0].mxu0
      %866 = vmatprep.mubr.bf16.mxu0 0
      %867 = vmatmul.mubr.bf16.gmra.mrb[0].mxu0 %v668
      %v868 = vpop.f32.mrb[0].mxu0
      %v869 = vadd.f32 0.0, %v868
      %v870 = vpop.f32.mrb[0].mxu0
      %v871 = vpop.f32.mrb[0].mxu0
      %v872 = vpop.f32.mrb[0].mxu0
      %873 = vdwg.mxu0
      %v875 = vsel %vm607, %v277, 0
      %v878 = vsel %vm607, %v558, 0
      %v881 = vsel %vm607, %v392, 0
      %v884 = vsel %vm607, %v401, 0
      %v887 = vsel %vm607, %v410, 0
      %v890 = vsel %vm607, %v419, 0
      %v893 = vsel %vm607, %v428, 0
      %v896 = vsel %vm607, %v437, 0
      %v899 = vsel %vm607, %v446, 0
      %v902 = vsel %vm607, %v455, 0
      %v905 = vsel %vm607, %v464, 0
      %v908 = vsel %vm607, %v473, 0
      %v911 = vsel %vm607, %v482, 0
      %v914 = vsel %vm607, %v491, 0
      %v917 = vsel %vm607, %v500, 0
      %v920 = vsel %vm607, %v509, 0
      %v923 = vsel %vm607, %v518, 0
      %v926 = vsel %vm607, %v527, 0
      %v929 = vsel %vm607, %v536, 0
      %v932 = vsel %vm607, %v545, 0
      %v935 = vsel %vm607, %v554, 0
      %v938 = vsel %vm670, %v243, 0
      %940 = vmatprep.subr.bf16.mxu0 0
      %941 = vmatpush1.bf16.msra.mxu0 %v938
      %942 = vmatprep.subr.bf16.mxu0 0
      %943 = vmatpush1.bf16.msra.mxu0 0
      %944 = vmatprep.subr.bf16.mxu0 0
      %945 = vmatpush1.bf16.msra.mxu0 0
      %946 = vmatprep.subr.bf16.mxu0 0
      %947 = vmatpush1.bf16.msra.mxu0 0
      %948 = vmatprep.subr.bf16.mxu0 0
      %949 = vmatpush1.bf16.msra.mxu0 0
      %950 = vmatprep.subr.bf16.mxu0 0
      %951 = vmatpush1.bf16.msra.mxu0 0
      %952 = vmatprep.subr.bf16.mxu0 0
      %953 = vmatpush1.bf16.msra.mxu0 0
      %954 = vmatprep.subr.bf16.mxu0 0
      %955 = vmatpush1.bf16.msra.mxu0 0
      %956 = vmatprep.subr.bf16.mxu0 0
      %957 = vmatpush1.bf16.msra.mxu0 0
      %958 = vmatprep.subr.bf16.mxu0 0
      %959 = vmatpush1.bf16.msra.mxu0 0
      %960 = vmatprep.subr.bf16.mxu0 0
      %961 = vmatpush1.bf16.msra.mxu0 0
      %962 = vmatprep.subr.bf16.mxu0 0
      %963 = vmatpush1.bf16.msra.mxu0 0
      %964 = vmatprep.subr.bf16.mxu0 0
      %965 = vmatpush1.bf16.msra.mxu0 0
      %966 = vmatprep.subr.bf16.mxu0 0
      %967 = vmatpush1.bf16.msra.mxu0 0
      %968 = vmatprep.subr.bf16.mxu0 0
      %969 = vmatpush1.bf16.msra.mxu0 0
      %970 = vmatprep.subr.bf16.mxu0 0
      %971 = vmatpush1.bf16.msra.mxu0 0
      %972 = vmatprep.mubr.bf16.mxu0 0
      %973 = vmatmul.mubr.bf16.gmra.mrb[0].mxu0 %v875
      %v974 = vpop.f32.mrb[0].mxu0
      %v975 = vadd.f32 %v709, %v974
      %v976 = vpop.f32.mrb[0].mxu0
      %v977 = vpop.f32.mrb[0].mxu0
      %v978 = vadd.f32 %v712, %v977
      %v979 = vpop.f32.mrb[0].mxu0
      %980 = vmatprep.mubr.bf16.mxu0 0
      %981 = vmatmul.mubr.bf16.gmra.mrb[0].mxu0 %v878
      %v982 = vpop.f32.mrb[0].mxu0
      %v983 = vadd.f32 %v717, %v982
      %v984 = vpop.f32.mrb[0].mxu0
      %v985 = vpop.f32.mrb[0].mxu0
      %v986 = vadd.f32 %v720, %v985
      %v987 = vpop.f32.mrb[0].mxu0
      %988 = vmatprep.mubr.bf16.mxu0 0
      %989 = vmatmul.mubr.bf16.gmra.mrb[0].mxu0 %v881
      %v990 = vpop.f32.mrb[0].mxu0
      %v991 = vadd.f32 %v725, %v990
      %v992 = vpop.f32.mrb[0].mxu0
      %v993 = vpop.f32.mrb[0].mxu0
      %v994 = vadd.f32 %v728, %v993
      %v995 = vpop.f32.mrb[0].mxu0
      %996 = vmatprep.mubr.bf16.mxu0 0
      %997 = vmatmul.mubr.bf16.gmra.mrb[0].mxu0 %v884
      %v998 = vpop.f32.mrb[0].mxu0
      %v999 = vadd.f32 %v733, %v998
      %v1000 = vpop.f32.mrb[0].mxu0
      %v1001 = vpop.f32.mrb[0].mxu0
      %v1002 = vadd.f32 %v736, %v1001
      %v1003 = vpop.f32.mrb[0].mxu0
      %1004 = vmatprep.mubr.bf16.mxu0 0
      %1005 = vmatmul.mubr.bf16.gmra.mrb[0].mxu0 %v887
      %v1006 = vpop.f32.mrb[0].mxu0
      %v1007 = vadd.f32 %v741, %v1006
      %v1008 = vpop.f32.mrb[0].mxu0
      %v1009 = vpop.f32.mrb[0].mxu0
      %v1010 = vadd.f32 %v744, %v1009
      %v1011 = vpop.f32.mrb[0].mxu0
      %1012 = vmatprep.mubr.bf16.mxu0 0
      %1013 = vmatmul.mubr.bf16.gmra.mrb[0].mxu0 %v890
      %v1014 = vpop.f32.mrb[0].mxu0
      %v1015 = vadd.f32 %v749, %v1014
      %v1016 = vpop.f32.mrb[0].mxu0
      %v1017 = vpop.f32.mrb[0].mxu0
      %v1018 = vadd.f32 %v752, %v1017
      %v1019 = vpop.f32.mrb[0].mxu0
      %1020 = vmatprep.mubr.bf16.mxu0 0
      %1021 = vmatmul.mubr.bf16.gmra.mrb[0].mxu0 %v893
      %v1022 = vpop.f32.mrb[0].mxu0
      %v1023 = vadd.f32 %v757, %v1022
      %v1024 = vpop.f32.mrb[0].mxu0
      %v1025 = vpop.f32.mrb[0].mxu0
      %v1026 = vadd.f32 %v760, %v1025
      %v1027 = vpop.f32.mrb[0].mxu0
      %1028 = vmatprep.mubr.bf16.mxu0 0
      %1029 = vmatmul.mubr.bf16.gmra.mrb[0].mxu0 %v896
      %v1030 = vpop.f32.mrb[0].mxu0
      %v1031 = vadd.f32 %v765, %v1030
      %v1032 = vpop.f32.mrb[0].mxu0
      %v1033 = vpop.f32.mrb[0].mxu0
      %v1034 = vadd.f32 %v768, %v1033
      %v1035 = vpop.f32.mrb[0].mxu0
      %1036 = vmatprep.mubr.bf16.mxu0 0
      %1037 = vmatmul.mubr.bf16.gmra.mrb[0].mxu0 %v899
      %v1038 = vpop.f32.mrb[0].mxu0
      %v1039 = vadd.f32 %v773, %v1038
      %v1040 = vpop.f32.mrb[0].mxu0
      %v1041 = vpop.f32.mrb[0].mxu0
      %v1042 = vadd.f32 %v776, %v1041
      %v1043 = vpop.f32.mrb[0].mxu0
      %1044 = vmatprep.mubr.bf16.mxu0 0
      %1045 = vmatmul.mubr.bf16.gmra.mrb[0].mxu0 %v902
      %v1046 = vpop.f32.mrb[0].mxu0
      %v1047 = vadd.f32 %v781, %v1046
      %v1048 = vpop.f32.mrb[0].mxu0
      %v1049 = vpop.f32.mrb[0].mxu0
      %v1050 = vadd.f32 %v784, %v1049
      %v1051 = vpop.f32.mrb[0].mxu0
      %1052 = vmatprep.mubr.bf16.mxu0 0
      %1053 = vmatmul.mubr.bf16.gmra.mrb[0].mxu0 %v905
      %v1054 = vpop.f32.mrb[0].mxu0
      %v1055 = vadd.f32 %v789, %v1054
      %v1056 = vpop.f32.mrb[0].mxu0
      %v1057 = vpop.f32.mrb[0].mxu0
      %v1058 = vadd.f32 %v792, %v1057
      %v1059 = vpop.f32.mrb[0].mxu0
      %1060 = vmatprep.mubr.bf16.mxu0 0
      %1061 = vmatmul.mubr.bf16.gmra.mrb[0].mxu0 %v908
      %v1062 = vpop.f32.mrb[0].mxu0
      %v1063 = vadd.f32 %v797, %v1062
      %v1064 = vpop.f32.mrb[0].mxu0
      %v1065 = vpop.f32.mrb[0].mxu0
      %v1066 = vadd.f32 %v800, %v1065
      %v1067 = vpop.f32.mrb[0].mxu0
      %1068 = vmatprep.mubr.bf16.mxu0 0
      %1069 = vmatmul.mubr.bf16.gmra.mrb[0].mxu0 %v911
      %v1070 = vpop.f32.mrb[0].mxu0
      %v1071 = vadd.f32 %v805, %v1070
      %v1072 = vpop.f32.mrb[0].mxu0
      %v1073 = vpop.f32.mrb[0].mxu0
      %v1074 = vadd.f32 %v808, %v1073
      %v1075 = vpop.f32.mrb[0].mxu0
      %1076 = vmatprep.mubr.bf16.mxu0 0
      %1077 = vmatmul.mubr.bf16.gmra.mrb[0].mxu0 %v914
      %v1078 = vpop.f32.mrb[0].mxu0
      %v1079 = vadd.f32 %v813, %v1078
      %v1080 = vpop.f32.mrb[0].mxu0
      %v1081 = vpop.f32.mrb[0].mxu0
      %v1082 = vadd.f32 %v816, %v1081
      %v1083 = vpop.f32.mrb[0].mxu0
      %1084 = vmatprep.mubr.bf16.mxu0 0
      %1085 = vmatmul.mubr.bf16.gmra.mrb[0].mxu0 %v917
      %v1086 = vpop.f32.mrb[0].mxu0
      %v1087 = vadd.f32 %v821, %v1086
      %v1088 = vpop.f32.mrb[0].mxu0
      %v1089 = vpop.f32.mrb[0].mxu0
      %v1090 = vadd.f32 %v824, %v1089
      %v1091 = vpop.f32.mrb[0].mxu0
      %1092 = vmatprep.mubr.bf16.mxu0 0
      %1093 = vmatmul.mubr.bf16.gmra.mrb[0].mxu0 %v920
      %v1094 = vpop.f32.mrb[0].mxu0
      %v1095 = vadd.f32 %v829, %v1094
      %v1096 = vpop.f32.mrb[0].mxu0
      %v1097 = vpop.f32.mrb[0].mxu0
      %v1098 = vadd.f32 %v832, %v1097
      %v1099 = vpop.f32.mrb[0].mxu0
      %1100 = vmatprep.mubr.bf16.mxu0 0
      %1101 = vmatmul.mubr.bf16.gmra.mrb[0].mxu0 %v923
      %v1102 = vpop.f32.mrb[0].mxu0
      %v1103 = vadd.f32 %v837, %v1102
      %v1104 = vpop.f32.mrb[0].mxu0
      %v1105 = vpop.f32.mrb[0].mxu0
      %v1106 = vadd.f32 %v840, %v1105
      %v1107 = vpop.f32.mrb[0].mxu0
      %1108 = vmatprep.mubr.bf16.mxu0 0
      %1109 = vmatmul.mubr.bf16.gmra.mrb[0].mxu0 %v926
      %v1110 = vpop.f32.mrb[0].mxu0
      %v1111 = vadd.f32 %v845, %v1110
      %v1112 = vpop.f32.mrb[0].mxu0
      %v1113 = vpop.f32.mrb[0].mxu0
      %v1114 = vadd.f32 %v848, %v1113
      %v1115 = vpop.f32.mrb[0].mxu0
      %1116 = vmatprep.mubr.bf16.mxu0 0
      %1117 = vmatmul.mubr.bf16.gmra.mrb[0].mxu0 %v929
      %v1118 = vpop.f32.mrb[0].mxu0
      %v1119 = vadd.f32 %v853, %v1118
      %v1120 = vpop.f32.mrb[0].mxu0
      %v1121 = vpop.f32.mrb[0].mxu0
      %v1122 = vadd.f32 %v856, %v1121
      %v1123 = vpop.f32.mrb[0].mxu0
      %1124 = vmatprep.mubr.bf16.mxu0 0
      %1125 = vmatmul.mubr.bf16.gmra.mrb[0].mxu0 %v932
      %v1126 = vpop.f32.mrb[0].mxu0
      %v1127 = vadd.f32 %v861, %v1126
      %v1128 = vpop.f32.mrb[0].mxu0
      %v1129 = vpop.f32.mrb[0].mxu0
      %v1130 = vadd.f32 %v864, %v1129
      %v1131 = vpop.f32.mrb[0].mxu0
      %1132 = vmatprep.mubr.bf16.mxu0 0
      %1133 = vmatmul.mubr.bf16.gmra.mrb[0].mxu0 %v935
      %v1134 = vpop.f32.mrb[0].mxu0
      %v1135 = vadd.f32 %v869, %v1134
      %v1136 = vpop.f32.mrb[0].mxu0
      %v1137 = vpop.f32.mrb[0].mxu0
      %v1138 = vpop.f32.mrb[0].mxu0
      %1139 = vdwg.mxu0
      %vm1140 = vsmask.f32 4352
      %v1141 = vrot.slane %v262, 3
      %v1142 = vrot.slane %v265, 4
      %v1143 = vor.u32 %v1141, %v1142
      %v1144 = vrot.slane %v270, 3
      %v1145 = vrot.slane %v273, 4
      %v1146 = vor.u32 %v1144, %v1145
      %v1147 = vsel %vm1140, %v1143, %v1146
      %vm1149 = vsmask.f32 256
      %v1150 = vrot.slane %v377, 7
      %v1151 = vor.u32 %v1150, %v380
      %v1152 = vrot.slane %v385, 7
      %v1153 = vor.u32 %v1152, %v388
      %v1154 = vsel %vm1149, %v1150, %v1153
      %v1155 = vrot.slane %v394, 7
      %v1156 = vor.u32 %v1155, %v397
      %v1157 = vsel %vm1149, %v1152, %v1156
      %v1158 = vrot.slane %v403, 7
      %v1159 = vor.u32 %v1158, %v406
      %v1160 = vsel %vm1149, %v1155, %v1159
      %v1161 = vrot.slane %v412, 7
      %v1162 = vor.u32 %v1161, %v415
      %v1163 = vsel %vm1149, %v1158, %v1162
      %v1164 = vrot.slane %v421, 7
      %v1165 = vor.u32 %v1164, %v424
      %v1166 = vsel %vm1149, %v1161, %v1165
      %v1167 = vrot.slane %v430, 7
      %v1168 = vor.u32 %v1167, %v433
      %v1169 = vsel %vm1149, %v1164, %v1168
      %v1170 = vrot.slane %v439, 7
      %v1171 = vor.u32 %v1170, %v442
      %v1172 = vsel %vm1149, %v1167, %v1171
      %v1173 = vrot.slane %v448, 7
      %v1174 = vor.u32 %v1173, %v451
      %v1175 = vsel %vm1149, %v1170, %v1174
      %v1176 = vrot.slane %v457, 7
      %v1177 = vor.u32 %v1176, %v460
      %v1178 = vsel %vm1149, %v1173, %v1177
      %v1179 = vrot.slane %v466, 7
      %v1180 = vor.u32 %v1179, %v469
      %v1181 = vsel %vm1149, %v1176, %v1180
      %v1182 = vrot.slane %v475, 7
      %v1183 = vor.u32 %v1182, %v478
      %v1184 = vsel %vm1149, %v1179, %v1183
      %v1185 = vrot.slane %v484, 7
      %v1186 = vor.u32 %v1185, %v487
      %v1187 = vsel %vm1149, %v1182, %v1186
      %v1188 = vrot.slane %v493, 7
      %v1189 = vor.u32 %v1188, %v496
      %v1190 = vsel %vm1149, %v1185, %v1189
      %v1191 = vrot.slane %v502, 7
      %v1192 = vor.u32 %v1191, %v505
      %v1193 = vsel %vm1149, %v1188, %v1192
      %v1194 = vrot.slane %v511, 7
      %v1195 = vor.u32 %v1194, %v514
      %v1196 = vsel %vm1149, %v1191, %v1195
      %v1197 = vrot.slane %v520, 7
      %v1198 = vor.u32 %v1197, %v523
      %v1199 = vsel %vm1149, %v1194, %v1198
      %v1200 = vrot.slane %v529, 7
      %v1201 = vor.u32 %v1200, %v532
      %v1202 = vsel %vm1149, %v1197, %v1201
      %v1203 = vrot.slane %v538, 7
      %v1204 = vor.u32 %v1203, %v541
      %v1205 = vsel %vm1149, %v1200, %v1204
      %v1206 = vrot.slane %v547, 7
      %v1207 = vor.u32 %v1206, %v550
      %v1208 = vsel %vm1149, %v1203, %v1207
      %vm1210 = vmand %vm563, %vm1149
      %v1211 = vsel %vm1210, %v1144, %v1151
      %v1213 = vsel %vm607, %v1147, 0
      %v1216 = vsel %vm607, %v1211, 0
      %v1219 = vsel %vm607, %v1154, 0
      %v1222 = vsel %vm607, %v1157, 0
      %v1225 = vsel %vm607, %v1160, 0
      %v1228 = vsel %vm607, %v1163, 0
      %v1231 = vsel %vm607, %v1166, 0
      %v1234 = vsel %vm607, %v1169, 0
      %v1237 = vsel %vm607, %v1172, 0
      %v1240 = vsel %vm607, %v1175, 0
      %v1243 = vsel %vm607, %v1178, 0
      %v1246 = vsel %vm607, %v1181, 0
      %v1249 = vsel %vm607, %v1184, 0
      %v1252 = vsel %vm607, %v1187, 0
      %v1255 = vsel %vm607, %v1190, 0
      %v1258 = vsel %vm607, %v1193, 0
      %v1261 = vsel %vm607, %v1196, 0
      %v1264 = vsel %vm607, %v1199, 0
      %v1267 = vsel %vm607, %v1202, 0
      %v1270 = vsel %vm607, %v1205, 0
      %v1273 = vsel %vm607, %v1208, 0
      %v1276 = vsel %vm670, %v245, 0
      %1278 = vmatprep.subr.bf16.mxu0 0
      %1279 = vmatpush1.bf16.msra.mxu0 %v1276
      %1280 = vmatprep.subr.bf16.mxu0 0
      %1281 = vmatpush1.bf16.msra.mxu0 0
      %1282 = vmatprep.subr.bf16.mxu0 0
      %1283 = vmatpush1.bf16.msra.mxu0 0
      %1284 = vmatprep.subr.bf16.mxu0 0
      %1285 = vmatpush1.bf16.msra.mxu0 0
      %1286 = vmatprep.subr.bf16.mxu0 0
      %1287 = vmatpush1.bf16.msra.mxu0 0
      %1288 = vmatprep.subr.bf16.mxu0 0
      %1289 = vmatpush1.bf16.msra.mxu0 0
      %1290 = vmatprep.subr.bf16.mxu0 0
      %1291 = vmatpush1.bf16.msra.mxu0 0
      %1292 = vmatprep.subr.bf16.mxu0 0
      %1293 = vmatpush1.bf16.msra.mxu0 0
      %1294 = vmatprep.subr.bf16.mxu0 0
      %1295 = vmatpush1.bf16.msra.mxu0 0
      %1296 = vmatprep.subr.bf16.mxu0 0
      %1297 = vmatpush1.bf16.msra.mxu0 0
      %1298 = vmatprep.subr.bf16.mxu0 0
      %1299 = vmatpush1.bf16.msra.mxu0 0
      %1300 = vmatprep.subr.bf16.mxu0 0
      %1301 = vmatpush1.bf16.msra.mxu0 0
      %1302 = vmatprep.subr.bf16.mxu0 0
      %1303 = vmatpush1.bf16.msra.mxu0 0
      %1304 = vmatprep.subr.bf16.mxu0 0
      %1305 = vmatpush1.bf16.msra.mxu0 0
      %1306 = vmatprep.subr.bf16.mxu0 0
      %1307 = vmatpush1.bf16.msra.mxu0 0
      %1308 = vmatprep.subr.bf16.mxu0 0
      %1309 = vmatpush1.bf16.msra.mxu0 0
      %1310 = vmatprep.mubr.bf16.mxu0 0
      %1311 = vmatmul.mubr.bf16.gmra.mrb[0].mxu0 %v1213
      %v1312 = vpop.f32.mrb[0].mxu0
      %v1313 = vadd.f32 0.0, %v1312
      %v1314 = vpop.f32.mrb[0].mxu0
      %v1315 = vpop.f32.mrb[0].mxu0
      %v1316 = vadd.f32 0.0, %v1315
      %v1317 = vpop.f32.mrb[0].mxu0
      %1318 = vmatprep.mubr.bf16.mxu0 0
      %1319 = vmatmul.mubr.bf16.gmra.mrb[0].mxu0 %v1216
      %v1320 = vpop.f32.mrb[0].mxu0
      %v1321 = vadd.f32 0.0, %v1320
      %v1322 = vpop.f32.mrb[0].mxu0
      %v1323 = vpop.f32.mrb[0].mxu0
      %v1324 = vadd.f32 0.0, %v1323
      %v1325 = vpop.f32.mrb[0].mxu0
      %1326 = vmatprep.mubr.bf16.mxu0 0
      %1327 = vmatmul.mubr.bf16.gmra.mrb[0].mxu0 %v1219
      %v1328 = vpop.f32.mrb[0].mxu0
      %v1329 = vadd.f32 0.0, %v1328
      %v1330 = vpop.f32.mrb[0].mxu0
      %v1331 = vpop.f32.mrb[0].mxu0
      %v1332 = vadd.f32 0.0, %v1331
      %v1333 = vpop.f32.mrb[0].mxu0
      %1334 = vmatprep.mubr.bf16.mxu0 0
      %1335 = vmatmul.mubr.bf16.gmra.mrb[0].mxu0 %v1222
      %v1336 = vpop.f32.mrb[0].mxu0
      %v1337 = vadd.f32 0.0, %v1336
      %v1338 = vpop.f32.mrb[0].mxu0
      %v1339 = vpop.f32.mrb[0].mxu0
      %v1340 = vadd.f32 0.0, %v1339
      %v1341 = vpop.f32.mrb[0].mxu0
      %1342 = vmatprep.mubr.bf16.mxu0 0
      %1343 = vmatmul.mubr.bf16.gmra.mrb[0].mxu0 %v1225
      %v1344 = vpop.f32.mrb[0].mxu0
      %v1345 = vadd.f32 0.0, %v1344
      %v1346 = vpop.f32.mrb[0].mxu0
      %v1347 = vpop.f32.mrb[0].mxu0
      %v1348 = vadd.f32 0.0, %v1347
      %v1349 = vpop.f32.mrb[0].mxu0
      %1350 = vmatprep.mubr.bf16.mxu0 0
      %1351 = vmatmul.mubr.bf16.gmra.mrb[0].mxu0 %v1228
      %v1352 = vpop.f32.mrb[0].mxu0
      %v1353 = vadd.f32 0.0, %v1352
      %v1354 = vpop.f32.mrb[0].mxu0
      %v1355 = vpop.f32.mrb[0].mxu0
      %v1356 = vadd.f32 0.0, %v1355
      %v1357 = vpop.f32.mrb[0].mxu0
      %1358 = vmatprep.mubr.bf16.mxu0 0
      %1359 = vmatmul.mubr.bf16.gmra.mrb[0].mxu0 %v1231
      %v1360 = vpop.f32.mrb[0].mxu0
      %v1361 = vadd.f32 0.0, %v1360
      %v1362 = vpop.f32.mrb[0].mxu0
      %v1363 = vpop.f32.mrb[0].mxu0
      %v1364 = vadd.f32 0.0, %v1363
      %v1365 = vpop.f32.mrb[0].mxu0
      %1366 = vmatprep.mubr.bf16.mxu0 0
      %1367 = vmatmul.mubr.bf16.gmra.mrb[0].mxu0 %v1234
      %v1368 = vpop.f32.mrb[0].mxu0
      %v1369 = vadd.f32 0.0, %v1368
      %v1370 = vpop.f32.mrb[0].mxu0
      %v1371 = vpop.f32.mrb[0].mxu0
      %v1372 = vadd.f32 0.0, %v1371
      %v1373 = vpop.f32.mrb[0].mxu0
      %1374 = vmatprep.mubr.bf16.mxu0 0
      %1375 = vmatmul.mubr.bf16.gmra.mrb[0].mxu0 %v1237
      %v1376 = vpop.f32.mrb[0].mxu0
      %v1377 = vadd.f32 0.0, %v1376
      %v1378 = vpop.f32.mrb[0].mxu0
      %v1379 = vpop.f32.mrb[0].mxu0
      %v1380 = vadd.f32 0.0, %v1379
      %v1381 = vpop.f32.mrb[0].mxu0
      %1382 = vmatprep.mubr.bf16.mxu0 0
      %1383 = vmatmul.mubr.bf16.gmra.mrb[0].mxu0 %v1240
      %v1384 = vpop.f32.mrb[0].mxu0
      %v1385 = vadd.f32 0.0, %v1384
      %v1386 = vpop.f32.mrb[0].mxu0
      %v1387 = vpop.f32.mrb[0].mxu0
      %v1388 = vadd.f32 0.0, %v1387
      %v1389 = vpop.f32.mrb[0].mxu0
      %1390 = vmatprep.mubr.bf16.mxu0 0
      %1391 = vmatmul.mubr.bf16.gmra.mrb[0].mxu0 %v1243
      %v1392 = vpop.f32.mrb[0].mxu0
      %v1393 = vadd.f32 0.0, %v1392
      %v1394 = vpop.f32.mrb[0].mxu0
      %v1395 = vpop.f32.mrb[0].mxu0
      %v1396 = vadd.f32 0.0, %v1395
      %v1397 = vpop.f32.mrb[0].mxu0
      %1398 = vmatprep.mubr.bf16.mxu0 0
      %1399 = vmatmul.mubr.bf16.gmra.mrb[0].mxu0 %v1246
      %v1400 = vpop.f32.mrb[0].mxu0
      %v1401 = vadd.f32 0.0, %v1400
      %v1402 = vpop.f32.mrb[0].mxu0
      %v1403 = vpop.f32.mrb[0].mxu0
      %v1404 = vadd.f32 0.0, %v1403
      %v1405 = vpop.f32.mrb[0].mxu0
      %1406 = vmatprep.mubr.bf16.mxu0 0
      %1407 = vmatmul.mubr.bf16.gmra.mrb[0].mxu0 %v1249
      %v1408 = vpop.f32.mrb[0].mxu0
      %v1409 = vadd.f32 0.0, %v1408
      %v1410 = vpop.f32.mrb[0].mxu0
      %v1411 = vpop.f32.mrb[0].mxu0
      %v1412 = vadd.f32 0.0, %v1411
      %v1413 = vpop.f32.mrb[0].mxu0
      %1414 = vmatprep.mubr.bf16.mxu0 0
      %1415 = vmatmul.mubr.bf16.gmra.mrb[0].mxu0 %v1252
      %v1416 = vpop.f32.mrb[0].mxu0
      %v1417 = vadd.f32 0.0, %v1416
      %v1418 = vpop.f32.mrb[0].mxu0
      %v1419 = vpop.f32.mrb[0].mxu0
      %v1420 = vadd.f32 0.0, %v1419
      %v1421 = vpop.f32.mrb[0].mxu0
      %1422 = vmatprep.mubr.bf16.mxu0 0
      %1423 = vmatmul.mubr.bf16.gmra.mrb[0].mxu0 %v1255
      %v1424 = vpop.f32.mrb[0].mxu0
      %v1425 = vadd.f32 0.0, %v1424
      %v1426 = vpop.f32.mrb[0].mxu0
      %v1427 = vpop.f32.mrb[0].mxu0
      %v1428 = vadd.f32 0.0, %v1427
      %v1429 = vpop.f32.mrb[0].mxu0
      %1430 = vmatprep.mubr.bf16.mxu0 0
      %1431 = vmatmul.mubr.bf16.gmra.mrb[0].mxu0 %v1258
      %v1432 = vpop.f32.mrb[0].mxu0
      %v1433 = vadd.f32 0.0, %v1432
      %v1434 = vpop.f32.mrb[0].mxu0
      %v1435 = vpop.f32.mrb[0].mxu0
      %v1436 = vadd.f32 0.0, %v1435
      %v1437 = vpop.f32.mrb[0].mxu0
      %1438 = vmatprep.mubr.bf16.mxu0 0
      %1439 = vmatmul.mubr.bf16.gmra.mrb[0].mxu0 %v1261
      %v1440 = vpop.f32.mrb[0].mxu0
      %v1441 = vadd.f32 0.0, %v1440
      %v1442 = vpop.f32.mrb[0].mxu0
      %v1443 = vpop.f32.mrb[0].mxu0
      %v1444 = vadd.f32 0.0, %v1443
      %v1445 = vpop.f32.mrb[0].mxu0
      %1446 = vmatprep.mubr.bf16.mxu0 0
      %1447 = vmatmul.mubr.bf16.gmra.mrb[0].mxu0 %v1264
      %v1448 = vpop.f32.mrb[0].mxu0
      %v1449 = vadd.f32 0.0, %v1448
      %v1450 = vpop.f32.mrb[0].mxu0
      %v1451 = vpop.f32.mrb[0].mxu0
      %v1452 = vadd.f32 0.0, %v1451
      %v1453 = vpop.f32.mrb[0].mxu0
      %1454 = vmatprep.mubr.bf16.mxu0 0
      %1455 = vmatmul.mubr.bf16.gmra.mrb[0].mxu0 %v1267
      %v1456 = vpop.f32.mrb[0].mxu0
      %v1457 = vadd.f32 0.0, %v1456
      %v1458 = vpop.f32.mrb[0].mxu0
      %v1459 = vpop.f32.mrb[0].mxu0
      %v1460 = vadd.f32 0.0, %v1459
      %v1461 = vpop.f32.mrb[0].mxu0
      %1462 = vmatprep.mubr.bf16.mxu0 0
      %1463 = vmatmul.mubr.bf16.gmra.mrb[0].mxu0 %v1270
      %v1464 = vpop.f32.mrb[0].mxu0
      %v1465 = vadd.f32 0.0, %v1464
      %v1466 = vpop.f32.mrb[0].mxu0
      %v1467 = vpop.f32.mrb[0].mxu0
      %v1468 = vadd.f32 0.0, %v1467
      %v1469 = vpop.f32.mrb[0].mxu0
      %1470 = vmatprep.mubr.bf16.mxu0 0
      %1471 = vmatmul.mubr.bf16.gmra.mrb[0].mxu0 %v1273
      %v1472 = vpop.f32.mrb[0].mxu0
      %v1473 = vadd.f32 0.0, %v1472
      %v1474 = vpop.f32.mrb[0].mxu0
      %v1475 = vpop.f32.mrb[0].mxu0
      %v1476 = vpop.f32.mrb[0].mxu0
      %1477 = vdwg.mxu0
      %v1478 = vadd.f32 %v975, %v1313
      %v1479 = vadd.f32 %v978, %v1316
      %v1480 = vadd.f32 %v983, %v1321
      %v1481 = vadd.f32 %v986, %v1324
      %v1482 = vadd.f32 %v991, %v1329
      %v1483 = vadd.f32 %v994, %v1332
      %v1484 = vadd.f32 %v999, %v1337
      %v1485 = vadd.f32 %v1002, %v1340
      %v1486 = vadd.f32 %v1007, %v1345
      %v1487 = vadd.f32 %v1010, %v1348
      %v1488 = vadd.f32 %v1015, %v1353
      %v1489 = vadd.f32 %v1018, %v1356
      %v1490 = vadd.f32 %v1023, %v1361
      %v1491 = vadd.f32 %v1026, %v1364
      %v1492 = vadd.f32 %v1031, %v1369
      %v1493 = vadd.f32 %v1034, %v1372
      %v1494 = vadd.f32 %v1039, %v1377
      %v1495 = vadd.f32 %v1042, %v1380
      %v1496 = vadd.f32 %v1047, %v1385
      %v1497 = vadd.f32 %v1050, %v1388
      %v1498 = vadd.f32 %v1055, %v1393
      %v1499 = vadd.f32 %v1058, %v1396
      %v1500 = vadd.f32 %v1063, %v1401
      %v1501 = vadd.f32 %v1066, %v1404
      %v1502 = vadd.f32 %v1071, %v1409
      %v1503 = vadd.f32 %v1074, %v1412
      %v1504 = vadd.f32 %v1079, %v1417
      %v1505 = vadd.f32 %v1082, %v1420
      %v1506 = vadd.f32 %v1087, %v1425
      %v1507 = vadd.f32 %v1090, %v1428
      %v1508 = vadd.f32 %v1095, %v1433
      %v1509 = vadd.f32 %v1098, %v1436
      %v1510 = vadd.f32 %v1103, %v1441
      %v1511 = vadd.f32 %v1106, %v1444
      %v1512 = vadd.f32 %v1111, %v1449
      %v1513 = vadd.f32 %v1114, %v1452
      %v1514 = vadd.f32 %v1119, %v1457
      %v1515 = vadd.f32 %v1122, %v1460
      %v1516 = vadd.f32 %v1127, %v1465
      %v1517 = vadd.f32 %v1130, %v1468
      %v1518 = vadd.f32 %v1135, %v1473
      %v1519 = vrot.slane %v262, 7
      %v1520 = vor.u32 %v1519, %v265
      %v1521 = vsel %vm1149, %v1203, %v1520
      %v1522 = vrot.slane %v270, 7
      %v1523 = vor.u32 %v1522, %v273
      %v1524 = vsel %vm1149, %v1519, %v1523
      %v1526 = vsel %vm607, %v1521, 0
      %v1529 = vsel %vm607, %v1524, 0
      %v1532 = vsel %vm670, %v246, 0
      %1534 = vmatprep.subr.bf16.mxu0 0
      %1535 = vmatpush1.bf16.msra.mxu0 %v1532
      %1536 = vmatprep.subr.bf16.mxu0 0
      %1537 = vmatpush1.bf16.msra.mxu0 0
      %1538 = vmatprep.subr.bf16.mxu0 0
      %1539 = vmatpush1.bf16.msra.mxu0 0
      %1540 = vmatprep.subr.bf16.mxu0 0
      %1541 = vmatpush1.bf16.msra.mxu0 0
      %1542 = vmatprep.subr.bf16.mxu0 0
      %1543 = vmatpush1.bf16.msra.mxu0 0
      %1544 = vmatprep.subr.bf16.mxu0 0
      %1545 = vmatpush1.bf16.msra.mxu0 0
      %1546 = vmatprep.subr.bf16.mxu0 0
      %1547 = vmatpush1.bf16.msra.mxu0 0
      %1548 = vmatprep.subr.bf16.mxu0 0
      %1549 = vmatpush1.bf16.msra.mxu0 0
      %1550 = vmatprep.subr.bf16.mxu0 0
      %1551 = vmatpush1.bf16.msra.mxu0 0
      %1552 = vmatprep.subr.bf16.mxu0 0
      %1553 = vmatpush1.bf16.msra.mxu0 0
      %1554 = vmatprep.subr.bf16.mxu0 0
      %1555 = vmatpush1.bf16.msra.mxu0 0
      %1556 = vmatprep.subr.bf16.mxu0 0
      %1557 = vmatpush1.bf16.msra.mxu0 0
      %1558 = vmatprep.subr.bf16.mxu0 0
      %1559 = vmatpush1.bf16.msra.mxu0 0
      %1560 = vmatprep.subr.bf16.mxu0 0
      %1561 = vmatpush1.bf16.msra.mxu0 0
      %1562 = vmatprep.subr.bf16.mxu0 0
      %1563 = vmatpush1.bf16.msra.mxu0 0
      %1564 = vmatprep.subr.bf16.mxu0 0
      %1565 = vmatpush1.bf16.msra.mxu0 0
      %1566 = vmatprep.mubr.bf16.mxu0 0
      %1567 = vmatmul.mubr.bf16.gmra.mrb[0].mxu0 %v1216
      %v1568 = vpop.f32.mrb[0].mxu0
      %v1569 = vadd.f32 0.0, %v1568
      %v1570 = vpop.f32.mrb[0].mxu0
      %v1571 = vpop.f32.mrb[0].mxu0
      %v1572 = vadd.f32 0.0, %v1571
      %v1573 = vpop.f32.mrb[0].mxu0
      %1574 = vmatprep.mubr.bf16.mxu0 0
      %1575 = vmatmul.mubr.bf16.gmra.mrb[0].mxu0 %v1219
      %v1576 = vpop.f32.mrb[0].mxu0
      %v1577 = vadd.f32 0.0, %v1576
      %v1578 = vpop.f32.mrb[0].mxu0
      %v1579 = vpop.f32.mrb[0].mxu0
      %v1580 = vadd.f32 0.0, %v1579
      %v1581 = vpop.f32.mrb[0].mxu0
      %1582 = vmatprep.mubr.bf16.mxu0 0
      %1583 = vmatmul.mubr.bf16.gmra.mrb[0].mxu0 %v1222
      %v1584 = vpop.f32.mrb[0].mxu0
      %v1585 = vadd.f32 0.0, %v1584
      %v1586 = vpop.f32.mrb[0].mxu0
      %v1587 = vpop.f32.mrb[0].mxu0
      %v1588 = vadd.f32 0.0, %v1587
      %v1589 = vpop.f32.mrb[0].mxu0
      %1590 = vmatprep.mubr.bf16.mxu0 0
      %1591 = vmatmul.mubr.bf16.gmra.mrb[0].mxu0 %v1225
      %v1592 = vpop.f32.mrb[0].mxu0
      %v1593 = vadd.f32 0.0, %v1592
      %v1594 = vpop.f32.mrb[0].mxu0
      %v1595 = vpop.f32.mrb[0].mxu0
      %v1596 = vadd.f32 0.0, %v1595
      %v1597 = vpop.f32.mrb[0].mxu0
      %1598 = vmatprep.mubr.bf16.mxu0 0
      %1599 = vmatmul.mubr.bf16.gmra.mrb[0].mxu0 %v1228
      %v1600 = vpop.f32.mrb[0].mxu0
      %v1601 = vadd.f32 0.0, %v1600
      %v1602 = vpop.f32.mrb[0].mxu0
      %v1603 = vpop.f32.mrb[0].mxu0
      %v1604 = vadd.f32 0.0, %v1603
      %v1605 = vpop.f32.mrb[0].mxu0
      %1606 = vmatprep.mubr.bf16.mxu0 0
      %1607 = vmatmul.mubr.bf16.gmra.mrb[0].mxu0 %v1231
      %v1608 = vpop.f32.mrb[0].mxu0
      %v1609 = vadd.f32 0.0, %v1608
      %v1610 = vpop.f32.mrb[0].mxu0
      %v1611 = vpop.f32.mrb[0].mxu0
      %v1612 = vadd.f32 0.0, %v1611
      %v1613 = vpop.f32.mrb[0].mxu0
      %1614 = vmatprep.mubr.bf16.mxu0 0
      %1615 = vmatmul.mubr.bf16.gmra.mrb[0].mxu0 %v1234
      %v1616 = vpop.f32.mrb[0].mxu0
      %v1617 = vadd.f32 0.0, %v1616
      %v1618 = vpop.f32.mrb[0].mxu0
      %v1619 = vpop.f32.mrb[0].mxu0
      %v1620 = vadd.f32 0.0, %v1619
      %v1621 = vpop.f32.mrb[0].mxu0
      %1622 = vmatprep.mubr.bf16.mxu0 0
      %1623 = vmatmul.mubr.bf16.gmra.mrb[0].mxu0 %v1237
      %v1624 = vpop.f32.mrb[0].mxu0
      %v1625 = vadd.f32 0.0, %v1624
      %v1626 = vpop.f32.mrb[0].mxu0
      %v1627 = vpop.f32.mrb[0].mxu0
      %v1628 = vadd.f32 0.0, %v1627
      %v1629 = vpop.f32.mrb[0].mxu0
      %1630 = vmatprep.mubr.bf16.mxu0 0
      %1631 = vmatmul.mubr.bf16.gmra.mrb[0].mxu0 %v1240
      %v1632 = vpop.f32.mrb[0].mxu0
      %v1633 = vadd.f32 0.0, %v1632
      %v1634 = vpop.f32.mrb[0].mxu0
      %v1635 = vpop.f32.mrb[0].mxu0
      %v1636 = vadd.f32 0.0, %v1635
      %v1637 = vpop.f32.mrb[0].mxu0
      %1638 = vmatprep.mubr.bf16.mxu0 0
      %1639 = vmatmul.mubr.bf16.gmra.mrb[0].mxu0 %v1243
      %v1640 = vpop.f32.mrb[0].mxu0
      %v1641 = vadd.f32 0.0, %v1640
      %v1642 = vpop.f32.mrb[0].mxu0
      %v1643 = vpop.f32.mrb[0].mxu0
      %v1644 = vadd.f32 0.0, %v1643
      %v1645 = vpop.f32.mrb[0].mxu0
      %1646 = vmatprep.mubr.bf16.mxu0 0
      %1647 = vmatmul.mubr.bf16.gmra.mrb[0].mxu0 %v1246
      %v1648 = vpop.f32.mrb[0].mxu0
      %v1649 = vadd.f32 0.0, %v1648
      %v1650 = vpop.f32.mrb[0].mxu0
      %v1651 = vpop.f32.mrb[0].mxu0
      %v1652 = vadd.f32 0.0, %v1651
      %v1653 = vpop.f32.mrb[0].mxu0
      %1654 = vmatprep.mubr.bf16.mxu0 0
      %1655 = vmatmul.mubr.bf16.gmra.mrb[0].mxu0 %v1249
      %v1656 = vpop.f32.mrb[0].mxu0
      %v1657 = vadd.f32 0.0, %v1656
      %v1658 = vpop.f32.mrb[0].mxu0
      %v1659 = vpop.f32.mrb[0].mxu0
      %v1660 = vadd.f32 0.0, %v1659
      %v1661 = vpop.f32.mrb[0].mxu0
      %1662 = vmatprep.mubr.bf16.mxu0 0
      %1663 = vmatmul.mubr.bf16.gmra.mrb[0].mxu0 %v1252
      %v1664 = vpop.f32.mrb[0].mxu0
      %v1665 = vadd.f32 0.0, %v1664
      %v1666 = vpop.f32.mrb[0].mxu0
      %v1667 = vpop.f32.mrb[0].mxu0
      %v1668 = vadd.f32 0.0, %v1667
      %v1669 = vpop.f32.mrb[0].mxu0
      %1670 = vmatprep.mubr.bf16.mxu0 0
      %1671 = vmatmul.mubr.bf16.gmra.mrb[0].mxu0 %v1255
      %v1672 = vpop.f32.mrb[0].mxu0
      %v1673 = vadd.f32 0.0, %v1672
      %v1674 = vpop.f32.mrb[0].mxu0
      %v1675 = vpop.f32.mrb[0].mxu0
      %v1676 = vadd.f32 0.0, %v1675
      %v1677 = vpop.f32.mrb[0].mxu0
      %1678 = vmatprep.mubr.bf16.mxu0 0
      %1679 = vmatmul.mubr.bf16.gmra.mrb[0].mxu0 %v1258
      %v1680 = vpop.f32.mrb[0].mxu0
      %v1681 = vadd.f32 0.0, %v1680
      %v1682 = vpop.f32.mrb[0].mxu0
      %v1683 = vpop.f32.mrb[0].mxu0
      %v1684 = vadd.f32 0.0, %v1683
      %v1685 = vpop.f32.mrb[0].mxu0
      %1686 = vmatprep.mubr.bf16.mxu0 0
      %1687 = vmatmul.mubr.bf16.gmra.mrb[0].mxu0 %v1261
      %v1688 = vpop.f32.mrb[0].mxu0
      %v1689 = vadd.f32 0.0, %v1688
      %v1690 = vpop.f32.mrb[0].mxu0
      %v1691 = vpop.f32.mrb[0].mxu0
      %v1692 = vadd.f32 0.0, %v1691
      %v1693 = vpop.f32.mrb[0].mxu0
      %1694 = vmatprep.mubr.bf16.mxu0 0
      %1695 = vmatmul.mubr.bf16.gmra.mrb[0].mxu0 %v1264
      %v1696 = vpop.f32.mrb[0].mxu0
      %v1697 = vadd.f32 0.0, %v1696
      %v1698 = vpop.f32.mrb[0].mxu0
      %v1699 = vpop.f32.mrb[0].mxu0
      %v1700 = vadd.f32 0.0, %v1699
      %v1701 = vpop.f32.mrb[0].mxu0
      %1702 = vmatprep.mubr.bf16.mxu0 0
      %1703 = vmatmul.mubr.bf16.gmra.mrb[0].mxu0 %v1267
      %v1704 = vpop.f32.mrb[0].mxu0
      %v1705 = vadd.f32 0.0, %v1704
      %v1706 = vpop.f32.mrb[0].mxu0
      %v1707 = vpop.f32.mrb[0].mxu0
      %v1708 = vadd.f32 0.0, %v1707
      %v1709 = vpop.f32.mrb[0].mxu0
      %1710 = vmatprep.mubr.bf16.mxu0 0
      %1711 = vmatmul.mubr.bf16.gmra.mrb[0].mxu0 %v1270
      %v1712 = vpop.f32.mrb[0].mxu0
      %v1713 = vadd.f32 0.0, %v1712
      %v1714 = vpop.f32.mrb[0].mxu0
      %v1715 = vpop.f32.mrb[0].mxu0
      %v1716 = vadd.f32 0.0, %v1715
      %v1717 = vpop.f32.mrb[0].mxu0
      %1718 = vmatprep.mubr.bf16.mxu0 0
      %1719 = vmatmul.mubr.bf16.gmra.mrb[0].mxu0 %v1526
      %v1720 = vpop.f32.mrb[0].mxu0
      %v1721 = vadd.f32 0.0, %v1720
      %v1722 = vpop.f32.mrb[0].mxu0
      %v1723 = vpop.f32.mrb[0].mxu0
      %v1724 = vadd.f32 0.0, %v1723
      %v1725 = vpop.f32.mrb[0].mxu0
      %1726 = vmatprep.mubr.bf16.mxu0 0
      %1727 = vmatmul.mubr.bf16.gmra.mrb[0].mxu0 %v1529
      %v1728 = vpop.f32.mrb[0].mxu0
      %v1729 = vadd.f32 0.0, %v1728
      %v1730 = vpop.f32.mrb[0].mxu0
      %v1731 = vpop.f32.mrb[0].mxu0
      %v1732 = vpop.f32.mrb[0].mxu0
      %1733 = vdwg.mxu0
      %v1734 = vadd.f32 %v1478, %v1569
      %v1735 = vadd.f32 %v1479, %v1572
      %v1736 = vadd.f32 %v1480, %v1577
      %v1737 = vadd.f32 %v1481, %v1580
      %v1738 = vadd.f32 %v1482, %v1585
      %v1739 = vadd.f32 %v1483, %v1588
      %v1740 = vadd.f32 %v1484, %v1593
      %v1741 = vadd.f32 %v1485, %v1596
      %v1742 = vadd.f32 %v1486, %v1601
      %v1743 = vadd.f32 %v1487, %v1604
      %v1744 = vadd.f32 %v1488, %v1609
      %v1745 = vadd.f32 %v1489, %v1612
      %v1746 = vadd.f32 %v1490, %v1617
      %v1747 = vadd.f32 %v1491, %v1620
      %v1748 = vadd.f32 %v1492, %v1625
      %v1749 = vadd.f32 %v1493, %v1628
      %v1750 = vadd.f32 %v1494, %v1633
      %v1751 = vadd.f32 %v1495, %v1636
      %v1752 = vadd.f32 %v1496, %v1641
      %v1753 = vadd.f32 %v1497, %v1644
      %v1754 = vadd.f32 %v1498, %v1649
      %v1755 = vadd.f32 %v1499, %v1652
      %v1756 = vadd.f32 %v1500, %v1657
      %v1757 = vadd.f32 %v1501, %v1660
      %v1758 = vadd.f32 %v1502, %v1665
      %v1759 = vadd.f32 %v1503, %v1668
      %v1760 = vadd.f32 %v1504, %v1673
      %v1761 = vadd.f32 %v1505, %v1676
      %v1762 = vadd.f32 %v1506, %v1681
      %v1763 = vadd.f32 %v1507, %v1684
      %v1764 = vadd.f32 %v1508, %v1689
      %v1765 = vadd.f32 %v1509, %v1692
      %v1766 = vadd.f32 %v1510, %v1697
      %v1767 = vadd.f32 %v1511, %v1700
      %v1768 = vadd.f32 %v1512, %v1705
      %v1769 = vadd.f32 %v1513, %v1708
      %v1770 = vadd.f32 %v1514, %v1713
      %v1771 = vadd.f32 %v1515, %v1716
      %v1772 = vadd.f32 %v1516, %v1721
      %v1773 = vadd.f32 %v1517, %v1724
      %v1774 = vadd.f32 %v1518, %v1729
      %v1775 = vsel %vm607, %v355, 0
      %v1777 = vsel %vm607, %v356, 0
      %v1779 = vsel %vm607, %v357, 0
      %v1781 = vsel %vm607, %v358, 0
      %v1783 = vsel %vm607, %v359, 0
      %v1785 = vsel %vm607, %v360, 0
      %v1787 = vsel %vm607, %v361, 0
      %v1789 = vsel %vm607, %v362, 0
      %v1791 = vsel %vm607, %v363, 0
      %v1793 = vsel %vm607, %v364, 0
      %v1795 = vsel %vm607, %v365, 0
      %v1797 = vsel %vm607, %v366, 0
      %v1799 = vsel %vm607, %v367, 0
      %v1801 = vsel %vm607, %v368, 0
      %v1803 = vsel %vm607, %v369, 0
      %v1805 = vsel %vm607, %v370, 0
      %v1807 = vsel %vm607, %v371, 0
      %v1809 = vsel %vm607, %v372, 0
      %v1811 = vsel %vm607, %v373, 0
      %v1813 = vsel %vm607, %v258, 0
      %v1815 = vsel %vm607, %v259, 0
      %v1818 = vsel %vm670, %v247, 0
      %1820 = vmatprep.subr.bf16.mxu0 0
      %1821 = vmatpush1.bf16.msra.mxu0 %v1818
      %1822 = vmatprep.subr.bf16.mxu0 0
      %1823 = vmatpush1.bf16.msra.mxu0 0
      %1824 = vmatprep.subr.bf16.mxu0 0
      %1825 = vmatpush1.bf16.msra.mxu0 0
      %1826 = vmatprep.subr.bf16.mxu0 0
      %1827 = vmatpush1.bf16.msra.mxu0 0
      %1828 = vmatprep.subr.bf16.mxu0 0
      %1829 = vmatpush1.bf16.msra.mxu0 0
      %1830 = vmatprep.subr.bf16.mxu0 0
      %1831 = vmatpush1.bf16.msra.mxu0 0
      %1832 = vmatprep.subr.bf16.mxu0 0
      %1833 = vmatpush1.bf16.msra.mxu0 0
      %1834 = vmatprep.subr.bf16.mxu0 0
      %1835 = vmatpush1.bf16.msra.mxu0 0
      %1836 = vmatprep.subr.bf16.mxu0 0
      %1837 = vmatpush1.bf16.msra.mxu0 0
      %1838 = vmatprep.subr.bf16.mxu0 0
      %1839 = vmatpush1.bf16.msra.mxu0 0
      %1840 = vmatprep.subr.bf16.mxu0 0
      %1841 = vmatpush1.bf16.msra.mxu0 0
      %1842 = vmatprep.subr.bf16.mxu0 0
      %1843 = vmatpush1.bf16.msra.mxu0 0
      %1844 = vmatprep.subr.bf16.mxu0 0
      %1845 = vmatpush1.bf16.msra.mxu0 0
      %1846 = vmatprep.subr.bf16.mxu0 0
      %1847 = vmatpush1.bf16.msra.mxu0 0
      %1848 = vmatprep.subr.bf16.mxu0 0
      %1849 = vmatpush1.bf16.msra.mxu0 0
      %1850 = vmatprep.subr.bf16.mxu0 0
      %1851 = vmatpush1.bf16.msra.mxu0 0
      %1852 = vmatprep.mubr.bf16.mxu0 0
      %1853 = vmatmul.mubr.bf16.gmra.mrb[0].mxu0 %v1775
      %v1854 = vpop.f32.mrb[0].mxu0
      %v1855 = vadd.f32 0.0, %v1854
      %v1856 = vpop.f32.mrb[0].mxu0
      %v1857 = vpop.f32.mrb[0].mxu0
      %v1858 = vadd.f32 0.0, %v1857
      %v1859 = vpop.f32.mrb[0].mxu0
      %1860 = vmatprep.mubr.bf16.mxu0 0
      %1861 = vmatmul.mubr.bf16.gmra.mrb[0].mxu0 %v1777
      %v1862 = vpop.f32.mrb[0].mxu0
      %v1863 = vadd.f32 0.0, %v1862
      %v1864 = vpop.f32.mrb[0].mxu0
      %v1865 = vpop.f32.mrb[0].mxu0
      %v1866 = vadd.f32 0.0, %v1865
      %v1867 = vpop.f32.mrb[0].mxu0
      %1868 = vmatprep.mubr.bf16.mxu0 0
      %1869 = vmatmul.mubr.bf16.gmra.mrb[0].mxu0 %v1779
      %v1870 = vpop.f32.mrb[0].mxu0
      %v1871 = vadd.f32 0.0, %v1870
      %v1872 = vpop.f32.mrb[0].mxu0
      %v1873 = vpop.f32.mrb[0].mxu0
      %v1874 = vadd.f32 0.0, %v1873
      %v1875 = vpop.f32.mrb[0].mxu0
      %1876 = vmatprep.mubr.bf16.mxu0 0
      %1877 = vmatmul.mubr.bf16.gmra.mrb[0].mxu0 %v1781
      %v1878 = vpop.f32.mrb[0].mxu0
      %v1879 = vadd.f32 0.0, %v1878
      %v1880 = vpop.f32.mrb[0].mxu0
      %v1881 = vpop.f32.mrb[0].mxu0
      %v1882 = vadd.f32 0.0, %v1881
      %v1883 = vpop.f32.mrb[0].mxu0
      %1884 = vmatprep.mubr.bf16.mxu0 0
      %1885 = vmatmul.mubr.bf16.gmra.mrb[0].mxu0 %v1783
      %v1886 = vpop.f32.mrb[0].mxu0
      %v1887 = vadd.f32 0.0, %v1886
      %v1888 = vpop.f32.mrb[0].mxu0
      %v1889 = vpop.f32.mrb[0].mxu0
      %v1890 = vadd.f32 0.0, %v1889
      %v1891 = vpop.f32.mrb[0].mxu0
      %1892 = vmatprep.mubr.bf16.mxu0 0
      %1893 = vmatmul.mubr.bf16.gmra.mrb[0].mxu0 %v1785
      %v1894 = vpop.f32.mrb[0].mxu0
      %v1895 = vadd.f32 0.0, %v1894
      %v1896 = vpop.f32.mrb[0].mxu0
      %v1897 = vpop.f32.mrb[0].mxu0
      %v1898 = vadd.f32 0.0, %v1897
      %v1899 = vpop.f32.mrb[0].mxu0
      %1900 = vmatprep.mubr.bf16.mxu0 0
      %1901 = vmatmul.mubr.bf16.gmra.mrb[0].mxu0 %v1787
      %v1902 = vpop.f32.mrb[0].mxu0
      %v1903 = vadd.f32 0.0, %v1902
      %v1904 = vpop.f32.mrb[0].mxu0
      %v1905 = vpop.f32.mrb[0].mxu0
      %v1906 = vadd.f32 0.0, %v1905
      %v1907 = vpop.f32.mrb[0].mxu0
      %1908 = vmatprep.mubr.bf16.mxu0 0
      %1909 = vmatmul.mubr.bf16.gmra.mrb[0].mxu0 %v1789
      %v1910 = vpop.f32.mrb[0].mxu0
      %v1911 = vadd.f32 0.0, %v1910
      %v1912 = vpop.f32.mrb[0].mxu0
      %v1913 = vpop.f32.mrb[0].mxu0
      %v1914 = vadd.f32 0.0, %v1913
      %v1915 = vpop.f32.mrb[0].mxu0
      %1916 = vmatprep.mubr.bf16.mxu0 0
      %1917 = vmatmul.mubr.bf16.gmra.mrb[0].mxu0 %v1791
      %v1918 = vpop.f32.mrb[0].mxu0
      %v1919 = vadd.f32 0.0, %v1918
      %v1920 = vpop.f32.mrb[0].mxu0
      %v1921 = vpop.f32.mrb[0].mxu0
      %v1922 = vadd.f32 0.0, %v1921
      %v1923 = vpop.f32.mrb[0].mxu0
      %1924 = vmatprep.mubr.bf16.mxu0 0
      %1925 = vmatmul.mubr.bf16.gmra.mrb[0].mxu0 %v1793
      %v1926 = vpop.f32.mrb[0].mxu0
      %v1927 = vadd.f32 0.0, %v1926
      %v1928 = vpop.f32.mrb[0].mxu0
      %v1929 = vpop.f32.mrb[0].mxu0
      %v1930 = vadd.f32 0.0, %v1929
      %v1931 = vpop.f32.mrb[0].mxu0
      %1932 = vmatprep.mubr.bf16.mxu0 0
      %1933 = vmatmul.mubr.bf16.gmra.mrb[0].mxu0 %v1795
      %v1934 = vpop.f32.mrb[0].mxu0
      %v1935 = vadd.f32 0.0, %v1934
      %v1936 = vpop.f32.mrb[0].mxu0
      %v1937 = vpop.f32.mrb[0].mxu0
      %v1938 = vadd.f32 0.0, %v1937
      %v1939 = vpop.f32.mrb[0].mxu0
      %1940 = vmatprep.mubr.bf16.mxu0 0
      %1941 = vmatmul.mubr.bf16.gmra.mrb[0].mxu0 %v1797
      %v1942 = vpop.f32.mrb[0].mxu0
      %v1943 = vadd.f32 0.0, %v1942
      %v1944 = vpop.f32.mrb[0].mxu0
      %v1945 = vpop.f32.mrb[0].mxu0
      %v1946 = vadd.f32 0.0, %v1945
      %v1947 = vpop.f32.mrb[0].mxu0
      %1948 = vmatprep.mubr.bf16.mxu0 0
      %1949 = vmatmul.mubr.bf16.gmra.mrb[0].mxu0 %v1799
      %v1950 = vpop.f32.mrb[0].mxu0
      %v1951 = vadd.f32 0.0, %v1950
      %v1952 = vpop.f32.mrb[0].mxu0
      %v1953 = vpop.f32.mrb[0].mxu0
      %v1954 = vadd.f32 0.0, %v1953
      %v1955 = vpop.f32.mrb[0].mxu0
      %1956 = vmatprep.mubr.bf16.mxu0 0
      %1957 = vmatmul.mubr.bf16.gmra.mrb[0].mxu0 %v1801
      %v1958 = vpop.f32.mrb[0].mxu0
      %v1959 = vadd.f32 0.0, %v1958
      %v1960 = vpop.f32.mrb[0].mxu0
      %v1961 = vpop.f32.mrb[0].mxu0
      %v1962 = vadd.f32 0.0, %v1961
      %v1963 = vpop.f32.mrb[0].mxu0
      %1964 = vmatprep.mubr.bf16.mxu0 0
      %1965 = vmatmul.mubr.bf16.gmra.mrb[0].mxu0 %v1803
      %v1966 = vpop.f32.mrb[0].mxu0
      %v1967 = vadd.f32 0.0, %v1966
      %v1968 = vpop.f32.mrb[0].mxu0
      %v1969 = vpop.f32.mrb[0].mxu0
      %v1970 = vadd.f32 0.0, %v1969
      %v1971 = vpop.f32.mrb[0].mxu0
      %1972 = vmatprep.mubr.bf16.mxu0 0
      %1973 = vmatmul.mubr.bf16.gmra.mrb[0].mxu0 %v1805
      %v1974 = vpop.f32.mrb[0].mxu0
      %v1975 = vadd.f32 0.0, %v1974
      %v1976 = vpop.f32.mrb[0].mxu0
      %v1977 = vpop.f32.mrb[0].mxu0
      %v1978 = vadd.f32 0.0, %v1977
      %v1979 = vpop.f32.mrb[0].mxu0
      %1980 = vmatprep.mubr.bf16.mxu0 0
      %1981 = vmatmul.mubr.bf16.gmra.mrb[0].mxu0 %v1807
      %v1982 = vpop.f32.mrb[0].mxu0
      %v1983 = vadd.f32 0.0, %v1982
      %v1984 = vpop.f32.mrb[0].mxu0
      %v1985 = vpop.f32.mrb[0].mxu0
      %v1986 = vadd.f32 0.0, %v1985
      %v1987 = vpop.f32.mrb[0].mxu0
      %1988 = vmatprep.mubr.bf16.mxu0 0
      %1989 = vmatmul.mubr.bf16.gmra.mrb[0].mxu0 %v1809
      %v1990 = vpop.f32.mrb[0].mxu0
      %v1991 = vadd.f32 0.0, %v1990
      %v1992 = vpop.f32.mrb[0].mxu0
      %v1993 = vpop.f32.mrb[0].mxu0
      %v1994 = vadd.f32 0.0, %v1993
      %v1995 = vpop.f32.mrb[0].mxu0
      %1996 = vmatprep.mubr.bf16.mxu0 0
      %1997 = vmatmul.mubr.bf16.gmra.mrb[0].mxu0 %v1811
      %v1998 = vpop.f32.mrb[0].mxu0
      %v1999 = vadd.f32 0.0, %v1998
      %v2000 = vpop.f32.mrb[0].mxu0
      %v2001 = vpop.f32.mrb[0].mxu0
      %v2002 = vadd.f32 0.0, %v2001
      %v2003 = vpop.f32.mrb[0].mxu0
      %2004 = vmatprep.mubr.bf16.mxu0 0
      %2005 = vmatmul.mubr.bf16.gmra.mrb[0].mxu0 %v1813
      %v2006 = vpop.f32.mrb[0].mxu0
      %v2007 = vadd.f32 0.0, %v2006
      %v2008 = vpop.f32.mrb[0].mxu0
      %v2009 = vpop.f32.mrb[0].mxu0
      %v2010 = vadd.f32 0.0, %v2009
      %v2011 = vpop.f32.mrb[0].mxu0
      %2012 = vmatprep.mubr.bf16.mxu0 0
      %2013 = vmatmul.mubr.bf16.gmra.mrb[0].mxu0 %v1815
      %v2014 = vpop.f32.mrb[0].mxu0
      %v2015 = vadd.f32 0.0, %v2014
      %v2016 = vpop.f32.mrb[0].mxu0
      %v2017 = vpop.f32.mrb[0].mxu0
      %v2018 = vpop.f32.mrb[0].mxu0
      %2019 = vdwg.mxu0
      %v2020 = vadd.f32 %v1734, %v1855
      %v2021 = vadd.f32 %v1735, %v1858
      %v2022 = vadd.f32 %v1736, %v1863
      %v2023 = vadd.f32 %v1737, %v1866
      %v2024 = vadd.f32 %v1738, %v1871
      %v2025 = vadd.f32 %v1739, %v1874
      %v2026 = vadd.f32 %v1740, %v1879
      %v2027 = vadd.f32 %v1741, %v1882
      %v2028 = vadd.f32 %v1742, %v1887
      %v2029 = vadd.f32 %v1743, %v1890
      %v2030 = vadd.f32 %v1744, %v1895
      %v2031 = vadd.f32 %v1745, %v1898
      %v2032 = vadd.f32 %v1746, %v1903
      %v2033 = vadd.f32 %v1747, %v1906
      %v2034 = vadd.f32 %v1748, %v1911
      %v2035 = vadd.f32 %v1749, %v1914
      %v2036 = vadd.f32 %v1750, %v1919
      %v2037 = vadd.f32 %v1751, %v1922
      %v2038 = vadd.f32 %v1752, %v1927
      %v2039 = vadd.f32 %v1753, %v1930
      %v2040 = vadd.f32 %v1754, %v1935
      %v2041 = vadd.f32 %v1755, %v1938
      %v2042 = vadd.f32 %v1756, %v1943
      %v2043 = vadd.f32 %v1757, %v1946
      %v2044 = vadd.f32 %v1758, %v1951
      %v2045 = vadd.f32 %v1759, %v1954
      %v2046 = vadd.f32 %v1760, %v1959
      %v2047 = vadd.f32 %v1761, %v1962
      %v2048 = vadd.f32 %v1762, %v1967
      %v2049 = vadd.f32 %v1763, %v1970
      %v2050 = vadd.f32 %v1764, %v1975
      %v2051 = vadd.f32 %v1765, %v1978
      %v2052 = vadd.f32 %v1766, %v1983
      %v2053 = vadd.f32 %v1767, %v1986
      %v2054 = vadd.f32 %v1768, %v1991
      %v2055 = vadd.f32 %v1769, %v1994
      %v2056 = vadd.f32 %v1770, %v1999
      %v2057 = vadd.f32 %v1771, %v2002
      %v2058 = vadd.f32 %v1772, %v2007
      %v2059 = vadd.f32 %v1773, %v2010
      %v2060 = vadd.f32 %v1774, %v2015
      %vm2061 = vsmask.f32 7424
      %v2062 = vrot.slane %v380, 1
      %v2063 = vor.u32 %v377, %v2062
      %v2064 = vrot.slane %v388, 1
      %v2065 = vsel %vm2061, %v2063, %v2064
      %v2066 = vor.u32 %v385, %v2064
      %v2067 = vrot.slane %v397, 1
      %v2068 = vsel %vm2061, %v2066, %v2067
      %v2069 = vor.u32 %v394, %v2067
      %v2070 = vrot.slane %v406, 1
      %v2071 = vsel %vm2061, %v2069, %v2070
      %v2072 = vor.u32 %v403, %v2070
      %v2073 = vrot.slane %v415, 1
      %v2074 = vsel %vm2061, %v2072, %v2073
      %v2075 = vor.u32 %v412, %v2073
      %v2076 = vrot.slane %v424, 1
      %v2077 = vsel %vm2061, %v2075, %v2076
      %v2078 = vor.u32 %v421, %v2076
      %v2079 = vrot.slane %v433, 1
      %v2080 = vsel %vm2061, %v2078, %v2079
      %v2081 = vor.u32 %v430, %v2079
      %v2082 = vrot.slane %v442, 1
      %v2083 = vsel %vm2061, %v2081, %v2082
      %v2084 = vor.u32 %v439, %v2082
      %v2085 = vrot.slane %v451, 1
      %v2086 = vsel %vm2061, %v2084, %v2085
      %v2087 = vor.u32 %v448, %v2085
      %v2088 = vrot.slane %v460, 1
      %v2089 = vsel %vm2061, %v2087, %v2088
      %v2090 = vor.u32 %v457, %v2088
      %v2091 = vrot.slane %v469, 1
      %v2092 = vsel %vm2061, %v2090, %v2091
      %v2093 = vor.u32 %v466, %v2091
      %v2094 = vrot.slane %v478, 1
      %v2095 = vsel %vm2061, %v2093, %v2094
      %v2096 = vor.u32 %v475, %v2094
      %v2097 = vrot.slane %v487, 1
      %v2098 = vsel %vm2061, %v2096, %v2097
      %v2099 = vor.u32 %v484, %v2097
      %v2100 = vrot.slane %v496, 1
      %v2101 = vsel %vm2061, %v2099, %v2100
      %v2102 = vor.u32 %v493, %v2100
      %v2103 = vrot.slane %v505, 1
      %v2104 = vsel %vm2061, %v2102, %v2103
      %v2105 = vor.u32 %v502, %v2103
      %v2106 = vrot.slane %v514, 1
      %v2107 = vsel %vm2061, %v2105, %v2106
      %v2108 = vor.u32 %v511, %v2106
      %v2109 = vrot.slane %v523, 1
      %v2110 = vsel %vm2061, %v2108, %v2109
      %v2111 = vor.u32 %v520, %v2109
      %v2112 = vrot.slane %v532, 1
      %v2113 = vsel %vm2061, %v2111, %v2112
      %v2114 = vor.u32 %v529, %v2112
      %v2115 = vrot.slane %v541, 1
      %v2116 = vsel %vm2061, %v2114, %v2115
      %v2117 = vor.u32 %v538, %v2115
      %v2118 = vrot.slane %v265, 1
      %v2119 = vsel %vm2061, %v2117, %v2118
      %v2120 = vor.u32 %v262, %v2118
      %v2121 = vrot.slane %v273, 1
      %v2122 = vsel %vm2061, %v2120, %v2121
      %v2123 = vor.u32 %v270, %v2121
      %v2125 = vpack.c.b16 %v317, %v317
      %v2127 = vshll.u32 %v2125, 16
      %v2129 = vrot.slane %v2127, 5
      %vm2131 = vcmask 1043456
      %vm2132 = vsmask.f32 3328
      %vm2133 = vmand %vm2131, %vm2132
      %v2134 = vsel %vm2133, %v2123, %v2129
      %v2136 = vsel %vm607, %v2065, 0
      %v2139 = vsel %vm607, %v2068, 0
      %v2142 = vsel %vm607, %v2071, 0
      %v2145 = vsel %vm607, %v2074, 0
      %v2148 = vsel %vm607, %v2077, 0
      %v2151 = vsel %vm607, %v2080, 0
      %v2154 = vsel %vm607, %v2083, 0
      %v2157 = vsel %vm607, %v2086, 0
      %v2160 = vsel %vm607, %v2089, 0
      %v2163 = vsel %vm607, %v2092, 0
      %v2166 = vsel %vm607, %v2095, 0
      %v2169 = vsel %vm607, %v2098, 0
      %v2172 = vsel %vm607, %v2101, 0
      %v2175 = vsel %vm607, %v2104, 0
      %v2178 = vsel %vm607, %v2107, 0
      %v2181 = vsel %vm607, %v2110, 0
      %v2184 = vsel %vm607, %v2113, 0
      %v2187 = vsel %vm607, %v2116, 0
      %v2190 = vsel %vm607, %v2119, 0
      %v2193 = vsel %vm607, %v2122, 0
      %v2196 = vsel %vm607, %v2134, 0
      %v2199 = vsel %vm670, %v248, 0
      %2201 = vmatprep.subr.bf16.mxu0 0
      %2202 = vmatpush1.bf16.msra.mxu0 %v2199
      %2203 = vmatprep.subr.bf16.mxu0 0
      %2204 = vmatpush1.bf16.msra.mxu0 0
      %2205 = vmatprep.subr.bf16.mxu0 0
      %2206 = vmatpush1.bf16.msra.mxu0 0
      %2207 = vmatprep.subr.bf16.mxu0 0
      %2208 = vmatpush1.bf16.msra.mxu0 0
      %2209 = vmatprep.subr.bf16.mxu0 0
      %2210 = vmatpush1.bf16.msra.mxu0 0
      %2211 = vmatprep.subr.bf16.mxu0 0
      %2212 = vmatpush1.bf16.msra.mxu0 0
      %2213 = vmatprep.subr.bf16.mxu0 0
      %2214 = vmatpush1.bf16.msra.mxu0 0
      %2215 = vmatprep.subr.bf16.mxu0 0
      %2216 = vmatpush1.bf16.msra.mxu0 0
      %2217 = vmatprep.subr.bf16.mxu0 0
      %2218 = vmatpush1.bf16.msra.mxu0 0
      %2219 = vmatprep.subr.bf16.mxu0 0
      %2220 = vmatpush1.bf16.msra.mxu0 0
      %2221 = vmatprep.subr.bf16.mxu0 0
      %2222 = vmatpush1.bf16.msra.mxu0 0
      %2223 = vmatprep.subr.bf16.mxu0 0
      %2224 = vmatpush1.bf16.msra.mxu0 0
      %2225 = vmatprep.subr.bf16.mxu0 0
      %2226 = vmatpush1.bf16.msra.mxu0 0
      %2227 = vmatprep.subr.bf16.mxu0 0
      %2228 = vmatpush1.bf16.msra.mxu0 0
      %2229 = vmatprep.subr.bf16.mxu0 0
      %2230 = vmatpush1.bf16.msra.mxu0 0
      %2231 = vmatprep.subr.bf16.mxu0 0
      %2232 = vmatpush1.bf16.msra.mxu0 0
      %2233 = vmatprep.mubr.bf16.mxu0 0
      %2234 = vmatmul.mubr.bf16.gmra.mrb[0].mxu0 %v2136
      %v2235 = vpop.f32.mrb[0].mxu0
      %v2236 = vadd.f32 0.0, %v2235
      %v2237 = vpop.f32.mrb[0].mxu0
      %v2238 = vpop.f32.mrb[0].mxu0
      %v2239 = vadd.f32 0.0, %v2238
      %v2240 = vpop.f32.mrb[0].mxu0
      %2241 = vmatprep.mubr.bf16.mxu0 0
      %2242 = vmatmul.mubr.bf16.gmra.mrb[0].mxu0 %v2139
      %v2243 = vpop.f32.mrb[0].mxu0
      %v2244 = vadd.f32 0.0, %v2243
      %v2245 = vpop.f32.mrb[0].mxu0
      %v2246 = vpop.f32.mrb[0].mxu0
      %v2247 = vadd.f32 0.0, %v2246
      %v2248 = vpop.f32.mrb[0].mxu0
      %2249 = vmatprep.mubr.bf16.mxu0 0
      %2250 = vmatmul.mubr.bf16.gmra.mrb[0].mxu0 %v2142
      %v2251 = vpop.f32.mrb[0].mxu0
      %v2252 = vadd.f32 0.0, %v2251
      %v2253 = vpop.f32.mrb[0].mxu0
      %v2254 = vpop.f32.mrb[0].mxu0
      %v2255 = vadd.f32 0.0, %v2254
      %v2256 = vpop.f32.mrb[0].mxu0
      %2257 = vmatprep.mubr.bf16.mxu0 0
      %2258 = vmatmul.mubr.bf16.gmra.mrb[0].mxu0 %v2145
      %v2259 = vpop.f32.mrb[0].mxu0
      %v2260 = vadd.f32 0.0, %v2259
      %v2261 = vpop.f32.mrb[0].mxu0
      %v2262 = vpop.f32.mrb[0].mxu0
      %v2263 = vadd.f32 0.0, %v2262
      %v2264 = vpop.f32.mrb[0].mxu0
      %2265 = vmatprep.mubr.bf16.mxu0 0
      %2266 = vmatmul.mubr.bf16.gmra.mrb[0].mxu0 %v2148
      %v2267 = vpop.f32.mrb[0].mxu0
      %v2268 = vadd.f32 0.0, %v2267
      %v2269 = vpop.f32.mrb[0].mxu0
      %v2270 = vpop.f32.mrb[0].mxu0
      %v2271 = vadd.f32 0.0, %v2270
      %v2272 = vpop.f32.mrb[0].mxu0
      %2273 = vmatprep.mubr.bf16.mxu0 0
      %2274 = vmatmul.mubr.bf16.gmra.mrb[0].mxu0 %v2151
      %v2275 = vpop.f32.mrb[0].mxu0
      %v2276 = vadd.f32 0.0, %v2275
      %v2277 = vpop.f32.mrb[0].mxu0
      %v2278 = vpop.f32.mrb[0].mxu0
      %v2279 = vadd.f32 0.0, %v2278
      %v2280 = vpop.f32.mrb[0].mxu0
      %2281 = vmatprep.mubr.bf16.mxu0 0
      %2282 = vmatmul.mubr.bf16.gmra.mrb[0].mxu0 %v2154
      %v2283 = vpop.f32.mrb[0].mxu0
      %v2284 = vadd.f32 0.0, %v2283
      %v2285 = vpop.f32.mrb[0].mxu0
      %v2286 = vpop.f32.mrb[0].mxu0
      %v2287 = vadd.f32 0.0, %v2286
      %v2288 = vpop.f32.mrb[0].mxu0
      %2289 = vmatprep.mubr.bf16.mxu0 0
      %2290 = vmatmul.mubr.bf16.gmra.mrb[0].mxu0 %v2157
      %v2291 = vpop.f32.mrb[0].mxu0
      %v2292 = vadd.f32 0.0, %v2291
      %v2293 = vpop.f32.mrb[0].mxu0
      %v2294 = vpop.f32.mrb[0].mxu0
      %v2295 = vadd.f32 0.0, %v2294
      %v2296 = vpop.f32.mrb[0].mxu0
      %2297 = vmatprep.mubr.bf16.mxu0 0
      %2298 = vmatmul.mubr.bf16.gmra.mrb[0].mxu0 %v2160
      %v2299 = vpop.f32.mrb[0].mxu0
      %v2300 = vadd.f32 0.0, %v2299
      %v2301 = vpop.f32.mrb[0].mxu0
      %v2302 = vpop.f32.mrb[0].mxu0
      %v2303 = vadd.f32 0.0, %v2302
      %v2304 = vpop.f32.mrb[0].mxu0
      %2305 = vmatprep.mubr.bf16.mxu0 0
      %2306 = vmatmul.mubr.bf16.gmra.mrb[0].mxu0 %v2163
      %v2307 = vpop.f32.mrb[0].mxu0
      %v2308 = vadd.f32 0.0, %v2307
      %v2309 = vpop.f32.mrb[0].mxu0
      %v2310 = vpop.f32.mrb[0].mxu0
      %v2311 = vadd.f32 0.0, %v2310
      %v2312 = vpop.f32.mrb[0].mxu0
      %2313 = vmatprep.mubr.bf16.mxu0 0
      %2314 = vmatmul.mubr.bf16.gmra.mrb[0].mxu0 %v2166
      %v2315 = vpop.f32.mrb[0].mxu0
      %v2316 = vadd.f32 0.0, %v2315
      %v2317 = vpop.f32.mrb[0].mxu0
      %v2318 = vpop.f32.mrb[0].mxu0
      %v2319 = vadd.f32 0.0, %v2318
      %v2320 = vpop.f32.mrb[0].mxu0
      %2321 = vmatprep.mubr.bf16.mxu0 0
      %2322 = vmatmul.mubr.bf16.gmra.mrb[0].mxu0 %v2169
      %v2323 = vpop.f32.mrb[0].mxu0
      %v2324 = vadd.f32 0.0, %v2323
      %v2325 = vpop.f32.mrb[0].mxu0
      %v2326 = vpop.f32.mrb[0].mxu0
      %v2327 = vadd.f32 0.0, %v2326
      %v2328 = vpop.f32.mrb[0].mxu0
      %2329 = vmatprep.mubr.bf16.mxu0 0
      %2330 = vmatmul.mubr.bf16.gmra.mrb[0].mxu0 %v2172
      %v2331 = vpop.f32.mrb[0].mxu0
      %v2332 = vadd.f32 0.0, %v2331
      %v2333 = vpop.f32.mrb[0].mxu0
      %v2334 = vpop.f32.mrb[0].mxu0
      %v2335 = vadd.f32 0.0, %v2334
      %v2336 = vpop.f32.mrb[0].mxu0
      %2337 = vmatprep.mubr.bf16.mxu0 0
      %2338 = vmatmul.mubr.bf16.gmra.mrb[0].mxu0 %v2175
      %v2339 = vpop.f32.mrb[0].mxu0
      %v2340 = vadd.f32 0.0, %v2339
      %v2341 = vpop.f32.mrb[0].mxu0
      %v2342 = vpop.f32.mrb[0].mxu0
      %v2343 = vadd.f32 0.0, %v2342
      %v2344 = vpop.f32.mrb[0].mxu0
      %2345 = vmatprep.mubr.bf16.mxu0 0
      %2346 = vmatmul.mubr.bf16.gmra.mrb[0].mxu0 %v2178
      %v2347 = vpop.f32.mrb[0].mxu0
      %v2348 = vadd.f32 0.0, %v2347
      %v2349 = vpop.f32.mrb[0].mxu0
      %v2350 = vpop.f32.mrb[0].mxu0
      %v2351 = vadd.f32 0.0, %v2350
      %v2352 = vpop.f32.mrb[0].mxu0
      %2353 = vmatprep.mubr.bf16.mxu0 0
      %2354 = vmatmul.mubr.bf16.gmra.mrb[0].mxu0 %v2181
      %v2355 = vpop.f32.mrb[0].mxu0
      %v2356 = vadd.f32 0.0, %v2355
      %v2357 = vpop.f32.mrb[0].mxu0
      %v2358 = vpop.f32.mrb[0].mxu0
      %v2359 = vadd.f32 0.0, %v2358
      %v2360 = vpop.f32.mrb[0].mxu0
      %2361 = vmatprep.mubr.bf16.mxu0 0
      %2362 = vmatmul.mubr.bf16.gmra.mrb[0].mxu0 %v2184
      %v2363 = vpop.f32.mrb[0].mxu0
      %v2364 = vadd.f32 0.0, %v2363
      %v2365 = vpop.f32.mrb[0].mxu0
      %v2366 = vpop.f32.mrb[0].mxu0
      %v2367 = vadd.f32 0.0, %v2366
      %v2368 = vpop.f32.mrb[0].mxu0
      %2369 = vmatprep.mubr.bf16.mxu0 0
      %2370 = vmatmul.mubr.bf16.gmra.mrb[0].mxu0 %v2187
      %v2371 = vpop.f32.mrb[0].mxu0
      %v2372 = vadd.f32 0.0, %v2371
      %v2373 = vpop.f32.mrb[0].mxu0
      %v2374 = vpop.f32.mrb[0].mxu0
      %v2375 = vadd.f32 0.0, %v2374
      %v2376 = vpop.f32.mrb[0].mxu0
      %2377 = vmatprep.mubr.bf16.mxu0 0
      %2378 = vmatmul.mubr.bf16.gmra.mrb[0].mxu0 %v2190
      %v2379 = vpop.f32.mrb[0].mxu0
      %v2380 = vadd.f32 0.0, %v2379
      %v2381 = vpop.f32.mrb[0].mxu0
      %v2382 = vpop.f32.mrb[0].mxu0
      %v2383 = vadd.f32 0.0, %v2382
      %v2384 = vpop.f32.mrb[0].mxu0
      %2385 = vmatprep.mubr.bf16.mxu0 0
      %2386 = vmatmul.mubr.bf16.gmra.mrb[0].mxu0 %v2193
      %v2387 = vpop.f32.mrb[0].mxu0
      %v2388 = vadd.f32 0.0, %v2387
      %v2389 = vpop.f32.mrb[0].mxu0
      %v2390 = vpop.f32.mrb[0].mxu0
      %v2391 = vadd.f32 0.0, %v2390
      %v2392 = vpop.f32.mrb[0].mxu0
      %2393 = vmatprep.mubr.bf16.mxu0 0
      %2394 = vmatmul.mubr.bf16.gmra.mrb[0].mxu0 %v2196
      %v2395 = vpop.f32.mrb[0].mxu0
      %v2396 = vadd.f32 0.0, %v2395
      %v2397 = vpop.f32.mrb[0].mxu0
      %v2398 = vpop.f32.mrb[0].mxu0
      %v2399 = vpop.f32.mrb[0].mxu0
      %2400 = vdwg.mxu0
      %v2401 = vadd.f32 %v2020, %v2236
      %v2402 = vadd.f32 %v2021, %v2239
      %v2403 = vadd.f32 %v2022, %v2244
      %v2404 = vadd.f32 %v2023, %v2247
      %v2405 = vadd.f32 %v2024, %v2252
      %v2406 = vadd.f32 %v2025, %v2255
      %v2407 = vadd.f32 %v2026, %v2260
      %v2408 = vadd.f32 %v2027, %v2263
      %v2409 = vadd.f32 %v2028, %v2268
      %v2410 = vadd.f32 %v2029, %v2271
      %v2411 = vadd.f32 %v2030, %v2276
      %v2412 = vadd.f32 %v2031, %v2279
      %v2413 = vadd.f32 %v2032, %v2284
      %v2414 = vadd.f32 %v2033, %v2287
      %v2415 = vadd.f32 %v2034, %v2292
      %v2416 = vadd.f32 %v2035, %v2295
      %v2417 = vadd.f32 %v2036, %v2300
      %v2418 = vadd.f32 %v2037, %v2303
      %v2419 = vadd.f32 %v2038, %v2308
      %v2420 = vadd.f32 %v2039, %v2311
      %v2421 = vadd.f32 %v2040, %v2316
      %v2422 = vadd.f32 %v2041, %v2319
      %v2423 = vadd.f32 %v2042, %v2324
      %v2424 = vadd.f32 %v2043, %v2327
      %v2425 = vadd.f32 %v2044, %v2332
      %v2426 = vadd.f32 %v2045, %v2335
      %v2427 = vadd.f32 %v2046, %v2340
      %v2428 = vadd.f32 %v2047, %v2343
      %v2429 = vadd.f32 %v2048, %v2348
      %v2430 = vadd.f32 %v2049, %v2351
      %v2431 = vadd.f32 %v2050, %v2356
      %v2432 = vadd.f32 %v2051, %v2359
      %v2433 = vadd.f32 %v2052, %v2364
      %v2434 = vadd.f32 %v2053, %v2367
      %v2435 = vadd.f32 %v2054, %v2372
      %v2436 = vadd.f32 %v2055, %v2375
      %v2437 = vadd.f32 %v2056, %v2380
      %v2438 = vadd.f32 %v2057, %v2383
      %v2439 = vadd.f32 %v2058, %v2388
      %v2440 = vadd.f32 %v2059, %v2391
      %v2441 = vadd.f32 %v2060, %v2396
      %v2442 = vpack.c.b16 %v319, %v319
      %v2443 = vrot.slane %v377, 4
      %v2444 = vrot.slane %v380, 5
      %v2445 = vor.u32 %v2443, %v2444
      %v2447 = vshll.u32 %v2442, 16
      %v2449 = vrot.slane %v2447, 5
      %v2450 = vsel %vm2132, %v2445, %v2449
      %v2452 = vsel %vm2133, %v2123, %v2445
      %v2454 = vsel %vm607, %v2452, 0
      %v2457 = vsel %vm607, %v2450, 0
      %v2460 = vsel %vm670, %v249, 0
      %2462 = vmatprep.subr.bf16.mxu0 0
      %2463 = vmatpush1.bf16.msra.mxu0 %v2460
      %2464 = vmatprep.subr.bf16.mxu0 0
      %2465 = vmatpush1.bf16.msra.mxu0 0
      %2466 = vmatprep.subr.bf16.mxu0 0
      %2467 = vmatpush1.bf16.msra.mxu0 0
      %2468 = vmatprep.subr.bf16.mxu0 0
      %2469 = vmatpush1.bf16.msra.mxu0 0
      %2470 = vmatprep.subr.bf16.mxu0 0
      %2471 = vmatpush1.bf16.msra.mxu0 0
      %2472 = vmatprep.subr.bf16.mxu0 0
      %2473 = vmatpush1.bf16.msra.mxu0 0
      %2474 = vmatprep.subr.bf16.mxu0 0
      %2475 = vmatpush1.bf16.msra.mxu0 0
      %2476 = vmatprep.subr.bf16.mxu0 0
      %2477 = vmatpush1.bf16.msra.mxu0 0
      %2478 = vmatprep.subr.bf16.mxu0 0
      %2479 = vmatpush1.bf16.msra.mxu0 0
      %2480 = vmatprep.subr.bf16.mxu0 0
      %2481 = vmatpush1.bf16.msra.mxu0 0
      %2482 = vmatprep.subr.bf16.mxu0 0
      %2483 = vmatpush1.bf16.msra.mxu0 0
      %2484 = vmatprep.subr.bf16.mxu0 0
      %2485 = vmatpush1.bf16.msra.mxu0 0
      %2486 = vmatprep.subr.bf16.mxu0 0
      %2487 = vmatpush1.bf16.msra.mxu0 0
      %2488 = vmatprep.subr.bf16.mxu0 0
      %2489 = vmatpush1.bf16.msra.mxu0 0
      %2490 = vmatprep.subr.bf16.mxu0 0
      %2491 = vmatpush1.bf16.msra.mxu0 0
      %2492 = vmatprep.subr.bf16.mxu0 0
      %2493 = vmatpush1.bf16.msra.mxu0 0
      %2494 = vmatprep.mubr.bf16.mxu0 0
      %2495 = vmatmul.mubr.bf16.gmra.mrb[0].mxu0 %v2139
      %v2496 = vpop.f32.mrb[0].mxu0
      %v2497 = vadd.f32 0.0, %v2496
      %v2498 = vpop.f32.mrb[0].mxu0
      %v2499 = vpop.f32.mrb[0].mxu0
      %v2500 = vadd.f32 0.0, %v2499
      %v2501 = vpop.f32.mrb[0].mxu0
      %2502 = vmatprep.mubr.bf16.mxu0 0
      %2503 = vmatmul.mubr.bf16.gmra.mrb[0].mxu0 %v2142
      %v2504 = vpop.f32.mrb[0].mxu0
      %v2505 = vadd.f32 0.0, %v2504
      %v2506 = vpop.f32.mrb[0].mxu0
      %v2507 = vpop.f32.mrb[0].mxu0
      %v2508 = vadd.f32 0.0, %v2507
      %v2509 = vpop.f32.mrb[0].mxu0
      %2510 = vmatprep.mubr.bf16.mxu0 0
      %2511 = vmatmul.mubr.bf16.gmra.mrb[0].mxu0 %v2145
      %v2512 = vpop.f32.mrb[0].mxu0
      %v2513 = vadd.f32 0.0, %v2512
      %v2514 = vpop.f32.mrb[0].mxu0
      %v2515 = vpop.f32.mrb[0].mxu0
      %v2516 = vadd.f32 0.0, %v2515
      %v2517 = vpop.f32.mrb[0].mxu0
      %2518 = vmatprep.mubr.bf16.mxu0 0
      %2519 = vmatmul.mubr.bf16.gmra.mrb[0].mxu0 %v2148
      %v2520 = vpop.f32.mrb[0].mxu0
      %v2521 = vadd.f32 0.0, %v2520
      %v2522 = vpop.f32.mrb[0].mxu0
      %v2523 = vpop.f32.mrb[0].mxu0
      %v2524 = vadd.f32 0.0, %v2523
      %v2525 = vpop.f32.mrb[0].mxu0
      %2526 = vmatprep.mubr.bf16.mxu0 0
      %2527 = vmatmul.mubr.bf16.gmra.mrb[0].mxu0 %v2151
      %v2528 = vpop.f32.mrb[0].mxu0
      %v2529 = vadd.f32 0.0, %v2528
      %v2530 = vpop.f32.mrb[0].mxu0
      %v2531 = vpop.f32.mrb[0].mxu0
      %v2532 = vadd.f32 0.0, %v2531
      %v2533 = vpop.f32.mrb[0].mxu0
      %2534 = vmatprep.mubr.bf16.mxu0 0
      %2535 = vmatmul.mubr.bf16.gmra.mrb[0].mxu0 %v2154
      %v2536 = vpop.f32.mrb[0].mxu0
      %v2537 = vadd.f32 0.0, %v2536
      %v2538 = vpop.f32.mrb[0].mxu0
      %v2539 = vpop.f32.mrb[0].mxu0
      %v2540 = vadd.f32 0.0, %v2539
      %v2541 = vpop.f32.mrb[0].mxu0
      %2542 = vmatprep.mubr.bf16.mxu0 0
      %2543 = vmatmul.mubr.bf16.gmra.mrb[0].mxu0 %v2157
      %v2544 = vpop.f32.mrb[0].mxu0
      %v2545 = vadd.f32 0.0, %v2544
      %v2546 = vpop.f32.mrb[0].mxu0
      %v2547 = vpop.f32.mrb[0].mxu0
      %v2548 = vadd.f32 0.0, %v2547
      %v2549 = vpop.f32.mrb[0].mxu0
      %2550 = vmatprep.mubr.bf16.mxu0 0
      %2551 = vmatmul.mubr.bf16.gmra.mrb[0].mxu0 %v2160
      %v2552 = vpop.f32.mrb[0].mxu0
      %v2553 = vadd.f32 0.0, %v2552
      %v2554 = vpop.f32.mrb[0].mxu0
      %v2555 = vpop.f32.mrb[0].mxu0
      %v2556 = vadd.f32 0.0, %v2555
      %v2557 = vpop.f32.mrb[0].mxu0
      %2558 = vmatprep.mubr.bf16.mxu0 0
      %2559 = vmatmul.mubr.bf16.gmra.mrb[0].mxu0 %v2163
      %v2560 = vpop.f32.mrb[0].mxu0
      %v2561 = vadd.f32 0.0, %v2560
      %v2562 = vpop.f32.mrb[0].mxu0
      %v2563 = vpop.f32.mrb[0].mxu0
      %v2564 = vadd.f32 0.0, %v2563
      %v2565 = vpop.f32.mrb[0].mxu0
      %2566 = vmatprep.mubr.bf16.mxu0 0
      %2567 = vmatmul.mubr.bf16.gmra.mrb[0].mxu0 %v2166
      %v2568 = vpop.f32.mrb[0].mxu0
      %v2569 = vadd.f32 0.0, %v2568
      %v2570 = vpop.f32.mrb[0].mxu0
      %v2571 = vpop.f32.mrb[0].mxu0
      %v2572 = vadd.f32 0.0, %v2571
      %v2573 = vpop.f32.mrb[0].mxu0
      %2574 = vmatprep.mubr.bf16.mxu0 0
      %2575 = vmatmul.mubr.bf16.gmra.mrb[0].mxu0 %v2169
      %v2576 = vpop.f32.mrb[0].mxu0
      %v2577 = vadd.f32 0.0, %v2576
      %v2578 = vpop.f32.mrb[0].mxu0
      %v2579 = vpop.f32.mrb[0].mxu0
      %v2580 = vadd.f32 0.0, %v2579
      %v2581 = vpop.f32.mrb[0].mxu0
      %2582 = vmatprep.mubr.bf16.mxu0 0
      %2583 = vmatmul.mubr.bf16.gmra.mrb[0].mxu0 %v2172
      %v2584 = vpop.f32.mrb[0].mxu0
      %v2585 = vadd.f32 0.0, %v2584
      %v2586 = vpop.f32.mrb[0].mxu0
      %v2587 = vpop.f32.mrb[0].mxu0
      %v2588 = vadd.f32 0.0, %v2587
      %v2589 = vpop.f32.mrb[0].mxu0
      %2590 = vmatprep.mubr.bf16.mxu0 0
      %2591 = vmatmul.mubr.bf16.gmra.mrb[0].mxu0 %v2175
      %v2592 = vpop.f32.mrb[0].mxu0
      %v2593 = vadd.f32 0.0, %v2592
      %v2594 = vpop.f32.mrb[0].mxu0
      %v2595 = vpop.f32.mrb[0].mxu0
      %v2596 = vadd.f32 0.0, %v2595
      %v2597 = vpop.f32.mrb[0].mxu0
      %2598 = vmatprep.mubr.bf16.mxu0 0
      %2599 = vmatmul.mubr.bf16.gmra.mrb[0].mxu0 %v2178
      %v2600 = vpop.f32.mrb[0].mxu0
      %v2601 = vadd.f32 0.0, %v2600
      %v2602 = vpop.f32.mrb[0].mxu0
      %v2603 = vpop.f32.mrb[0].mxu0
      %v2604 = vadd.f32 0.0, %v2603
      %v2605 = vpop.f32.mrb[0].mxu0
      %2606 = vmatprep.mubr.bf16.mxu0 0
      %2607 = vmatmul.mubr.bf16.gmra.mrb[0].mxu0 %v2181
      %v2608 = vpop.f32.mrb[0].mxu0
      %v2609 = vadd.f32 0.0, %v2608
      %v2610 = vpop.f32.mrb[0].mxu0
      %v2611 = vpop.f32.mrb[0].mxu0
      %v2612 = vadd.f32 0.0, %v2611
      %v2613 = vpop.f32.mrb[0].mxu0
      %2614 = vmatprep.mubr.bf16.mxu0 0
      %2615 = vmatmul.mubr.bf16.gmra.mrb[0].mxu0 %v2184
      %v2616 = vpop.f32.mrb[0].mxu0
      %v2617 = vadd.f32 0.0, %v2616
      %v2618 = vpop.f32.mrb[0].mxu0
      %v2619 = vpop.f32.mrb[0].mxu0
      %v2620 = vadd.f32 0.0, %v2619
      %v2621 = vpop.f32.mrb[0].mxu0
      %2622 = vmatprep.mubr.bf16.mxu0 0
      %2623 = vmatmul.mubr.bf16.gmra.mrb[0].mxu0 %v2187
      %v2624 = vpop.f32.mrb[0].mxu0
      %v2625 = vadd.f32 0.0, %v2624
      %v2626 = vpop.f32.mrb[0].mxu0
      %v2627 = vpop.f32.mrb[0].mxu0
      %v2628 = vadd.f32 0.0, %v2627
      %v2629 = vpop.f32.mrb[0].mxu0
      %2630 = vmatprep.mubr.bf16.mxu0 0
      %2631 = vmatmul.mubr.bf16.gmra.mrb[0].mxu0 %v2190
      %v2632 = vpop.f32.mrb[0].mxu0
      %v2633 = vadd.f32 0.0, %v2632
      %v2634 = vpop.f32.mrb[0].mxu0
      %v2635 = vpop.f32.mrb[0].mxu0
      %v2636 = vadd.f32 0.0, %v2635
      %v2637 = vpop.f32.mrb[0].mxu0
      %2638 = vmatprep.mubr.bf16.mxu0 0
      %2639 = vmatmul.mubr.bf16.gmra.mrb[0].mxu0 %v2193
      %v2640 = vpop.f32.mrb[0].mxu0
      %v2641 = vadd.f32 0.0, %v2640
      %v2642 = vpop.f32.mrb[0].mxu0
      %v2643 = vpop.f32.mrb[0].mxu0
      %v2644 = vadd.f32 0.0, %v2643
      %v2645 = vpop.f32.mrb[0].mxu0
      %2646 = vmatprep.mubr.bf16.mxu0 0
      %2647 = vmatmul.mubr.bf16.gmra.mrb[0].mxu0 %v2454
      %v2648 = vpop.f32.mrb[0].mxu0
      %v2649 = vadd.f32 0.0, %v2648
      %v2650 = vpop.f32.mrb[0].mxu0
      %v2651 = vpop.f32.mrb[0].mxu0
      %v2652 = vadd.f32 0.0, %v2651
      %v2653 = vpop.f32.mrb[0].mxu0
      %2654 = vmatprep.mubr.bf16.mxu0 0
      %2655 = vmatmul.mubr.bf16.gmra.mrb[0].mxu0 %v2457
      %v2656 = vpop.f32.mrb[0].mxu0
      %v2657 = vadd.f32 0.0, %v2656
      %v2658 = vpop.f32.mrb[0].mxu0
      %v2659 = vpop.f32.mrb[0].mxu0
      %v2660 = vpop.f32.mrb[0].mxu0
      %2661 = vdwg.mxu0
      %v2662 = vadd.f32 %v2401, %v2497
      %v2663 = vadd.f32 %v2402, %v2500
      %v2664 = vadd.f32 %v2403, %v2505
      %v2665 = vadd.f32 %v2404, %v2508
      %v2666 = vadd.f32 %v2405, %v2513
      %v2667 = vadd.f32 %v2406, %v2516
      %v2668 = vadd.f32 %v2407, %v2521
      %v2669 = vadd.f32 %v2408, %v2524
      %v2670 = vadd.f32 %v2409, %v2529
      %v2671 = vadd.f32 %v2410, %v2532
      %v2672 = vadd.f32 %v2411, %v2537
      %v2673 = vadd.f32 %v2412, %v2540
      %v2674 = vadd.f32 %v2413, %v2545
      %v2675 = vadd.f32 %v2414, %v2548
      %v2676 = vadd.f32 %v2415, %v2553
      %v2677 = vadd.f32 %v2416, %v2556
      %v2678 = vadd.f32 %v2417, %v2561
      %v2679 = vadd.f32 %v2418, %v2564
      %v2680 = vadd.f32 %v2419, %v2569
      %v2681 = vadd.f32 %v2420, %v2572
      %v2682 = vadd.f32 %v2421, %v2577
      %v2683 = vadd.f32 %v2422, %v2580
      %v2684 = vadd.f32 %v2423, %v2585
      %v2685 = vadd.f32 %v2424, %v2588
      %v2686 = vadd.f32 %v2425, %v2593
      %v2687 = vadd.f32 %v2426, %v2596
      %v2688 = vadd.f32 %v2427, %v2601
      %v2689 = vadd.f32 %v2428, %v2604
      %v2690 = vadd.f32 %v2429, %v2609
      %v2691 = vadd.f32 %v2430, %v2612
      %v2692 = vadd.f32 %v2431, %v2617
      %v2693 = vadd.f32 %v2432, %v2620
      %v2694 = vadd.f32 %v2433, %v2625
      %v2695 = vadd.f32 %v2434, %v2628
      %v2696 = vadd.f32 %v2435, %v2633
      %v2697 = vadd.f32 %v2436, %v2636
      %v2698 = vadd.f32 %v2437, %v2641
      %v2699 = vadd.f32 %v2438, %v2644
      %v2700 = vadd.f32 %v2439, %v2649
      %v2701 = vadd.f32 %v2440, %v2652
      %v2702 = vadd.f32 %v2441, %v2657
      %vm2703 = vcmask 1046528
      %v2704 = vrot.slane %v356, 1
      %v2705 = vrot.slane %v357, 1
      %v2706 = vsel %vm2703, %v2704, %v2705
      %v2707 = vrot.slane %v358, 1
      %v2708 = vsel %vm2703, %v2705, %v2707
      %v2709 = vrot.slane %v359, 1
      %v2710 = vsel %vm2703, %v2707, %v2709
      %v2711 = vrot.slane %v360, 1
      %v2712 = vsel %vm2703, %v2709, %v2711
      %v2713 = vrot.slane %v361, 1
      %v2714 = vsel %vm2703, %v2711, %v2713
      %v2715 = vrot.slane %v362, 1
      %v2716 = vsel %vm2703, %v2713, %v2715
      %v2717 = vrot.slane %v363, 1
      %v2718 = vsel %vm2703, %v2715, %v2717
      %v2719 = vrot.slane %v364, 1
      %v2720 = vsel %vm2703, %v2717, %v2719
      %v2721 = vrot.slane %v365, 1
      %v2722 = vsel %vm2703, %v2719, %v2721
      %v2723 = vrot.slane %v366, 1
      %v2724 = vsel %vm2703, %v2721, %v2723
      %v2725 = vrot.slane %v367, 1
      %v2726 = vsel %vm2703, %v2723, %v2725
      %v2727 = vrot.slane %v368, 1
      %v2728 = vsel %vm2703, %v2725, %v2727
      %v2729 = vrot.slane %v369, 1
      %v2730 = vsel %vm2703, %v2727, %v2729
      %v2731 = vrot.slane %v370, 1
      %v2732 = vsel %vm2703, %v2729, %v2731
      %v2733 = vrot.slane %v371, 1
      %v2734 = vsel %vm2703, %v2731, %v2733
      %v2735 = vrot.slane %v372, 1
      %v2736 = vsel %vm2703, %v2733, %v2735
      %v2737 = vrot.slane %v373, 1
      %v2738 = vsel %vm2703, %v2735, %v2737
      %v2739 = vrot.slane %v258, 1
      %v2740 = vsel %vm2703, %v2737, %v2739
      %v2741 = vrot.slane %v259, 1
      %v2742 = vsel %vm2703, %v2739, %v2741
      %vm2743 = vcmask 1042432
      %v2744 = vrot.slane %v355, 5
      %v2745 = vrot.slane %v2442, 5
      %v2746 = vsel %vm2743, %v2744, %v2745
      %vm2747 = vcmask 1042432
      %v2750 = vsel %vm2747, %v2741, %v2744
      %v2752 = vsel %vm607, %v2706, 0
      %v2755 = vsel %vm607, %v2708, 0
      %v2758 = vsel %vm607, %v2710, 0
      %v2761 = vsel %vm607, %v2712, 0
      %v2764 = vsel %vm607, %v2714, 0
      %v2767 = vsel %vm607, %v2716, 0
      %v2770 = vsel %vm607, %v2718, 0
      %v2773 = vsel %vm607, %v2720, 0
      %v2776 = vsel %vm607, %v2722, 0
      %v2779 = vsel %vm607, %v2724, 0
      %v2782 = vsel %vm607, %v2726, 0
      %v2785 = vsel %vm607, %v2728, 0
      %v2788 = vsel %vm607, %v2730, 0
      %v2791 = vsel %vm607, %v2732, 0
      %v2794 = vsel %vm607, %v2734, 0
      %v2797 = vsel %vm607, %v2736, 0
      %v2800 = vsel %vm607, %v2738, 0
      %v2803 = vsel %vm607, %v2740, 0
      %v2806 = vsel %vm607, %v2742, 0
      %v2808 = vsel %vm607, %v2750, 0
      %v2811 = vsel %vm607, %v2746, 0
      %v2814 = vsel %vm670, %v250, 0
      %2816 = vmatprep.subr.bf16.mxu0 0
      %2817 = vmatpush1.bf16.msra.mxu0 %v2814
      %2818 = vmatprep.subr.bf16.mxu0 0
      %2819 = vmatpush1.bf16.msra.mxu0 0
      %2820 = vmatprep.subr.bf16.mxu0 0
      %2821 = vmatpush1.bf16.msra.mxu0 0
      %2822 = vmatprep.subr.bf16.mxu0 0
      %2823 = vmatpush1.bf16.msra.mxu0 0
      %2824 = vmatprep.subr.bf16.mxu0 0
      %2825 = vmatpush1.bf16.msra.mxu0 0
      %2826 = vmatprep.subr.bf16.mxu0 0
      %2827 = vmatpush1.bf16.msra.mxu0 0
      %2828 = vmatprep.subr.bf16.mxu0 0
      %2829 = vmatpush1.bf16.msra.mxu0 0
      %2830 = vmatprep.subr.bf16.mxu0 0
      %2831 = vmatpush1.bf16.msra.mxu0 0
      %2832 = vmatprep.subr.bf16.mxu0 0
      %2833 = vmatpush1.bf16.msra.mxu0 0
      %2834 = vmatprep.subr.bf16.mxu0 0
      %2835 = vmatpush1.bf16.msra.mxu0 0
      %2836 = vmatprep.subr.bf16.mxu0 0
      %2837 = vmatpush1.bf16.msra.mxu0 0
      %2838 = vmatprep.subr.bf16.mxu0 0
      %2839 = vmatpush1.bf16.msra.mxu0 0
      %2840 = vmatprep.subr.bf16.mxu0 0
      %2841 = vmatpush1.bf16.msra.mxu0 0
      %2842 = vmatprep.subr.bf16.mxu0 0
      %2843 = vmatpush1.bf16.msra.mxu0 0
      %2844 = vmatprep.subr.bf16.mxu0 0
      %2845 = vmatpush1.bf16.msra.mxu0 0
      %2846 = vmatprep.subr.bf16.mxu0 0
      %2847 = vmatpush1.bf16.msra.mxu0 0
      %2848 = vmatprep.mubr.bf16.mxu0 0
      %2849 = vmatmul.mubr.bf16.gmra.mrb[0].mxu0 %v2752
      %v2850 = vpop.f32.mrb[0].mxu0
      %v2851 = vadd.f32 0.0, %v2850
      %v2852 = vpop.f32.mrb[0].mxu0
      %v2853 = vpop.f32.mrb[0].mxu0
      %v2854 = vadd.f32 0.0, %v2853
      %v2855 = vpop.f32.mrb[0].mxu0
      %2856 = vmatprep.mubr.bf16.mxu0 0
      %2857 = vmatmul.mubr.bf16.gmra.mrb[0].mxu0 %v2755
      %v2858 = vpop.f32.mrb[0].mxu0
      %v2859 = vadd.f32 0.0, %v2858
      %v2860 = vpop.f32.mrb[0].mxu0
      %v2861 = vpop.f32.mrb[0].mxu0
      %v2862 = vadd.f32 0.0, %v2861
      %v2863 = vpop.f32.mrb[0].mxu0
      %2864 = vmatprep.mubr.bf16.mxu0 0
      %2865 = vmatmul.mubr.bf16.gmra.mrb[0].mxu0 %v2758
      %v2866 = vpop.f32.mrb[0].mxu0
      %v2867 = vadd.f32 0.0, %v2866
      %v2868 = vpop.f32.mrb[0].mxu0
      %v2869 = vpop.f32.mrb[0].mxu0
      %v2870 = vadd.f32 0.0, %v2869
      %v2871 = vpop.f32.mrb[0].mxu0
      %2872 = vmatprep.mubr.bf16.mxu0 0
      %2873 = vmatmul.mubr.bf16.gmra.mrb[0].mxu0 %v2761
      %v2874 = vpop.f32.mrb[0].mxu0
      %v2875 = vadd.f32 0.0, %v2874
      %v2876 = vpop.f32.mrb[0].mxu0
      %v2877 = vpop.f32.mrb[0].mxu0
      %v2878 = vadd.f32 0.0, %v2877
      %v2879 = vpop.f32.mrb[0].mxu0
      %2880 = vmatprep.mubr.bf16.mxu0 0
      %2881 = vmatmul.mubr.bf16.gmra.mrb[0].mxu0 %v2764
      %v2882 = vpop.f32.mrb[0].mxu0
      %v2883 = vadd.f32 0.0, %v2882
      %v2884 = vpop.f32.mrb[0].mxu0
      %v2885 = vpop.f32.mrb[0].mxu0
      %v2886 = vadd.f32 0.0, %v2885
      %v2887 = vpop.f32.mrb[0].mxu0
      %2888 = vmatprep.mubr.bf16.mxu0 0
      %2889 = vmatmul.mubr.bf16.gmra.mrb[0].mxu0 %v2767
      %v2890 = vpop.f32.mrb[0].mxu0
      %v2891 = vadd.f32 0.0, %v2890
      %v2892 = vpop.f32.mrb[0].mxu0
      %v2893 = vpop.f32.mrb[0].mxu0
      %v2894 = vadd.f32 0.0, %v2893
      %v2895 = vpop.f32.mrb[0].mxu0
      %2896 = vmatprep.mubr.bf16.mxu0 0
      %2897 = vmatmul.mubr.bf16.gmra.mrb[0].mxu0 %v2770
      %v2898 = vpop.f32.mrb[0].mxu0
      %v2899 = vadd.f32 0.0, %v2898
      %v2900 = vpop.f32.mrb[0].mxu0
      %v2901 = vpop.f32.mrb[0].mxu0
      %v2902 = vadd.f32 0.0, %v2901
      %v2903 = vpop.f32.mrb[0].mxu0
      %2904 = vmatprep.mubr.bf16.mxu0 0
      %2905 = vmatmul.mubr.bf16.gmra.mrb[0].mxu0 %v2773
      %v2906 = vpop.f32.mrb[0].mxu0
      %v2907 = vadd.f32 0.0, %v2906
      %v2908 = vpop.f32.mrb[0].mxu0
      %v2909 = vpop.f32.mrb[0].mxu0
      %v2910 = vadd.f32 0.0, %v2909
      %v2911 = vpop.f32.mrb[0].mxu0
      %2912 = vmatprep.mubr.bf16.mxu0 0
      %2913 = vmatmul.mubr.bf16.gmra.mrb[0].mxu0 %v2776
      %v2914 = vpop.f32.mrb[0].mxu0
      %v2915 = vadd.f32 0.0, %v2914
      %v2916 = vpop.f32.mrb[0].mxu0
      %v2917 = vpop.f32.mrb[0].mxu0
      %v2918 = vadd.f32 0.0, %v2917
      %v2919 = vpop.f32.mrb[0].mxu0
      %2920 = vmatprep.mubr.bf16.mxu0 0
      %2921 = vmatmul.mubr.bf16.gmra.mrb[0].mxu0 %v2779
      %v2922 = vpop.f32.mrb[0].mxu0
      %v2923 = vadd.f32 0.0, %v2922
      %v2924 = vpop.f32.mrb[0].mxu0
      %v2925 = vpop.f32.mrb[0].mxu0
      %v2926 = vadd.f32 0.0, %v2925
      %v2927 = vpop.f32.mrb[0].mxu0
      %2928 = vmatprep.mubr.bf16.mxu0 0
      %2929 = vmatmul.mubr.bf16.gmra.mrb[0].mxu0 %v2782
      %v2930 = vpop.f32.mrb[0].mxu0
      %v2931 = vadd.f32 0.0, %v2930
      %v2932 = vpop.f32.mrb[0].mxu0
      %v2933 = vpop.f32.mrb[0].mxu0
      %v2934 = vadd.f32 0.0, %v2933
      %v2935 = vpop.f32.mrb[0].mxu0
      %2936 = vmatprep.mubr.bf16.mxu0 0
      %2937 = vmatmul.mubr.bf16.gmra.mrb[0].mxu0 %v2785
      %v2938 = vpop.f32.mrb[0].mxu0
      %v2939 = vadd.f32 0.0, %v2938
      %v2940 = vpop.f32.mrb[0].mxu0
      %v2941 = vpop.f32.mrb[0].mxu0
      %v2942 = vadd.f32 0.0, %v2941
      %v2943 = vpop.f32.mrb[0].mxu0
      %2944 = vmatprep.mubr.bf16.mxu0 0
      %2945 = vmatmul.mubr.bf16.gmra.mrb[0].mxu0 %v2788
      %v2946 = vpop.f32.mrb[0].mxu0
      %v2947 = vadd.f32 0.0, %v2946
      %v2948 = vpop.f32.mrb[0].mxu0
      %v2949 = vpop.f32.mrb[0].mxu0
      %v2950 = vadd.f32 0.0, %v2949
      %v2951 = vpop.f32.mrb[0].mxu0
      %2952 = vmatprep.mubr.bf16.mxu0 0
      %2953 = vmatmul.mubr.bf16.gmra.mrb[0].mxu0 %v2791
      %v2954 = vpop.f32.mrb[0].mxu0
      %v2955 = vadd.f32 0.0, %v2954
      %v2956 = vpop.f32.mrb[0].mxu0
      %v2957 = vpop.f32.mrb[0].mxu0
      %v2958 = vadd.f32 0.0, %v2957
      %v2959 = vpop.f32.mrb[0].mxu0
      %2960 = vmatprep.mubr.bf16.mxu0 0
      %2961 = vmatmul.mubr.bf16.gmra.mrb[0].mxu0 %v2794
      %v2962 = vpop.f32.mrb[0].mxu0
      %v2963 = vadd.f32 0.0, %v2962
      %v2964 = vpop.f32.mrb[0].mxu0
      %v2965 = vpop.f32.mrb[0].mxu0
      %v2966 = vadd.f32 0.0, %v2965
      %v2967 = vpop.f32.mrb[0].mxu0
      %2968 = vmatprep.mubr.bf16.mxu0 0
      %2969 = vmatmul.mubr.bf16.gmra.mrb[0].mxu0 %v2797
      %v2970 = vpop.f32.mrb[0].mxu0
      %v2971 = vadd.f32 0.0, %v2970
      %v2972 = vpop.f32.mrb[0].mxu0
      %v2973 = vpop.f32.mrb[0].mxu0
      %v2974 = vadd.f32 0.0, %v2973
      %v2975 = vpop.f32.mrb[0].mxu0
      %2976 = vmatprep.mubr.bf16.mxu0 0
      %2977 = vmatmul.mubr.bf16.gmra.mrb[0].mxu0 %v2800
      %v2978 = vpop.f32.mrb[0].mxu0
      %v2979 = vadd.f32 0.0, %v2978
      %v2980 = vpop.f32.mrb[0].mxu0
      %v2981 = vpop.f32.mrb[0].mxu0
      %v2982 = vadd.f32 0.0, %v2981
      %v2983 = vpop.f32.mrb[0].mxu0
      %2984 = vmatprep.mubr.bf16.mxu0 0
      %2985 = vmatmul.mubr.bf16.gmra.mrb[0].mxu0 %v2803
      %v2986 = vpop.f32.mrb[0].mxu0
      %v2987 = vadd.f32 0.0, %v2986
      %v2988 = vpop.f32.mrb[0].mxu0
      %v2989 = vpop.f32.mrb[0].mxu0
      %v2990 = vadd.f32 0.0, %v2989
      %v2991 = vpop.f32.mrb[0].mxu0
      %2992 = vmatprep.mubr.bf16.mxu0 0
      %2993 = vmatmul.mubr.bf16.gmra.mrb[0].mxu0 %v2806
      %v2994 = vpop.f32.mrb[0].mxu0
      %v2995 = vadd.f32 0.0, %v2994
      %v2996 = vpop.f32.mrb[0].mxu0
      %v2997 = vpop.f32.mrb[0].mxu0
      %v2998 = vadd.f32 0.0, %v2997
      %v2999 = vpop.f32.mrb[0].mxu0
      %3000 = vmatprep.mubr.bf16.mxu0 0
      %3001 = vmatmul.mubr.bf16.gmra.mrb[0].mxu0 %v2808
      %v3002 = vpop.f32.mrb[0].mxu0
      %v3003 = vadd.f32 0.0, %v3002
      %v3004 = vpop.f32.mrb[0].mxu0
      %v3005 = vpop.f32.mrb[0].mxu0
      %v3006 = vadd.f32 0.0, %v3005
      %v3007 = vpop.f32.mrb[0].mxu0
      %3008 = vmatprep.mubr.bf16.mxu0 0
      %3009 = vmatmul.mubr.bf16.gmra.mrb[0].mxu0 %v2811
      %v3010 = vpop.f32.mrb[0].mxu0
      %v3011 = vadd.f32 0.0, %v3010
      %v3012 = vpop.f32.mrb[0].mxu0
      %v3013 = vpop.f32.mrb[0].mxu0
      %v3014 = vpop.f32.mrb[0].mxu0
      %3015 = vdwg.mxu0
      %v3016 = vadd.f32 %v2662, %v2851
      %v3017 = vadd.f32 %v2663, %v2854
      %v3018 = vadd.f32 %v2664, %v2859
      %v3019 = vadd.f32 %v2665, %v2862
      %v3020 = vadd.f32 %v2666, %v2867
      %v3021 = vadd.f32 %v2667, %v2870
      %v3022 = vadd.f32 %v2668, %v2875
      %v3023 = vadd.f32 %v2669, %v2878
      %v3024 = vadd.f32 %v2670, %v2883
      %v3025 = vadd.f32 %v2671, %v2886
      %v3026 = vadd.f32 %v2672, %v2891
      %v3027 = vadd.f32 %v2673, %v2894
      %v3028 = vadd.f32 %v2674, %v2899
      %v3029 = vadd.f32 %v2675, %v2902
      %v3030 = vadd.f32 %v2676, %v2907
      %v3031 = vadd.f32 %v2677, %v2910
      %v3032 = vadd.f32 %v2678, %v2915
      %v3033 = vadd.f32 %v2679, %v2918
      %v3034 = vadd.f32 %v2680, %v2923
      %v3035 = vadd.f32 %v2681, %v2926
      %v3036 = vadd.f32 %v2682, %v2931
      %v3037 = vadd.f32 %v2683, %v2934
      %v3038 = vadd.f32 %v2684, %v2939
      %v3039 = vadd.f32 %v2685, %v2942
      %v3040 = vadd.f32 %v2686, %v2947
      %v3041 = vadd.f32 %v2687, %v2950
      %v3042 = vadd.f32 %v2688, %v2955
      %v3043 = vadd.f32 %v2689, %v2958
      %v3044 = vadd.f32 %v2690, %v2963
      %v3045 = vadd.f32 %v2691, %v2966
      %v3046 = vadd.f32 %v2692, %v2971
      %v3047 = vadd.f32 %v2693, %v2974
      %v3048 = vadd.f32 %v2694, %v2979
      %v3049 = vadd.f32 %v2695, %v2982
      %v3050 = vadd.f32 %v2696, %v2987
      %v3051 = vadd.f32 %v2697, %v2990
      %v3052 = vadd.f32 %v2698, %v2995
      %v3053 = vadd.f32 %v2699, %v2998
      %v3054 = vadd.f32 %v2700, %v3003
      %v3055 = vadd.f32 %v2701, %v3006
      %v3056 = vadd.f32 %v2702, %v3011
      %vm3057 = vsmask.f32 6400
      %v3058 = vrot.slane %v385, 1
      %v3059 = vrot.slane %v388, 2
      %v3060 = vor.u32 %v3058, %v3059
      %v3061 = vrot.slane %v394, 1
      %v3062 = vrot.slane %v397, 2
      %v3063 = vor.u32 %v3061, %v3062
      %v3064 = vsel %vm3057, %v3060, %v3063
      %v3065 = vrot.slane %v403, 1
      %v3066 = vrot.slane %v406, 2
      %v3067 = vor.u32 %v3065, %v3066
      %v3068 = vsel %vm3057, %v3063, %v3067
      %v3069 = vrot.slane %v412, 1
      %v3070 = vrot.slane %v415, 2
      %v3071 = vor.u32 %v3069, %v3070
      %v3072 = vsel %vm3057, %v3067, %v3071
      %v3073 = vrot.slane %v421, 1
      %v3074 = vrot.slane %v424, 2
      %v3075 = vor.u32 %v3073, %v3074
      %v3076 = vsel %vm3057, %v3071, %v3075
      %v3077 = vrot.slane %v430, 1
      %v3078 = vrot.slane %v433, 2
      %v3079 = vor.u32 %v3077, %v3078
      %v3080 = vsel %vm3057, %v3075, %v3079
      %v3081 = vrot.slane %v439, 1
      %v3082 = vrot.slane %v442, 2
      %v3083 = vor.u32 %v3081, %v3082
      %v3084 = vsel %vm3057, %v3079, %v3083
      %v3085 = vrot.slane %v448, 1
      %v3086 = vrot.slane %v451, 2
      %v3087 = vor.u32 %v3085, %v3086
      %v3088 = vsel %vm3057, %v3083, %v3087
      %v3089 = vrot.slane %v457, 1
      %v3090 = vrot.slane %v460, 2
      %v3091 = vor.u32 %v3089, %v3090
      %v3092 = vsel %vm3057, %v3087, %v3091
      %v3093 = vrot.slane %v466, 1
      %v3094 = vrot.slane %v469, 2
      %v3095 = vor.u32 %v3093, %v3094
      %v3096 = vsel %vm3057, %v3091, %v3095
      %v3097 = vrot.slane %v475, 1
      %v3098 = vrot.slane %v478, 2
      %v3099 = vor.u32 %v3097, %v3098
      %v3100 = vsel %vm3057, %v3095, %v3099
      %v3101 = vrot.slane %v484, 1
      %v3102 = vrot.slane %v487, 2
      %v3103 = vor.u32 %v3101, %v3102
      %v3104 = vsel %vm3057, %v3099, %v3103
      %v3105 = vrot.slane %v493, 1
      %v3106 = vrot.slane %v496, 2
      %v3107 = vor.u32 %v3105, %v3106
      %v3108 = vsel %vm3057, %v3103, %v3107
      %v3109 = vrot.slane %v502, 1
      %v3110 = vrot.slane %v505, 2
      %v3111 = vor.u32 %v3109, %v3110
      %v3112 = vsel %vm3057, %v3107, %v3111
      %v3113 = vrot.slane %v511, 1
      %v3114 = vrot.slane %v514, 2
      %v3115 = vor.u32 %v3113, %v3114
      %v3116 = vsel %vm3057, %v3111, %v3115
      %v3117 = vrot.slane %v520, 1
      %v3118 = vrot.slane %v523, 2
      %v3119 = vor.u32 %v3117, %v3118
      %v3120 = vsel %vm3057, %v3115, %v3119
      %v3121 = vrot.slane %v529, 1
      %v3122 = vrot.slane %v532, 2
      %v3123 = vor.u32 %v3121, %v3122
      %v3124 = vsel %vm3057, %v3119, %v3123
      %v3125 = vrot.slane %v538, 1
      %v3126 = vrot.slane %v541, 2
      %v3127 = vor.u32 %v3125, %v3126
      %v3128 = vsel %vm3057, %v3123, %v3127
      %v3129 = vrot.slane %v262, 1
      %v3130 = vrot.slane %v265, 2
      %v3131 = vor.u32 %v3129, %v3130
      %v3132 = vsel %vm3057, %v3127, %v3131
      %v3133 = vrot.slane %v270, 1
      %v3134 = vrot.slane %v273, 2
      %v3135 = vor.u32 %v3133, %v3134
      %v3136 = vsel %vm3057, %v3131, %v3135
      %vm3138 = vsmask.f32 2304
      %v3139 = vrot.slane %v377, 5
      %v3140 = vrot.slane %v380, 6
      %v3141 = vor.u32 %v3139, %v3140
      %v3142 = vshrl.u32 %v2442, 16
      %v3144 = vrot.slane %v3142, 5
      %v3145 = vrot.slane %v2447, 6
      %v3146 = vor.u32 %v3144, %v3145
      %v3147 = vsel %vm3138, %v3141, %v3146
      %vm3149 = vmand %vm2743, %vm3138
      %v3150 = vsel %vm3149, %v3135, %v3141
      %v3152 = vsel %vm607, %v3064, 0
      %v3155 = vsel %vm607, %v3068, 0
      %v3158 = vsel %vm607, %v3072, 0
      %v3161 = vsel %vm607, %v3076, 0
      %v3164 = vsel %vm607, %v3080, 0
      %v3167 = vsel %vm607, %v3084, 0
      %v3170 = vsel %vm607, %v3088, 0
      %v3173 = vsel %vm607, %v3092, 0
      %v3176 = vsel %vm607, %v3096, 0
      %v3179 = vsel %vm607, %v3100, 0
      %v3182 = vsel %vm607, %v3104, 0
      %v3185 = vsel %vm607, %v3108, 0
      %v3188 = vsel %vm607, %v3112, 0
      %v3191 = vsel %vm607, %v3116, 0
      %v3194 = vsel %vm607, %v3120, 0
      %v3197 = vsel %vm607, %v3124, 0
      %v3200 = vsel %vm607, %v3128, 0
      %v3203 = vsel %vm607, %v3132, 0
      %v3206 = vsel %vm607, %v3136, 0
      %v3209 = vsel %vm607, %v3150, 0
      %v3212 = vsel %vm607, %v3147, 0
      %v3215 = vsel %vm670, %v251, 0
      %3217 = vmatprep.subr.bf16.mxu0 0
      %3218 = vmatpush1.bf16.msra.mxu0 %v3215
      %3219 = vmatprep.subr.bf16.mxu0 0
      %3220 = vmatpush1.bf16.msra.mxu0 0
      %3221 = vmatprep.subr.bf16.mxu0 0
      %3222 = vmatpush1.bf16.msra.mxu0 0
      %3223 = vmatprep.subr.bf16.mxu0 0
      %3224 = vmatpush1.bf16.msra.mxu0 0
      %3225 = vmatprep.subr.bf16.mxu0 0
      %3226 = vmatpush1.bf16.msra.mxu0 0
      %3227 = vmatprep.subr.bf16.mxu0 0
      %3228 = vmatpush1.bf16.msra.mxu0 0
      %3229 = vmatprep.subr.bf16.mxu0 0
      %3230 = vmatpush1.bf16.msra.mxu0 0
      %3231 = vmatprep.subr.bf16.mxu0 0
      %3232 = vmatpush1.bf16.msra.mxu0 0
      %3233 = vmatprep.subr.bf16.mxu0 0
      %3234 = vmatpush1.bf16.msra.mxu0 0
      %3235 = vmatprep.subr.bf16.mxu0 0
      %3236 = vmatpush1.bf16.msra.mxu0 0
      %3237 = vmatprep.subr.bf16.mxu0 0
      %3238 = vmatpush1.bf16.msra.mxu0 0
      %3239 = vmatprep.subr.bf16.mxu0 0
      %3240 = vmatpush1.bf16.msra.mxu0 0
      %3241 = vmatprep.subr.bf16.mxu0 0
      %3242 = vmatpush1.bf16.msra.mxu0 0
      %3243 = vmatprep.subr.bf16.mxu0 0
      %3244 = vmatpush1.bf16.msra.mxu0 0
      %3245 = vmatprep.subr.bf16.mxu0 0
      %3246 = vmatpush1.bf16.msra.mxu0 0
      %3247 = vmatprep.subr.bf16.mxu0 0
      %3248 = vmatpush1.bf16.msra.mxu0 0
      %3249 = vmatprep.mubr.bf16.mxu0 0
      %3250 = vmatmul.mubr.bf16.gmra.mrb[0].mxu0 %v3152
      %v3251 = vpop.f32.mrb[0].mxu0
      %v3252 = vadd.f32 0.0, %v3251
      %v3253 = vpop.f32.mrb[0].mxu0
      %v3254 = vpop.f32.mrb[0].mxu0
      %v3255 = vadd.f32 0.0, %v3254
      %v3256 = vpop.f32.mrb[0].mxu0
      %3257 = vmatprep.mubr.bf16.mxu0 0
      %3258 = vmatmul.mubr.bf16.gmra.mrb[0].mxu0 %v3155
      %v3259 = vpop.f32.mrb[0].mxu0
      %v3260 = vadd.f32 0.0, %v3259
      %v3261 = vpop.f32.mrb[0].mxu0
      %v3262 = vpop.f32.mrb[0].mxu0
      %v3263 = vadd.f32 0.0, %v3262
      %v3264 = vpop.f32.mrb[0].mxu0
      %3265 = vmatprep.mubr.bf16.mxu0 0
      %3266 = vmatmul.mubr.bf16.gmra.mrb[0].mxu0 %v3158
      %v3267 = vpop.f32.mrb[0].mxu0
      %v3268 = vadd.f32 0.0, %v3267
      %v3269 = vpop.f32.mrb[0].mxu0
      %v3270 = vpop.f32.mrb[0].mxu0
      %v3271 = vadd.f32 0.0, %v3270
      %v3272 = vpop.f32.mrb[0].mxu0
      %3273 = vmatprep.mubr.bf16.mxu0 0
      %3274 = vmatmul.mubr.bf16.gmra.mrb[0].mxu0 %v3161
      %v3275 = vpop.f32.mrb[0].mxu0
      %v3276 = vadd.f32 0.0, %v3275
      %v3277 = vpop.f32.mrb[0].mxu0
      %v3278 = vpop.f32.mrb[0].mxu0
      %v3279 = vadd.f32 0.0, %v3278
      %v3280 = vpop.f32.mrb[0].mxu0
      %3281 = vmatprep.mubr.bf16.mxu0 0
      %3282 = vmatmul.mubr.bf16.gmra.mrb[0].mxu0 %v3164
      %v3283 = vpop.f32.mrb[0].mxu0
      %v3284 = vadd.f32 0.0, %v3283
      %v3285 = vpop.f32.mrb[0].mxu0
      %v3286 = vpop.f32.mrb[0].mxu0
      %v3287 = vadd.f32 0.0, %v3286
      %v3288 = vpop.f32.mrb[0].mxu0
      %3289 = vmatprep.mubr.bf16.mxu0 0
      %3290 = vmatmul.mubr.bf16.gmra.mrb[0].mxu0 %v3167
      %v3291 = vpop.f32.mrb[0].mxu0
      %v3292 = vadd.f32 0.0, %v3291
      %v3293 = vpop.f32.mrb[0].mxu0
      %v3294 = vpop.f32.mrb[0].mxu0
      %v3295 = vadd.f32 0.0, %v3294
      %v3296 = vpop.f32.mrb[0].mxu0
      %3297 = vmatprep.mubr.bf16.mxu0 0
      %3298 = vmatmul.mubr.bf16.gmra.mrb[0].mxu0 %v3170
      %v3299 = vpop.f32.mrb[0].mxu0
      %v3300 = vadd.f32 0.0, %v3299
      %v3301 = vpop.f32.mrb[0].mxu0
      %v3302 = vpop.f32.mrb[0].mxu0
      %v3303 = vadd.f32 0.0, %v3302
      %v3304 = vpop.f32.mrb[0].mxu0
      %3305 = vmatprep.mubr.bf16.mxu0 0
      %3306 = vmatmul.mubr.bf16.gmra.mrb[0].mxu0 %v3173
      %v3307 = vpop.f32.mrb[0].mxu0
      %v3308 = vadd.f32 0.0, %v3307
      %v3309 = vpop.f32.mrb[0].mxu0
      %v3310 = vpop.f32.mrb[0].mxu0
      %v3311 = vadd.f32 0.0, %v3310
      %v3312 = vpop.f32.mrb[0].mxu0
      %3313 = vmatprep.mubr.bf16.mxu0 0
      %3314 = vmatmul.mubr.bf16.gmra.mrb[0].mxu0 %v3176
      %v3315 = vpop.f32.mrb[0].mxu0
      %v3316 = vadd.f32 0.0, %v3315
      %v3317 = vpop.f32.mrb[0].mxu0
      %v3318 = vpop.f32.mrb[0].mxu0
      %v3319 = vadd.f32 0.0, %v3318
      %v3320 = vpop.f32.mrb[0].mxu0
      %3321 = vmatprep.mubr.bf16.mxu0 0
      %3322 = vmatmul.mubr.bf16.gmra.mrb[0].mxu0 %v3179
      %v3323 = vpop.f32.mrb[0].mxu0
      %v3324 = vadd.f32 0.0, %v3323
      %v3325 = vpop.f32.mrb[0].mxu0
      %v3326 = vpop.f32.mrb[0].mxu0
      %v3327 = vadd.f32 0.0, %v3326
      %v3328 = vpop.f32.mrb[0].mxu0
      %3329 = vmatprep.mubr.bf16.mxu0 0
      %3330 = vmatmul.mubr.bf16.gmra.mrb[0].mxu0 %v3182
      %v3331 = vpop.f32.mrb[0].mxu0
      %v3332 = vadd.f32 0.0, %v3331
      %v3333 = vpop.f32.mrb[0].mxu0
      %v3334 = vpop.f32.mrb[0].mxu0
      %v3335 = vadd.f32 0.0, %v3334
      %v3336 = vpop.f32.mrb[0].mxu0
      %3337 = vmatprep.mubr.bf16.mxu0 0
      %3338 = vmatmul.mubr.bf16.gmra.mrb[0].mxu0 %v3185
      %v3339 = vpop.f32.mrb[0].mxu0
      %v3340 = vadd.f32 0.0, %v3339
      %v3341 = vpop.f32.mrb[0].mxu0
      %v3342 = vpop.f32.mrb[0].mxu0
      %v3343 = vadd.f32 0.0, %v3342
      %v3344 = vpop.f32.mrb[0].mxu0
      %3345 = vmatprep.mubr.bf16.mxu0 0
      %3346 = vmatmul.mubr.bf16.gmra.mrb[0].mxu0 %v3188
      %v3347 = vpop.f32.mrb[0].mxu0
      %v3348 = vadd.f32 0.0, %v3347
      %v3349 = vpop.f32.mrb[0].mxu0
      %v3350 = vpop.f32.mrb[0].mxu0
      %v3351 = vadd.f32 0.0, %v3350
      %v3352 = vpop.f32.mrb[0].mxu0
      %3353 = vmatprep.mubr.bf16.mxu0 0
      %3354 = vmatmul.mubr.bf16.gmra.mrb[0].mxu0 %v3191
      %v3355 = vpop.f32.mrb[0].mxu0
      %v3356 = vadd.f32 0.0, %v3355
      %v3357 = vpop.f32.mrb[0].mxu0
      %v3358 = vpop.f32.mrb[0].mxu0
      %v3359 = vadd.f32 0.0, %v3358
      %v3360 = vpop.f32.mrb[0].mxu0
      %3361 = vmatprep.mubr.bf16.mxu0 0
      %3362 = vmatmul.mubr.bf16.gmra.mrb[0].mxu0 %v3194
      %v3363 = vpop.f32.mrb[0].mxu0
      %v3364 = vadd.f32 0.0, %v3363
      %v3365 = vpop.f32.mrb[0].mxu0
      %v3366 = vpop.f32.mrb[0].mxu0
      %v3367 = vadd.f32 0.0, %v3366
      %v3368 = vpop.f32.mrb[0].mxu0
      %3369 = vmatprep.mubr.bf16.mxu0 0
      %3370 = vmatmul.mubr.bf16.gmra.mrb[0].mxu0 %v3197
      %v3371 = vpop.f32.mrb[0].mxu0
      %v3372 = vadd.f32 0.0, %v3371
      %v3373 = vpop.f32.mrb[0].mxu0
      %v3374 = vpop.f32.mrb[0].mxu0
      %v3375 = vadd.f32 0.0, %v3374
      %v3376 = vpop.f32.mrb[0].mxu0
      %3377 = vmatprep.mubr.bf16.mxu0 0
      %3378 = vmatmul.mubr.bf16.gmra.mrb[0].mxu0 %v3200
      %v3379 = vpop.f32.mrb[0].mxu0
      %v3380 = vadd.f32 0.0, %v3379
      %v3381 = vpop.f32.mrb[0].mxu0
      %v3382 = vpop.f32.mrb[0].mxu0
      %v3383 = vadd.f32 0.0, %v3382
      %v3384 = vpop.f32.mrb[0].mxu0
      %3385 = vmatprep.mubr.bf16.mxu0 0
      %3386 = vmatmul.mubr.bf16.gmra.mrb[0].mxu0 %v3203
      %v3387 = vpop.f32.mrb[0].mxu0
      %v3388 = vadd.f32 0.0, %v3387
      %v3389 = vpop.f32.mrb[0].mxu0
      %v3390 = vpop.f32.mrb[0].mxu0
      %v3391 = vadd.f32 0.0, %v3390
      %v3392 = vpop.f32.mrb[0].mxu0
      %3393 = vmatprep.mubr.bf16.mxu0 0
      %3394 = vmatmul.mubr.bf16.gmra.mrb[0].mxu0 %v3206
      %v3395 = vpop.f32.mrb[0].mxu0
      %v3396 = vadd.f32 0.0, %v3395
      %v3397 = vpop.f32.mrb[0].mxu0
      %v3398 = vpop.f32.mrb[0].mxu0
      %v3399 = vadd.f32 0.0, %v3398
      %v3400 = vpop.f32.mrb[0].mxu0
      %3401 = vmatprep.mubr.bf16.mxu0 0
      %3402 = vmatmul.mubr.bf16.gmra.mrb[0].mxu0 %v3209
      %v3403 = vpop.f32.mrb[0].mxu0
      %v3404 = vadd.f32 0.0, %v3403
      %v3405 = vpop.f32.mrb[0].mxu0
      %v3406 = vpop.f32.mrb[0].mxu0
      %v3407 = vadd.f32 0.0, %v3406
      %v3408 = vpop.f32.mrb[0].mxu0
      %3409 = vmatprep.mubr.bf16.mxu0 0
      %3410 = vmatmul.mubr.bf16.gmra.mrb[0].mxu0 %v3212
      %v3411 = vpop.f32.mrb[0].mxu0
      %v3412 = vadd.f32 0.0, %v3411
      %v3413 = vpop.f32.mrb[0].mxu0
      %v3414 = vpop.f32.mrb[0].mxu0
      %v3415 = vpop.f32.mrb[0].mxu0
      %3416 = vdwg.mxu0
      %v3417 = vadd.f32 %v3016, %v3252
      %v3418 = vadd.f32 %v3017, %v3255
      %v3419 = vadd.f32 %v3018, %v3260
      %v3420 = vadd.f32 %v3019, %v3263
      %v3421 = vadd.f32 %v3020, %v3268
      %v3422 = vadd.f32 %v3021, %v3271
      %v3423 = vadd.f32 %v3022, %v3276
      %v3424 = vadd.f32 %v3023, %v3279
      %v3425 = vadd.f32 %v3024, %v3284
      %v3426 = vadd.f32 %v3025, %v3287
      %v3427 = vadd.f32 %v3026, %v3292
      %v3428 = vadd.f32 %v3027, %v3295
      %v3429 = vadd.f32 %v3028, %v3300
      %v3430 = vadd.f32 %v3029, %v3303
      %v3431 = vadd.f32 %v3030, %v3308
      %v3432 = vadd.f32 %v3031, %v3311
      %v3433 = vadd.f32 %v3032, %v3316
      %v3434 = vadd.f32 %v3033, %v3319
      %v3435 = vadd.f32 %v3034, %v3324
      %v3436 = vadd.f32 %v3035, %v3327
      %v3437 = vadd.f32 %v3036, %v3332
      %v3438 = vadd.f32 %v3037, %v3335
      %v3439 = vadd.f32 %v3038, %v3340
      %v3440 = vadd.f32 %v3039, %v3343
      %v3441 = vadd.f32 %v3040, %v3348
      %v3442 = vadd.f32 %v3041, %v3351
      %v3443 = vadd.f32 %v3042, %v3356
      %v3444 = vadd.f32 %v3043, %v3359
      %v3445 = vadd.f32 %v3044, %v3364
      %v3446 = vadd.f32 %v3045, %v3367
      %v3447 = vadd.f32 %v3046, %v3372
      %v3448 = vadd.f32 %v3047, %v3375
      %v3449 = vadd.f32 %v3048, %v3380
      %v3450 = vadd.f32 %v3049, %v3383
      %v3451 = vadd.f32 %v3050, %v3388
      %v3452 = vadd.f32 %v3051, %v3391
      %v3453 = vadd.f32 %v3052, %v3396
      %v3454 = vadd.f32 %v3053, %v3399
      %v3455 = vadd.f32 %v3054, %v3404
      %v3456 = vadd.f32 %v3055, %v3407
      %v3457 = vadd.f32 %v3056, %v3412
      %v3458 = vld [vmem:[%s2] sm:$0x1]
      %v3460 = vlaneseq
      %v3461 = vshrl.u32 %v3460, 7
      %v3462 = vsub.s32 0, %v3461
      %v3463 = vrot.slane %v3458, %v3462
      %v3465 = vmul.f32 %v3417, %v3463
      %v3466 = vmul.f32 %v3418, %v3463
      %v3467 = vmul.f32 %v3419, %v3463
      %v3468 = vmul.f32 %v3420, %v3463
      %v3469 = vmul.f32 %v3421, %v3463
      %v3470 = vmul.f32 %v3422, %v3463
      %v3471 = vmul.f32 %v3423, %v3463
      %v3472 = vmul.f32 %v3424, %v3463
      %v3473 = vmul.f32 %v3425, %v3463
      %v3474 = vmul.f32 %v3426, %v3463
      %v3475 = vmul.f32 %v3427, %v3463
      %v3476 = vmul.f32 %v3428, %v3463
      %v3477 = vmul.f32 %v3429, %v3463
      %v3478 = vmul.f32 %v3430, %v3463
      %v3479 = vmul.f32 %v3431, %v3463
      %v3480 = vmul.f32 %v3432, %v3463
      %v3481 = vmul.f32 %v3433, %v3463
      %v3482 = vmul.f32 %v3434, %v3463
      %v3483 = vmul.f32 %v3435, %v3463
      %v3484 = vmul.f32 %v3436, %v3463
      %v3485 = vmul.f32 %v3437, %v3463
      %v3486 = vmul.f32 %v3438, %v3463
      %v3487 = vmul.f32 %v3439, %v3463
      %v3488 = vmul.f32 %v3440, %v3463
      %v3489 = vmul.f32 %v3441, %v3463
      %v3490 = vmul.f32 %v3442, %v3463
      %v3491 = vmul.f32 %v3443, %v3463
      %v3492 = vmul.f32 %v3444, %v3463
      %v3493 = vmul.f32 %v3445, %v3463
      %v3494 = vmul.f32 %v3446, %v3463
      %v3495 = vmul.f32 %v3447, %v3463
      %v3496 = vmul.f32 %v3448, %v3463
      %v3497 = vmul.f32 %v3449, %v3463
      %v3498 = vmul.f32 %v3450, %v3463
      %v3499 = vmul.f32 %v3451, %v3463
      %v3500 = vmul.f32 %v3452, %v3463
      %v3501 = vmul.f32 %v3453, %v3463
      %v3502 = vmul.f32 %v3454, %v3463
      %v3503 = vmul.f32 %v3455, %v3463
      %v3504 = vmul.f32 %v3456, %v3463
      %v3505 = vmul.f32 %v3457, %v3463
      %v3506 = vld [vmem:[%s3] sm:$0x1]
      %v3508 = vlaneseq
      %v3509 = vshrl.u32 %v3508, 7
      %v3510 = vsub.s32 0, %v3509
      %v3511 = vrot.slane %v3506, %v3510
      %v3513 = vadd.f32 %v3465, %v3511
      %v3514 = vadd.f32 %v3466, %v3511
      %v3515 = vadd.f32 %v3467, %v3511
      %v3516 = vadd.f32 %v3468, %v3511
      %v3517 = vadd.f32 %v3469, %v3511
      %v3518 = vadd.f32 %v3470, %v3511
      %v3519 = vadd.f32 %v3471, %v3511
      %v3520 = vadd.f32 %v3472, %v3511
      %v3521 = vadd.f32 %v3473, %v3511
      %v3522 = vadd.f32 %v3474, %v3511
      %v3523 = vadd.f32 %v3475, %v3511
      %v3524 = vadd.f32 %v3476, %v3511
      %v3525 = vadd.f32 %v3477, %v3511
      %v3526 = vadd.f32 %v3478, %v3511
      %v3527 = vadd.f32 %v3479, %v3511
      %v3528 = vadd.f32 %v3480, %v3511
      %v3529 = vadd.f32 %v3481, %v3511
      %v3530 = vadd.f32 %v3482, %v3511
      %v3531 = vadd.f32 %v3483, %v3511
      %v3532 = vadd.f32 %v3484, %v3511
      %v3533 = vadd.f32 %v3485, %v3511
      %v3534 = vadd.f32 %v3486, %v3511
      %v3535 = vadd.f32 %v3487, %v3511
      %v3536 = vadd.f32 %v3488, %v3511
      %v3537 = vadd.f32 %v3489, %v3511
      %v3538 = vadd.f32 %v3490, %v3511
      %v3539 = vadd.f32 %v3491, %v3511
      %v3540 = vadd.f32 %v3492, %v3511
      %v3541 = vadd.f32 %v3493, %v3511
      %v3542 = vadd.f32 %v3494, %v3511
      %v3543 = vadd.f32 %v3495, %v3511
      %v3544 = vadd.f32 %v3496, %v3511
      %v3545 = vadd.f32 %v3497, %v3511
      %v3546 = vadd.f32 %v3498, %v3511
      %v3547 = vadd.f32 %v3499, %v3511
      %v3548 = vadd.f32 %v3500, %v3511
      %v3549 = vadd.f32 %v3501, %v3511
      %v3550 = vadd.f32 %v3502, %v3511
      %v3551 = vadd.f32 %v3503, %v3511
      %v3552 = vadd.f32 %v3504, %v3511
      %v3553 = vadd.f32 %v3505, %v3511
      %vm3554 = vcmp.ge.f32.partialorder %v3513, 0.0
      %vm3555 = vcmp.ge.f32.partialorder %v3514, 0.0
      %vm3556 = vcmp.ge.f32.partialorder %v3515, 0.0
      %vm3557 = vcmp.ge.f32.partialorder %v3516, 0.0
      %vm3558 = vcmp.ge.f32.partialorder %v3517, 0.0
      %vm3559 = vcmp.ge.f32.partialorder %v3518, 0.0
      %vm3560 = vcmp.ge.f32.partialorder %v3519, 0.0
      %vm3561 = vcmp.ge.f32.partialorder %v3520, 0.0
      %vm3562 = vcmp.ge.f32.partialorder %v3521, 0.0
      %vm3563 = vcmp.ge.f32.partialorder %v3522, 0.0
      %vm3564 = vcmp.ge.f32.partialorder %v3523, 0.0
      %vm3565 = vcmp.ge.f32.partialorder %v3524, 0.0
      %vm3566 = vcmp.ge.f32.partialorder %v3525, 0.0
      %vm3567 = vcmp.ge.f32.partialorder %v3526, 0.0
      %vm3568 = vcmp.ge.f32.partialorder %v3527, 0.0
      %vm3569 = vcmp.ge.f32.partialorder %v3528, 0.0
      %vm3570 = vcmp.ge.f32.partialorder %v3529, 0.0
      %vm3571 = vcmp.ge.f32.partialorder %v3530, 0.0
      %vm3572 = vcmp.ge.f32.partialorder %v3531, 0.0
      %vm3573 = vcmp.ge.f32.partialorder %v3532, 0.0
      %vm3574 = vcmp.ge.f32.partialorder %v3533, 0.0
      %vm3575 = vcmp.ge.f32.partialorder %v3534, 0.0
      %vm3576 = vcmp.ge.f32.partialorder %v3535, 0.0
      %vm3577 = vcmp.ge.f32.partialorder %v3536, 0.0
      %vm3578 = vcmp.ge.f32.partialorder %v3537, 0.0
      %vm3579 = vcmp.ge.f32.partialorder %v3538, 0.0
      %vm3580 = vcmp.ge.f32.partialorder %v3539, 0.0
      %vm3581 = vcmp.ge.f32.partialorder %v3540, 0.0
      %vm3582 = vcmp.ge.f32.partialorder %v3541, 0.0
      %vm3583 = vcmp.ge.f32.partialorder %v3542, 0.0
      %vm3584 = vcmp.ge.f32.partialorder %v3543, 0.0
      %vm3585 = vcmp.ge.f32.partialorder %v3544, 0.0
      %vm3586 = vcmp.ge.f32.partialorder %v3545, 0.0
      %vm3587 = vcmp.ge.f32.partialorder %v3546, 0.0
      %vm3588 = vcmp.ge.f32.partialorder %v3547, 0.0
      %vm3589 = vcmp.ge.f32.partialorder %v3548, 0.0
      %vm3590 = vcmp.ge.f32.partialorder %v3549, 0.0
      %vm3591 = vcmp.ge.f32.partialorder %v3550, 0.0
      %vm3592 = vcmp.ge.f32.partialorder %v3551, 0.0
      %vm3593 = vcmp.ge.f32.partialorder %v3552, 0.0
      %vm3594 = vcmp.ge.f32.partialorder %v3553, 0.0
      %v3595 = vmul.f32 %v3513, 0.01
      %v3596 = vmul.f32 %v3514, 0.01
      %v3597 = vmul.f32 %v3515, 0.01
      %v3598 = vmul.f32 %v3516, 0.01
      %v3599 = vmul.f32 %v3517, 0.01
      %v3600 = vmul.f32 %v3518, 0.01
      %v3601 = vmul.f32 %v3519, 0.01
      %v3602 = vmul.f32 %v3520, 0.01
      %v3603 = vmul.f32 %v3521, 0.01
      %v3604 = vmul.f32 %v3522, 0.01
      %v3605 = vmul.f32 %v3523, 0.01
      %v3606 = vmul.f32 %v3524, 0.01
      %v3607 = vmul.f32 %v3525, 0.01
      %v3608 = vmul.f32 %v3526, 0.01
      %v3609 = vmul.f32 %v3527, 0.01
      %v3610 = vmul.f32 %v3528, 0.01
      %v3611 = vmul.f32 %v3529, 0.01
      %v3612 = vmul.f32 %v3530, 0.01
      %v3613 = vmul.f32 %v3531, 0.01
      %v3614 = vmul.f32 %v3532, 0.01
      %v3615 = vmul.f32 %v3533, 0.01
      %v3616 = vmul.f32 %v3534, 0.01
      %v3617 = vmul.f32 %v3535, 0.01
      %v3618 = vmul.f32 %v3536, 0.01
      %v3619 = vmul.f32 %v3537, 0.01
      %v3620 = vmul.f32 %v3538, 0.01
      %v3621 = vmul.f32 %v3539, 0.01
      %v3622 = vmul.f32 %v3540, 0.01
      %v3623 = vmul.f32 %v3541, 0.01
      %v3624 = vmul.f32 %v3542, 0.01
      %v3625 = vmul.f32 %v3543, 0.01
      %v3626 = vmul.f32 %v3544, 0.01
      %v3627 = vmul.f32 %v3545, 0.01
      %v3628 = vmul.f32 %v3546, 0.01
      %v3629 = vmul.f32 %v3547, 0.01
      %v3630 = vmul.f32 %v3548, 0.01
      %v3631 = vmul.f32 %v3549, 0.01
      %v3632 = vmul.f32 %v3550, 0.01
      %v3633 = vmul.f32 %v3551, 0.01
      %v3634 = vmul.f32 %v3552, 0.01
      %v3635 = vmul.f32 %v3553, 0.01
      %v3636 = vsel %vm3554, %v3513, %v3595
      %v3637 = vsel %vm3555, %v3514, %v3596
      %v3638 = vsel %vm3556, %v3515, %v3597
      %v3639 = vsel %vm3557, %v3516, %v3598
      %v3640 = vsel %vm3558, %v3517, %v3599
      %v3641 = vsel %vm3559, %v3518, %v3600
      %v3642 = vsel %vm3560, %v3519, %v3601
      %v3643 = vsel %vm3561, %v3520, %v3602
      %v3644 = vsel %vm3562, %v3521, %v3603
      %v3645 = vsel %vm3563, %v3522, %v3604
      %v3646 = vsel %vm3564, %v3523, %v3605
      %v3647 = vsel %vm3565, %v3524, %v3606
      %v3648 = vsel %vm3566, %v3525, %v3607
      %v3649 = vsel %vm3567, %v3526, %v3608
      %v3650 = vsel %vm3568, %v3527, %v3609
      %v3651 = vsel %vm3569, %v3528, %v3610
      %v3652 = vsel %vm3570, %v3529, %v3611
      %v3653 = vsel %vm3571, %v3530, %v3612
      %v3654 = vsel %vm3572, %v3531, %v3613
      %v3655 = vsel %vm3573, %v3532, %v3614
      %v3656 = vsel %vm3574, %v3533, %v3615
      %v3657 = vsel %vm3575, %v3534, %v3616
      %v3658 = vsel %vm3576, %v3535, %v3617
      %v3659 = vsel %vm3577, %v3536, %v3618
      %v3660 = vsel %vm3578, %v3537, %v3619
      %v3661 = vsel %vm3579, %v3538, %v3620
      %v3662 = vsel %vm3580, %v3539, %v3621
      %v3663 = vsel %vm3581, %v3540, %v3622
      %v3664 = vsel %vm3582, %v3541, %v3623
      %v3665 = vsel %vm3583, %v3542, %v3624
      %v3666 = vsel %vm3584, %v3543, %v3625
      %v3667 = vsel %vm3585, %v3544, %v3626
      %v3668 = vsel %vm3586, %v3545, %v3627
      %v3669 = vsel %vm3587, %v3546, %v3628
      %v3670 = vsel %vm3588, %v3547, %v3629
      %v3671 = vsel %vm3589, %v3548, %v3630
      %v3672 = vsel %vm3590, %v3549, %v3631
      %v3673 = vsel %vm3591, %v3550, %v3632
      %v3674 = vsel %vm3592, %v3551, %v3633
      %v3675 = vsel %vm3593, %v3552, %v3634
      %v3676 = vsel %vm3594, %v3553, %v3635
      %v3677 = vpack.c.bf16 %v3637, %v3636
      %v3678 = vpack.c.bf16 %v3639, %v3638
      %v3679 = vpack.c.bf16 %v3641, %v3640
      %v3680 = vpack.c.bf16 %v3643, %v3642
      %v3681 = vpack.c.bf16 %v3645, %v3644
      %v3682 = vpack.c.bf16 %v3647, %v3646
      %v3683 = vpack.c.bf16 %v3649, %v3648
      %v3684 = vpack.c.bf16 %v3651, %v3650
      %v3685 = vpack.c.bf16 %v3653, %v3652
      %v3686 = vpack.c.bf16 %v3655, %v3654
      %v3687 = vpack.c.bf16 %v3657, %v3656
      %v3688 = vpack.c.bf16 %v3659, %v3658
      %v3689 = vpack.c.bf16 %v3661, %v3660
      %v3690 = vpack.c.bf16 %v3663, %v3662
      %v3691 = vpack.c.bf16 %v3665, %v3664
      %v3692 = vpack.c.bf16 %v3667, %v3666
      %v3693 = vpack.c.bf16 %v3669, %v3668
      %v3694 = vpack.c.bf16 %v3671, %v3670
      %v3695 = vpack.c.bf16 %v3673, %v3672
      %v3696 = vpack.c.bf16 %v3675, %v3674
      %v3697 = vpack.c.bf16 %v3676, %v3676
      %v3719 = vunpack.c.l.b16 %v3677
      %v3720 = vunpack.c.h.b16 %v3677
      %v3721 = vunpack.c.l.b16 %v3678
      %v3722 = vunpack.c.h.b16 %v3678
      %v3723 = vunpack.c.l.b16 %v3679
      %v3724 = vunpack.c.h.b16 %v3679
      %v3725 = vunpack.c.l.b16 %v3680
      %v3726 = vunpack.c.h.b16 %v3680
      %v3727 = vunpack.c.l.b16 %v3681
      %v3728 = vunpack.c.h.b16 %v3681
      %v3729 = vunpack.c.l.b16 %v3682
      %v3730 = vunpack.c.h.b16 %v3682
      %v3731 = vunpack.c.l.b16 %v3683
      %v3732 = vunpack.c.h.b16 %v3683
      %v3733 = vunpack.c.l.b16 %v3684
      %v3734 = vunpack.c.h.b16 %v3684
      %v3735 = vunpack.c.l.b16 %v3685
      %v3736 = vunpack.c.h.b16 %v3685
      %v3737 = vunpack.c.l.b16 %v3686
      %v3738 = vunpack.c.h.b16 %v3686
      %v3739 = vunpack.c.l.b16 %v3687
      %v3740 = vunpack.c.h.b16 %v3687
      %v3741 = vunpack.c.l.b16 %v3688
      %v3742 = vunpack.c.h.b16 %v3688
      %v3743 = vunpack.c.l.b16 %v3689
      %v3744 = vunpack.c.h.b16 %v3689
      %v3745 = vunpack.c.l.b16 %v3690
      %v3746 = vunpack.c.h.b16 %v3690
      %v3747 = vunpack.c.l.b16 %v3691
      %v3748 = vunpack.c.h.b16 %v3691
      %v3749 = vunpack.c.l.b16 %v3692
      %v3750 = vunpack.c.h.b16 %v3692
      %v3751 = vunpack.c.l.b16 %v3693
      %v3752 = vunpack.c.h.b16 %v3693
      %v3753 = vunpack.c.l.b16 %v3694
      %v3754 = vunpack.c.h.b16 %v3694
      %v3755 = vunpack.c.l.b16 %v3695
      %v3756 = vunpack.c.h.b16 %v3695
      %v3757 = vunpack.c.l.b16 %v3696
      %v3758 = vunpack.c.h.b16 %v3696
      %v3759 = vunpack.c.l.b16 %v3697
      %v3760 = vpack.c.b16 %v3719, %v3719
      %v3761 = vpack.c.b16 %v3720, %v3720
      %v3762 = vpack.c.b16 %v3721, %v3721
      %v3763 = vpack.c.b16 %v3722, %v3722
      %v3764 = vpack.c.b16 %v3723, %v3723
      %v3765 = vpack.c.b16 %v3724, %v3724
      %v3766 = vpack.c.b16 %v3725, %v3725
      %v3767 = vpack.c.b16 %v3726, %v3726
      %v3768 = vpack.c.b16 %v3727, %v3727
      %v3769 = vpack.c.b16 %v3728, %v3728
      %v3770 = vpack.c.b16 %v3729, %v3729
      %v3771 = vpack.c.b16 %v3730, %v3730
      %v3772 = vpack.c.b16 %v3731, %v3731
      %v3773 = vpack.c.b16 %v3732, %v3732
      %v3774 = vpack.c.b16 %v3733, %v3733
      %v3775 = vpack.c.b16 %v3734, %v3734
      %v3776 = vpack.c.b16 %v3735, %v3735
      %v3777 = vpack.c.b16 %v3736, %v3736
      %v3778 = vpack.c.b16 %v3737, %v3737
      %v3779 = vpack.c.b16 %v3738, %v3738
      %v3780 = vpack.c.b16 %v3739, %v3739
      %v3781 = vpack.c.b16 %v3740, %v3740
      %v3782 = vpack.c.b16 %v3741, %v3741
      %v3783 = vpack.c.b16 %v3742, %v3742
      %v3784 = vpack.c.b16 %v3743, %v3743
      %v3785 = vpack.c.b16 %v3744, %v3744
      %v3786 = vpack.c.b16 %v3745, %v3745
      %v3787 = vpack.c.b16 %v3746, %v3746
      %v3788 = vpack.c.b16 %v3747, %v3747
      %v3789 = vpack.c.b16 %v3748, %v3748
      %v3790 = vpack.c.b16 %v3749, %v3749
      %v3791 = vpack.c.b16 %v3750, %v3750
      %v3792 = vpack.c.b16 %v3751, %v3751
      %v3793 = vpack.c.b16 %v3752, %v3752
      %v3794 = vpack.c.b16 %v3753, %v3753
      %v3795 = vpack.c.b16 %v3754, %v3754
      %v3796 = vpack.c.b16 %v3755, %v3755
      %v3797 = vpack.c.b16 %v3756, %v3756
      %v3798 = vpack.c.b16 %v3757, %v3757
      %v3799 = vpack.c.b16 %v3758, %v3758
      %v3800 = vpack.c.b16 %v3759, %v3759
      %3842 = vst [vmem:[%s199] sm:$0xf] %v3760
      %3843 = vst [vmem:[%s199 + $0x4] sm:$0xf] %v3761
      %3844 = vst [vmem:[%s199 + $0x8] sm:$0xf] %v3762
      %3845 = vst [vmem:[%s199 + $0xc] sm:$0xf] %v3763
      %3846 = vst [vmem:[%s199 + $0x10] sm:$0xf] %v3764
      %3847 = vst [vmem:[%s199 + $0x14] sm:$0xf] %v3765
      %3848 = vst [vmem:[%s199 + $0x18] sm:$0xf] %v3766
      %3849 = vst [vmem:[%s199 + $0x1c] sm:$0xf] %v3767
      %3850 = vst [vmem:[%s199 + $0x20] sm:$0xf] %v3768
      %3851 = vst [vmem:[%s199 + $0x24] sm:$0xf] %v3769
      %3852 = vst [vmem:[%s199 + $0x28] sm:$0xf] %v3770
      %3853 = vst [vmem:[%s199 + $0x2c] sm:$0xf] %v3771
      %3854 = vst [vmem:[%s199 + $0x30] sm:$0xf] %v3772
      %3855 = vst [vmem:[%s199 + $0x34] sm:$0xf] %v3773
      %3856 = vst [vmem:[%s199 + $0x38] sm:$0xf] %v3774
      %3857 = vst [vmem:[%s199 + $0x3c] sm:$0xf] %v3775
      %3858 = vst [vmem:[%s199 + $0x40] sm:$0xf] %v3776
      %3859 = vst [vmem:[%s199 + $0x44] sm:$0xf] %v3777
      %3860 = vst [vmem:[%s199 + $0x48] sm:$0xf] %v3778
      %3861 = vst [vmem:[%s199 + $0x4c] sm:$0xf] %v3779
      %3862 = vst [vmem:[%s199 + $0x50] sm:$0xf] %v3780
      %3863 = vst [vmem:[%s199 + $0x54] sm:$0xf] %v3781
      %3864 = vst [vmem:[%s199 + $0x58] sm:$0xf] %v3782
      %3865 = vst [vmem:[%s199 + $0x5c] sm:$0xf] %v3783
      %3866 = vst [vmem:[%s199 + $0x60] sm:$0xf] %v3784
      %3867 = vst [vmem:[%s199 + $0x64] sm:$0xf] %v3785
      %3868 = vst [vmem:[%s199 + $0x68] sm:$0xf] %v3786
      %3869 = vst [vmem:[%s199 + $0x6c] sm:$0xf] %v3787
      %3870 = vst [vmem:[%s199 + $0x70] sm:$0xf] %v3788
      %3871 = vst [vmem:[%s199 + $0x74] sm:$0xf] %v3789
      %3872 = vst [vmem:[%s199 + $0x78] sm:$0xf] %v3790
      %3873 = vst [vmem:[%s199 + $0x7c] sm:$0xf] %v3791
      %3874 = vst [vmem:[%s199 + $0x80] sm:$0xf] %v3792
      %3875 = vst [vmem:[%s199 + $0x84] sm:$0xf] %v3793
      %3876 = vst [vmem:[%s199 + $0x88] sm:$0xf] %v3794
      %3877 = vst [vmem:[%s199 + $0x8c] sm:$0xf] %v3795
      %3878 = vst [vmem:[%s199 + $0x90] sm:$0xf] %v3796
      %3879 = vst [vmem:[%s199 + $0x94] sm:$0xf] %v3797
      %3880 = vst [vmem:[%s199 + $0x98] sm:$0xf] %v3798
      %3881 = vst [vmem:[%s199 + $0x9c] sm:$0xf] %v3799
      %3882 = vst [vmem:[%s199 + $0xa0] sm:$0xf] %v3800
      %s3883 = smul.u32 41, %s15
      %p3884 = scmp.lt.s32.totalorder %s3883, 81
      %s3885 = scalar_select %p3884, %s3883, 81
      %s3886 = smul.addr %s3885, 4
      %s3887 = scalar_lea.vmem %s4, %s3886
      // Predicated region
      $region37: #{conv_module_forward.3} parent=35 // pred_check
        %p3888 = pneg %p122
      $region38: #{conv_module_forward.3} parent=35 // pred_check_branch
        %3890 = sbr.rel (%p3888) target = $region40
      $region39: #{conv_module_forward.3} parent=35 // pred_region
        %s3891 = smul.u32 41, %s15
      $region40: #{conv_module_forward.3} parent=35 // pred_fallthru
        _
    $region36: #{conv_module_forward.3} parent=5 // pred_fallthru
      _
    %p3892 = scmp.le.s32.totalorder 2, %s10
    // Predicated region
    $region41: #{conv_module_forward.3} parent=5 // pred_check
      %p3893 = pneg %p3892
    $region42: #{conv_module_forward.3} parent=5 // pred_check_branch
      %3895 = sbr.rel (%p3893) target = $region44
    $region43: #{conv_module_forward.3} parent=5 // pred_region
      %s3896 = ssub.s32 %s10, 2
      // Predicated region
      $region45: #{conv_module_forward.3} parent=43 // pred_check
        %p3897 = pneg %p128
      $region46: #{conv_module_forward.3} parent=43 // pred_check_branch
        %3899 = sbr.rel (%p3897) target = $region48
      $region47: #{conv_module_forward.3} parent=43 // pred_region
        %s3900 = smul.u32 41, %s16
        %p3901 = scmp.lt.s32.totalorder %s3900, 81
        %s3902 = scalar_select %p3901, %s3900, 81
        %s3903 = smul.addr %s3902, 4
        %s3904 = scalar_lea.vmem %s4, %s3903
      $region48: #{conv_module_forward.3} parent=43 // pred_fallthru
        _
    $region44: #{conv_module_forward.3} parent=5 // pred_fallthru
      _
  $region6: #{conv_module_forward.3} parent=0 // loop_footer
    %s14 = sadd.s32 1, %s10
  $region7: #{conv_module_forward.3} parent=0 // loop_footer_branch
    %9 = sbr.rel target = $region3
  $region8: #{conv_module_forward.3} parent=0 // loop_exit
    _

// kernel: conv_module_forward.2
$region0: #{conv_module_forward.2}
  #allocation0 [shape = 'u32[]', space=smem, size = 0x4, offset = 0x4, fixed_abs, tag = 'smem constant byte address 0x4 - core index']
  #allocation1 [shape = 'u32[144,128]{1,0:T(1,128)}', space=vmem, size = 0x12000, scoped, tag = 'internal scratch']
  %s0 = inlined_call_operand.vmem [shape: bf16[656,4], index: 0, kind: input, shape index: {}]
  %s1 = inlined_call_operand.vmem [shape: bf16[9,4,128], index: 1, kind: input, shape index: {}]
  %s2 = inlined_call_operand.vmem [shape: f32[328,1], index: 2, kind: input, shape index: {}]
  %s3 = inlined_call_operand.vmem [shape: f32[2,1,128], index: 3, kind: output, shape index: {0}]
  %s4 = inlined_call_operand.vmem [shape: f32[2,1,128], index: 4, kind: output, shape index: {1}]
  %5 = xla_tuple %s3, %s4
  %s6 = sld [smem:[#allocation0]]
  $region53: #{conv_module_forward.2} parent=0
    _
  %s8 = ssub.s32 1, %s6
  %s9 = scalar_select 0, %s8, %s6
  loop: start=0, step=1, limit=4
  $region2: #{conv_module_forward.2} parent=0 // loop_pre_header
    _
  $region3: #{conv_module_forward.2} parent=0 // loop_header
    %s11 = sphi 0, %s15
    %p12 = scmp.ge.s32.totalorder %s11, 4
    %s21 = sphi 0, %s23
    %s24 = sphi 0, %s21
    %s25 = sphi 0, %s24
    %s41 = sphi 0, %s25
    %s45 = sphi 0, %s45
    %s47 = sphi 0, %s45
    %s48 = sphi 0, %s47
    %s62 = sphi 0, %s48
    %s66 = sphi 0, %s66
    %s68 = sphi 0, %s66
    %s69 = sphi 0, %s68
    %s83 = sphi 0, %s69
    %s89 = sphi 0, %s91
    %s92 = sphi 0, %s89
    %s93 = sphi 0, %s92
    %s109 = sphi 0, %s93
    %s115 = sphi 0, %s117
    %s118 = sphi 0, %s115
    %s119 = sphi 0, %s118
    %s135 = sphi 0, %s119
  $region4: #{conv_module_forward.2} parent=0 // loop_header_branch
    %14 = sbr.rel (%p12) target = $region8
  $region5: #{conv_module_forward.2} parent=0 // loop_body
    %s16 = ssub.s32 %s11, 1
    %s17 = ssub.s32 %s11, 2
    %s18 = sadd.s32 %s11, 1
    %s19 = ssub.s32 %s11, %s18
    %p20 = scmp.eq.s32.totalorder %s19, 0
    %s22 = sadd.s32 %s21, 1
    %s23 = scalar_select %p20, %s21, %s22
    %p26 = pneg %p20
    %p27 = scmp.eq.s32.totalorder %s11, 1
    %p28 = por %p26, %p27
    %p29 = scmp.ne.s32.totalorder %s21, %s24
    %p30 = scmp.eq.s32.totalorder %s11, 0
    %p31 = por %p29, %p30
    %p32 = scmp.ne.s32.totalorder %s21, %s24
    %p33 = scmp.eq.s32.totalorder %s16, 1
    %p34 = por %p32, %p33
    %p35 = scmp.ne.s32.totalorder %s24, %s25
    %p36 = scmp.eq.s32.totalorder %s16, 0
    %p37 = por %p35, %p36
    %p38 = scmp.ne.s32.totalorder %s24, %s25
    %p39 = scmp.eq.s32.totalorder %s17, 1
    %p40 = por %p38, %p39
    %p42 = scmp.ne.s32.totalorder %s25, %s41
    %p43 = scmp.eq.s32.totalorder %s17, 0
    %p44 = por %p42, %p43
    %s46 = sadd.s32 %s45, 1
    %p49 = scmp.eq.s32.totalorder %s11, 1
    %p50 = scmp.ne.s32.totalorder %s45, %s47
    %p51 = scmp.eq.s32.totalorder %s11, 0
    %p52 = por %p50, %p51
    %p53 = scmp.ne.s32.totalorder %s45, %s47
    %p54 = scmp.eq.s32.totalorder %s16, 1
    %p55 = por %p53, %p54
    %p56 = scmp.ne.s32.totalorder %s47, %s48
    %p57 = scmp.eq.s32.totalorder %s16, 0
    %p58 = por %p56, %p57
    %p59 = scmp.ne.s32.totalorder %s47, %s48
    %p60 = scmp.eq.s32.totalorder %s17, 1
    %p61 = por %p59, %p60
    %p63 = scmp.ne.s32.totalorder %s48, %s62
    %p64 = scmp.eq.s32.totalorder %s17, 0
    %p65 = por %p63, %p64
    %s67 = sadd.s32 %s66, 1
    %p70 = scmp.eq.s32.totalorder %s11, 1
    %p71 = scmp.ne.s32.totalorder %s66, %s68
    %p72 = scmp.eq.s32.totalorder %s11, 0
    %p73 = por %p71, %p72
    %p74 = scmp.ne.s32.totalorder %s66, %s68
    %p75 = scmp.eq.s32.totalorder %s16, 1
    %p76 = por %p74, %p75
    %p77 = scmp.ne.s32.totalorder %s68, %s69
    %p78 = scmp.eq.s32.totalorder %s16, 0
    %p79 = por %p77, %p78
    %p80 = scmp.ne.s32.totalorder %s68, %s69
    %p81 = scmp.eq.s32.totalorder %s17, 1
    %p82 = por %p80, %p81
    %p84 = scmp.ne.s32.totalorder %s69, %s83
    %p85 = scmp.eq.s32.totalorder %s17, 0
    %p86 = por %p84, %p85
    %s87 = ssub.s32 %s11, %s18
    %p88 = scmp.eq.s32.totalorder %s87, 0
    %s90 = sadd.s32 %s89, 1
    %s91 = scalar_select %p88, %s89, %s90
    %p94 = pneg %p88
    %p95 = scmp.eq.s32.totalorder %s11, 1
    %p96 = por %p94, %p95
    %p97 = scmp.ne.s32.totalorder %s89, %s92
    %p98 = scmp.eq.s32.totalorder %s11, 0
    %p99 = por %p97, %p98
    %p100 = scmp.ne.s32.totalorder %s89, %s92
    %p101 = scmp.eq.s32.totalorder %s16, 1
    %p102 = por %p100, %p101
    %p103 = scmp.ne.s32.totalorder %s92, %s93
    %p104 = scmp.eq.s32.totalorder %s16, 0
    %p105 = por %p103, %p104
    %p106 = scmp.ne.s32.totalorder %s92, %s93
    %p107 = scmp.eq.s32.totalorder %s17, 1
    %p108 = por %p106, %p107
    %p110 = scmp.ne.s32.totalorder %s93, %s109
    %p111 = scmp.eq.s32.totalorder %s17, 0
    %p112 = por %p110, %p111
    %s113 = ssub.s32 %s11, %s18
    %p114 = scmp.eq.s32.totalorder %s113, 0
    %s116 = sadd.s32 %s115, 1
    %s117 = scalar_select %p114, %s115, %s116
    %p120 = pneg %p114
    %p121 = scmp.eq.s32.totalorder %s11, 1
    %p122 = por %p120, %p121
    %p123 = scmp.ne.s32.totalorder %s115, %s118
    %p124 = scmp.eq.s32.totalorder %s11, 0
    %p125 = por %p123, %p124
    %p126 = scmp.ne.s32.totalorder %s115, %s118
    %p127 = scmp.eq.s32.totalorder %s16, 1
    %p128 = por %p126, %p127
    %p129 = scmp.ne.s32.totalorder %s118, %s119
    %p130 = scmp.eq.s32.totalorder %s16, 0
    %p131 = por %p129, %p130
    %p132 = scmp.ne.s32.totalorder %s118, %s119
    %p133 = scmp.eq.s32.totalorder %s17, 1
    %p134 = por %p132, %p133
    %p136 = scmp.ne.s32.totalorder %s119, %s135
    %p137 = scmp.eq.s32.totalorder %s17, 0
    %p138 = por %p136, %p137
    %p139 = scmp.le.s32.totalorder 1, %s11
    %p140 = scmp.lt.s32.totalorder %s11, 3
    %p141 = pnand %p139, %p140
    %p142 = pneg %p141
    // Predicated region
    $region9: #{conv_module_forward.2} parent=5 // pred_check
      _
    $region10: #{conv_module_forward.2} parent=5 // pred_check_branch
      %144 = sbr.rel (%p141) target = $region12
    $region11: #{conv_module_forward.2} parent=5 // pred_region
      %s145 = ssub.s32 %s11, 1
      // Predicated region
      $region13: #{conv_module_forward.2} parent=11 // pred_check
        %p146 = pneg %p58
      $region14: #{conv_module_forward.2} parent=11 // pred_check_branch
        %148 = sbr.rel (%p146) target = $region16
      $region15: #{conv_module_forward.2} parent=11 // pred_region
        _
      $region16: #{conv_module_forward.2} parent=11 // pred_fallthru
        _
      // Predicated region
      $region17: #{conv_module_forward.2} parent=11 // pred_check
        %p149 = pneg %p79
      $region18: #{conv_module_forward.2} parent=11 // pred_check_branch
        %151 = sbr.rel (%p149) target = $region20
      $region19: #{conv_module_forward.2} parent=11 // pred_region
        _
      $region20: #{conv_module_forward.2} parent=11 // pred_fallthru
        _
    $region12: #{conv_module_forward.2} parent=5 // pred_fallthru
      _
    %p152 = scmp.lt.s32.totalorder %s11, 2
    // Predicated region
    $region21: #{conv_module_forward.2} parent=5 // pred_check
      %p153 = pneg %p152
    $region22: #{conv_module_forward.2} parent=5 // pred_check_branch
      %155 = sbr.rel (%p153) target = $region24
    $region23: #{conv_module_forward.2} parent=5 // pred_region
      // Predicated region
      $region25: #{conv_module_forward.2} parent=23 // pred_check
        %p156 = pneg %p31
      $region26: #{conv_module_forward.2} parent=23 // pred_check_branch
        %158 = sbr.rel (%p156) target = $region28
      $region27: #{conv_module_forward.2} parent=23 // pred_region
        %s159 = smul.u32 41, %s11
        %p160 = scmp.lt.s32.totalorder %s159, 81
        %s161 = scalar_select %p160, %s159, 81
        %s162 = smul.addr %s161, 4
        %s163 = scalar_lea.vmem %s0, %s162
        %s164 = smul.u32 41, %s11
      $region28: #{conv_module_forward.2} parent=23 // pred_fallthru
        _
    $region24: #{conv_module_forward.2} parent=5 // pred_fallthru
      _
    %p165 = scmp.le.s32.totalorder 1, %s11
    %p166 = scmp.lt.s32.totalorder %s11, 3
    %p167 = pnand %p165, %p166
    %p168 = pneg %p167
    // Predicated region
    $region29: #{conv_module_forward.2} parent=5 // pred_check
      _
    $region30: #{conv_module_forward.2} parent=5 // pred_check_branch
      %170 = sbr.rel (%p167) target = $region32
    $region31: #{conv_module_forward.2} parent=5 // pred_region
      %s171 = ssub.s32 %s11, 1
      %s172 = smul.u32 41, %s16
      %p173 = scmp.lt.s32.totalorder %s172, 81
      %s174 = scalar_select %p173, %s172, 81
      %s175 = smul.addr %s174, 4
      %s176 = scalar_lea.vmem %s0, %s175
      %p177 = pneg %p37
      %p178 = pneg %p34
      %p179 = pneg %p58
      %p180 = pneg %p55
      %p181 = pneg %p79
      %p182 = pneg %p76
      %p183 = pneg %p105
      %p184 = pneg %p102
      %p185 = scmp.lt.s32.totalorder %s16, 1
      %s186 = scalar_select %p185, %s16, 1
      %s187 = scalar_lea.vmem %s3, %s186
      %p188 = pneg %p131
      %p189 = pneg %p128
      %p190 = scmp.lt.s32.totalorder %s16, 1
      %s191 = scalar_select %p190, %s16, 1
      %s192 = scalar_lea.vmem %s4, %s191
      %s193 = smul.u32 41, %s16
      %p194 = scmp.lt.s32.totalorder %s193, 81
      %s195 = scalar_select %p194, %s193, 81
      %s196 = smul.addr %s195, 4
      %s197 = scalar_lea.vmem %s0, %s196
      %s198 = smul.u32 41, %s16
      %p199 = scmp.lt.s32.totalorder %s16, 1
      %s200 = scalar_select %p199, %s16, 1
      %s201 = scalar_lea.vmem %s3, %s200
      %p202 = scmp.lt.s32.totalorder %s16, 1
      %s203 = scalar_select %p202, %s16, 1
      %s204 = scalar_lea.vmem %s4, %s203
      %v206 = vld [vmem:[%s197] sm:$0xf]
      %v207 = vld [vmem:[%s197 + $0x4] sm:$0xf]
      %v208 = vld [vmem:[%s197 + $0x8] sm:$0xf]
      %v209 = vld [vmem:[%s197 + $0xc] sm:$0xf]
      %v210 = vld [vmem:[%s197 + $0x10] sm:$0xf]
      %v211 = vld [vmem:[%s197 + $0x14] sm:$0xf]
      %v212 = vld [vmem:[%s197 + $0x18] sm:$0xf]
      %v213 = vld [vmem:[%s197 + $0x1c] sm:$0xf]
      %v214 = vld [vmem:[%s197 + $0x20] sm:$0xf]
      %v215 = vld [vmem:[%s197 + $0x24] sm:$0xf]
      %v216 = vld [vmem:[%s197 + $0x28] sm:$0xf]
      %v217 = vld [vmem:[%s197 + $0x2c] sm:$0xf]
      %v218 = vld [vmem:[%s197 + $0x30] sm:$0xf]
      %v219 = vld [vmem:[%s197 + $0x34] sm:$0xf]
      %v220 = vld [vmem:[%s197 + $0x38] sm:$0xf]
      %v221 = vld [vmem:[%s197 + $0x3c] sm:$0xf]
      %v222 = vld [vmem:[%s197 + $0x40] sm:$0xf]
      %v223 = vld [vmem:[%s197 + $0x44] sm:$0xf]
      %v224 = vld [vmem:[%s197 + $0x48] sm:$0xf]
      %v225 = vld [vmem:[%s197 + $0x4c] sm:$0xf]
      %v226 = vld [vmem:[%s197 + $0x50] sm:$0xf]
      %v227 = vld [vmem:[%s197 + $0x54] sm:$0xf]
      %v228 = vld [vmem:[%s197 + $0x58] sm:$0xf]
      %v229 = vld [vmem:[%s197 + $0x5c] sm:$0xf]
      %v230 = vld [vmem:[%s197 + $0x60] sm:$0xf]
      %v231 = vld [vmem:[%s197 + $0x64] sm:$0xf]
      %v232 = vld [vmem:[%s197 + $0x68] sm:$0xf]
      %v233 = vld [vmem:[%s197 + $0x6c] sm:$0xf]
      %v234 = vld [vmem:[%s197 + $0x70] sm:$0xf]
      %v235 = vld [vmem:[%s197 + $0x74] sm:$0xf]
      %v236 = vld [vmem:[%s197 + $0x78] sm:$0xf]
      %v237 = vld [vmem:[%s197 + $0x7c] sm:$0xf]
      %v238 = vld [vmem:[%s197 + $0x80] sm:$0xf]
      %v239 = vld [vmem:[%s197 + $0x84] sm:$0xf]
      %v240 = vld [vmem:[%s197 + $0x88] sm:$0xf]
      %v241 = vld [vmem:[%s197 + $0x8c] sm:$0xf]
      %v242 = vld [vmem:[%s197 + $0x90] sm:$0xf]
      %v243 = vld [vmem:[%s197 + $0x94] sm:$0xf]
      %v244 = vld [vmem:[%s197 + $0x98] sm:$0xf]
      %v245 = vld [vmem:[%s197 + $0x9c] sm:$0xf]
      %v246 = vld [vmem:[%s197 + $0xa0] sm:$0xf]
      %v247 = vld [vmem:[%s1] sm:$0x3]
      %v248 = vld [vmem:[%s1 + $0x2] sm:$0x3]
      %v249 = vld [vmem:[%s1 + $0x4] sm:$0x3]
      %v250 = vld [vmem:[%s1 + $0x6] sm:$0x3]
      %v251 = vld [vmem:[%s1 + $0x8] sm:$0x3]
      %v252 = vld [vmem:[%s1 + $0xa] sm:$0x3]
      %v253 = vld [vmem:[%s1 + $0xc] sm:$0x3]
      %v254 = vld [vmem:[%s1 + $0xe] sm:$0x3]
      %v255 = vld [vmem:[%s1 + $0x10] sm:$0x3]
      %v259 = vunpack.c.l.b16 %v244
      %v260 = vunpack.c.l.b16 %v245
      %v261 = vunpack.c.l.b16 %v246
      %v262 = vpack.c.b16 %v260, %v259
      %v263 = vpack.c.b16 %v261, %v261
      %vm264 = vsmask.f32 5376
      %v266 = vshrl.u32 %v262, 16
      %v268 = vrot.slane %v266, 2
      %v269 = vshll.u32 %v262, 16
      %v271 = vrot.slane %v269, 3
      %v272 = vor.u32 %v268, %v271
      %v274 = vshrl.u32 %v263, 16
      %v276 = vrot.slane %v274, 2
      %v277 = vshll.u32 %v263, 16
      %v279 = vrot.slane %v277, 3
      %v280 = vor.u32 %v276, %v279
      %v281 = vsel %vm264, %v272, %v280
      %v321 = vunpack.c.l.b16 %v206
      %v322 = vunpack.c.l.b16 %v207
      %v323 = vunpack.c.l.b16 %v208
      %v324 = vunpack.c.l.b16 %v209
      %v325 = vunpack.c.l.b16 %v210
      %v326 = vunpack.c.l.b16 %v211
      %v327 = vunpack.c.l.b16 %v212
      %v328 = vunpack.c.l.b16 %v213
      %v329 = vunpack.c.l.b16 %v214
      %v330 = vunpack.c.l.b16 %v215
      %v331 = vunpack.c.l.b16 %v216
      %v332 = vunpack.c.l.b16 %v217
      %v333 = vunpack.c.l.b16 %v218
      %v334 = vunpack.c.l.b16 %v219
      %v335 = vunpack.c.l.b16 %v220
      %v336 = vunpack.c.l.b16 %v221
      %v337 = vunpack.c.l.b16 %v222
      %v338 = vunpack.c.l.b16 %v223
      %v339 = vunpack.c.l.b16 %v224
      %v340 = vunpack.c.l.b16 %v225
      %v341 = vunpack.c.l.b16 %v226
      %v342 = vunpack.c.l.b16 %v227
      %v343 = vunpack.c.l.b16 %v228
      %v344 = vunpack.c.l.b16 %v229
      %v345 = vunpack.c.l.b16 %v230
      %v346 = vunpack.c.l.b16 %v231
      %v347 = vunpack.c.l.b16 %v232
      %v348 = vunpack.c.l.b16 %v233
      %v349 = vunpack.c.l.b16 %v234
      %v350 = vunpack.c.l.b16 %v235
      %v351 = vunpack.c.l.b16 %v236
      %v352 = vunpack.c.l.b16 %v237
      %v353 = vunpack.c.l.b16 %v238
      %v354 = vunpack.c.l.b16 %v239
      %v355 = vunpack.c.l.b16 %v240
      %v356 = vunpack.c.l.b16 %v241
      %v357 = vunpack.c.l.b16 %v242
      %v358 = vunpack.c.l.b16 %v243
      %v359 = vpack.c.b16 %v322, %v321
      %v360 = vpack.c.b16 %v324, %v323
      %v361 = vpack.c.b16 %v326, %v325
      %v362 = vpack.c.b16 %v328, %v327
      %v363 = vpack.c.b16 %v330, %v329
      %v364 = vpack.c.b16 %v332, %v331
      %v365 = vpack.c.b16 %v334, %v333
      %v366 = vpack.c.b16 %v336, %v335
      %v367 = vpack.c.b16 %v338, %v337
      %v368 = vpack.c.b16 %v340, %v339
      %v369 = vpack.c.b16 %v342, %v341
      %v370 = vpack.c.b16 %v344, %v343
      %v371 = vpack.c.b16 %v346, %v345
      %v372 = vpack.c.b16 %v348, %v347
      %v373 = vpack.c.b16 %v350, %v349
      %v374 = vpack.c.b16 %v352, %v351
      %v375 = vpack.c.b16 %v354, %v353
      %v376 = vpack.c.b16 %v356, %v355
      %v377 = vpack.c.b16 %v358, %v357
      %v378 = vpack.c.b16 %v259, %v259
      %vm379 = vsmask.f32 1280
      %v381 = vshrl.u32 %v359, 16
      %v383 = vrot.slane %v381, 6
      %v384 = vshll.u32 %v359, 16
      %v386 = vrot.slane %v384, 7
      %v387 = vor.u32 %v383, %v386
      %v389 = vshrl.u32 %v360, 16
      %v391 = vrot.slane %v389, 6
      %v392 = vshll.u32 %v360, 16
      %v394 = vrot.slane %v392, 7
      %v395 = vor.u32 %v391, %v394
      %v396 = vsel %vm379, %v387, %v395
      %v398 = vshrl.u32 %v361, 16
      %v400 = vrot.slane %v398, 6
      %v401 = vshll.u32 %v361, 16
      %v403 = vrot.slane %v401, 7
      %v404 = vor.u32 %v400, %v403
      %v405 = vsel %vm379, %v395, %v404
      %v407 = vshrl.u32 %v362, 16
      %v409 = vrot.slane %v407, 6
      %v410 = vshll.u32 %v362, 16
      %v412 = vrot.slane %v410, 7
      %v413 = vor.u32 %v409, %v412
      %v414 = vsel %vm379, %v404, %v413
      %v416 = vshrl.u32 %v363, 16
      %v418 = vrot.slane %v416, 6
      %v419 = vshll.u32 %v363, 16
      %v421 = vrot.slane %v419, 7
      %v422 = vor.u32 %v418, %v421
      %v423 = vsel %vm379, %v413, %v422
      %v425 = vshrl.u32 %v364, 16
      %v427 = vrot.slane %v425, 6
      %v428 = vshll.u32 %v364, 16
      %v430 = vrot.slane %v428, 7
      %v431 = vor.u32 %v427, %v430
      %v432 = vsel %vm379, %v422, %v431
      %v434 = vshrl.u32 %v365, 16
      %v436 = vrot.slane %v434, 6
      %v437 = vshll.u32 %v365, 16
      %v439 = vrot.slane %v437, 7
      %v440 = vor.u32 %v436, %v439
      %v441 = vsel %vm379, %v431, %v440
      %v443 = vshrl.u32 %v366, 16
      %v445 = vrot.slane %v443, 6
      %v446 = vshll.u32 %v366, 16
      %v448 = vrot.slane %v446, 7
      %v449 = vor.u32 %v445, %v448
      %v450 = vsel %vm379, %v440, %v449
      %v452 = vshrl.u32 %v367, 16
      %v454 = vrot.slane %v452, 6
      %v455 = vshll.u32 %v367, 16
      %v457 = vrot.slane %v455, 7
      %v458 = vor.u32 %v454, %v457
      %v459 = vsel %vm379, %v449, %v458
      %v461 = vshrl.u32 %v368, 16
      %v463 = vrot.slane %v461, 6
      %v464 = vshll.u32 %v368, 16
      %v466 = vrot.slane %v464, 7
      %v467 = vor.u32 %v463, %v466
      %v468 = vsel %vm379, %v458, %v467
      %v470 = vshrl.u32 %v369, 16
      %v472 = vrot.slane %v470, 6
      %v473 = vshll.u32 %v369, 16
      %v475 = vrot.slane %v473, 7
      %v476 = vor.u32 %v472, %v475
      %v477 = vsel %vm379, %v467, %v476
      %v479 = vshrl.u32 %v370, 16
      %v481 = vrot.slane %v479, 6
      %v482 = vshll.u32 %v370, 16
      %v484 = vrot.slane %v482, 7
      %v485 = vor.u32 %v481, %v484
      %v486 = vsel %vm379, %v476, %v485
      %v488 = vshrl.u32 %v371, 16
      %v490 = vrot.slane %v488, 6
      %v491 = vshll.u32 %v371, 16
      %v493 = vrot.slane %v491, 7
      %v494 = vor.u32 %v490, %v493
      %v495 = vsel %vm379, %v485, %v494
      %v497 = vshrl.u32 %v372, 16
      %v499 = vrot.slane %v497, 6
      %v500 = vshll.u32 %v372, 16
      %v502 = vrot.slane %v500, 7
      %v503 = vor.u32 %v499, %v502
      %v504 = vsel %vm379, %v494, %v503
      %v506 = vshrl.u32 %v373, 16
      %v508 = vrot.slane %v506, 6
      %v509 = vshll.u32 %v373, 16
      %v511 = vrot.slane %v509, 7
      %v512 = vor.u32 %v508, %v511
      %v513 = vsel %vm379, %v503, %v512
      %v515 = vshrl.u32 %v374, 16
      %v517 = vrot.slane %v515, 6
      %v518 = vshll.u32 %v374, 16
      %v520 = vrot.slane %v518, 7
      %v521 = vor.u32 %v517, %v520
      %v522 = vsel %vm379, %v512, %v521
      %v524 = vshrl.u32 %v375, 16
      %v526 = vrot.slane %v524, 6
      %v527 = vshll.u32 %v375, 16
      %v529 = vrot.slane %v527, 7
      %v530 = vor.u32 %v526, %v529
      %v531 = vsel %vm379, %v521, %v530
      %v533 = vshrl.u32 %v376, 16
      %v535 = vrot.slane %v533, 6
      %v536 = vshll.u32 %v376, 16
      %v538 = vrot.slane %v536, 7
      %v539 = vor.u32 %v535, %v538
      %v540 = vsel %vm379, %v530, %v539
      %v542 = vshrl.u32 %v377, 16
      %v544 = vrot.slane %v542, 6
      %v545 = vshll.u32 %v377, 16
      %v547 = vrot.slane %v545, 7
      %v548 = vor.u32 %v544, %v547
      %v549 = vsel %vm379, %v539, %v548
      %v551 = vshrl.u32 %v378, 16
      %v553 = vrot.slane %v551, 6
      %v554 = vshll.u32 %v378, 16
      %v556 = vrot.slane %v554, 7
      %v557 = vor.u32 %v553, %v556
      %v558 = vsel %vm379, %v548, %v557
      %vm560 = vcmask 1041408
      %vm561 = vmand %vm560, %vm379
      %v562 = vsel %vm561, %v280, %v387
      %vm563 = vcmask 1044480
      %v564 = vrot.slane %v262, 3
      %v565 = vrot.slane %v263, 3
      %v566 = vsel %vm563, %v564, %v565
      %vm567 = vcmask 1040384
      %v568 = vrot.slane %v359, 7
      %v569 = vrot.slane %v360, 7
      %v570 = vsel %vm567, %v568, %v569
      %v571 = vrot.slane %v361, 7
      %v572 = vsel %vm567, %v569, %v571
      %v573 = vrot.slane %v362, 7
      %v574 = vsel %vm567, %v571, %v573
      %v575 = vrot.slane %v363, 7
      %v576 = vsel %vm567, %v573, %v575
      %v577 = vrot.slane %v364, 7
      %v578 = vsel %vm567, %v575, %v577
      %v579 = vrot.slane %v365, 7
      %v580 = vsel %vm567, %v577, %v579
      %v581 = vrot.slane %v366, 7
      %v582 = vsel %vm567, %v579, %v581
      %v583 = vrot.slane %v367, 7
      %v584 = vsel %vm567, %v581, %v583
      %v585 = vrot.slane %v368, 7
      %v586 = vsel %vm567, %v583, %v585
      %v587 = vrot.slane %v369, 7
      %v588 = vsel %vm567, %v585, %v587
      %v589 = vrot.slane %v370, 7
      %v590 = vsel %vm567, %v587, %v589
      %v591 = vrot.slane %v371, 7
      %v592 = vsel %vm567, %v589, %v591
      %v593 = vrot.slane %v372, 7
      %v594 = vsel %vm567, %v591, %v593
      %v595 = vrot.slane %v373, 7
      %v596 = vsel %vm567, %v593, %v595
      %v597 = vrot.slane %v374, 7
      %v598 = vsel %vm567, %v595, %v597
      %v599 = vrot.slane %v375, 7
      %v600 = vsel %vm567, %v597, %v599
      %v601 = vrot.slane %v376, 7
      %v602 = vsel %vm567, %v599, %v601
      %v603 = vrot.slane %v377, 7
      %v604 = vsel %vm567, %v601, %v603
      %v605 = vrot.slane %v378, 7
      %v606 = vsel %vm567, %v603, %v605
      %vm607 = vcmask 1040384
      %v610 = vsel %vm607, %v565, %v568
      %vm611 = vcmask 31744
      %v613 = vsel %vm611, %v566, 0
      %v615 = vsel %vm611, %v610, 0
      %v618 = vsel %vm611, %v570, 0
      %v621 = vsel %vm611, %v572, 0
      %v624 = vsel %vm611, %v574, 0
      %v627 = vsel %vm611, %v576, 0
      %v630 = vsel %vm611, %v578, 0
      %v633 = vsel %vm611, %v580, 0
      %v636 = vsel %vm611, %v582, 0
      %v639 = vsel %vm611, %v584, 0
      %v642 = vsel %vm611, %v586, 0
      %v645 = vsel %vm611, %v588, 0
      %v648 = vsel %vm611, %v590, 0
      %v651 = vsel %vm611, %v592, 0
      %v654 = vsel %vm611, %v594, 0
      %v657 = vsel %vm611, %v596, 0
      %v660 = vsel %vm611, %v598, 0
      %v663 = vsel %vm611, %v600, 0
      %v666 = vsel %vm611, %v602, 0
      %v669 = vsel %vm611, %v604, 0
      %v672 = vsel %vm611, %v606, 0
      %vm674 = vcmask 1041408
      %v676 = vsel %vm674, %v248, 0
      %678 = vmatprep.subr.bf16.mxu0 0
      %679 = vmatpush1.bf16.msra.mxu0 %v676
      %680 = vmatprep.subr.bf16.mxu0 0
      %681 = vmatpush1.bf16.msra.mxu0 0
      %682 = vmatprep.subr.bf16.mxu0 0
      %683 = vmatpush1.bf16.msra.mxu0 0
      %684 = vmatprep.subr.bf16.mxu0 0
      %685 = vmatpush1.bf16.msra.mxu0 0
      %686 = vmatprep.subr.bf16.mxu0 0
      %687 = vmatpush1.bf16.msra.mxu0 0
      %688 = vmatprep.subr.bf16.mxu0 0
      %689 = vmatpush1.bf16.msra.mxu0 0
      %690 = vmatprep.subr.bf16.mxu0 0
      %691 = vmatpush1.bf16.msra.mxu0 0
      %692 = vmatprep.subr.bf16.mxu0 0
      %693 = vmatpush1.bf16.msra.mxu0 0
      %694 = vmatprep.subr.bf16.mxu0 0
      %695 = vmatpush1.bf16.msra.mxu0 0
      %696 = vmatprep.subr.bf16.mxu0 0
      %697 = vmatpush1.bf16.msra.mxu0 0
      %698 = vmatprep.subr.bf16.mxu0 0
      %699 = vmatpush1.bf16.msra.mxu0 0
      %700 = vmatprep.subr.bf16.mxu0 0
      %701 = vmatpush1.bf16.msra.mxu0 0
      %702 = vmatprep.subr.bf16.mxu0 0
      %703 = vmatpush1.bf16.msra.mxu0 0
      %704 = vmatprep.subr.bf16.mxu0 0
      %705 = vmatpush1.bf16.msra.mxu0 0
      %706 = vmatprep.subr.bf16.mxu0 0
      %707 = vmatpush1.bf16.msra.mxu0 0
      %708 = vmatprep.subr.bf16.mxu0 0
      %709 = vmatpush1.bf16.msra.mxu0 0
      %710 = vmatprep.mubr.bf16.mxu0 0
      %711 = vmatmul.mubr.bf16.gmra.mrb[0].mxu0 %v613
      %v712 = vpop.f32.mrb[0].mxu0
      %v713 = vadd.f32 0.0, %v712
      %v714 = vpop.f32.mrb[0].mxu0
      %v715 = vpop.f32.mrb[0].mxu0
      %v716 = vadd.f32 0.0, %v715
      %v717 = vpop.f32.mrb[0].mxu0
      %718 = vmatprep.mubr.bf16.mxu0 0
      %719 = vmatmul.mubr.bf16.gmra.mrb[0].mxu0 %v615
      %v720 = vpop.f32.mrb[0].mxu0
      %v721 = vadd.f32 0.0, %v720
      %v722 = vpop.f32.mrb[0].mxu0
      %v723 = vpop.f32.mrb[0].mxu0
      %v724 = vadd.f32 0.0, %v723
      %v725 = vpop.f32.mrb[0].mxu0
      %726 = vmatprep.mubr.bf16.mxu0 0
      %727 = vmatmul.mubr.bf16.gmra.mrb[0].mxu0 %v618
      %v728 = vpop.f32.mrb[0].mxu0
      %v729 = vadd.f32 0.0, %v728
      %v730 = vpop.f32.mrb[0].mxu0
      %v731 = vpop.f32.mrb[0].mxu0
      %v732 = vadd.f32 0.0, %v731
      %v733 = vpop.f32.mrb[0].mxu0
      %734 = vmatprep.mubr.bf16.mxu0 0
      %735 = vmatmul.mubr.bf16.gmra.mrb[0].mxu0 %v621
      %v736 = vpop.f32.mrb[0].mxu0
      %v737 = vadd.f32 0.0, %v736
      %v738 = vpop.f32.mrb[0].mxu0
      %v739 = vpop.f32.mrb[0].mxu0
      %v740 = vadd.f32 0.0, %v739
      %v741 = vpop.f32.mrb[0].mxu0
      %742 = vmatprep.mubr.bf16.mxu0 0
      %743 = vmatmul.mubr.bf16.gmra.mrb[0].mxu0 %v624
      %v744 = vpop.f32.mrb[0].mxu0
      %v745 = vadd.f32 0.0, %v744
      %v746 = vpop.f32.mrb[0].mxu0
      %v747 = vpop.f32.mrb[0].mxu0
      %v748 = vadd.f32 0.0, %v747
      %v749 = vpop.f32.mrb[0].mxu0
      %750 = vmatprep.mubr.bf16.mxu0 0
      %751 = vmatmul.mubr.bf16.gmra.mrb[0].mxu0 %v627
      %v752 = vpop.f32.mrb[0].mxu0
      %v753 = vadd.f32 0.0, %v752
      %v754 = vpop.f32.mrb[0].mxu0
      %v755 = vpop.f32.mrb[0].mxu0
      %v756 = vadd.f32 0.0, %v755
      %v757 = vpop.f32.mrb[0].mxu0
      %758 = vmatprep.mubr.bf16.mxu0 0
      %759 = vmatmul.mubr.bf16.gmra.mrb[0].mxu0 %v630
      %v760 = vpop.f32.mrb[0].mxu0
      %v761 = vadd.f32 0.0, %v760
      %v762 = vpop.f32.mrb[0].mxu0
      %v763 = vpop.f32.mrb[0].mxu0
      %v764 = vadd.f32 0.0, %v763
      %v765 = vpop.f32.mrb[0].mxu0
      %766 = vmatprep.mubr.bf16.mxu0 0
      %767 = vmatmul.mubr.bf16.gmra.mrb[0].mxu0 %v633
      %v768 = vpop.f32.mrb[0].mxu0
      %v769 = vadd.f32 0.0, %v768
      %v770 = vpop.f32.mrb[0].mxu0
      %v771 = vpop.f32.mrb[0].mxu0
      %v772 = vadd.f32 0.0, %v771
      %v773 = vpop.f32.mrb[0].mxu0
      %774 = vmatprep.mubr.bf16.mxu0 0
      %775 = vmatmul.mubr.bf16.gmra.mrb[0].mxu0 %v636
      %v776 = vpop.f32.mrb[0].mxu0
      %v777 = vadd.f32 0.0, %v776
      %v778 = vpop.f32.mrb[0].mxu0
      %v779 = vpop.f32.mrb[0].mxu0
      %v780 = vadd.f32 0.0, %v779
      %v781 = vpop.f32.mrb[0].mxu0
      %782 = vmatprep.mubr.bf16.mxu0 0
      %783 = vmatmul.mubr.bf16.gmra.mrb[0].mxu0 %v639
      %v784 = vpop.f32.mrb[0].mxu0
      %v785 = vadd.f32 0.0, %v784
      %v786 = vpop.f32.mrb[0].mxu0
      %v787 = vpop.f32.mrb[0].mxu0
      %v788 = vadd.f32 0.0, %v787
      %v789 = vpop.f32.mrb[0].mxu0
      %790 = vmatprep.mubr.bf16.mxu0 0
      %791 = vmatmul.mubr.bf16.gmra.mrb[0].mxu0 %v642
      %v792 = vpop.f32.mrb[0].mxu0
      %v793 = vadd.f32 0.0, %v792
      %v794 = vpop.f32.mrb[0].mxu0
      %v795 = vpop.f32.mrb[0].mxu0
      %v796 = vadd.f32 0.0, %v795
      %v797 = vpop.f32.mrb[0].mxu0
      %798 = vmatprep.mubr.bf16.mxu0 0
      %799 = vmatmul.mubr.bf16.gmra.mrb[0].mxu0 %v645
      %v800 = vpop.f32.mrb[0].mxu0
      %v801 = vadd.f32 0.0, %v800
      %v802 = vpop.f32.mrb[0].mxu0
      %v803 = vpop.f32.mrb[0].mxu0
      %v804 = vadd.f32 0.0, %v803
      %v805 = vpop.f32.mrb[0].mxu0
      %806 = vmatprep.mubr.bf16.mxu0 0
      %807 = vmatmul.mubr.bf16.gmra.mrb[0].mxu0 %v648
      %v808 = vpop.f32.mrb[0].mxu0
      %v809 = vadd.f32 0.0, %v808
      %v810 = vpop.f32.mrb[0].mxu0
      %v811 = vpop.f32.mrb[0].mxu0
      %v812 = vadd.f32 0.0, %v811
      %v813 = vpop.f32.mrb[0].mxu0
      %814 = vmatprep.mubr.bf16.mxu0 0
      %815 = vmatmul.mubr.bf16.gmra.mrb[0].mxu0 %v651
      %v816 = vpop.f32.mrb[0].mxu0
      %v817 = vadd.f32 0.0, %v816
      %v818 = vpop.f32.mrb[0].mxu0
      %v819 = vpop.f32.mrb[0].mxu0
      %v820 = vadd.f32 0.0, %v819
      %v821 = vpop.f32.mrb[0].mxu0
      %822 = vmatprep.mubr.bf16.mxu0 0
      %823 = vmatmul.mubr.bf16.gmra.mrb[0].mxu0 %v654
      %v824 = vpop.f32.mrb[0].mxu0
      %v825 = vadd.f32 0.0, %v824
      %v826 = vpop.f32.mrb[0].mxu0
      %v827 = vpop.f32.mrb[0].mxu0
      %v828 = vadd.f32 0.0, %v827
      %v829 = vpop.f32.mrb[0].mxu0
      %830 = vmatprep.mubr.bf16.mxu0 0
      %831 = vmatmul.mubr.bf16.gmra.mrb[0].mxu0 %v657
      %v832 = vpop.f32.mrb[0].mxu0
      %v833 = vadd.f32 0.0, %v832
      %v834 = vpop.f32.mrb[0].mxu0
      %v835 = vpop.f32.mrb[0].mxu0
      %v836 = vadd.f32 0.0, %v835
      %v837 = vpop.f32.mrb[0].mxu0
      %838 = vmatprep.mubr.bf16.mxu0 0
      %839 = vmatmul.mubr.bf16.gmra.mrb[0].mxu0 %v660
      %v840 = vpop.f32.mrb[0].mxu0
      %v841 = vadd.f32 0.0, %v840
      %v842 = vpop.f32.mrb[0].mxu0
      %v843 = vpop.f32.mrb[0].mxu0
      %v844 = vadd.f32 0.0, %v843
      %v845 = vpop.f32.mrb[0].mxu0
      %846 = vmatprep.mubr.bf16.mxu0 0
      %847 = vmatmul.mubr.bf16.gmra.mrb[0].mxu0 %v663
      %v848 = vpop.f32.mrb[0].mxu0
      %v849 = vadd.f32 0.0, %v848
      %v850 = vpop.f32.mrb[0].mxu0
      %v851 = vpop.f32.mrb[0].mxu0
      %v852 = vadd.f32 0.0, %v851
      %v853 = vpop.f32.mrb[0].mxu0
      %854 = vmatprep.mubr.bf16.mxu0 0
      %855 = vmatmul.mubr.bf16.gmra.mrb[0].mxu0 %v666
      %v856 = vpop.f32.mrb[0].mxu0
      %v857 = vadd.f32 0.0, %v856
      %v858 = vpop.f32.mrb[0].mxu0
      %v859 = vpop.f32.mrb[0].mxu0
      %v860 = vadd.f32 0.0, %v859
      %v861 = vpop.f32.mrb[0].mxu0
      %862 = vmatprep.mubr.bf16.mxu0 0
      %863 = vmatmul.mubr.bf16.gmra.mrb[0].mxu0 %v669
      %v864 = vpop.f32.mrb[0].mxu0
      %v865 = vadd.f32 0.0, %v864
      %v866 = vpop.f32.mrb[0].mxu0
      %v867 = vpop.f32.mrb[0].mxu0
      %v868 = vadd.f32 0.0, %v867
      %v869 = vpop.f32.mrb[0].mxu0
      %870 = vmatprep.mubr.bf16.mxu0 0
      %871 = vmatmul.mubr.bf16.gmra.mrb[0].mxu0 %v672
      %v872 = vpop.f32.mrb[0].mxu0
      %v873 = vadd.f32 0.0, %v872
      %v874 = vpop.f32.mrb[0].mxu0
      %v875 = vpop.f32.mrb[0].mxu0
      %v876 = vpop.f32.mrb[0].mxu0
      %877 = vdwg.mxu0
      %v879 = vsel %vm611, %v281, 0
      %v882 = vsel %vm611, %v562, 0
      %v885 = vsel %vm611, %v396, 0
      %v888 = vsel %vm611, %v405, 0
      %v891 = vsel %vm611, %v414, 0
      %v894 = vsel %vm611, %v423, 0
      %v897 = vsel %vm611, %v432, 0
      %v900 = vsel %vm611, %v441, 0
      %v903 = vsel %vm611, %v450, 0
      %v906 = vsel %vm611, %v459, 0
      %v909 = vsel %vm611, %v468, 0
      %v912 = vsel %vm611, %v477, 0
      %v915 = vsel %vm611, %v486, 0
      %v918 = vsel %vm611, %v495, 0
      %v921 = vsel %vm611, %v504, 0
      %v924 = vsel %vm611, %v513, 0
      %v927 = vsel %vm611, %v522, 0
      %v930 = vsel %vm611, %v531, 0
      %v933 = vsel %vm611, %v540, 0
      %v936 = vsel %vm611, %v549, 0
      %v939 = vsel %vm611, %v558, 0
      %v942 = vsel %vm674, %v247, 0
      %944 = vmatprep.subr.bf16.mxu0 0
      %945 = vmatpush1.bf16.msra.mxu0 %v942
      %946 = vmatprep.subr.bf16.mxu0 0
      %947 = vmatpush1.bf16.msra.mxu0 0
      %948 = vmatprep.subr.bf16.mxu0 0
      %949 = vmatpush1.bf16.msra.mxu0 0
      %950 = vmatprep.subr.bf16.mxu0 0
      %951 = vmatpush1.bf16.msra.mxu0 0
      %952 = vmatprep.subr.bf16.mxu0 0
      %953 = vmatpush1.bf16.msra.mxu0 0
      %954 = vmatprep.subr.bf16.mxu0 0
      %955 = vmatpush1.bf16.msra.mxu0 0
      %956 = vmatprep.subr.bf16.mxu0 0
      %957 = vmatpush1.bf16.msra.mxu0 0
      %958 = vmatprep.subr.bf16.mxu0 0
      %959 = vmatpush1.bf16.msra.mxu0 0
      %960 = vmatprep.subr.bf16.mxu0 0
      %961 = vmatpush1.bf16.msra.mxu0 0
      %962 = vmatprep.subr.bf16.mxu0 0
      %963 = vmatpush1.bf16.msra.mxu0 0
      %964 = vmatprep.subr.bf16.mxu0 0
      %965 = vmatpush1.bf16.msra.mxu0 0
      %966 = vmatprep.subr.bf16.mxu0 0
      %967 = vmatpush1.bf16.msra.mxu0 0
      %968 = vmatprep.subr.bf16.mxu0 0
      %969 = vmatpush1.bf16.msra.mxu0 0
      %970 = vmatprep.subr.bf16.mxu0 0
      %971 = vmatpush1.bf16.msra.mxu0 0
      %972 = vmatprep.subr.bf16.mxu0 0
      %973 = vmatpush1.bf16.msra.mxu0 0
      %974 = vmatprep.subr.bf16.mxu0 0
      %975 = vmatpush1.bf16.msra.mxu0 0
      %976 = vmatprep.mubr.bf16.mxu0 0
      %977 = vmatmul.mubr.bf16.gmra.mrb[0].mxu0 %v879
      %v978 = vpop.f32.mrb[0].mxu0
      %v979 = vadd.f32 %v713, %v978
      %v980 = vpop.f32.mrb[0].mxu0
      %v981 = vpop.f32.mrb[0].mxu0
      %v982 = vadd.f32 %v716, %v981
      %v983 = vpop.f32.mrb[0].mxu0
      %984 = vmatprep.mubr.bf16.mxu0 0
      %985 = vmatmul.mubr.bf16.gmra.mrb[0].mxu0 %v882
      %v986 = vpop.f32.mrb[0].mxu0
      %v987 = vadd.f32 %v721, %v986
      %v988 = vpop.f32.mrb[0].mxu0
      %v989 = vpop.f32.mrb[0].mxu0
      %v990 = vadd.f32 %v724, %v989
      %v991 = vpop.f32.mrb[0].mxu0
      %992 = vmatprep.mubr.bf16.mxu0 0
      %993 = vmatmul.mubr.bf16.gmra.mrb[0].mxu0 %v885
      %v994 = vpop.f32.mrb[0].mxu0
      %v995 = vadd.f32 %v729, %v994
      %v996 = vpop.f32.mrb[0].mxu0
      %v997 = vpop.f32.mrb[0].mxu0
      %v998 = vadd.f32 %v732, %v997
      %v999 = vpop.f32.mrb[0].mxu0
      %1000 = vmatprep.mubr.bf16.mxu0 0
      %1001 = vmatmul.mubr.bf16.gmra.mrb[0].mxu0 %v888
      %v1002 = vpop.f32.mrb[0].mxu0
      %v1003 = vadd.f32 %v737, %v1002
      %v1004 = vpop.f32.mrb[0].mxu0
      %v1005 = vpop.f32.mrb[0].mxu0
      %v1006 = vadd.f32 %v740, %v1005
      %v1007 = vpop.f32.mrb[0].mxu0
      %1008 = vmatprep.mubr.bf16.mxu0 0
      %1009 = vmatmul.mubr.bf16.gmra.mrb[0].mxu0 %v891
      %v1010 = vpop.f32.mrb[0].mxu0
      %v1011 = vadd.f32 %v745, %v1010
      %v1012 = vpop.f32.mrb[0].mxu0
      %v1013 = vpop.f32.mrb[0].mxu0
      %v1014 = vadd.f32 %v748, %v1013
      %v1015 = vpop.f32.mrb[0].mxu0
      %1016 = vmatprep.mubr.bf16.mxu0 0
      %1017 = vmatmul.mubr.bf16.gmra.mrb[0].mxu0 %v894
      %v1018 = vpop.f32.mrb[0].mxu0
      %v1019 = vadd.f32 %v753, %v1018
      %v1020 = vpop.f32.mrb[0].mxu0
      %v1021 = vpop.f32.mrb[0].mxu0
      %v1022 = vadd.f32 %v756, %v1021
      %v1023 = vpop.f32.mrb[0].mxu0
      %1024 = vmatprep.mubr.bf16.mxu0 0
      %1025 = vmatmul.mubr.bf16.gmra.mrb[0].mxu0 %v897
      %v1026 = vpop.f32.mrb[0].mxu0
      %v1027 = vadd.f32 %v761, %v1026
      %v1028 = vpop.f32.mrb[0].mxu0
      %v1029 = vpop.f32.mrb[0].mxu0
      %v1030 = vadd.f32 %v764, %v1029
      %v1031 = vpop.f32.mrb[0].mxu0
      %1032 = vmatprep.mubr.bf16.mxu0 0
      %1033 = vmatmul.mubr.bf16.gmra.mrb[0].mxu0 %v900
      %v1034 = vpop.f32.mrb[0].mxu0
      %v1035 = vadd.f32 %v769, %v1034
      %v1036 = vpop.f32.mrb[0].mxu0
      %v1037 = vpop.f32.mrb[0].mxu0
      %v1038 = vadd.f32 %v772, %v1037
      %v1039 = vpop.f32.mrb[0].mxu0
      %1040 = vmatprep.mubr.bf16.mxu0 0
      %1041 = vmatmul.mubr.bf16.gmra.mrb[0].mxu0 %v903
      %v1042 = vpop.f32.mrb[0].mxu0
      %v1043 = vadd.f32 %v777, %v1042
      %v1044 = vpop.f32.mrb[0].mxu0
      %v1045 = vpop.f32.mrb[0].mxu0
      %v1046 = vadd.f32 %v780, %v1045
      %v1047 = vpop.f32.mrb[0].mxu0
      %1048 = vmatprep.mubr.bf16.mxu0 0
      %1049 = vmatmul.mubr.bf16.gmra.mrb[0].mxu0 %v906
      %v1050 = vpop.f32.mrb[0].mxu0
      %v1051 = vadd.f32 %v785, %v1050
      %v1052 = vpop.f32.mrb[0].mxu0
      %v1053 = vpop.f32.mrb[0].mxu0
      %v1054 = vadd.f32 %v788, %v1053
      %v1055 = vpop.f32.mrb[0].mxu0
      %1056 = vmatprep.mubr.bf16.mxu0 0
      %1057 = vmatmul.mubr.bf16.gmra.mrb[0].mxu0 %v909
      %v1058 = vpop.f32.mrb[0].mxu0
      %v1059 = vadd.f32 %v793, %v1058
      %v1060 = vpop.f32.mrb[0].mxu0
      %v1061 = vpop.f32.mrb[0].mxu0
      %v1062 = vadd.f32 %v796, %v1061
      %v1063 = vpop.f32.mrb[0].mxu0
      %1064 = vmatprep.mubr.bf16.mxu0 0
      %1065 = vmatmul.mubr.bf16.gmra.mrb[0].mxu0 %v912
      %v1066 = vpop.f32.mrb[0].mxu0
      %v1067 = vadd.f32 %v801, %v1066
      %v1068 = vpop.f32.mrb[0].mxu0
      %v1069 = vpop.f32.mrb[0].mxu0
      %v1070 = vadd.f32 %v804, %v1069
      %v1071 = vpop.f32.mrb[0].mxu0
      %1072 = vmatprep.mubr.bf16.mxu0 0
      %1073 = vmatmul.mubr.bf16.gmra.mrb[0].mxu0 %v915
      %v1074 = vpop.f32.mrb[0].mxu0
      %v1075 = vadd.f32 %v809, %v1074
      %v1076 = vpop.f32.mrb[0].mxu0
      %v1077 = vpop.f32.mrb[0].mxu0
      %v1078 = vadd.f32 %v812, %v1077
      %v1079 = vpop.f32.mrb[0].mxu0
      %1080 = vmatprep.mubr.bf16.mxu0 0
      %1081 = vmatmul.mubr.bf16.gmra.mrb[0].mxu0 %v918
      %v1082 = vpop.f32.mrb[0].mxu0
      %v1083 = vadd.f32 %v817, %v1082
      %v1084 = vpop.f32.mrb[0].mxu0
      %v1085 = vpop.f32.mrb[0].mxu0
      %v1086 = vadd.f32 %v820, %v1085
      %v1087 = vpop.f32.mrb[0].mxu0
      %1088 = vmatprep.mubr.bf16.mxu0 0
      %1089 = vmatmul.mubr.bf16.gmra.mrb[0].mxu0 %v921
      %v1090 = vpop.f32.mrb[0].mxu0
      %v1091 = vadd.f32 %v825, %v1090
      %v1092 = vpop.f32.mrb[0].mxu0
      %v1093 = vpop.f32.mrb[0].mxu0
      %v1094 = vadd.f32 %v828, %v1093
      %v1095 = vpop.f32.mrb[0].mxu0
      %1096 = vmatprep.mubr.bf16.mxu0 0
      %1097 = vmatmul.mubr.bf16.gmra.mrb[0].mxu0 %v924
      %v1098 = vpop.f32.mrb[0].mxu0
      %v1099 = vadd.f32 %v833, %v1098
      %v1100 = vpop.f32.mrb[0].mxu0
      %v1101 = vpop.f32.mrb[0].mxu0
      %v1102 = vadd.f32 %v836, %v1101
      %v1103 = vpop.f32.mrb[0].mxu0
      %1104 = vmatprep.mubr.bf16.mxu0 0
      %1105 = vmatmul.mubr.bf16.gmra.mrb[0].mxu0 %v927
      %v1106 = vpop.f32.mrb[0].mxu0
      %v1107 = vadd.f32 %v841, %v1106
      %v1108 = vpop.f32.mrb[0].mxu0
      %v1109 = vpop.f32.mrb[0].mxu0
      %v1110 = vadd.f32 %v844, %v1109
      %v1111 = vpop.f32.mrb[0].mxu0
      %1112 = vmatprep.mubr.bf16.mxu0 0
      %1113 = vmatmul.mubr.bf16.gmra.mrb[0].mxu0 %v930
      %v1114 = vpop.f32.mrb[0].mxu0
      %v1115 = vadd.f32 %v849, %v1114
      %v1116 = vpop.f32.mrb[0].mxu0
      %v1117 = vpop.f32.mrb[0].mxu0
      %v1118 = vadd.f32 %v852, %v1117
      %v1119 = vpop.f32.mrb[0].mxu0
      %1120 = vmatprep.mubr.bf16.mxu0 0
      %1121 = vmatmul.mubr.bf16.gmra.mrb[0].mxu0 %v933
      %v1122 = vpop.f32.mrb[0].mxu0
      %v1123 = vadd.f32 %v857, %v1122
      %v1124 = vpop.f32.mrb[0].mxu0
      %v1125 = vpop.f32.mrb[0].mxu0
      %v1126 = vadd.f32 %v860, %v1125
      %v1127 = vpop.f32.mrb[0].mxu0
      %1128 = vmatprep.mubr.bf16.mxu0 0
      %1129 = vmatmul.mubr.bf16.gmra.mrb[0].mxu0 %v936
      %v1130 = vpop.f32.mrb[0].mxu0
      %v1131 = vadd.f32 %v865, %v1130
      %v1132 = vpop.f32.mrb[0].mxu0
      %v1133 = vpop.f32.mrb[0].mxu0
      %v1134 = vadd.f32 %v868, %v1133
      %v1135 = vpop.f32.mrb[0].mxu0
      %1136 = vmatprep.mubr.bf16.mxu0 0
      %1137 = vmatmul.mubr.bf16.gmra.mrb[0].mxu0 %v939
      %v1138 = vpop.f32.mrb[0].mxu0
      %v1139 = vadd.f32 %v873, %v1138
      %v1140 = vpop.f32.mrb[0].mxu0
      %v1141 = vpop.f32.mrb[0].mxu0
      %v1142 = vpop.f32.mrb[0].mxu0
      %1143 = vdwg.mxu0
      %vm1144 = vsmask.f32 4352
      %v1145 = vrot.slane %v266, 3
      %v1146 = vrot.slane %v269, 4
      %v1147 = vor.u32 %v1145, %v1146
      %v1148 = vrot.slane %v274, 3
      %v1149 = vrot.slane %v277, 4
      %v1150 = vor.u32 %v1148, %v1149
      %v1151 = vsel %vm1144, %v1147, %v1150
      %vm1153 = vsmask.f32 256
      %v1154 = vrot.slane %v381, 7
      %v1155 = vor.u32 %v1154, %v384
      %v1156 = vrot.slane %v389, 7
      %v1157 = vor.u32 %v1156, %v392
      %v1158 = vsel %vm1153, %v1154, %v1157
      %v1159 = vrot.slane %v398, 7
      %v1160 = vor.u32 %v1159, %v401
      %v1161 = vsel %vm1153, %v1156, %v1160
      %v1162 = vrot.slane %v407, 7
      %v1163 = vor.u32 %v1162, %v410
      %v1164 = vsel %vm1153, %v1159, %v1163
      %v1165 = vrot.slane %v416, 7
      %v1166 = vor.u32 %v1165, %v419
      %v1167 = vsel %vm1153, %v1162, %v1166
      %v1168 = vrot.slane %v425, 7
      %v1169 = vor.u32 %v1168, %v428
      %v1170 = vsel %vm1153, %v1165, %v1169
      %v1171 = vrot.slane %v434, 7
      %v1172 = vor.u32 %v1171, %v437
      %v1173 = vsel %vm1153, %v1168, %v1172
      %v1174 = vrot.slane %v443, 7
      %v1175 = vor.u32 %v1174, %v446
      %v1176 = vsel %vm1153, %v1171, %v1175
      %v1177 = vrot.slane %v452, 7
      %v1178 = vor.u32 %v1177, %v455
      %v1179 = vsel %vm1153, %v1174, %v1178
      %v1180 = vrot.slane %v461, 7
      %v1181 = vor.u32 %v1180, %v464
      %v1182 = vsel %vm1153, %v1177, %v1181
      %v1183 = vrot.slane %v470, 7
      %v1184 = vor.u32 %v1183, %v473
      %v1185 = vsel %vm1153, %v1180, %v1184
      %v1186 = vrot.slane %v479, 7
      %v1187 = vor.u32 %v1186, %v482
      %v1188 = vsel %vm1153, %v1183, %v1187
      %v1189 = vrot.slane %v488, 7
      %v1190 = vor.u32 %v1189, %v491
      %v1191 = vsel %vm1153, %v1186, %v1190
      %v1192 = vrot.slane %v497, 7
      %v1193 = vor.u32 %v1192, %v500
      %v1194 = vsel %vm1153, %v1189, %v1193
      %v1195 = vrot.slane %v506, 7
      %v1196 = vor.u32 %v1195, %v509
      %v1197 = vsel %vm1153, %v1192, %v1196
      %v1198 = vrot.slane %v515, 7
      %v1199 = vor.u32 %v1198, %v518
      %v1200 = vsel %vm1153, %v1195, %v1199
      %v1201 = vrot.slane %v524, 7
      %v1202 = vor.u32 %v1201, %v527
      %v1203 = vsel %vm1153, %v1198, %v1202
      %v1204 = vrot.slane %v533, 7
      %v1205 = vor.u32 %v1204, %v536
      %v1206 = vsel %vm1153, %v1201, %v1205
      %v1207 = vrot.slane %v542, 7
      %v1208 = vor.u32 %v1207, %v545
      %v1209 = vsel %vm1153, %v1204, %v1208
      %v1210 = vrot.slane %v551, 7
      %v1211 = vor.u32 %v1210, %v554
      %v1212 = vsel %vm1153, %v1207, %v1211
      %vm1214 = vmand %vm567, %vm1153
      %v1215 = vsel %vm1214, %v1148, %v1155
      %v1217 = vsel %vm611, %v1151, 0
      %v1220 = vsel %vm611, %v1215, 0
      %v1223 = vsel %vm611, %v1158, 0
      %v1226 = vsel %vm611, %v1161, 0
      %v1229 = vsel %vm611, %v1164, 0
      %v1232 = vsel %vm611, %v1167, 0
      %v1235 = vsel %vm611, %v1170, 0
      %v1238 = vsel %vm611, %v1173, 0
      %v1241 = vsel %vm611, %v1176, 0
      %v1244 = vsel %vm611, %v1179, 0
      %v1247 = vsel %vm611, %v1182, 0
      %v1250 = vsel %vm611, %v1185, 0
      %v1253 = vsel %vm611, %v1188, 0
      %v1256 = vsel %vm611, %v1191, 0
      %v1259 = vsel %vm611, %v1194, 0
      %v1262 = vsel %vm611, %v1197, 0
      %v1265 = vsel %vm611, %v1200, 0
      %v1268 = vsel %vm611, %v1203, 0
      %v1271 = vsel %vm611, %v1206, 0
      %v1274 = vsel %vm611, %v1209, 0
      %v1277 = vsel %vm611, %v1212, 0
      %v1280 = vsel %vm674, %v249, 0
      %1282 = vmatprep.subr.bf16.mxu0 0
      %1283 = vmatpush1.bf16.msra.mxu0 %v1280
      %1284 = vmatprep.subr.bf16.mxu0 0
      %1285 = vmatpush1.bf16.msra.mxu0 0
      %1286 = vmatprep.subr.bf16.mxu0 0
      %1287 = vmatpush1.bf16.msra.mxu0 0
      %1288 = vmatprep.subr.bf16.mxu0 0
      %1289 = vmatpush1.bf16.msra.mxu0 0
      %1290 = vmatprep.subr.bf16.mxu0 0
      %1291 = vmatpush1.bf16.msra.mxu0 0
      %1292 = vmatprep.subr.bf16.mxu0 0
      %1293 = vmatpush1.bf16.msra.mxu0 0
      %1294 = vmatprep.subr.bf16.mxu0 0
      %1295 = vmatpush1.bf16.msra.mxu0 0
      %1296 = vmatprep.subr.bf16.mxu0 0
      %1297 = vmatpush1.bf16.msra.mxu0 0
      %1298 = vmatprep.subr.bf16.mxu0 0
      %1299 = vmatpush1.bf16.msra.mxu0 0
      %1300 = vmatprep.subr.bf16.mxu0 0
      %1301 = vmatpush1.bf16.msra.mxu0 0
      %1302 = vmatprep.subr.bf16.mxu0 0
      %1303 = vmatpush1.bf16.msra.mxu0 0
      %1304 = vmatprep.subr.bf16.mxu0 0
      %1305 = vmatpush1.bf16.msra.mxu0 0
      %1306 = vmatprep.subr.bf16.mxu0 0
      %1307 = vmatpush1.bf16.msra.mxu0 0
      %1308 = vmatprep.subr.bf16.mxu0 0
      %1309 = vmatpush1.bf16.msra.mxu0 0
      %1310 = vmatprep.subr.bf16.mxu0 0
      %1311 = vmatpush1.bf16.msra.mxu0 0
      %1312 = vmatprep.subr.bf16.mxu0 0
      %1313 = vmatpush1.bf16.msra.mxu0 0
      %1314 = vmatprep.mubr.bf16.mxu0 0
      %1315 = vmatmul.mubr.bf16.gmra.mrb[0].mxu0 %v1217
      %v1316 = vpop.f32.mrb[0].mxu0
      %v1317 = vadd.f32 0.0, %v1316
      %v1318 = vpop.f32.mrb[0].mxu0
      %v1319 = vpop.f32.mrb[0].mxu0
      %v1320 = vadd.f32 0.0, %v1319
      %v1321 = vpop.f32.mrb[0].mxu0
      %1322 = vmatprep.mubr.bf16.mxu0 0
      %1323 = vmatmul.mubr.bf16.gmra.mrb[0].mxu0 %v1220
      %v1324 = vpop.f32.mrb[0].mxu0
      %v1325 = vadd.f32 0.0, %v1324
      %v1326 = vpop.f32.mrb[0].mxu0
      %v1327 = vpop.f32.mrb[0].mxu0
      %v1328 = vadd.f32 0.0, %v1327
      %v1329 = vpop.f32.mrb[0].mxu0
      %1330 = vmatprep.mubr.bf16.mxu0 0
      %1331 = vmatmul.mubr.bf16.gmra.mrb[0].mxu0 %v1223
      %v1332 = vpop.f32.mrb[0].mxu0
      %v1333 = vadd.f32 0.0, %v1332
      %v1334 = vpop.f32.mrb[0].mxu0
      %v1335 = vpop.f32.mrb[0].mxu0
      %v1336 = vadd.f32 0.0, %v1335
      %v1337 = vpop.f32.mrb[0].mxu0
      %1338 = vmatprep.mubr.bf16.mxu0 0
      %1339 = vmatmul.mubr.bf16.gmra.mrb[0].mxu0 %v1226
      %v1340 = vpop.f32.mrb[0].mxu0
      %v1341 = vadd.f32 0.0, %v1340
      %v1342 = vpop.f32.mrb[0].mxu0
      %v1343 = vpop.f32.mrb[0].mxu0
      %v1344 = vadd.f32 0.0, %v1343
      %v1345 = vpop.f32.mrb[0].mxu0
      %1346 = vmatprep.mubr.bf16.mxu0 0
      %1347 = vmatmul.mubr.bf16.gmra.mrb[0].mxu0 %v1229
      %v1348 = vpop.f32.mrb[0].mxu0
      %v1349 = vadd.f32 0.0, %v1348
      %v1350 = vpop.f32.mrb[0].mxu0
      %v1351 = vpop.f32.mrb[0].mxu0
      %v1352 = vadd.f32 0.0, %v1351
      %v1353 = vpop.f32.mrb[0].mxu0
      %1354 = vmatprep.mubr.bf16.mxu0 0
      %1355 = vmatmul.mubr.bf16.gmra.mrb[0].mxu0 %v1232
      %v1356 = vpop.f32.mrb[0].mxu0
      %v1357 = vadd.f32 0.0, %v1356
      %v1358 = vpop.f32.mrb[0].mxu0
      %v1359 = vpop.f32.mrb[0].mxu0
      %v1360 = vadd.f32 0.0, %v1359
      %v1361 = vpop.f32.mrb[0].mxu0
      %1362 = vmatprep.mubr.bf16.mxu0 0
      %1363 = vmatmul.mubr.bf16.gmra.mrb[0].mxu0 %v1235
      %v1364 = vpop.f32.mrb[0].mxu0
      %v1365 = vadd.f32 0.0, %v1364
      %v1366 = vpop.f32.mrb[0].mxu0
      %v1367 = vpop.f32.mrb[0].mxu0
      %v1368 = vadd.f32 0.0, %v1367
      %v1369 = vpop.f32.mrb[0].mxu0
      %1370 = vmatprep.mubr.bf16.mxu0 0
      %1371 = vmatmul.mubr.bf16.gmra.mrb[0].mxu0 %v1238
      %v1372 = vpop.f32.mrb[0].mxu0
      %v1373 = vadd.f32 0.0, %v1372
      %v1374 = vpop.f32.mrb[0].mxu0
      %v1375 = vpop.f32.mrb[0].mxu0
      %v1376 = vadd.f32 0.0, %v1375
      %v1377 = vpop.f32.mrb[0].mxu0
      %1378 = vmatprep.mubr.bf16.mxu0 0
      %1379 = vmatmul.mubr.bf16.gmra.mrb[0].mxu0 %v1241
      %v1380 = vpop.f32.mrb[0].mxu0
      %v1381 = vadd.f32 0.0, %v1380
      %v1382 = vpop.f32.mrb[0].mxu0
      %v1383 = vpop.f32.mrb[0].mxu0
      %v1384 = vadd.f32 0.0, %v1383
      %v1385 = vpop.f32.mrb[0].mxu0
      %1386 = vmatprep.mubr.bf16.mxu0 0
      %1387 = vmatmul.mubr.bf16.gmra.mrb[0].mxu0 %v1244
      %v1388 = vpop.f32.mrb[0].mxu0
      %v1389 = vadd.f32 0.0, %v1388
      %v1390 = vpop.f32.mrb[0].mxu0
      %v1391 = vpop.f32.mrb[0].mxu0
      %v1392 = vadd.f32 0.0, %v1391
      %v1393 = vpop.f32.mrb[0].mxu0
      %1394 = vmatprep.mubr.bf16.mxu0 0
      %1395 = vmatmul.mubr.bf16.gmra.mrb[0].mxu0 %v1247
      %v1396 = vpop.f32.mrb[0].mxu0
      %v1397 = vadd.f32 0.0, %v1396
      %v1398 = vpop.f32.mrb[0].mxu0
      %v1399 = vpop.f32.mrb[0].mxu0
      %v1400 = vadd.f32 0.0, %v1399
      %v1401 = vpop.f32.mrb[0].mxu0
      %1402 = vmatprep.mubr.bf16.mxu0 0
      %1403 = vmatmul.mubr.bf16.gmra.mrb[0].mxu0 %v1250
      %v1404 = vpop.f32.mrb[0].mxu0
      %v1405 = vadd.f32 0.0, %v1404
      %v1406 = vpop.f32.mrb[0].mxu0
      %v1407 = vpop.f32.mrb[0].mxu0
      %v1408 = vadd.f32 0.0, %v1407
      %v1409 = vpop.f32.mrb[0].mxu0
      %1410 = vmatprep.mubr.bf16.mxu0 0
      %1411 = vmatmul.mubr.bf16.gmra.mrb[0].mxu0 %v1253
      %v1412 = vpop.f32.mrb[0].mxu0
      %v1413 = vadd.f32 0.0, %v1412
      %v1414 = vpop.f32.mrb[0].mxu0
      %v1415 = vpop.f32.mrb[0].mxu0
      %v1416 = vadd.f32 0.0, %v1415
      %v1417 = vpop.f32.mrb[0].mxu0
      %1418 = vmatprep.mubr.bf16.mxu0 0
      %1419 = vmatmul.mubr.bf16.gmra.mrb[0].mxu0 %v1256
      %v1420 = vpop.f32.mrb[0].mxu0
      %v1421 = vadd.f32 0.0, %v1420
      %v1422 = vpop.f32.mrb[0].mxu0
      %v1423 = vpop.f32.mrb[0].mxu0
      %v1424 = vadd.f32 0.0, %v1423
      %v1425 = vpop.f32.mrb[0].mxu0
      %1426 = vmatprep.mubr.bf16.mxu0 0
      %1427 = vmatmul.mubr.bf16.gmra.mrb[0].mxu0 %v1259
      %v1428 = vpop.f32.mrb[0].mxu0
      %v1429 = vadd.f32 0.0, %v1428
      %v1430 = vpop.f32.mrb[0].mxu0
      %v1431 = vpop.f32.mrb[0].mxu0
      %v1432 = vadd.f32 0.0, %v1431
      %v1433 = vpop.f32.mrb[0].mxu0
      %1434 = vmatprep.mubr.bf16.mxu0 0
      %1435 = vmatmul.mubr.bf16.gmra.mrb[0].mxu0 %v1262
      %v1436 = vpop.f32.mrb[0].mxu0
      %v1437 = vadd.f32 0.0, %v1436
      %v1438 = vpop.f32.mrb[0].mxu0
      %v1439 = vpop.f32.mrb[0].mxu0
      %v1440 = vadd.f32 0.0, %v1439
      %v1441 = vpop.f32.mrb[0].mxu0
      %1442 = vmatprep.mubr.bf16.mxu0 0
      %1443 = vmatmul.mubr.bf16.gmra.mrb[0].mxu0 %v1265
      %v1444 = vpop.f32.mrb[0].mxu0
      %v1445 = vadd.f32 0.0, %v1444
      %v1446 = vpop.f32.mrb[0].mxu0
      %v1447 = vpop.f32.mrb[0].mxu0
      %v1448 = vadd.f32 0.0, %v1447
      %v1449 = vpop.f32.mrb[0].mxu0
      %1450 = vmatprep.mubr.bf16.mxu0 0
      %1451 = vmatmul.mubr.bf16.gmra.mrb[0].mxu0 %v1268
      %v1452 = vpop.f32.mrb[0].mxu0
      %v1453 = vadd.f32 0.0, %v1452
      %v1454 = vpop.f32.mrb[0].mxu0
      %v1455 = vpop.f32.mrb[0].mxu0
      %v1456 = vadd.f32 0.0, %v1455
      %v1457 = vpop.f32.mrb[0].mxu0
      %1458 = vmatprep.mubr.bf16.mxu0 0
      %1459 = vmatmul.mubr.bf16.gmra.mrb[0].mxu0 %v1271
      %v1460 = vpop.f32.mrb[0].mxu0
      %v1461 = vadd.f32 0.0, %v1460
      %v1462 = vpop.f32.mrb[0].mxu0
      %v1463 = vpop.f32.mrb[0].mxu0
      %v1464 = vadd.f32 0.0, %v1463
      %v1465 = vpop.f32.mrb[0].mxu0
      %1466 = vmatprep.mubr.bf16.mxu0 0
      %1467 = vmatmul.mubr.bf16.gmra.mrb[0].mxu0 %v1274
      %v1468 = vpop.f32.mrb[0].mxu0
      %v1469 = vadd.f32 0.0, %v1468
      %v1470 = vpop.f32.mrb[0].mxu0
      %v1471 = vpop.f32.mrb[0].mxu0
      %v1472 = vadd.f32 0.0, %v1471
      %v1473 = vpop.f32.mrb[0].mxu0
      %1474 = vmatprep.mubr.bf16.mxu0 0
      %1475 = vmatmul.mubr.bf16.gmra.mrb[0].mxu0 %v1277
      %v1476 = vpop.f32.mrb[0].mxu0
      %v1477 = vadd.f32 0.0, %v1476
      %v1478 = vpop.f32.mrb[0].mxu0
      %v1479 = vpop.f32.mrb[0].mxu0
      %v1480 = vpop.f32.mrb[0].mxu0
      %1481 = vdwg.mxu0
      %v1482 = vadd.f32 %v979, %v1317
      %v1483 = vadd.f32 %v982, %v1320
      %v1484 = vadd.f32 %v987, %v1325
      %v1485 = vadd.f32 %v990, %v1328
      %v1486 = vadd.f32 %v995, %v1333
      %v1487 = vadd.f32 %v998, %v1336
      %v1488 = vadd.f32 %v1003, %v1341
      %v1489 = vadd.f32 %v1006, %v1344
      %v1490 = vadd.f32 %v1011, %v1349
      %v1491 = vadd.f32 %v1014, %v1352
      %v1492 = vadd.f32 %v1019, %v1357
      %v1493 = vadd.f32 %v1022, %v1360
      %v1494 = vadd.f32 %v1027, %v1365
      %v1495 = vadd.f32 %v1030, %v1368
      %v1496 = vadd.f32 %v1035, %v1373
      %v1497 = vadd.f32 %v1038, %v1376
      %v1498 = vadd.f32 %v1043, %v1381
      %v1499 = vadd.f32 %v1046, %v1384
      %v1500 = vadd.f32 %v1051, %v1389
      %v1501 = vadd.f32 %v1054, %v1392
      %v1502 = vadd.f32 %v1059, %v1397
      %v1503 = vadd.f32 %v1062, %v1400
      %v1504 = vadd.f32 %v1067, %v1405
      %v1505 = vadd.f32 %v1070, %v1408
      %v1506 = vadd.f32 %v1075, %v1413
      %v1507 = vadd.f32 %v1078, %v1416
      %v1508 = vadd.f32 %v1083, %v1421
      %v1509 = vadd.f32 %v1086, %v1424
      %v1510 = vadd.f32 %v1091, %v1429
      %v1511 = vadd.f32 %v1094, %v1432
      %v1512 = vadd.f32 %v1099, %v1437
      %v1513 = vadd.f32 %v1102, %v1440
      %v1514 = vadd.f32 %v1107, %v1445
      %v1515 = vadd.f32 %v1110, %v1448
      %v1516 = vadd.f32 %v1115, %v1453
      %v1517 = vadd.f32 %v1118, %v1456
      %v1518 = vadd.f32 %v1123, %v1461
      %v1519 = vadd.f32 %v1126, %v1464
      %v1520 = vadd.f32 %v1131, %v1469
      %v1521 = vadd.f32 %v1134, %v1472
      %v1522 = vadd.f32 %v1139, %v1477
      %v1523 = vrot.slane %v266, 7
      %v1524 = vor.u32 %v1523, %v269
      %v1525 = vsel %vm1153, %v1207, %v1524
      %v1526 = vrot.slane %v274, 7
      %v1527 = vor.u32 %v1526, %v277
      %v1528 = vsel %vm1153, %v1523, %v1527
      %v1530 = vsel %vm611, %v1525, 0
      %v1533 = vsel %vm611, %v1528, 0
      %v1536 = vsel %vm674, %v250, 0
      %1538 = vmatprep.subr.bf16.mxu0 0
      %1539 = vmatpush1.bf16.msra.mxu0 %v1536
      %1540 = vmatprep.subr.bf16.mxu0 0
      %1541 = vmatpush1.bf16.msra.mxu0 0
      %1542 = vmatprep.subr.bf16.mxu0 0
      %1543 = vmatpush1.bf16.msra.mxu0 0
      %1544 = vmatprep.subr.bf16.mxu0 0
      %1545 = vmatpush1.bf16.msra.mxu0 0
      %1546 = vmatprep.subr.bf16.mxu0 0
      %1547 = vmatpush1.bf16.msra.mxu0 0
      %1548 = vmatprep.subr.bf16.mxu0 0
      %1549 = vmatpush1.bf16.msra.mxu0 0
      %1550 = vmatprep.subr.bf16.mxu0 0
      %1551 = vmatpush1.bf16.msra.mxu0 0
      %1552 = vmatprep.subr.bf16.mxu0 0
      %1553 = vmatpush1.bf16.msra.mxu0 0
      %1554 = vmatprep.subr.bf16.mxu0 0
      %1555 = vmatpush1.bf16.msra.mxu0 0
      %1556 = vmatprep.subr.bf16.mxu0 0
      %1557 = vmatpush1.bf16.msra.mxu0 0
      %1558 = vmatprep.subr.bf16.mxu0 0
      %1559 = vmatpush1.bf16.msra.mxu0 0
      %1560 = vmatprep.subr.bf16.mxu0 0
      %1561 = vmatpush1.bf16.msra.mxu0 0
      %1562 = vmatprep.subr.bf16.mxu0 0
      %1563 = vmatpush1.bf16.msra.mxu0 0
      %1564 = vmatprep.subr.bf16.mxu0 0
      %1565 = vmatpush1.bf16.msra.mxu0 0
      %1566 = vmatprep.subr.bf16.mxu0 0
      %1567 = vmatpush1.bf16.msra.mxu0 0
      %1568 = vmatprep.subr.bf16.mxu0 0
      %1569 = vmatpush1.bf16.msra.mxu0 0
      %1570 = vmatprep.mubr.bf16.mxu0 0
      %1571 = vmatmul.mubr.bf16.gmra.mrb[0].mxu0 %v1220
      %v1572 = vpop.f32.mrb[0].mxu0
      %v1573 = vadd.f32 0.0, %v1572
      %v1574 = vpop.f32.mrb[0].mxu0
      %v1575 = vpop.f32.mrb[0].mxu0
      %v1576 = vadd.f32 0.0, %v1575
      %v1577 = vpop.f32.mrb[0].mxu0
      %1578 = vmatprep.mubr.bf16.mxu0 0
      %1579 = vmatmul.mubr.bf16.gmra.mrb[0].mxu0 %v1223
      %v1580 = vpop.f32.mrb[0].mxu0
      %v1581 = vadd.f32 0.0, %v1580
      %v1582 = vpop.f32.mrb[0].mxu0
      %v1583 = vpop.f32.mrb[0].mxu0
      %v1584 = vadd.f32 0.0, %v1583
      %v1585 = vpop.f32.mrb[0].mxu0
      %1586 = vmatprep.mubr.bf16.mxu0 0
      %1587 = vmatmul.mubr.bf16.gmra.mrb[0].mxu0 %v1226
      %v1588 = vpop.f32.mrb[0].mxu0
      %v1589 = vadd.f32 0.0, %v1588
      %v1590 = vpop.f32.mrb[0].mxu0
      %v1591 = vpop.f32.mrb[0].mxu0
      %v1592 = vadd.f32 0.0, %v1591
      %v1593 = vpop.f32.mrb[0].mxu0
      %1594 = vmatprep.mubr.bf16.mxu0 0
      %1595 = vmatmul.mubr.bf16.gmra.mrb[0].mxu0 %v1229
      %v1596 = vpop.f32.mrb[0].mxu0
      %v1597 = vadd.f32 0.0, %v1596
      %v1598 = vpop.f32.mrb[0].mxu0
      %v1599 = vpop.f32.mrb[0].mxu0
      %v1600 = vadd.f32 0.0, %v1599
      %v1601 = vpop.f32.mrb[0].mxu0
      %1602 = vmatprep.mubr.bf16.mxu0 0
      %1603 = vmatmul.mubr.bf16.gmra.mrb[0].mxu0 %v1232
      %v1604 = vpop.f32.mrb[0].mxu0
      %v1605 = vadd.f32 0.0, %v1604
      %v1606 = vpop.f32.mrb[0].mxu0
      %v1607 = vpop.f32.mrb[0].mxu0
      %v1608 = vadd.f32 0.0, %v1607
      %v1609 = vpop.f32.mrb[0].mxu0
      %1610 = vmatprep.mubr.bf16.mxu0 0
      %1611 = vmatmul.mubr.bf16.gmra.mrb[0].mxu0 %v1235
      %v1612 = vpop.f32.mrb[0].mxu0
      %v1613 = vadd.f32 0.0, %v1612
      %v1614 = vpop.f32.mrb[0].mxu0
      %v1615 = vpop.f32.mrb[0].mxu0
      %v1616 = vadd.f32 0.0, %v1615
      %v1617 = vpop.f32.mrb[0].mxu0
      %1618 = vmatprep.mubr.bf16.mxu0 0
      %1619 = vmatmul.mubr.bf16.gmra.mrb[0].mxu0 %v1238
      %v1620 = vpop.f32.mrb[0].mxu0
      %v1621 = vadd.f32 0.0, %v1620
      %v1622 = vpop.f32.mrb[0].mxu0
      %v1623 = vpop.f32.mrb[0].mxu0
      %v1624 = vadd.f32 0.0, %v1623
      %v1625 = vpop.f32.mrb[0].mxu0
      %1626 = vmatprep.mubr.bf16.mxu0 0
      %1627 = vmatmul.mubr.bf16.gmra.mrb[0].mxu0 %v1241
      %v1628 = vpop.f32.mrb[0].mxu0
      %v1629 = vadd.f32 0.0, %v1628
      %v1630 = vpop.f32.mrb[0].mxu0
      %v1631 = vpop.f32.mrb[0].mxu0
      %v1632 = vadd.f32 0.0, %v1631
      %v1633 = vpop.f32.mrb[0].mxu0
      %1634 = vmatprep.mubr.bf16.mxu0 0
      %1635 = vmatmul.mubr.bf16.gmra.mrb[0].mxu0 %v1244
      %v1636 = vpop.f32.mrb[0].mxu0
      %v1637 = vadd.f32 0.0, %v1636
      %v1638 = vpop.f32.mrb[0].mxu0
      %v1639 = vpop.f32.mrb[0].mxu0
      %v1640 = vadd.f32 0.0, %v1639
      %v1641 = vpop.f32.mrb[0].mxu0
      %1642 = vmatprep.mubr.bf16.mxu0 0
      %1643 = vmatmul.mubr.bf16.gmra.mrb[0].mxu0 %v1247
      %v1644 = vpop.f32.mrb[0].mxu0
      %v1645 = vadd.f32 0.0, %v1644
      %v1646 = vpop.f32.mrb[0].mxu0
      %v1647 = vpop.f32.mrb[0].mxu0
      %v1648 = vadd.f32 0.0, %v1647
      %v1649 = vpop.f32.mrb[0].mxu0
      %1650 = vmatprep.mubr.bf16.mxu0 0
      %1651 = vmatmul.mubr.bf16.gmra.mrb[0].mxu0 %v1250
      %v1652 = vpop.f32.mrb[0].mxu0
      %v1653 = vadd.f32 0.0, %v1652
      %v1654 = vpop.f32.mrb[0].mxu0
      %v1655 = vpop.f32.mrb[0].mxu0
      %v1656 = vadd.f32 0.0, %v1655
      %v1657 = vpop.f32.mrb[0].mxu0
      %1658 = vmatprep.mubr.bf16.mxu0 0
      %1659 = vmatmul.mubr.bf16.gmra.mrb[0].mxu0 %v1253
      %v1660 = vpop.f32.mrb[0].mxu0
      %v1661 = vadd.f32 0.0, %v1660
      %v1662 = vpop.f32.mrb[0].mxu0
      %v1663 = vpop.f32.mrb[0].mxu0
      %v1664 = vadd.f32 0.0, %v1663
      %v1665 = vpop.f32.mrb[0].mxu0
      %1666 = vmatprep.mubr.bf16.mxu0 0
      %1667 = vmatmul.mubr.bf16.gmra.mrb[0].mxu0 %v1256
      %v1668 = vpop.f32.mrb[0].mxu0
      %v1669 = vadd.f32 0.0, %v1668
      %v1670 = vpop.f32.mrb[0].mxu0
      %v1671 = vpop.f32.mrb[0].mxu0
      %v1672 = vadd.f32 0.0, %v1671
      %v1673 = vpop.f32.mrb[0].mxu0
      %1674 = vmatprep.mubr.bf16.mxu0 0
      %1675 = vmatmul.mubr.bf16.gmra.mrb[0].mxu0 %v1259
      %v1676 = vpop.f32.mrb[0].mxu0
      %v1677 = vadd.f32 0.0, %v1676
      %v1678 = vpop.f32.mrb[0].mxu0
      %v1679 = vpop.f32.mrb[0].mxu0
      %v1680 = vadd.f32 0.0, %v1679
      %v1681 = vpop.f32.mrb[0].mxu0
      %1682 = vmatprep.mubr.bf16.mxu0 0
      %1683 = vmatmul.mubr.bf16.gmra.mrb[0].mxu0 %v1262
      %v1684 = vpop.f32.mrb[0].mxu0
      %v1685 = vadd.f32 0.0, %v1684
      %v1686 = vpop.f32.mrb[0].mxu0
      %v1687 = vpop.f32.mrb[0].mxu0
      %v1688 = vadd.f32 0.0, %v1687
      %v1689 = vpop.f32.mrb[0].mxu0
      %1690 = vmatprep.mubr.bf16.mxu0 0
      %1691 = vmatmul.mubr.bf16.gmra.mrb[0].mxu0 %v1265
      %v1692 = vpop.f32.mrb[0].mxu0
      %v1693 = vadd.f32 0.0, %v1692
      %v1694 = vpop.f32.mrb[0].mxu0
      %v1695 = vpop.f32.mrb[0].mxu0
      %v1696 = vadd.f32 0.0, %v1695
      %v1697 = vpop.f32.mrb[0].mxu0
      %1698 = vmatprep.mubr.bf16.mxu0 0
      %1699 = vmatmul.mubr.bf16.gmra.mrb[0].mxu0 %v1268
      %v1700 = vpop.f32.mrb[0].mxu0
      %v1701 = vadd.f32 0.0, %v1700
      %v1702 = vpop.f32.mrb[0].mxu0
      %v1703 = vpop.f32.mrb[0].mxu0
      %v1704 = vadd.f32 0.0, %v1703
      %v1705 = vpop.f32.mrb[0].mxu0
      %1706 = vmatprep.mubr.bf16.mxu0 0
      %1707 = vmatmul.mubr.bf16.gmra.mrb[0].mxu0 %v1271
      %v1708 = vpop.f32.mrb[0].mxu0
      %v1709 = vadd.f32 0.0, %v1708
      %v1710 = vpop.f32.mrb[0].mxu0
      %v1711 = vpop.f32.mrb[0].mxu0
      %v1712 = vadd.f32 0.0, %v1711
      %v1713 = vpop.f32.mrb[0].mxu0
      %1714 = vmatprep.mubr.bf16.mxu0 0
      %1715 = vmatmul.mubr.bf16.gmra.mrb[0].mxu0 %v1274
      %v1716 = vpop.f32.mrb[0].mxu0
      %v1717 = vadd.f32 0.0, %v1716
      %v1718 = vpop.f32.mrb[0].mxu0
      %v1719 = vpop.f32.mrb[0].mxu0
      %v1720 = vadd.f32 0.0, %v1719
      %v1721 = vpop.f32.mrb[0].mxu0
      %1722 = vmatprep.mubr.bf16.mxu0 0
      %1723 = vmatmul.mubr.bf16.gmra.mrb[0].mxu0 %v1530
      %v1724 = vpop.f32.mrb[0].mxu0
      %v1725 = vadd.f32 0.0, %v1724
      %v1726 = vpop.f32.mrb[0].mxu0
      %v1727 = vpop.f32.mrb[0].mxu0
      %v1728 = vadd.f32 0.0, %v1727
      %v1729 = vpop.f32.mrb[0].mxu0
      %1730 = vmatprep.mubr.bf16.mxu0 0
      %1731 = vmatmul.mubr.bf16.gmra.mrb[0].mxu0 %v1533
      %v1732 = vpop.f32.mrb[0].mxu0
      %v1733 = vadd.f32 0.0, %v1732
      %v1734 = vpop.f32.mrb[0].mxu0
      %v1735 = vpop.f32.mrb[0].mxu0
      %v1736 = vpop.f32.mrb[0].mxu0
      %1737 = vdwg.mxu0
      %v1738 = vadd.f32 %v1482, %v1573
      %v1739 = vadd.f32 %v1483, %v1576
      %v1740 = vadd.f32 %v1484, %v1581
      %v1741 = vadd.f32 %v1485, %v1584
      %v1742 = vadd.f32 %v1486, %v1589
      %v1743 = vadd.f32 %v1487, %v1592
      %v1744 = vadd.f32 %v1488, %v1597
      %v1745 = vadd.f32 %v1489, %v1600
      %v1746 = vadd.f32 %v1490, %v1605
      %v1747 = vadd.f32 %v1491, %v1608
      %v1748 = vadd.f32 %v1492, %v1613
      %v1749 = vadd.f32 %v1493, %v1616
      %v1750 = vadd.f32 %v1494, %v1621
      %v1751 = vadd.f32 %v1495, %v1624
      %v1752 = vadd.f32 %v1496, %v1629
      %v1753 = vadd.f32 %v1497, %v1632
      %v1754 = vadd.f32 %v1498, %v1637
      %v1755 = vadd.f32 %v1499, %v1640
      %v1756 = vadd.f32 %v1500, %v1645
      %v1757 = vadd.f32 %v1501, %v1648
      %v1758 = vadd.f32 %v1502, %v1653
      %v1759 = vadd.f32 %v1503, %v1656
      %v1760 = vadd.f32 %v1504, %v1661
      %v1761 = vadd.f32 %v1505, %v1664
      %v1762 = vadd.f32 %v1506, %v1669
      %v1763 = vadd.f32 %v1507, %v1672
      %v1764 = vadd.f32 %v1508, %v1677
      %v1765 = vadd.f32 %v1509, %v1680
      %v1766 = vadd.f32 %v1510, %v1685
      %v1767 = vadd.f32 %v1511, %v1688
      %v1768 = vadd.f32 %v1512, %v1693
      %v1769 = vadd.f32 %v1513, %v1696
      %v1770 = vadd.f32 %v1514, %v1701
      %v1771 = vadd.f32 %v1515, %v1704
      %v1772 = vadd.f32 %v1516, %v1709
      %v1773 = vadd.f32 %v1517, %v1712
      %v1774 = vadd.f32 %v1518, %v1717
      %v1775 = vadd.f32 %v1519, %v1720
      %v1776 = vadd.f32 %v1520, %v1725
      %v1777 = vadd.f32 %v1521, %v1728
      %v1778 = vadd.f32 %v1522, %v1733
      %v1779 = vsel %vm611, %v359, 0
      %v1781 = vsel %vm611, %v360, 0
      %v1783 = vsel %vm611, %v361, 0
      %v1785 = vsel %vm611, %v362, 0
      %v1787 = vsel %vm611, %v363, 0
      %v1789 = vsel %vm611, %v364, 0
      %v1791 = vsel %vm611, %v365, 0
      %v1793 = vsel %vm611, %v366, 0
      %v1795 = vsel %vm611, %v367, 0
      %v1797 = vsel %vm611, %v368, 0
      %v1799 = vsel %vm611, %v369, 0
      %v1801 = vsel %vm611, %v370, 0
      %v1803 = vsel %vm611, %v371, 0
      %v1805 = vsel %vm611, %v372, 0
      %v1807 = vsel %vm611, %v373, 0
      %v1809 = vsel %vm611, %v374, 0
      %v1811 = vsel %vm611, %v375, 0
      %v1813 = vsel %vm611, %v376, 0
      %v1815 = vsel %vm611, %v377, 0
      %v1817 = vsel %vm611, %v262, 0
      %v1819 = vsel %vm611, %v263, 0
      %v1822 = vsel %vm674, %v251, 0
      %1824 = vmatprep.subr.bf16.mxu0 0
      %1825 = vmatpush1.bf16.msra.mxu0 %v1822
      %1826 = vmatprep.subr.bf16.mxu0 0
      %1827 = vmatpush1.bf16.msra.mxu0 0
      %1828 = vmatprep.subr.bf16.mxu0 0
      %1829 = vmatpush1.bf16.msra.mxu0 0
      %1830 = vmatprep.subr.bf16.mxu0 0
      %1831 = vmatpush1.bf16.msra.mxu0 0
      %1832 = vmatprep.subr.bf16.mxu0 0
      %1833 = vmatpush1.bf16.msra.mxu0 0
      %1834 = vmatprep.subr.bf16.mxu0 0
      %1835 = vmatpush1.bf16.msra.mxu0 0
      %1836 = vmatprep.subr.bf16.mxu0 0
      %1837 = vmatpush1.bf16.msra.mxu0 0
      %1838 = vmatprep.subr.bf16.mxu0 0
      %1839 = vmatpush1.bf16.msra.mxu0 0
      %1840 = vmatprep.subr.bf16.mxu0 0
      %1841 = vmatpush1.bf16.msra.mxu0 0
      %1842 = vmatprep.subr.bf16.mxu0 0
      %1843 = vmatpush1.bf16.msra.mxu0 0
      %1844 = vmatprep.subr.bf16.mxu0 0
      %1845 = vmatpush1.bf16.msra.mxu0 0
      %1846 = vmatprep.subr.bf16.mxu0 0
      %1847 = vmatpush1.bf16.msra.mxu0 0
      %1848 = vmatprep.subr.bf16.mxu0 0
      %1849 = vmatpush1.bf16.msra.mxu0 0
      %1850 = vmatprep.subr.bf16.mxu0 0
      %1851 = vmatpush1.bf16.msra.mxu0 0
      %1852 = vmatprep.subr.bf16.mxu0 0
      %1853 = vmatpush1.bf16.msra.mxu0 0
      %1854 = vmatprep.subr.bf16.mxu0 0
      %1855 = vmatpush1.bf16.msra.mxu0 0
      %1856 = vmatprep.mubr.bf16.mxu0 0
      %1857 = vmatmul.mubr.bf16.gmra.mrb[0].mxu0 %v1779
      %v1858 = vpop.f32.mrb[0].mxu0
      %v1859 = vadd.f32 0.0, %v1858
      %v1860 = vpop.f32.mrb[0].mxu0
      %v1861 = vpop.f32.mrb[0].mxu0
      %v1862 = vadd.f32 0.0, %v1861
      %v1863 = vpop.f32.mrb[0].mxu0
      %1864 = vmatprep.mubr.bf16.mxu0 0
      %1865 = vmatmul.mubr.bf16.gmra.mrb[0].mxu0 %v1781
      %v1866 = vpop.f32.mrb[0].mxu0
      %v1867 = vadd.f32 0.0, %v1866
      %v1868 = vpop.f32.mrb[0].mxu0
      %v1869 = vpop.f32.mrb[0].mxu0
      %v1870 = vadd.f32 0.0, %v1869
      %v1871 = vpop.f32.mrb[0].mxu0
      %1872 = vmatprep.mubr.bf16.mxu0 0
      %1873 = vmatmul.mubr.bf16.gmra.mrb[0].mxu0 %v1783
      %v1874 = vpop.f32.mrb[0].mxu0
      %v1875 = vadd.f32 0.0, %v1874
      %v1876 = vpop.f32.mrb[0].mxu0
      %v1877 = vpop.f32.mrb[0].mxu0
      %v1878 = vadd.f32 0.0, %v1877
      %v1879 = vpop.f32.mrb[0].mxu0
      %1880 = vmatprep.mubr.bf16.mxu0 0
      %1881 = vmatmul.mubr.bf16.gmra.mrb[0].mxu0 %v1785
      %v1882 = vpop.f32.mrb[0].mxu0
      %v1883 = vadd.f32 0.0, %v1882
      %v1884 = vpop.f32.mrb[0].mxu0
      %v1885 = vpop.f32.mrb[0].mxu0
      %v1886 = vadd.f32 0.0, %v1885
      %v1887 = vpop.f32.mrb[0].mxu0
      %1888 = vmatprep.mubr.bf16.mxu0 0
      %1889 = vmatmul.mubr.bf16.gmra.mrb[0].mxu0 %v1787
      %v1890 = vpop.f32.mrb[0].mxu0
      %v1891 = vadd.f32 0.0, %v1890
      %v1892 = vpop.f32.mrb[0].mxu0
      %v1893 = vpop.f32.mrb[0].mxu0
      %v1894 = vadd.f32 0.0, %v1893
      %v1895 = vpop.f32.mrb[0].mxu0
      %1896 = vmatprep.mubr.bf16.mxu0 0
      %1897 = vmatmul.mubr.bf16.gmra.mrb[0].mxu0 %v1789
      %v1898 = vpop.f32.mrb[0].mxu0
      %v1899 = vadd.f32 0.0, %v1898
      %v1900 = vpop.f32.mrb[0].mxu0
      %v1901 = vpop.f32.mrb[0].mxu0
      %v1902 = vadd.f32 0.0, %v1901
      %v1903 = vpop.f32.mrb[0].mxu0
      %1904 = vmatprep.mubr.bf16.mxu0 0
      %1905 = vmatmul.mubr.bf16.gmra.mrb[0].mxu0 %v1791
      %v1906 = vpop.f32.mrb[0].mxu0
      %v1907 = vadd.f32 0.0, %v1906
      %v1908 = vpop.f32.mrb[0].mxu0
      %v1909 = vpop.f32.mrb[0].mxu0
      %v1910 = vadd.f32 0.0, %v1909
      %v1911 = vpop.f32.mrb[0].mxu0
      %1912 = vmatprep.mubr.bf16.mxu0 0
      %1913 = vmatmul.mubr.bf16.gmra.mrb[0].mxu0 %v1793
      %v1914 = vpop.f32.mrb[0].mxu0
      %v1915 = vadd.f32 0.0, %v1914
      %v1916 = vpop.f32.mrb[0].mxu0
      %v1917 = vpop.f32.mrb[0].mxu0
      %v1918 = vadd.f32 0.0, %v1917
      %v1919 = vpop.f32.mrb[0].mxu0
      %1920 = vmatprep.mubr.bf16.mxu0 0
      %1921 = vmatmul.mubr.bf16.gmra.mrb[0].mxu0 %v1795
      %v1922 = vpop.f32.mrb[0].mxu0
      %v1923 = vadd.f32 0.0, %v1922
      %v1924 = vpop.f32.mrb[0].mxu0
      %v1925 = vpop.f32.mrb[0].mxu0
      %v1926 = vadd.f32 0.0, %v1925
      %v1927 = vpop.f32.mrb[0].mxu0
      %1928 = vmatprep.mubr.bf16.mxu0 0
      %1929 = vmatmul.mubr.bf16.gmra.mrb[0].mxu0 %v1797
      %v1930 = vpop.f32.mrb[0].mxu0
      %v1931 = vadd.f32 0.0, %v1930
      %v1932 = vpop.f32.mrb[0].mxu0
      %v1933 = vpop.f32.mrb[0].mxu0
      %v1934 = vadd.f32 0.0, %v1933
      %v1935 = vpop.f32.mrb[0].mxu0
      %1936 = vmatprep.mubr.bf16.mxu0 0
      %1937 = vmatmul.mubr.bf16.gmra.mrb[0].mxu0 %v1799
      %v1938 = vpop.f32.mrb[0].mxu0
      %v1939 = vadd.f32 0.0, %v1938
      %v1940 = vpop.f32.mrb[0].mxu0
      %v1941 = vpop.f32.mrb[0].mxu0
      %v1942 = vadd.f32 0.0, %v1941
      %v1943 = vpop.f32.mrb[0].mxu0
      %1944 = vmatprep.mubr.bf16.mxu0 0
      %1945 = vmatmul.mubr.bf16.gmra.mrb[0].mxu0 %v1801
      %v1946 = vpop.f32.mrb[0].mxu0
      %v1947 = vadd.f32 0.0, %v1946
      %v1948 = vpop.f32.mrb[0].mxu0
      %v1949 = vpop.f32.mrb[0].mxu0
      %v1950 = vadd.f32 0.0, %v1949
      %v1951 = vpop.f32.mrb[0].mxu0
      %1952 = vmatprep.mubr.bf16.mxu0 0
      %1953 = vmatmul.mubr.bf16.gmra.mrb[0].mxu0 %v1803
      %v1954 = vpop.f32.mrb[0].mxu0
      %v1955 = vadd.f32 0.0, %v1954
      %v1956 = vpop.f32.mrb[0].mxu0
      %v1957 = vpop.f32.mrb[0].mxu0
      %v1958 = vadd.f32 0.0, %v1957
      %v1959 = vpop.f32.mrb[0].mxu0
      %1960 = vmatprep.mubr.bf16.mxu0 0
      %1961 = vmatmul.mubr.bf16.gmra.mrb[0].mxu0 %v1805
      %v1962 = vpop.f32.mrb[0].mxu0
      %v1963 = vadd.f32 0.0, %v1962
      %v1964 = vpop.f32.mrb[0].mxu0
      %v1965 = vpop.f32.mrb[0].mxu0
      %v1966 = vadd.f32 0.0, %v1965
      %v1967 = vpop.f32.mrb[0].mxu0
      %1968 = vmatprep.mubr.bf16.mxu0 0
      %1969 = vmatmul.mubr.bf16.gmra.mrb[0].mxu0 %v1807
      %v1970 = vpop.f32.mrb[0].mxu0
      %v1971 = vadd.f32 0.0, %v1970
      %v1972 = vpop.f32.mrb[0].mxu0
      %v1973 = vpop.f32.mrb[0].mxu0
      %v1974 = vadd.f32 0.0, %v1973
      %v1975 = vpop.f32.mrb[0].mxu0
      %1976 = vmatprep.mubr.bf16.mxu0 0
      %1977 = vmatmul.mubr.bf16.gmra.mrb[0].mxu0 %v1809
      %v1978 = vpop.f32.mrb[0].mxu0
      %v1979 = vadd.f32 0.0, %v1978
      %v1980 = vpop.f32.mrb[0].mxu0
      %v1981 = vpop.f32.mrb[0].mxu0
      %v1982 = vadd.f32 0.0, %v1981
      %v1983 = vpop.f32.mrb[0].mxu0
      %1984 = vmatprep.mubr.bf16.mxu0 0
      %1985 = vmatmul.mubr.bf16.gmra.mrb[0].mxu0 %v1811
      %v1986 = vpop.f32.mrb[0].mxu0
      %v1987 = vadd.f32 0.0, %v1986
      %v1988 = vpop.f32.mrb[0].mxu0
      %v1989 = vpop.f32.mrb[0].mxu0
      %v1990 = vadd.f32 0.0, %v1989
      %v1991 = vpop.f32.mrb[0].mxu0
      %1992 = vmatprep.mubr.bf16.mxu0 0
      %1993 = vmatmul.mubr.bf16.gmra.mrb[0].mxu0 %v1813
      %v1994 = vpop.f32.mrb[0].mxu0
      %v1995 = vadd.f32 0.0, %v1994
      %v1996 = vpop.f32.mrb[0].mxu0
      %v1997 = vpop.f32.mrb[0].mxu0
      %v1998 = vadd.f32 0.0, %v1997
      %v1999 = vpop.f32.mrb[0].mxu0
      %2000 = vmatprep.mubr.bf16.mxu0 0
      %2001 = vmatmul.mubr.bf16.gmra.mrb[0].mxu0 %v1815
      %v2002 = vpop.f32.mrb[0].mxu0
      %v2003 = vadd.f32 0.0, %v2002
      %v2004 = vpop.f32.mrb[0].mxu0
      %v2005 = vpop.f32.mrb[0].mxu0
      %v2006 = vadd.f32 0.0, %v2005
      %v2007 = vpop.f32.mrb[0].mxu0
      %2008 = vmatprep.mubr.bf16.mxu0 0
      %2009 = vmatmul.mubr.bf16.gmra.mrb[0].mxu0 %v1817
      %v2010 = vpop.f32.mrb[0].mxu0
      %v2011 = vadd.f32 0.0, %v2010
      %v2012 = vpop.f32.mrb[0].mxu0
      %v2013 = vpop.f32.mrb[0].mxu0
      %v2014 = vadd.f32 0.0, %v2013
      %v2015 = vpop.f32.mrb[0].mxu0
      %2016 = vmatprep.mubr.bf16.mxu0 0
      %2017 = vmatmul.mubr.bf16.gmra.mrb[0].mxu0 %v1819
      %v2018 = vpop.f32.mrb[0].mxu0
      %v2019 = vadd.f32 0.0, %v2018
      %v2020 = vpop.f32.mrb[0].mxu0
      %v2021 = vpop.f32.mrb[0].mxu0
      %v2022 = vpop.f32.mrb[0].mxu0
      %2023 = vdwg.mxu0
      %v2024 = vadd.f32 %v1738, %v1859
      %v2025 = vadd.f32 %v1739, %v1862
      %v2026 = vadd.f32 %v1740, %v1867
      %v2027 = vadd.f32 %v1741, %v1870
      %v2028 = vadd.f32 %v1742, %v1875
      %v2029 = vadd.f32 %v1743, %v1878
      %v2030 = vadd.f32 %v1744, %v1883
      %v2031 = vadd.f32 %v1745, %v1886
      %v2032 = vadd.f32 %v1746, %v1891
      %v2033 = vadd.f32 %v1747, %v1894
      %v2034 = vadd.f32 %v1748, %v1899
      %v2035 = vadd.f32 %v1749, %v1902
      %v2036 = vadd.f32 %v1750, %v1907
      %v2037 = vadd.f32 %v1751, %v1910
      %v2038 = vadd.f32 %v1752, %v1915
      %v2039 = vadd.f32 %v1753, %v1918
      %v2040 = vadd.f32 %v1754, %v1923
      %v2041 = vadd.f32 %v1755, %v1926
      %v2042 = vadd.f32 %v1756, %v1931
      %v2043 = vadd.f32 %v1757, %v1934
      %v2044 = vadd.f32 %v1758, %v1939
      %v2045 = vadd.f32 %v1759, %v1942
      %v2046 = vadd.f32 %v1760, %v1947
      %v2047 = vadd.f32 %v1761, %v1950
      %v2048 = vadd.f32 %v1762, %v1955
      %v2049 = vadd.f32 %v1763, %v1958
      %v2050 = vadd.f32 %v1764, %v1963
      %v2051 = vadd.f32 %v1765, %v1966
      %v2052 = vadd.f32 %v1766, %v1971
      %v2053 = vadd.f32 %v1767, %v1974
      %v2054 = vadd.f32 %v1768, %v1979
      %v2055 = vadd.f32 %v1769, %v1982
      %v2056 = vadd.f32 %v1770, %v1987
      %v2057 = vadd.f32 %v1771, %v1990
      %v2058 = vadd.f32 %v1772, %v1995
      %v2059 = vadd.f32 %v1773, %v1998
      %v2060 = vadd.f32 %v1774, %v2003
      %v2061 = vadd.f32 %v1775, %v2006
      %v2062 = vadd.f32 %v1776, %v2011
      %v2063 = vadd.f32 %v1777, %v2014
      %v2064 = vadd.f32 %v1778, %v2019
      %vm2065 = vsmask.f32 7424
      %v2066 = vrot.slane %v384, 1
      %v2067 = vor.u32 %v381, %v2066
      %v2068 = vrot.slane %v392, 1
      %v2069 = vsel %vm2065, %v2067, %v2068
      %v2070 = vor.u32 %v389, %v2068
      %v2071 = vrot.slane %v401, 1
      %v2072 = vsel %vm2065, %v2070, %v2071
      %v2073 = vor.u32 %v398, %v2071
      %v2074 = vrot.slane %v410, 1
      %v2075 = vsel %vm2065, %v2073, %v2074
      %v2076 = vor.u32 %v407, %v2074
      %v2077 = vrot.slane %v419, 1
      %v2078 = vsel %vm2065, %v2076, %v2077
      %v2079 = vor.u32 %v416, %v2077
      %v2080 = vrot.slane %v428, 1
      %v2081 = vsel %vm2065, %v2079, %v2080
      %v2082 = vor.u32 %v425, %v2080
      %v2083 = vrot.slane %v437, 1
      %v2084 = vsel %vm2065, %v2082, %v2083
      %v2085 = vor.u32 %v434, %v2083
      %v2086 = vrot.slane %v446, 1
      %v2087 = vsel %vm2065, %v2085, %v2086
      %v2088 = vor.u32 %v443, %v2086
      %v2089 = vrot.slane %v455, 1
      %v2090 = vsel %vm2065, %v2088, %v2089
      %v2091 = vor.u32 %v452, %v2089
      %v2092 = vrot.slane %v464, 1
      %v2093 = vsel %vm2065, %v2091, %v2092
      %v2094 = vor.u32 %v461, %v2092
      %v2095 = vrot.slane %v473, 1
      %v2096 = vsel %vm2065, %v2094, %v2095
      %v2097 = vor.u32 %v470, %v2095
      %v2098 = vrot.slane %v482, 1
      %v2099 = vsel %vm2065, %v2097, %v2098
      %v2100 = vor.u32 %v479, %v2098
      %v2101 = vrot.slane %v491, 1
      %v2102 = vsel %vm2065, %v2100, %v2101
      %v2103 = vor.u32 %v488, %v2101
      %v2104 = vrot.slane %v500, 1
      %v2105 = vsel %vm2065, %v2103, %v2104
      %v2106 = vor.u32 %v497, %v2104
      %v2107 = vrot.slane %v509, 1
      %v2108 = vsel %vm2065, %v2106, %v2107
      %v2109 = vor.u32 %v506, %v2107
      %v2110 = vrot.slane %v518, 1
      %v2111 = vsel %vm2065, %v2109, %v2110
      %v2112 = vor.u32 %v515, %v2110
      %v2113 = vrot.slane %v527, 1
      %v2114 = vsel %vm2065, %v2112, %v2113
      %v2115 = vor.u32 %v524, %v2113
      %v2116 = vrot.slane %v536, 1
      %v2117 = vsel %vm2065, %v2115, %v2116
      %v2118 = vor.u32 %v533, %v2116
      %v2119 = vrot.slane %v545, 1
      %v2120 = vsel %vm2065, %v2118, %v2119
      %v2121 = vor.u32 %v542, %v2119
      %v2122 = vrot.slane %v269, 1
      %v2123 = vsel %vm2065, %v2121, %v2122
      %v2124 = vor.u32 %v266, %v2122
      %v2125 = vrot.slane %v277, 1
      %v2126 = vsel %vm2065, %v2124, %v2125
      %v2127 = vor.u32 %v274, %v2125
      %v2129 = vpack.c.b16 %v321, %v321
      %v2131 = vshll.u32 %v2129, 16
      %v2133 = vrot.slane %v2131, 5
      %vm2135 = vcmask 1043456
      %vm2136 = vsmask.f32 3328
      %vm2137 = vmand %vm2135, %vm2136
      %v2138 = vsel %vm2137, %v2127, %v2133
      %v2140 = vsel %vm611, %v2069, 0
      %v2143 = vsel %vm611, %v2072, 0
      %v2146 = vsel %vm611, %v2075, 0
      %v2149 = vsel %vm611, %v2078, 0
      %v2152 = vsel %vm611, %v2081, 0
      %v2155 = vsel %vm611, %v2084, 0
      %v2158 = vsel %vm611, %v2087, 0
      %v2161 = vsel %vm611, %v2090, 0
      %v2164 = vsel %vm611, %v2093, 0
      %v2167 = vsel %vm611, %v2096, 0
      %v2170 = vsel %vm611, %v2099, 0
      %v2173 = vsel %vm611, %v2102, 0
      %v2176 = vsel %vm611, %v2105, 0
      %v2179 = vsel %vm611, %v2108, 0
      %v2182 = vsel %vm611, %v2111, 0
      %v2185 = vsel %vm611, %v2114, 0
      %v2188 = vsel %vm611, %v2117, 0
      %v2191 = vsel %vm611, %v2120, 0
      %v2194 = vsel %vm611, %v2123, 0
      %v2197 = vsel %vm611, %v2126, 0
      %v2200 = vsel %vm611, %v2138, 0
      %v2203 = vsel %vm674, %v252, 0
      %2205 = vmatprep.subr.bf16.mxu0 0
      %2206 = vmatpush1.bf16.msra.mxu0 %v2203
      %2207 = vmatprep.subr.bf16.mxu0 0
      %2208 = vmatpush1.bf16.msra.mxu0 0
      %2209 = vmatprep.subr.bf16.mxu0 0
      %2210 = vmatpush1.bf16.msra.mxu0 0
      %2211 = vmatprep.subr.bf16.mxu0 0
      %2212 = vmatpush1.bf16.msra.mxu0 0
      %2213 = vmatprep.subr.bf16.mxu0 0
      %2214 = vmatpush1.bf16.msra.mxu0 0
      %2215 = vmatprep.subr.bf16.mxu0 0
      %2216 = vmatpush1.bf16.msra.mxu0 0
      %2217 = vmatprep.subr.bf16.mxu0 0
      %2218 = vmatpush1.bf16.msra.mxu0 0
      %2219 = vmatprep.subr.bf16.mxu0 0
      %2220 = vmatpush1.bf16.msra.mxu0 0
      %2221 = vmatprep.subr.bf16.mxu0 0
      %2222 = vmatpush1.bf16.msra.mxu0 0
      %2223 = vmatprep.subr.bf16.mxu0 0
      %2224 = vmatpush1.bf16.msra.mxu0 0
      %2225 = vmatprep.subr.bf16.mxu0 0
      %2226 = vmatpush1.bf16.msra.mxu0 0
      %2227 = vmatprep.subr.bf16.mxu0 0
      %2228 = vmatpush1.bf16.msra.mxu0 0
      %2229 = vmatprep.subr.bf16.mxu0 0
      %2230 = vmatpush1.bf16.msra.mxu0 0
      %2231 = vmatprep.subr.bf16.mxu0 0
      %2232 = vmatpush1.bf16.msra.mxu0 0
      %2233 = vmatprep.subr.bf16.mxu0 0
      %2234 = vmatpush1.bf16.msra.mxu0 0
      %2235 = vmatprep.subr.bf16.mxu0 0
      %2236 = vmatpush1.bf16.msra.mxu0 0
      %2237 = vmatprep.mubr.bf16.mxu0 0
      %2238 = vmatmul.mubr.bf16.gmra.mrb[0].mxu0 %v2140
      %v2239 = vpop.f32.mrb[0].mxu0
      %v2240 = vadd.f32 0.0, %v2239
      %v2241 = vpop.f32.mrb[0].mxu0
      %v2242 = vpop.f32.mrb[0].mxu0
      %v2243 = vadd.f32 0.0, %v2242
      %v2244 = vpop.f32.mrb[0].mxu0
      %2245 = vmatprep.mubr.bf16.mxu0 0
      %2246 = vmatmul.mubr.bf16.gmra.mrb[0].mxu0 %v2143
      %v2247 = vpop.f32.mrb[0].mxu0
      %v2248 = vadd.f32 0.0, %v2247
      %v2249 = vpop.f32.mrb[0].mxu0
      %v2250 = vpop.f32.mrb[0].mxu0
      %v2251 = vadd.f32 0.0, %v2250
      %v2252 = vpop.f32.mrb[0].mxu0
      %2253 = vmatprep.mubr.bf16.mxu0 0
      %2254 = vmatmul.mubr.bf16.gmra.mrb[0].mxu0 %v2146
      %v2255 = vpop.f32.mrb[0].mxu0
      %v2256 = vadd.f32 0.0, %v2255
      %v2257 = vpop.f32.mrb[0].mxu0
      %v2258 = vpop.f32.mrb[0].mxu0
      %v2259 = vadd.f32 0.0, %v2258
      %v2260 = vpop.f32.mrb[0].mxu0
      %2261 = vmatprep.mubr.bf16.mxu0 0
      %2262 = vmatmul.mubr.bf16.gmra.mrb[0].mxu0 %v2149
      %v2263 = vpop.f32.mrb[0].mxu0
      %v2264 = vadd.f32 0.0, %v2263
      %v2265 = vpop.f32.mrb[0].mxu0
      %v2266 = vpop.f32.mrb[0].mxu0
      %v2267 = vadd.f32 0.0, %v2266
      %v2268 = vpop.f32.mrb[0].mxu0
      %2269 = vmatprep.mubr.bf16.mxu0 0
      %2270 = vmatmul.mubr.bf16.gmra.mrb[0].mxu0 %v2152
      %v2271 = vpop.f32.mrb[0].mxu0
      %v2272 = vadd.f32 0.0, %v2271
      %v2273 = vpop.f32.mrb[0].mxu0
      %v2274 = vpop.f32.mrb[0].mxu0
      %v2275 = vadd.f32 0.0, %v2274
      %v2276 = vpop.f32.mrb[0].mxu0
      %2277 = vmatprep.mubr.bf16.mxu0 0
      %2278 = vmatmul.mubr.bf16.gmra.mrb[0].mxu0 %v2155
      %v2279 = vpop.f32.mrb[0].mxu0
      %v2280 = vadd.f32 0.0, %v2279
      %v2281 = vpop.f32.mrb[0].mxu0
      %v2282 = vpop.f32.mrb[0].mxu0
      %v2283 = vadd.f32 0.0, %v2282
      %v2284 = vpop.f32.mrb[0].mxu0
      %2285 = vmatprep.mubr.bf16.mxu0 0
      %2286 = vmatmul.mubr.bf16.gmra.mrb[0].mxu0 %v2158
      %v2287 = vpop.f32.mrb[0].mxu0
      %v2288 = vadd.f32 0.0, %v2287
      %v2289 = vpop.f32.mrb[0].mxu0
      %v2290 = vpop.f32.mrb[0].mxu0
      %v2291 = vadd.f32 0.0, %v2290
      %v2292 = vpop.f32.mrb[0].mxu0
      %2293 = vmatprep.mubr.bf16.mxu0 0
      %2294 = vmatmul.mubr.bf16.gmra.mrb[0].mxu0 %v2161
      %v2295 = vpop.f32.mrb[0].mxu0
      %v2296 = vadd.f32 0.0, %v2295
      %v2297 = vpop.f32.mrb[0].mxu0
      %v2298 = vpop.f32.mrb[0].mxu0
      %v2299 = vadd.f32 0.0, %v2298
      %v2300 = vpop.f32.mrb[0].mxu0
      %2301 = vmatprep.mubr.bf16.mxu0 0
      %2302 = vmatmul.mubr.bf16.gmra.mrb[0].mxu0 %v2164
      %v2303 = vpop.f32.mrb[0].mxu0
      %v2304 = vadd.f32 0.0, %v2303
      %v2305 = vpop.f32.mrb[0].mxu0
      %v2306 = vpop.f32.mrb[0].mxu0
      %v2307 = vadd.f32 0.0, %v2306
      %v2308 = vpop.f32.mrb[0].mxu0
      %2309 = vmatprep.mubr.bf16.mxu0 0
      %2310 = vmatmul.mubr.bf16.gmra.mrb[0].mxu0 %v2167
      %v2311 = vpop.f32.mrb[0].mxu0
      %v2312 = vadd.f32 0.0, %v2311
      %v2313 = vpop.f32.mrb[0].mxu0
      %v2314 = vpop.f32.mrb[0].mxu0
      %v2315 = vadd.f32 0.0, %v2314
      %v2316 = vpop.f32.mrb[0].mxu0
      %2317 = vmatprep.mubr.bf16.mxu0 0
      %2318 = vmatmul.mubr.bf16.gmra.mrb[0].mxu0 %v2170
      %v2319 = vpop.f32.mrb[0].mxu0
      %v2320 = vadd.f32 0.0, %v2319
      %v2321 = vpop.f32.mrb[0].mxu0
      %v2322 = vpop.f32.mrb[0].mxu0
      %v2323 = vadd.f32 0.0, %v2322
      %v2324 = vpop.f32.mrb[0].mxu0
      %2325 = vmatprep.mubr.bf16.mxu0 0
      %2326 = vmatmul.mubr.bf16.gmra.mrb[0].mxu0 %v2173
      %v2327 = vpop.f32.mrb[0].mxu0
      %v2328 = vadd.f32 0.0, %v2327
      %v2329 = vpop.f32.mrb[0].mxu0
      %v2330 = vpop.f32.mrb[0].mxu0
      %v2331 = vadd.f32 0.0, %v2330
      %v2332 = vpop.f32.mrb[0].mxu0
      %2333 = vmatprep.mubr.bf16.mxu0 0
      %2334 = vmatmul.mubr.bf16.gmra.mrb[0].mxu0 %v2176
      %v2335 = vpop.f32.mrb[0].mxu0
      %v2336 = vadd.f32 0.0, %v2335
      %v2337 = vpop.f32.mrb[0].mxu0
      %v2338 = vpop.f32.mrb[0].mxu0
      %v2339 = vadd.f32 0.0, %v2338
      %v2340 = vpop.f32.mrb[0].mxu0
      %2341 = vmatprep.mubr.bf16.mxu0 0
      %2342 = vmatmul.mubr.bf16.gmra.mrb[0].mxu0 %v2179
      %v2343 = vpop.f32.mrb[0].mxu0
      %v2344 = vadd.f32 0.0, %v2343
      %v2345 = vpop.f32.mrb[0].mxu0
      %v2346 = vpop.f32.mrb[0].mxu0
      %v2347 = vadd.f32 0.0, %v2346
      %v2348 = vpop.f32.mrb[0].mxu0
      %2349 = vmatprep.mubr.bf16.mxu0 0
      %2350 = vmatmul.mubr.bf16.gmra.mrb[0].mxu0 %v2182
      %v2351 = vpop.f32.mrb[0].mxu0
      %v2352 = vadd.f32 0.0, %v2351
      %v2353 = vpop.f32.mrb[0].mxu0
      %v2354 = vpop.f32.mrb[0].mxu0
      %v2355 = vadd.f32 0.0, %v2354
      %v2356 = vpop.f32.mrb[0].mxu0
      %2357 = vmatprep.mubr.bf16.mxu0 0
      %2358 = vmatmul.mubr.bf16.gmra.mrb[0].mxu0 %v2185
      %v2359 = vpop.f32.mrb[0].mxu0
      %v2360 = vadd.f32 0.0, %v2359
      %v2361 = vpop.f32.mrb[0].mxu0
      %v2362 = vpop.f32.mrb[0].mxu0
      %v2363 = vadd.f32 0.0, %v2362
      %v2364 = vpop.f32.mrb[0].mxu0
      %2365 = vmatprep.mubr.bf16.mxu0 0
      %2366 = vmatmul.mubr.bf16.gmra.mrb[0].mxu0 %v2188
      %v2367 = vpop.f32.mrb[0].mxu0
      %v2368 = vadd.f32 0.0, %v2367
      %v2369 = vpop.f32.mrb[0].mxu0
      %v2370 = vpop.f32.mrb[0].mxu0
      %v2371 = vadd.f32 0.0, %v2370
      %v2372 = vpop.f32.mrb[0].mxu0
      %2373 = vmatprep.mubr.bf16.mxu0 0
      %2374 = vmatmul.mubr.bf16.gmra.mrb[0].mxu0 %v2191
      %v2375 = vpop.f32.mrb[0].mxu0
      %v2376 = vadd.f32 0.0, %v2375
      %v2377 = vpop.f32.mrb[0].mxu0
      %v2378 = vpop.f32.mrb[0].mxu0
      %v2379 = vadd.f32 0.0, %v2378
      %v2380 = vpop.f32.mrb[0].mxu0
      %2381 = vmatprep.mubr.bf16.mxu0 0
      %2382 = vmatmul.mubr.bf16.gmra.mrb[0].mxu0 %v2194
      %v2383 = vpop.f32.mrb[0].mxu0
      %v2384 = vadd.f32 0.0, %v2383
      %v2385 = vpop.f32.mrb[0].mxu0
      %v2386 = vpop.f32.mrb[0].mxu0
      %v2387 = vadd.f32 0.0, %v2386
      %v2388 = vpop.f32.mrb[0].mxu0
      %2389 = vmatprep.mubr.bf16.mxu0 0
      %2390 = vmatmul.mubr.bf16.gmra.mrb[0].mxu0 %v2197
      %v2391 = vpop.f32.mrb[0].mxu0
      %v2392 = vadd.f32 0.0, %v2391
      %v2393 = vpop.f32.mrb[0].mxu0
      %v2394 = vpop.f32.mrb[0].mxu0
      %v2395 = vadd.f32 0.0, %v2394
      %v2396 = vpop.f32.mrb[0].mxu0
      %2397 = vmatprep.mubr.bf16.mxu0 0
      %2398 = vmatmul.mubr.bf16.gmra.mrb[0].mxu0 %v2200
      %v2399 = vpop.f32.mrb[0].mxu0
      %v2400 = vadd.f32 0.0, %v2399
      %v2401 = vpop.f32.mrb[0].mxu0
      %v2402 = vpop.f32.mrb[0].mxu0
      %v2403 = vpop.f32.mrb[0].mxu0
      %2404 = vdwg.mxu0
      %v2405 = vadd.f32 %v2024, %v2240
      %v2406 = vadd.f32 %v2025, %v2243
      %v2407 = vadd.f32 %v2026, %v2248
      %v2408 = vadd.f32 %v2027, %v2251
      %v2409 = vadd.f32 %v2028, %v2256
      %v2410 = vadd.f32 %v2029, %v2259
      %v2411 = vadd.f32 %v2030, %v2264
      %v2412 = vadd.f32 %v2031, %v2267
      %v2413 = vadd.f32 %v2032, %v2272
      %v2414 = vadd.f32 %v2033, %v2275
      %v2415 = vadd.f32 %v2034, %v2280
      %v2416 = vadd.f32 %v2035, %v2283
      %v2417 = vadd.f32 %v2036, %v2288
      %v2418 = vadd.f32 %v2037, %v2291
      %v2419 = vadd.f32 %v2038, %v2296
      %v2420 = vadd.f32 %v2039, %v2299
      %v2421 = vadd.f32 %v2040, %v2304
      %v2422 = vadd.f32 %v2041, %v2307
      %v2423 = vadd.f32 %v2042, %v2312
      %v2424 = vadd.f32 %v2043, %v2315
      %v2425 = vadd.f32 %v2044, %v2320
      %v2426 = vadd.f32 %v2045, %v2323
      %v2427 = vadd.f32 %v2046, %v2328
      %v2428 = vadd.f32 %v2047, %v2331
      %v2429 = vadd.f32 %v2048, %v2336
      %v2430 = vadd.f32 %v2049, %v2339
      %v2431 = vadd.f32 %v2050, %v2344
      %v2432 = vadd.f32 %v2051, %v2347
      %v2433 = vadd.f32 %v2052, %v2352
      %v2434 = vadd.f32 %v2053, %v2355
      %v2435 = vadd.f32 %v2054, %v2360
      %v2436 = vadd.f32 %v2055, %v2363
      %v2437 = vadd.f32 %v2056, %v2368
      %v2438 = vadd.f32 %v2057, %v2371
      %v2439 = vadd.f32 %v2058, %v2376
      %v2440 = vadd.f32 %v2059, %v2379
      %v2441 = vadd.f32 %v2060, %v2384
      %v2442 = vadd.f32 %v2061, %v2387
      %v2443 = vadd.f32 %v2062, %v2392
      %v2444 = vadd.f32 %v2063, %v2395
      %v2445 = vadd.f32 %v2064, %v2400
      %v2446 = vpack.c.b16 %v323, %v323
      %v2447 = vrot.slane %v381, 4
      %v2448 = vrot.slane %v384, 5
      %v2449 = vor.u32 %v2447, %v2448
      %v2451 = vshll.u32 %v2446, 16
      %v2453 = vrot.slane %v2451, 5
      %v2454 = vsel %vm2136, %v2449, %v2453
      %v2456 = vsel %vm2137, %v2127, %v2449
      %v2458 = vsel %vm611, %v2456, 0
      %v2461 = vsel %vm611, %v2454, 0
      %v2464 = vsel %vm674, %v253, 0
      %2466 = vmatprep.subr.bf16.mxu0 0
      %2467 = vmatpush1.bf16.msra.mxu0 %v2464
      %2468 = vmatprep.subr.bf16.mxu0 0
      %2469 = vmatpush1.bf16.msra.mxu0 0
      %2470 = vmatprep.subr.bf16.mxu0 0
      %2471 = vmatpush1.bf16.msra.mxu0 0
      %2472 = vmatprep.subr.bf16.mxu0 0
      %2473 = vmatpush1.bf16.msra.mxu0 0
      %2474 = vmatprep.subr.bf16.mxu0 0
      %2475 = vmatpush1.bf16.msra.mxu0 0
      %2476 = vmatprep.subr.bf16.mxu0 0
      %2477 = vmatpush1.bf16.msra.mxu0 0
      %2478 = vmatprep.subr.bf16.mxu0 0
      %2479 = vmatpush1.bf16.msra.mxu0 0
      %2480 = vmatprep.subr.bf16.mxu0 0
      %2481 = vmatpush1.bf16.msra.mxu0 0
      %2482 = vmatprep.subr.bf16.mxu0 0
      %2483 = vmatpush1.bf16.msra.mxu0 0
      %2484 = vmatprep.subr.bf16.mxu0 0
      %2485 = vmatpush1.bf16.msra.mxu0 0
      %2486 = vmatprep.subr.bf16.mxu0 0
      %2487 = vmatpush1.bf16.msra.mxu0 0
      %2488 = vmatprep.subr.bf16.mxu0 0
      %2489 = vmatpush1.bf16.msra.mxu0 0
      %2490 = vmatprep.subr.bf16.mxu0 0
      %2491 = vmatpush1.bf16.msra.mxu0 0
      %2492 = vmatprep.subr.bf16.mxu0 0
      %2493 = vmatpush1.bf16.msra.mxu0 0
      %2494 = vmatprep.subr.bf16.mxu0 0
      %2495 = vmatpush1.bf16.msra.mxu0 0
      %2496 = vmatprep.subr.bf16.mxu0 0
      %2497 = vmatpush1.bf16.msra.mxu0 0
      %2498 = vmatprep.mubr.bf16.mxu0 0
      %2499 = vmatmul.mubr.bf16.gmra.mrb[0].mxu0 %v2143
      %v2500 = vpop.f32.mrb[0].mxu0
      %v2501 = vadd.f32 0.0, %v2500
      %v2502 = vpop.f32.mrb[0].mxu0
      %v2503 = vpop.f32.mrb[0].mxu0
      %v2504 = vadd.f32 0.0, %v2503
      %v2505 = vpop.f32.mrb[0].mxu0
      %2506 = vmatprep.mubr.bf16.mxu0 0
      %2507 = vmatmul.mubr.bf16.gmra.mrb[0].mxu0 %v2146
      %v2508 = vpop.f32.mrb[0].mxu0
      %v2509 = vadd.f32 0.0, %v2508
      %v2510 = vpop.f32.mrb[0].mxu0
      %v2511 = vpop.f32.mrb[0].mxu0
      %v2512 = vadd.f32 0.0, %v2511
      %v2513 = vpop.f32.mrb[0].mxu0
      %2514 = vmatprep.mubr.bf16.mxu0 0
      %2515 = vmatmul.mubr.bf16.gmra.mrb[0].mxu0 %v2149
      %v2516 = vpop.f32.mrb[0].mxu0
      %v2517 = vadd.f32 0.0, %v2516
      %v2518 = vpop.f32.mrb[0].mxu0
      %v2519 = vpop.f32.mrb[0].mxu0
      %v2520 = vadd.f32 0.0, %v2519
      %v2521 = vpop.f32.mrb[0].mxu0
      %2522 = vmatprep.mubr.bf16.mxu0 0
      %2523 = vmatmul.mubr.bf16.gmra.mrb[0].mxu0 %v2152
      %v2524 = vpop.f32.mrb[0].mxu0
      %v2525 = vadd.f32 0.0, %v2524
      %v2526 = vpop.f32.mrb[0].mxu0
      %v2527 = vpop.f32.mrb[0].mxu0
      %v2528 = vadd.f32 0.0, %v2527
      %v2529 = vpop.f32.mrb[0].mxu0
      %2530 = vmatprep.mubr.bf16.mxu0 0
      %2531 = vmatmul.mubr.bf16.gmra.mrb[0].mxu0 %v2155
      %v2532 = vpop.f32.mrb[0].mxu0
      %v2533 = vadd.f32 0.0, %v2532
      %v2534 = vpop.f32.mrb[0].mxu0
      %v2535 = vpop.f32.mrb[0].mxu0
      %v2536 = vadd.f32 0.0, %v2535
      %v2537 = vpop.f32.mrb[0].mxu0
      %2538 = vmatprep.mubr.bf16.mxu0 0
      %2539 = vmatmul.mubr.bf16.gmra.mrb[0].mxu0 %v2158
      %v2540 = vpop.f32.mrb[0].mxu0
      %v2541 = vadd.f32 0.0, %v2540
      %v2542 = vpop.f32.mrb[0].mxu0
      %v2543 = vpop.f32.mrb[0].mxu0
      %v2544 = vadd.f32 0.0, %v2543
      %v2545 = vpop.f32.mrb[0].mxu0
      %2546 = vmatprep.mubr.bf16.mxu0 0
      %2547 = vmatmul.mubr.bf16.gmra.mrb[0].mxu0 %v2161
      %v2548 = vpop.f32.mrb[0].mxu0
      %v2549 = vadd.f32 0.0, %v2548
      %v2550 = vpop.f32.mrb[0].mxu0
      %v2551 = vpop.f32.mrb[0].mxu0
      %v2552 = vadd.f32 0.0, %v2551
      %v2553 = vpop.f32.mrb[0].mxu0
      %2554 = vmatprep.mubr.bf16.mxu0 0
      %2555 = vmatmul.mubr.bf16.gmra.mrb[0].mxu0 %v2164
      %v2556 = vpop.f32.mrb[0].mxu0
      %v2557 = vadd.f32 0.0, %v2556
      %v2558 = vpop.f32.mrb[0].mxu0
      %v2559 = vpop.f32.mrb[0].mxu0
      %v2560 = vadd.f32 0.0, %v2559
      %v2561 = vpop.f32.mrb[0].mxu0
      %2562 = vmatprep.mubr.bf16.mxu0 0
      %2563 = vmatmul.mubr.bf16.gmra.mrb[0].mxu0 %v2167
      %v2564 = vpop.f32.mrb[0].mxu0
      %v2565 = vadd.f32 0.0, %v2564
      %v2566 = vpop.f32.mrb[0].mxu0
      %v2567 = vpop.f32.mrb[0].mxu0
      %v2568 = vadd.f32 0.0, %v2567
      %v2569 = vpop.f32.mrb[0].mxu0
      %2570 = vmatprep.mubr.bf16.mxu0 0
      %2571 = vmatmul.mubr.bf16.gmra.mrb[0].mxu0 %v2170
      %v2572 = vpop.f32.mrb[0].mxu0
      %v2573 = vadd.f32 0.0, %v2572
      %v2574 = vpop.f32.mrb[0].mxu0
      %v2575 = vpop.f32.mrb[0].mxu0
      %v2576 = vadd.f32 0.0, %v2575
      %v2577 = vpop.f32.mrb[0].mxu0
      %2578 = vmatprep.mubr.bf16.mxu0 0
      %2579 = vmatmul.mubr.bf16.gmra.mrb[0].mxu0 %v2173
      %v2580 = vpop.f32.mrb[0].mxu0
      %v2581 = vadd.f32 0.0, %v2580
      %v2582 = vpop.f32.mrb[0].mxu0
      %v2583 = vpop.f32.mrb[0].mxu0
      %v2584 = vadd.f32 0.0, %v2583
      %v2585 = vpop.f32.mrb[0].mxu0
      %2586 = vmatprep.mubr.bf16.mxu0 0
      %2587 = vmatmul.mubr.bf16.gmra.mrb[0].mxu0 %v2176
      %v2588 = vpop.f32.mrb[0].mxu0
      %v2589 = vadd.f32 0.0, %v2588
      %v2590 = vpop.f32.mrb[0].mxu0
      %v2591 = vpop.f32.mrb[0].mxu0
      %v2592 = vadd.f32 0.0, %v2591
      %v2593 = vpop.f32.mrb[0].mxu0
      %2594 = vmatprep.mubr.bf16.mxu0 0
      %2595 = vmatmul.mubr.bf16.gmra.mrb[0].mxu0 %v2179
      %v2596 = vpop.f32.mrb[0].mxu0
      %v2597 = vadd.f32 0.0, %v2596
      %v2598 = vpop.f32.mrb[0].mxu0
      %v2599 = vpop.f32.mrb[0].mxu0
      %v2600 = vadd.f32 0.0, %v2599
      %v2601 = vpop.f32.mrb[0].mxu0
      %2602 = vmatprep.mubr.bf16.mxu0 0
      %2603 = vmatmul.mubr.bf16.gmra.mrb[0].mxu0 %v2182
      %v2604 = vpop.f32.mrb[0].mxu0
      %v2605 = vadd.f32 0.0, %v2604
      %v2606 = vpop.f32.mrb[0].mxu0
      %v2607 = vpop.f32.mrb[0].mxu0
      %v2608 = vadd.f32 0.0, %v2607
      %v2609 = vpop.f32.mrb[0].mxu0
      %2610 = vmatprep.mubr.bf16.mxu0 0
      %2611 = vmatmul.mubr.bf16.gmra.mrb[0].mxu0 %v2185
      %v2612 = vpop.f32.mrb[0].mxu0
      %v2613 = vadd.f32 0.0, %v2612
      %v2614 = vpop.f32.mrb[0].mxu0
      %v2615 = vpop.f32.mrb[0].mxu0
      %v2616 = vadd.f32 0.0, %v2615
      %v2617 = vpop.f32.mrb[0].mxu0
      %2618 = vmatprep.mubr.bf16.mxu0 0
      %2619 = vmatmul.mubr.bf16.gmra.mrb[0].mxu0 %v2188
      %v2620 = vpop.f32.mrb[0].mxu0
      %v2621 = vadd.f32 0.0, %v2620
      %v2622 = vpop.f32.mrb[0].mxu0
      %v2623 = vpop.f32.mrb[0].mxu0
      %v2624 = vadd.f32 0.0, %v2623
      %v2625 = vpop.f32.mrb[0].mxu0
      %2626 = vmatprep.mubr.bf16.mxu0 0
      %2627 = vmatmul.mubr.bf16.gmra.mrb[0].mxu0 %v2191
      %v2628 = vpop.f32.mrb[0].mxu0
      %v2629 = vadd.f32 0.0, %v2628
      %v2630 = vpop.f32.mrb[0].mxu0
      %v2631 = vpop.f32.mrb[0].mxu0
      %v2632 = vadd.f32 0.0, %v2631
      %v2633 = vpop.f32.mrb[0].mxu0
      %2634 = vmatprep.mubr.bf16.mxu0 0
      %2635 = vmatmul.mubr.bf16.gmra.mrb[0].mxu0 %v2194
      %v2636 = vpop.f32.mrb[0].mxu0
      %v2637 = vadd.f32 0.0, %v2636
      %v2638 = vpop.f32.mrb[0].mxu0
      %v2639 = vpop.f32.mrb[0].mxu0
      %v2640 = vadd.f32 0.0, %v2639
      %v2641 = vpop.f32.mrb[0].mxu0
      %2642 = vmatprep.mubr.bf16.mxu0 0
      %2643 = vmatmul.mubr.bf16.gmra.mrb[0].mxu0 %v2197
      %v2644 = vpop.f32.mrb[0].mxu0
      %v2645 = vadd.f32 0.0, %v2644
      %v2646 = vpop.f32.mrb[0].mxu0
      %v2647 = vpop.f32.mrb[0].mxu0
      %v2648 = vadd.f32 0.0, %v2647
      %v2649 = vpop.f32.mrb[0].mxu0
      %2650 = vmatprep.mubr.bf16.mxu0 0
      %2651 = vmatmul.mubr.bf16.gmra.mrb[0].mxu0 %v2458
      %v2652 = vpop.f32.mrb[0].mxu0
      %v2653 = vadd.f32 0.0, %v2652
      %v2654 = vpop.f32.mrb[0].mxu0
      %v2655 = vpop.f32.mrb[0].mxu0
      %v2656 = vadd.f32 0.0, %v2655
      %v2657 = vpop.f32.mrb[0].mxu0
      %2658 = vmatprep.mubr.bf16.mxu0 0
      %2659 = vmatmul.mubr.bf16.gmra.mrb[0].mxu0 %v2461
      %v2660 = vpop.f32.mrb[0].mxu0
      %v2661 = vadd.f32 0.0, %v2660
      %v2662 = vpop.f32.mrb[0].mxu0
      %v2663 = vpop.f32.mrb[0].mxu0
      %v2664 = vpop.f32.mrb[0].mxu0
      %2665 = vdwg.mxu0
      %v2666 = vadd.f32 %v2405, %v2501
      %v2667 = vadd.f32 %v2406, %v2504
      %v2668 = vadd.f32 %v2407, %v2509
      %v2669 = vadd.f32 %v2408, %v2512
      %v2670 = vadd.f32 %v2409, %v2517
      %v2671 = vadd.f32 %v2410, %v2520
      %v2672 = vadd.f32 %v2411, %v2525
      %v2673 = vadd.f32 %v2412, %v2528
      %v2674 = vadd.f32 %v2413, %v2533
      %v2675 = vadd.f32 %v2414, %v2536
      %v2676 = vadd.f32 %v2415, %v2541
      %v2677 = vadd.f32 %v2416, %v2544
      %v2678 = vadd.f32 %v2417, %v2549
      %v2679 = vadd.f32 %v2418, %v2552
      %v2680 = vadd.f32 %v2419, %v2557
      %v2681 = vadd.f32 %v2420, %v2560
      %v2682 = vadd.f32 %v2421, %v2565
      %v2683 = vadd.f32 %v2422, %v2568
      %v2684 = vadd.f32 %v2423, %v2573
      %v2685 = vadd.f32 %v2424, %v2576
      %v2686 = vadd.f32 %v2425, %v2581
      %v2687 = vadd.f32 %v2426, %v2584
      %v2688 = vadd.f32 %v2427, %v2589
      %v2689 = vadd.f32 %v2428, %v2592
      %v2690 = vadd.f32 %v2429, %v2597
      %v2691 = vadd.f32 %v2430, %v2600
      %v2692 = vadd.f32 %v2431, %v2605
      %v2693 = vadd.f32 %v2432, %v2608
      %v2694 = vadd.f32 %v2433, %v2613
      %v2695 = vadd.f32 %v2434, %v2616
      %v2696 = vadd.f32 %v2435, %v2621
      %v2697 = vadd.f32 %v2436, %v2624
      %v2698 = vadd.f32 %v2437, %v2629
      %v2699 = vadd.f32 %v2438, %v2632
      %v2700 = vadd.f32 %v2439, %v2637
      %v2701 = vadd.f32 %v2440, %v2640
      %v2702 = vadd.f32 %v2441, %v2645
      %v2703 = vadd.f32 %v2442, %v2648
      %v2704 = vadd.f32 %v2443, %v2653
      %v2705 = vadd.f32 %v2444, %v2656
      %v2706 = vadd.f32 %v2445, %v2661
      %vm2707 = vcmask 1046528
      %v2708 = vrot.slane %v360, 1
      %v2709 = vrot.slane %v361, 1
      %v2710 = vsel %vm2707, %v2708, %v2709
      %v2711 = vrot.slane %v362, 1
      %v2712 = vsel %vm2707, %v2709, %v2711
      %v2713 = vrot.slane %v363, 1
      %v2714 = vsel %vm2707, %v2711, %v2713
      %v2715 = vrot.slane %v364, 1
      %v2716 = vsel %vm2707, %v2713, %v2715
      %v2717 = vrot.slane %v365, 1
      %v2718 = vsel %vm2707, %v2715, %v2717
      %v2719 = vrot.slane %v366, 1
      %v2720 = vsel %vm2707, %v2717, %v2719
      %v2721 = vrot.slane %v367, 1
      %v2722 = vsel %vm2707, %v2719, %v2721
      %v2723 = vrot.slane %v368, 1
      %v2724 = vsel %vm2707, %v2721, %v2723
      %v2725 = vrot.slane %v369, 1
      %v2726 = vsel %vm2707, %v2723, %v2725
      %v2727 = vrot.slane %v370, 1
      %v2728 = vsel %vm2707, %v2725, %v2727
      %v2729 = vrot.slane %v371, 1
      %v2730 = vsel %vm2707, %v2727, %v2729
      %v2731 = vrot.slane %v372, 1
      %v2732 = vsel %vm2707, %v2729, %v2731
      %v2733 = vrot.slane %v373, 1
      %v2734 = vsel %vm2707, %v2731, %v2733
      %v2735 = vrot.slane %v374, 1
      %v2736 = vsel %vm2707, %v2733, %v2735
      %v2737 = vrot.slane %v375, 1
      %v2738 = vsel %vm2707, %v2735, %v2737
      %v2739 = vrot.slane %v376, 1
      %v2740 = vsel %vm2707, %v2737, %v2739
      %v2741 = vrot.slane %v377, 1
      %v2742 = vsel %vm2707, %v2739, %v2741
      %v2743 = vrot.slane %v262, 1
      %v2744 = vsel %vm2707, %v2741, %v2743
      %v2745 = vrot.slane %v263, 1
      %v2746 = vsel %vm2707, %v2743, %v2745
      %vm2747 = vcmask 1042432
      %v2748 = vrot.slane %v359, 5
      %v2749 = vrot.slane %v2446, 5
      %v2750 = vsel %vm2747, %v2748, %v2749
      %vm2751 = vcmask 1042432
      %v2754 = vsel %vm2751, %v2745, %v2748
      %v2756 = vsel %vm611, %v2710, 0
      %v2759 = vsel %vm611, %v2712, 0
      %v2762 = vsel %vm611, %v2714, 0
      %v2765 = vsel %vm611, %v2716, 0
      %v2768 = vsel %vm611, %v2718, 0
      %v2771 = vsel %vm611, %v2720, 0
      %v2774 = vsel %vm611, %v2722, 0
      %v2777 = vsel %vm611, %v2724, 0
      %v2780 = vsel %vm611, %v2726, 0
      %v2783 = vsel %vm611, %v2728, 0
      %v2786 = vsel %vm611, %v2730, 0
      %v2789 = vsel %vm611, %v2732, 0
      %v2792 = vsel %vm611, %v2734, 0
      %v2795 = vsel %vm611, %v2736, 0
      %v2798 = vsel %vm611, %v2738, 0
      %v2801 = vsel %vm611, %v2740, 0
      %v2804 = vsel %vm611, %v2742, 0
      %v2807 = vsel %vm611, %v2744, 0
      %v2810 = vsel %vm611, %v2746, 0
      %v2812 = vsel %vm611, %v2754, 0
      %v2815 = vsel %vm611, %v2750, 0
      %v2818 = vsel %vm674, %v254, 0
      %2820 = vmatprep.subr.bf16.mxu0 0
      %2821 = vmatpush1.bf16.msra.mxu0 %v2818
      %2822 = vmatprep.subr.bf16.mxu0 0
      %2823 = vmatpush1.bf16.msra.mxu0 0
      %2824 = vmatprep.subr.bf16.mxu0 0
      %2825 = vmatpush1.bf16.msra.mxu0 0
      %2826 = vmatprep.subr.bf16.mxu0 0
      %2827 = vmatpush1.bf16.msra.mxu0 0
      %2828 = vmatprep.subr.bf16.mxu0 0
      %2829 = vmatpush1.bf16.msra.mxu0 0
      %2830 = vmatprep.subr.bf16.mxu0 0
      %2831 = vmatpush1.bf16.msra.mxu0 0
      %2832 = vmatprep.subr.bf16.mxu0 0
      %2833 = vmatpush1.bf16.msra.mxu0 0
      %2834 = vmatprep.subr.bf16.mxu0 0
      %2835 = vmatpush1.bf16.msra.mxu0 0
      %2836 = vmatprep.subr.bf16.mxu0 0
      %2837 = vmatpush1.bf16.msra.mxu0 0
      %2838 = vmatprep.subr.bf16.mxu0 0
      %2839 = vmatpush1.bf16.msra.mxu0 0
      %2840 = vmatprep.subr.bf16.mxu0 0
      %2841 = vmatpush1.bf16.msra.mxu0 0
      %2842 = vmatprep.subr.bf16.mxu0 0
      %2843 = vmatpush1.bf16.msra.mxu0 0
      %2844 = vmatprep.subr.bf16.mxu0 0
      %2845 = vmatpush1.bf16.msra.mxu0 0
      %2846 = vmatprep.subr.bf16.mxu0 0
      %2847 = vmatpush1.bf16.msra.mxu0 0
      %2848 = vmatprep.subr.bf16.mxu0 0
      %2849 = vmatpush1.bf16.msra.mxu0 0
      %2850 = vmatprep.subr.bf16.mxu0 0
      %2851 = vmatpush1.bf16.msra.mxu0 0
      %2852 = vmatprep.mubr.bf16.mxu0 0
      %2853 = vmatmul.mubr.bf16.gmra.mrb[0].mxu0 %v2756
      %v2854 = vpop.f32.mrb[0].mxu0
      %v2855 = vadd.f32 0.0, %v2854
      %v2856 = vpop.f32.mrb[0].mxu0
      %v2857 = vpop.f32.mrb[0].mxu0
      %v2858 = vadd.f32 0.0, %v2857
      %v2859 = vpop.f32.mrb[0].mxu0
      %2860 = vmatprep.mubr.bf16.mxu0 0
      %2861 = vmatmul.mubr.bf16.gmra.mrb[0].mxu0 %v2759
      %v2862 = vpop.f32.mrb[0].mxu0
      %v2863 = vadd.f32 0.0, %v2862
      %v2864 = vpop.f32.mrb[0].mxu0
      %v2865 = vpop.f32.mrb[0].mxu0
      %v2866 = vadd.f32 0.0, %v2865
      %v2867 = vpop.f32.mrb[0].mxu0
      %2868 = vmatprep.mubr.bf16.mxu0 0
      %2869 = vmatmul.mubr.bf16.gmra.mrb[0].mxu0 %v2762
      %v2870 = vpop.f32.mrb[0].mxu0
      %v2871 = vadd.f32 0.0, %v2870
      %v2872 = vpop.f32.mrb[0].mxu0
      %v2873 = vpop.f32.mrb[0].mxu0
      %v2874 = vadd.f32 0.0, %v2873
      %v2875 = vpop.f32.mrb[0].mxu0
      %2876 = vmatprep.mubr.bf16.mxu0 0
      %2877 = vmatmul.mubr.bf16.gmra.mrb[0].mxu0 %v2765
      %v2878 = vpop.f32.mrb[0].mxu0
      %v2879 = vadd.f32 0.0, %v2878
      %v2880 = vpop.f32.mrb[0].mxu0
      %v2881 = vpop.f32.mrb[0].mxu0
      %v2882 = vadd.f32 0.0, %v2881
      %v2883 = vpop.f32.mrb[0].mxu0
      %2884 = vmatprep.mubr.bf16.mxu0 0
      %2885 = vmatmul.mubr.bf16.gmra.mrb[0].mxu0 %v2768
      %v2886 = vpop.f32.mrb[0].mxu0
      %v2887 = vadd.f32 0.0, %v2886
      %v2888 = vpop.f32.mrb[0].mxu0
      %v2889 = vpop.f32.mrb[0].mxu0
      %v2890 = vadd.f32 0.0, %v2889
      %v2891 = vpop.f32.mrb[0].mxu0
      %2892 = vmatprep.mubr.bf16.mxu0 0
      %2893 = vmatmul.mubr.bf16.gmra.mrb[0].mxu0 %v2771
      %v2894 = vpop.f32.mrb[0].mxu0
      %v2895 = vadd.f32 0.0, %v2894
      %v2896 = vpop.f32.mrb[0].mxu0
      %v2897 = vpop.f32.mrb[0].mxu0
      %v2898 = vadd.f32 0.0, %v2897
      %v2899 = vpop.f32.mrb[0].mxu0
      %2900 = vmatprep.mubr.bf16.mxu0 0
      %2901 = vmatmul.mubr.bf16.gmra.mrb[0].mxu0 %v2774
      %v2902 = vpop.f32.mrb[0].mxu0
      %v2903 = vadd.f32 0.0, %v2902
      %v2904 = vpop.f32.mrb[0].mxu0
      %v2905 = vpop.f32.mrb[0].mxu0
      %v2906 = vadd.f32 0.0, %v2905
      %v2907 = vpop.f32.mrb[0].mxu0
      %2908 = vmatprep.mubr.bf16.mxu0 0
      %2909 = vmatmul.mubr.bf16.gmra.mrb[0].mxu0 %v2777
      %v2910 = vpop.f32.mrb[0].mxu0
      %v2911 = vadd.f32 0.0, %v2910
      %v2912 = vpop.f32.mrb[0].mxu0
      %v2913 = vpop.f32.mrb[0].mxu0
      %v2914 = vadd.f32 0.0, %v2913
      %v2915 = vpop.f32.mrb[0].mxu0
      %2916 = vmatprep.mubr.bf16.mxu0 0
      %2917 = vmatmul.mubr.bf16.gmra.mrb[0].mxu0 %v2780
      %v2918 = vpop.f32.mrb[0].mxu0
      %v2919 = vadd.f32 0.0, %v2918
      %v2920 = vpop.f32.mrb[0].mxu0
      %v2921 = vpop.f32.mrb[0].mxu0
      %v2922 = vadd.f32 0.0, %v2921
      %v2923 = vpop.f32.mrb[0].mxu0
      %2924 = vmatprep.mubr.bf16.mxu0 0
      %2925 = vmatmul.mubr.bf16.gmra.mrb[0].mxu0 %v2783
      %v2926 = vpop.f32.mrb[0].mxu0
      %v2927 = vadd.f32 0.0, %v2926
      %v2928 = vpop.f32.mrb[0].mxu0
      %v2929 = vpop.f32.mrb[0].mxu0
      %v2930 = vadd.f32 0.0, %v2929
      %v2931 = vpop.f32.mrb[0].mxu0
      %2932 = vmatprep.mubr.bf16.mxu0 0
      %2933 = vmatmul.mubr.bf16.gmra.mrb[0].mxu0 %v2786
      %v2934 = vpop.f32.mrb[0].mxu0
      %v2935 = vadd.f32 0.0, %v2934
      %v2936 = vpop.f32.mrb[0].mxu0
      %v2937 = vpop.f32.mrb[0].mxu0
      %v2938 = vadd.f32 0.0, %v2937
      %v2939 = vpop.f32.mrb[0].mxu0
      %2940 = vmatprep.mubr.bf16.mxu0 0
      %2941 = vmatmul.mubr.bf16.gmra.mrb[0].mxu0 %v2789
      %v2942 = vpop.f32.mrb[0].mxu0
      %v2943 = vadd.f32 0.0, %v2942
      %v2944 = vpop.f32.mrb[0].mxu0
      %v2945 = vpop.f32.mrb[0].mxu0
      %v2946 = vadd.f32 0.0, %v2945
      %v2947 = vpop.f32.mrb[0].mxu0
      %2948 = vmatprep.mubr.bf16.mxu0 0
      %2949 = vmatmul.mubr.bf16.gmra.mrb[0].mxu0 %v2792
      %v2950 = vpop.f32.mrb[0].mxu0
      %v2951 = vadd.f32 0.0, %v2950
      %v2952 = vpop.f32.mrb[0].mxu0
      %v2953 = vpop.f32.mrb[0].mxu0
      %v2954 = vadd.f32 0.0, %v2953
      %v2955 = vpop.f32.mrb[0].mxu0
      %2956 = vmatprep.mubr.bf16.mxu0 0
      %2957 = vmatmul.mubr.bf16.gmra.mrb[0].mxu0 %v2795
      %v2958 = vpop.f32.mrb[0].mxu0
      %v2959 = vadd.f32 0.0, %v2958
      %v2960 = vpop.f32.mrb[0].mxu0
      %v2961 = vpop.f32.mrb[0].mxu0
      %v2962 = vadd.f32 0.0, %v2961
      %v2963 = vpop.f32.mrb[0].mxu0
      %2964 = vmatprep.mubr.bf16.mxu0 0
      %2965 = vmatmul.mubr.bf16.gmra.mrb[0].mxu0 %v2798
      %v2966 = vpop.f32.mrb[0].mxu0
      %v2967 = vadd.f32 0.0, %v2966
      %v2968 = vpop.f32.mrb[0].mxu0
      %v2969 = vpop.f32.mrb[0].mxu0
      %v2970 = vadd.f32 0.0, %v2969
      %v2971 = vpop.f32.mrb[0].mxu0
      %2972 = vmatprep.mubr.bf16.mxu0 0
      %2973 = vmatmul.mubr.bf16.gmra.mrb[0].mxu0 %v2801
      %v2974 = vpop.f32.mrb[0].mxu0
      %v2975 = vadd.f32 0.0, %v2974
      %v2976 = vpop.f32.mrb[0].mxu0
      %v2977 = vpop.f32.mrb[0].mxu0
      %v2978 = vadd.f32 0.0, %v2977
      %v2979 = vpop.f32.mrb[0].mxu0
      %2980 = vmatprep.mubr.bf16.mxu0 0
      %2981 = vmatmul.mubr.bf16.gmra.mrb[0].mxu0 %v2804
      %v2982 = vpop.f32.mrb[0].mxu0
      %v2983 = vadd.f32 0.0, %v2982
      %v2984 = vpop.f32.mrb[0].mxu0
      %v2985 = vpop.f32.mrb[0].mxu0
      %v2986 = vadd.f32 0.0, %v2985
      %v2987 = vpop.f32.mrb[0].mxu0
      %2988 = vmatprep.mubr.bf16.mxu0 0
      %2989 = vmatmul.mubr.bf16.gmra.mrb[0].mxu0 %v2807
      %v2990 = vpop.f32.mrb[0].mxu0
      %v2991 = vadd.f32 0.0, %v2990
      %v2992 = vpop.f32.mrb[0].mxu0
      %v2993 = vpop.f32.mrb[0].mxu0
      %v2994 = vadd.f32 0.0, %v2993
      %v2995 = vpop.f32.mrb[0].mxu0
      %2996 = vmatprep.mubr.bf16.mxu0 0
      %2997 = vmatmul.mubr.bf16.gmra.mrb[0].mxu0 %v2810
      %v2998 = vpop.f32.mrb[0].mxu0
      %v2999 = vadd.f32 0.0, %v2998
      %v3000 = vpop.f32.mrb[0].mxu0
      %v3001 = vpop.f32.mrb[0].mxu0
      %v3002 = vadd.f32 0.0, %v3001
      %v3003 = vpop.f32.mrb[0].mxu0
      %3004 = vmatprep.mubr.bf16.mxu0 0
      %3005 = vmatmul.mubr.bf16.gmra.mrb[0].mxu0 %v2812
      %v3006 = vpop.f32.mrb[0].mxu0
      %v3007 = vadd.f32 0.0, %v3006
      %v3008 = vpop.f32.mrb[0].mxu0
      %v3009 = vpop.f32.mrb[0].mxu0
      %v3010 = vadd.f32 0.0, %v3009
      %v3011 = vpop.f32.mrb[0].mxu0
      %3012 = vmatprep.mubr.bf16.mxu0 0
      %3013 = vmatmul.mubr.bf16.gmra.mrb[0].mxu0 %v2815
      %v3014 = vpop.f32.mrb[0].mxu0
      %v3015 = vadd.f32 0.0, %v3014
      %v3016 = vpop.f32.mrb[0].mxu0
      %v3017 = vpop.f32.mrb[0].mxu0
      %v3018 = vpop.f32.mrb[0].mxu0
      %3019 = vdwg.mxu0
      %v3020 = vadd.f32 %v2666, %v2855
      %v3021 = vadd.f32 %v2667, %v2858
      %v3022 = vadd.f32 %v2668, %v2863
      %v3023 = vadd.f32 %v2669, %v2866
      %v3024 = vadd.f32 %v2670, %v2871
      %v3025 = vadd.f32 %v2671, %v2874
      %v3026 = vadd.f32 %v2672, %v2879
      %v3027 = vadd.f32 %v2673, %v2882
      %v3028 = vadd.f32 %v2674, %v2887
      %v3029 = vadd.f32 %v2675, %v2890
      %v3030 = vadd.f32 %v2676, %v2895
      %v3031 = vadd.f32 %v2677, %v2898
      %v3032 = vadd.f32 %v2678, %v2903
      %v3033 = vadd.f32 %v2679, %v2906
      %v3034 = vadd.f32 %v2680, %v2911
      %v3035 = vadd.f32 %v2681, %v2914
      %v3036 = vadd.f32 %v2682, %v2919
      %v3037 = vadd.f32 %v2683, %v2922
      %v3038 = vadd.f32 %v2684, %v2927
      %v3039 = vadd.f32 %v2685, %v2930
      %v3040 = vadd.f32 %v2686, %v2935
      %v3041 = vadd.f32 %v2687, %v2938
      %v3042 = vadd.f32 %v2688, %v2943
      %v3043 = vadd.f32 %v2689, %v2946
      %v3044 = vadd.f32 %v2690, %v2951
      %v3045 = vadd.f32 %v2691, %v2954
      %v3046 = vadd.f32 %v2692, %v2959
      %v3047 = vadd.f32 %v2693, %v2962
      %v3048 = vadd.f32 %v2694, %v2967
      %v3049 = vadd.f32 %v2695, %v2970
      %v3050 = vadd.f32 %v2696, %v2975
      %v3051 = vadd.f32 %v2697, %v2978
      %v3052 = vadd.f32 %v2698, %v2983
      %v3053 = vadd.f32 %v2699, %v2986
      %v3054 = vadd.f32 %v2700, %v2991
      %v3055 = vadd.f32 %v2701, %v2994
      %v3056 = vadd.f32 %v2702, %v2999
      %v3057 = vadd.f32 %v2703, %v3002
      %v3058 = vadd.f32 %v2704, %v3007
      %v3059 = vadd.f32 %v2705, %v3010
      %v3060 = vadd.f32 %v2706, %v3015
      %vm3061 = vsmask.f32 6400
      %v3062 = vrot.slane %v389, 1
      %v3063 = vrot.slane %v392, 2
      %v3064 = vor.u32 %v3062, %v3063
      %v3065 = vrot.slane %v398, 1
      %v3066 = vrot.slane %v401, 2
      %v3067 = vor.u32 %v3065, %v3066
      %v3068 = vsel %vm3061, %v3064, %v3067
      %v3069 = vrot.slane %v407, 1
      %v3070 = vrot.slane %v410, 2
      %v3071 = vor.u32 %v3069, %v3070
      %v3072 = vsel %vm3061, %v3067, %v3071
      %v3073 = vrot.slane %v416, 1
      %v3074 = vrot.slane %v419, 2
      %v3075 = vor.u32 %v3073, %v3074
      %v3076 = vsel %vm3061, %v3071, %v3075
      %v3077 = vrot.slane %v425, 1
      %v3078 = vrot.slane %v428, 2
      %v3079 = vor.u32 %v3077, %v3078
      %v3080 = vsel %vm3061, %v3075, %v3079
      %v3081 = vrot.slane %v434, 1
      %v3082 = vrot.slane %v437, 2
      %v3083 = vor.u32 %v3081, %v3082
      %v3084 = vsel %vm3061, %v3079, %v3083
      %v3085 = vrot.slane %v443, 1
      %v3086 = vrot.slane %v446, 2
      %v3087 = vor.u32 %v3085, %v3086
      %v3088 = vsel %vm3061, %v3083, %v3087
      %v3089 = vrot.slane %v452, 1
      %v3090 = vrot.slane %v455, 2
      %v3091 = vor.u32 %v3089, %v3090
      %v3092 = vsel %vm3061, %v3087, %v3091
      %v3093 = vrot.slane %v461, 1
      %v3094 = vrot.slane %v464, 2
      %v3095 = vor.u32 %v3093, %v3094
      %v3096 = vsel %vm3061, %v3091, %v3095
      %v3097 = vrot.slane %v470, 1
      %v3098 = vrot.slane %v473, 2
      %v3099 = vor.u32 %v3097, %v3098
      %v3100 = vsel %vm3061, %v3095, %v3099
      %v3101 = vrot.slane %v479, 1
      %v3102 = vrot.slane %v482, 2
      %v3103 = vor.u32 %v3101, %v3102
      %v3104 = vsel %vm3061, %v3099, %v3103
      %v3105 = vrot.slane %v488, 1
      %v3106 = vrot.slane %v491, 2
      %v3107 = vor.u32 %v3105, %v3106
      %v3108 = vsel %vm3061, %v3103, %v3107
      %v3109 = vrot.slane %v497, 1
      %v3110 = vrot.slane %v500, 2
      %v3111 = vor.u32 %v3109, %v3110
      %v3112 = vsel %vm3061, %v3107, %v3111
      %v3113 = vrot.slane %v506, 1
      %v3114 = vrot.slane %v509, 2
      %v3115 = vor.u32 %v3113, %v3114
      %v3116 = vsel %vm3061, %v3111, %v3115
      %v3117 = vrot.slane %v515, 1
      %v3118 = vrot.slane %v518, 2
      %v3119 = vor.u32 %v3117, %v3118
      %v3120 = vsel %vm3061, %v3115, %v3119
      %v3121 = vrot.slane %v524, 1
      %v3122 = vrot.slane %v527, 2
      %v3123 = vor.u32 %v3121, %v3122
      %v3124 = vsel %vm3061, %v3119, %v3123
      %v3125 = vrot.slane %v533, 1
      %v3126 = vrot.slane %v536, 2
      %v3127 = vor.u32 %v3125, %v3126
      %v3128 = vsel %vm3061, %v3123, %v3127
      %v3129 = vrot.slane %v542, 1
      %v3130 = vrot.slane %v545, 2
      %v3131 = vor.u32 %v3129, %v3130
      %v3132 = vsel %vm3061, %v3127, %v3131
      %v3133 = vrot.slane %v266, 1
      %v3134 = vrot.slane %v269, 2
      %v3135 = vor.u32 %v3133, %v3134
      %v3136 = vsel %vm3061, %v3131, %v3135
      %v3137 = vrot.slane %v274, 1
      %v3138 = vrot.slane %v277, 2
      %v3139 = vor.u32 %v3137, %v3138
      %v3140 = vsel %vm3061, %v3135, %v3139
      %vm3142 = vsmask.f32 2304
      %v3143 = vrot.slane %v381, 5
      %v3144 = vrot.slane %v384, 6
      %v3145 = vor.u32 %v3143, %v3144
      %v3146 = vshrl.u32 %v2446, 16
      %v3148 = vrot.slane %v3146, 5
      %v3149 = vrot.slane %v2451, 6
      %v3150 = vor.u32 %v3148, %v3149
      %v3151 = vsel %vm3142, %v3145, %v3150
      %vm3153 = vmand %vm2747, %vm3142
      %v3154 = vsel %vm3153, %v3139, %v3145
      %v3156 = vsel %vm611, %v3068, 0
      %v3159 = vsel %vm611, %v3072, 0
      %v3162 = vsel %vm611, %v3076, 0
      %v3165 = vsel %vm611, %v3080, 0
      %v3168 = vsel %vm611, %v3084, 0
      %v3171 = vsel %vm611, %v3088, 0
      %v3174 = vsel %vm611, %v3092, 0
      %v3177 = vsel %vm611, %v3096, 0
      %v3180 = vsel %vm611, %v3100, 0
      %v3183 = vsel %vm611, %v3104, 0
      %v3186 = vsel %vm611, %v3108, 0
      %v3189 = vsel %vm611, %v3112, 0
      %v3192 = vsel %vm611, %v3116, 0
      %v3195 = vsel %vm611, %v3120, 0
      %v3198 = vsel %vm611, %v3124, 0
      %v3201 = vsel %vm611, %v3128, 0
      %v3204 = vsel %vm611, %v3132, 0
      %v3207 = vsel %vm611, %v3136, 0
      %v3210 = vsel %vm611, %v3140, 0
      %v3213 = vsel %vm611, %v3154, 0
      %v3216 = vsel %vm611, %v3151, 0
      %v3219 = vsel %vm674, %v255, 0
      %3221 = vmatprep.subr.bf16.mxu0 0
      %3222 = vmatpush1.bf16.msra.mxu0 %v3219
      %3223 = vmatprep.subr.bf16.mxu0 0
      %3224 = vmatpush1.bf16.msra.mxu0 0
      %3225 = vmatprep.subr.bf16.mxu0 0
      %3226 = vmatpush1.bf16.msra.mxu0 0
      %3227 = vmatprep.subr.bf16.mxu0 0
      %3228 = vmatpush1.bf16.msra.mxu0 0
      %3229 = vmatprep.subr.bf16.mxu0 0
      %3230 = vmatpush1.bf16.msra.mxu0 0
      %3231 = vmatprep.subr.bf16.mxu0 0
      %3232 = vmatpush1.bf16.msra.mxu0 0
      %3233 = vmatprep.subr.bf16.mxu0 0
      %3234 = vmatpush1.bf16.msra.mxu0 0
      %3235 = vmatprep.subr.bf16.mxu0 0
      %3236 = vmatpush1.bf16.msra.mxu0 0
      %3237 = vmatprep.subr.bf16.mxu0 0
      %3238 = vmatpush1.bf16.msra.mxu0 0
      %3239 = vmatprep.subr.bf16.mxu0 0
      %3240 = vmatpush1.bf16.msra.mxu0 0
      %3241 = vmatprep.subr.bf16.mxu0 0
      %3242 = vmatpush1.bf16.msra.mxu0 0
      %3243 = vmatprep.subr.bf16.mxu0 0
      %3244 = vmatpush1.bf16.msra.mxu0 0
      %3245 = vmatprep.subr.bf16.mxu0 0
      %3246 = vmatpush1.bf16.msra.mxu0 0
      %3247 = vmatprep.subr.bf16.mxu0 0
      %3248 = vmatpush1.bf16.msra.mxu0 0
      %3249 = vmatprep.subr.bf16.mxu0 0
      %3250 = vmatpush1.bf16.msra.mxu0 0
      %3251 = vmatprep.subr.bf16.mxu0 0
      %3252 = vmatpush1.bf16.msra.mxu0 0
      %3253 = vmatprep.mubr.bf16.mxu0 0
      %3254 = vmatmul.mubr.bf16.gmra.mrb[0].mxu0 %v3156
      %v3255 = vpop.f32.mrb[0].mxu0
      %v3256 = vadd.f32 0.0, %v3255
      %v3257 = vpop.f32.mrb[0].mxu0
      %v3258 = vpop.f32.mrb[0].mxu0
      %v3259 = vadd.f32 0.0, %v3258
      %v3260 = vpop.f32.mrb[0].mxu0
      %3261 = vmatprep.mubr.bf16.mxu0 0
      %3262 = vmatmul.mubr.bf16.gmra.mrb[0].mxu0 %v3159
      %v3263 = vpop.f32.mrb[0].mxu0
      %v3264 = vadd.f32 0.0, %v3263
      %v3265 = vpop.f32.mrb[0].mxu0
      %v3266 = vpop.f32.mrb[0].mxu0
      %v3267 = vadd.f32 0.0, %v3266
      %v3268 = vpop.f32.mrb[0].mxu0
      %3269 = vmatprep.mubr.bf16.mxu0 0
      %3270 = vmatmul.mubr.bf16.gmra.mrb[0].mxu0 %v3162
      %v3271 = vpop.f32.mrb[0].mxu0
      %v3272 = vadd.f32 0.0, %v3271
      %v3273 = vpop.f32.mrb[0].mxu0
      %v3274 = vpop.f32.mrb[0].mxu0
      %v3275 = vadd.f32 0.0, %v3274
      %v3276 = vpop.f32.mrb[0].mxu0
      %3277 = vmatprep.mubr.bf16.mxu0 0
      %3278 = vmatmul.mubr.bf16.gmra.mrb[0].mxu0 %v3165
      %v3279 = vpop.f32.mrb[0].mxu0
      %v3280 = vadd.f32 0.0, %v3279
      %v3281 = vpop.f32.mrb[0].mxu0
      %v3282 = vpop.f32.mrb[0].mxu0
      %v3283 = vadd.f32 0.0, %v3282
      %v3284 = vpop.f32.mrb[0].mxu0
      %3285 = vmatprep.mubr.bf16.mxu0 0
      %3286 = vmatmul.mubr.bf16.gmra.mrb[0].mxu0 %v3168
      %v3287 = vpop.f32.mrb[0].mxu0
      %v3288 = vadd.f32 0.0, %v3287
      %v3289 = vpop.f32.mrb[0].mxu0
      %v3290 = vpop.f32.mrb[0].mxu0
      %v3291 = vadd.f32 0.0, %v3290
      %v3292 = vpop.f32.mrb[0].mxu0
      %3293 = vmatprep.mubr.bf16.mxu0 0
      %3294 = vmatmul.mubr.bf16.gmra.mrb[0].mxu0 %v3171
      %v3295 = vpop.f32.mrb[0].mxu0
      %v3296 = vadd.f32 0.0, %v3295
      %v3297 = vpop.f32.mrb[0].mxu0
      %v3298 = vpop.f32.mrb[0].mxu0
      %v3299 = vadd.f32 0.0, %v3298
      %v3300 = vpop.f32.mrb[0].mxu0
      %3301 = vmatprep.mubr.bf16.mxu0 0
      %3302 = vmatmul.mubr.bf16.gmra.mrb[0].mxu0 %v3174
      %v3303 = vpop.f32.mrb[0].mxu0
      %v3304 = vadd.f32 0.0, %v3303
      %v3305 = vpop.f32.mrb[0].mxu0
      %v3306 = vpop.f32.mrb[0].mxu0
      %v3307 = vadd.f32 0.0, %v3306
      %v3308 = vpop.f32.mrb[0].mxu0
      %3309 = vmatprep.mubr.bf16.mxu0 0
      %3310 = vmatmul.mubr.bf16.gmra.mrb[0].mxu0 %v3177
      %v3311 = vpop.f32.mrb[0].mxu0
      %v3312 = vadd.f32 0.0, %v3311
      %v3313 = vpop.f32.mrb[0].mxu0
      %v3314 = vpop.f32.mrb[0].mxu0
      %v3315 = vadd.f32 0.0, %v3314
      %v3316 = vpop.f32.mrb[0].mxu0
      %3317 = vmatprep.mubr.bf16.mxu0 0
      %3318 = vmatmul.mubr.bf16.gmra.mrb[0].mxu0 %v3180
      %v3319 = vpop.f32.mrb[0].mxu0
      %v3320 = vadd.f32 0.0, %v3319
      %v3321 = vpop.f32.mrb[0].mxu0
      %v3322 = vpop.f32.mrb[0].mxu0
      %v3323 = vadd.f32 0.0, %v3322
      %v3324 = vpop.f32.mrb[0].mxu0
      %3325 = vmatprep.mubr.bf16.mxu0 0
      %3326 = vmatmul.mubr.bf16.gmra.mrb[0].mxu0 %v3183
      %v3327 = vpop.f32.mrb[0].mxu0
      %v3328 = vadd.f32 0.0, %v3327
      %v3329 = vpop.f32.mrb[0].mxu0
      %v3330 = vpop.f32.mrb[0].mxu0
      %v3331 = vadd.f32 0.0, %v3330
      %v3332 = vpop.f32.mrb[0].mxu0
      %3333 = vmatprep.mubr.bf16.mxu0 0
      %3334 = vmatmul.mubr.bf16.gmra.mrb[0].mxu0 %v3186
      %v3335 = vpop.f32.mrb[0].mxu0
      %v3336 = vadd.f32 0.0, %v3335
      %v3337 = vpop.f32.mrb[0].mxu0
      %v3338 = vpop.f32.mrb[0].mxu0
      %v3339 = vadd.f32 0.0, %v3338
      %v3340 = vpop.f32.mrb[0].mxu0
      %3341 = vmatprep.mubr.bf16.mxu0 0
      %3342 = vmatmul.mubr.bf16.gmra.mrb[0].mxu0 %v3189
      %v3343 = vpop.f32.mrb[0].mxu0
      %v3344 = vadd.f32 0.0, %v3343
      %v3345 = vpop.f32.mrb[0].mxu0
      %v3346 = vpop.f32.mrb[0].mxu0
      %v3347 = vadd.f32 0.0, %v3346
      %v3348 = vpop.f32.mrb[0].mxu0
      %3349 = vmatprep.mubr.bf16.mxu0 0
      %3350 = vmatmul.mubr.bf16.gmra.mrb[0].mxu0 %v3192
      %v3351 = vpop.f32.mrb[0].mxu0
      %v3352 = vadd.f32 0.0, %v3351
      %v3353 = vpop.f32.mrb[0].mxu0
      %v3354 = vpop.f32.mrb[0].mxu0
      %v3355 = vadd.f32 0.0, %v3354
      %v3356 = vpop.f32.mrb[0].mxu0
      %3357 = vmatprep.mubr.bf16.mxu0 0
      %3358 = vmatmul.mubr.bf16.gmra.mrb[0].mxu0 %v3195
      %v3359 = vpop.f32.mrb[0].mxu0
      %v3360 = vadd.f32 0.0, %v3359
      %v3361 = vpop.f32.mrb[0].mxu0
      %v3362 = vpop.f32.mrb[0].mxu0
      %v3363 = vadd.f32 0.0, %v3362
      %v3364 = vpop.f32.mrb[0].mxu0
      %3365 = vmatprep.mubr.bf16.mxu0 0
      %3366 = vmatmul.mubr.bf16.gmra.mrb[0].mxu0 %v3198
      %v3367 = vpop.f32.mrb[0].mxu0
      %v3368 = vadd.f32 0.0, %v3367
      %v3369 = vpop.f32.mrb[0].mxu0
      %v3370 = vpop.f32.mrb[0].mxu0
      %v3371 = vadd.f32 0.0, %v3370
      %v3372 = vpop.f32.mrb[0].mxu0
      %3373 = vmatprep.mubr.bf16.mxu0 0
      %3374 = vmatmul.mubr.bf16.gmra.mrb[0].mxu0 %v3201
      %v3375 = vpop.f32.mrb[0].mxu0
      %v3376 = vadd.f32 0.0, %v3375
      %v3377 = vpop.f32.mrb[0].mxu0
      %v3378 = vpop.f32.mrb[0].mxu0
      %v3379 = vadd.f32 0.0, %v3378
      %v3380 = vpop.f32.mrb[0].mxu0
      %3381 = vmatprep.mubr.bf16.mxu0 0
      %3382 = vmatmul.mubr.bf16.gmra.mrb[0].mxu0 %v3204
      %v3383 = vpop.f32.mrb[0].mxu0
      %v3384 = vadd.f32 0.0, %v3383
      %v3385 = vpop.f32.mrb[0].mxu0
      %v3386 = vpop.f32.mrb[0].mxu0
      %v3387 = vadd.f32 0.0, %v3386
      %v3388 = vpop.f32.mrb[0].mxu0
      %3389 = vmatprep.mubr.bf16.mxu0 0
      %3390 = vmatmul.mubr.bf16.gmra.mrb[0].mxu0 %v3207
      %v3391 = vpop.f32.mrb[0].mxu0
      %v3392 = vadd.f32 0.0, %v3391
      %v3393 = vpop.f32.mrb[0].mxu0
      %v3394 = vpop.f32.mrb[0].mxu0
      %v3395 = vadd.f32 0.0, %v3394
      %v3396 = vpop.f32.mrb[0].mxu0
      %3397 = vmatprep.mubr.bf16.mxu0 0
      %3398 = vmatmul.mubr.bf16.gmra.mrb[0].mxu0 %v3210
      %v3399 = vpop.f32.mrb[0].mxu0
      %v3400 = vadd.f32 0.0, %v3399
      %v3401 = vpop.f32.mrb[0].mxu0
      %v3402 = vpop.f32.mrb[0].mxu0
      %v3403 = vadd.f32 0.0, %v3402
      %v3404 = vpop.f32.mrb[0].mxu0
      %3405 = vmatprep.mubr.bf16.mxu0 0
      %3406 = vmatmul.mubr.bf16.gmra.mrb[0].mxu0 %v3213
      %v3407 = vpop.f32.mrb[0].mxu0
      %v3408 = vadd.f32 0.0, %v3407
      %v3409 = vpop.f32.mrb[0].mxu0
      %v3410 = vpop.f32.mrb[0].mxu0
      %v3411 = vadd.f32 0.0, %v3410
      %v3412 = vpop.f32.mrb[0].mxu0
      %3413 = vmatprep.mubr.bf16.mxu0 0
      %3414 = vmatmul.mubr.bf16.gmra.mrb[0].mxu0 %v3216
      %v3415 = vpop.f32.mrb[0].mxu0
      %v3416 = vadd.f32 0.0, %v3415
      %v3417 = vpop.f32.mrb[0].mxu0
      %v3418 = vpop.f32.mrb[0].mxu0
      %v3419 = vpop.f32.mrb[0].mxu0
      %3420 = vdwg.mxu0
      %v3421 = vadd.f32 %v3020, %v3256
      %v3422 = vadd.f32 %v3021, %v3259
      %v3423 = vadd.f32 %v3022, %v3264
      %v3424 = vadd.f32 %v3023, %v3267
      %v3425 = vadd.f32 %v3024, %v3272
      %v3426 = vadd.f32 %v3025, %v3275
      %v3427 = vadd.f32 %v3026, %v3280
      %v3428 = vadd.f32 %v3027, %v3283
      %v3429 = vadd.f32 %v3028, %v3288
      %v3430 = vadd.f32 %v3029, %v3291
      %v3431 = vadd.f32 %v3030, %v3296
      %v3432 = vadd.f32 %v3031, %v3299
      %v3433 = vadd.f32 %v3032, %v3304
      %v3434 = vadd.f32 %v3033, %v3307
      %v3435 = vadd.f32 %v3034, %v3312
      %v3436 = vadd.f32 %v3035, %v3315
      %v3437 = vadd.f32 %v3036, %v3320
      %v3438 = vadd.f32 %v3037, %v3323
      %v3439 = vadd.f32 %v3038, %v3328
      %v3440 = vadd.f32 %v3039, %v3331
      %v3441 = vadd.f32 %v3040, %v3336
      %v3442 = vadd.f32 %v3041, %v3339
      %v3443 = vadd.f32 %v3042, %v3344
      %v3444 = vadd.f32 %v3043, %v3347
      %v3445 = vadd.f32 %v3044, %v3352
      %v3446 = vadd.f32 %v3045, %v3355
      %v3447 = vadd.f32 %v3046, %v3360
      %v3448 = vadd.f32 %v3047, %v3363
      %v3449 = vadd.f32 %v3048, %v3368
      %v3450 = vadd.f32 %v3049, %v3371
      %v3451 = vadd.f32 %v3050, %v3376
      %v3452 = vadd.f32 %v3051, %v3379
      %v3453 = vadd.f32 %v3052, %v3384
      %v3454 = vadd.f32 %v3053, %v3387
      %v3455 = vadd.f32 %v3054, %v3392
      %v3456 = vadd.f32 %v3055, %v3395
      %v3457 = vadd.f32 %v3056, %v3400
      %v3458 = vadd.f32 %v3057, %v3403
      %v3459 = vadd.f32 %v3058, %v3408
      %v3460 = vadd.f32 %v3059, %v3411
      %v3461 = vadd.f32 %v3060, %v3416
      %v3462 = vld [vmem:[%s2] sm:$0xff]
      %v3463 = vld [vmem:[%s2 + $0x8] sm:$0xff]
      %v3464 = vld [vmem:[%s2 + $0x10] sm:$0xff]
      %v3465 = vld [vmem:[%s2 + $0x18] sm:$0xff]
      %v3466 = vld [vmem:[%s2 + $0x20] sm:$0xff]
      %v3467 = vld [vmem:[%s2 + $0x28] sm:$0xff]
      %v3468 = vld [vmem:[%s2 + $0x30] sm:$0xff]
      %v3469 = vld [vmem:[%s2 + $0x38] sm:$0xff]
      %v3470 = vld [vmem:[%s2 + $0x40] sm:$0xff]
      %v3471 = vld [vmem:[%s2 + $0x48] sm:$0xff]
      %v3472 = vld [vmem:[%s2 + $0x50] sm:$0xff]
      %v3473 = vld [vmem:[%s2 + $0x58] sm:$0xff]
      %v3474 = vld [vmem:[%s2 + $0x60] sm:$0xff]
      %v3475 = vld [vmem:[%s2 + $0x68] sm:$0xff]
      %v3476 = vld [vmem:[%s2 + $0x70] sm:$0xff]
      %v3477 = vld [vmem:[%s2 + $0x78] sm:$0xff]
      %v3478 = vld [vmem:[%s2 + $0x80] sm:$0xff]
      %v3479 = vld [vmem:[%s2 + $0x88] sm:$0xff]
      %v3480 = vld [vmem:[%s2 + $0x90] sm:$0xff]
      %v3481 = vld [vmem:[%s2 + $0x98] sm:$0xff]
      %v3482 = vld [vmem:[%s2 + $0xa0] sm:$0xff]
      %v3483 = vld [vmem:[%s2 + $0xa8] sm:$0xff]
      %v3484 = vld [vmem:[%s2 + $0xb0] sm:$0xff]
      %v3485 = vld [vmem:[%s2 + $0xb8] sm:$0xff]
      %v3486 = vld [vmem:[%s2 + $0xc0] sm:$0xff]
      %v3487 = vld [vmem:[%s2 + $0xc8] sm:$0xff]
      %v3488 = vld [vmem:[%s2 + $0xd0] sm:$0xff]
      %v3489 = vld [vmem:[%s2 + $0xd8] sm:$0xff]
      %v3490 = vld [vmem:[%s2 + $0xe0] sm:$0xff]
      %v3491 = vld [vmem:[%s2 + $0xe8] sm:$0xff]
      %v3492 = vld [vmem:[%s2 + $0xf0] sm:$0xff]
      %v3493 = vld [vmem:[%s2 + $0xf8] sm:$0xff]
      %v3494 = vld [vmem:[%s2 + $0x100] sm:$0xff]
      %v3495 = vld [vmem:[%s2 + $0x108] sm:$0xff]
      %v3496 = vld [vmem:[%s2 + $0x110] sm:$0xff]
      %v3497 = vld [vmem:[%s2 + $0x118] sm:$0xff]
      %v3498 = vld [vmem:[%s2 + $0x120] sm:$0xff]
      %v3499 = vld [vmem:[%s2 + $0x128] sm:$0xff]
      %v3500 = vld [vmem:[%s2 + $0x130] sm:$0xff]
      %v3501 = vld [vmem:[%s2 + $0x138] sm:$0xff]
      %v3502 = vld [vmem:[%s2 + $0x140] sm:$0xff]
      %3504 = vset.pattern.permute.xlu0 0
      %3505 = vperm.xlu0 %3504, %v3462
      %v3506 = vpop.permute.xlu0 %3505
      %3509 = vset.pattern.permute.xlu0 0
      %3510 = vperm.xlu0 %3509, %v3463
      %v3511 = vpop.permute.xlu0 %3510
      %3514 = vset.pattern.permute.xlu0 0
      %3515 = vperm.xlu0 %3514, %v3464
      %v3516 = vpop.permute.xlu0 %3515
      %3519 = vset.pattern.permute.xlu0 0
      %3520 = vperm.xlu0 %3519, %v3465
      %v3521 = vpop.permute.xlu0 %3520
      %3524 = vset.pattern.permute.xlu0 0
      %3525 = vperm.xlu0 %3524, %v3466
      %v3526 = vpop.permute.xlu0 %3525
      %3529 = vset.pattern.permute.xlu0 0
      %3530 = vperm.xlu0 %3529, %v3467
      %v3531 = vpop.permute.xlu0 %3530
      %3534 = vset.pattern.permute.xlu0 0
      %3535 = vperm.xlu0 %3534, %v3468
      %v3536 = vpop.permute.xlu0 %3535
      %3539 = vset.pattern.permute.xlu0 0
      %3540 = vperm.xlu0 %3539, %v3469
      %v3541 = vpop.permute.xlu0 %3540
      %3544 = vset.pattern.permute.xlu0 0
      %3545 = vperm.xlu0 %3544, %v3470
      %v3546 = vpop.permute.xlu0 %3545
      %3549 = vset.pattern.permute.xlu0 0
      %3550 = vperm.xlu0 %3549, %v3471
      %v3551 = vpop.permute.xlu0 %3550
      %3554 = vset.pattern.permute.xlu0 0
      %3555 = vperm.xlu0 %3554, %v3472
      %v3556 = vpop.permute.xlu0 %3555
      %3559 = vset.pattern.permute.xlu0 0
      %3560 = vperm.xlu0 %3559, %v3473
      %v3561 = vpop.permute.xlu0 %3560
      %3564 = vset.pattern.permute.xlu0 0
      %3565 = vperm.xlu0 %3564, %v3474
      %v3566 = vpop.permute.xlu0 %3565
      %3569 = vset.pattern.permute.xlu0 0
      %3570 = vperm.xlu0 %3569, %v3475
      %v3571 = vpop.permute.xlu0 %3570
      %3574 = vset.pattern.permute.xlu0 0
      %3575 = vperm.xlu0 %3574, %v3476
      %v3576 = vpop.permute.xlu0 %3575
      %3579 = vset.pattern.permute.xlu0 0
      %3580 = vperm.xlu0 %3579, %v3477
      %v3581 = vpop.permute.xlu0 %3580
      %3584 = vset.pattern.permute.xlu0 0
      %3585 = vperm.xlu0 %3584, %v3478
      %v3586 = vpop.permute.xlu0 %3585
      %3589 = vset.pattern.permute.xlu0 0
      %3590 = vperm.xlu0 %3589, %v3479
      %v3591 = vpop.permute.xlu0 %3590
      %3594 = vset.pattern.permute.xlu0 0
      %3595 = vperm.xlu0 %3594, %v3480
      %v3596 = vpop.permute.xlu0 %3595
      %3599 = vset.pattern.permute.xlu0 0
      %3600 = vperm.xlu0 %3599, %v3481
      %v3601 = vpop.permute.xlu0 %3600
      %3604 = vset.pattern.permute.xlu0 0
      %3605 = vperm.xlu0 %3604, %v3482
      %v3606 = vpop.permute.xlu0 %3605
      %3609 = vset.pattern.permute.xlu0 0
      %3610 = vperm.xlu0 %3609, %v3483
      %v3611 = vpop.permute.xlu0 %3610
      %3614 = vset.pattern.permute.xlu0 0
      %3615 = vperm.xlu0 %3614, %v3484
      %v3616 = vpop.permute.xlu0 %3615
      %3619 = vset.pattern.permute.xlu0 0
      %3620 = vperm.xlu0 %3619, %v3485
      %v3621 = vpop.permute.xlu0 %3620
      %3624 = vset.pattern.permute.xlu0 0
      %3625 = vperm.xlu0 %3624, %v3486
      %v3626 = vpop.permute.xlu0 %3625
      %3629 = vset.pattern.permute.xlu0 0
      %3630 = vperm.xlu0 %3629, %v3487
      %v3631 = vpop.permute.xlu0 %3630
      %3634 = vset.pattern.permute.xlu0 0
      %3635 = vperm.xlu0 %3634, %v3488
      %v3636 = vpop.permute.xlu0 %3635
      %3639 = vset.pattern.permute.xlu0 0
      %3640 = vperm.xlu0 %3639, %v3489
      %v3641 = vpop.permute.xlu0 %3640
      %3644 = vset.pattern.permute.xlu0 0
      %3645 = vperm.xlu0 %3644, %v3490
      %v3646 = vpop.permute.xlu0 %3645
      %3649 = vset.pattern.permute.xlu0 0
      %3650 = vperm.xlu0 %3649, %v3491
      %v3651 = vpop.permute.xlu0 %3650
      %3654 = vset.pattern.permute.xlu0 0
      %3655 = vperm.xlu0 %3654, %v3492
      %v3656 = vpop.permute.xlu0 %3655
      %3659 = vset.pattern.permute.xlu0 0
      %3660 = vperm.xlu0 %3659, %v3493
      %v3661 = vpop.permute.xlu0 %3660
      %3664 = vset.pattern.permute.xlu0 0
      %3665 = vperm.xlu0 %3664, %v3494
      %v3666 = vpop.permute.xlu0 %3665
      %3669 = vset.pattern.permute.xlu0 0
      %3670 = vperm.xlu0 %3669, %v3495
      %v3671 = vpop.permute.xlu0 %3670
      %3674 = vset.pattern.permute.xlu0 0
      %3675 = vperm.xlu0 %3674, %v3496
      %v3676 = vpop.permute.xlu0 %3675
      %3679 = vset.pattern.permute.xlu0 0
      %3680 = vperm.xlu0 %3679, %v3497
      %v3681 = vpop.permute.xlu0 %3680
      %3684 = vset.pattern.permute.xlu0 0
      %3685 = vperm.xlu0 %3684, %v3498
      %v3686 = vpop.permute.xlu0 %3685
      %3689 = vset.pattern.permute.xlu0 0
      %3690 = vperm.xlu0 %3689, %v3499
      %v3691 = vpop.permute.xlu0 %3690
      %3694 = vset.pattern.permute.xlu0 0
      %3695 = vperm.xlu0 %3694, %v3500
      %v3696 = vpop.permute.xlu0 %3695
      %3699 = vset.pattern.permute.xlu0 0
      %3700 = vperm.xlu0 %3699, %v3501
      %v3701 = vpop.permute.xlu0 %3700
      %3704 = vset.pattern.permute.xlu0 0
      %3705 = vperm.xlu0 %3704, %v3502
      %v3706 = vpop.permute.xlu0 %3705
      %v3708 = vmul.f32 %v3421, %v3506
      %v3709 = vmul.f32 %v3422, %v3511
      %v3710 = vmul.f32 %v3423, %v3516
      %v3711 = vmul.f32 %v3424, %v3521
      %v3712 = vmul.f32 %v3425, %v3526
      %v3713 = vmul.f32 %v3426, %v3531
      %v3714 = vmul.f32 %v3427, %v3536
      %v3715 = vmul.f32 %v3428, %v3541
      %v3716 = vmul.f32 %v3429, %v3546
      %v3717 = vmul.f32 %v3430, %v3551
      %v3718 = vmul.f32 %v3431, %v3556
      %v3719 = vmul.f32 %v3432, %v3561
      %v3720 = vmul.f32 %v3433, %v3566
      %v3721 = vmul.f32 %v3434, %v3571
      %v3722 = vmul.f32 %v3435, %v3576
      %v3723 = vmul.f32 %v3436, %v3581
      %v3724 = vmul.f32 %v3437, %v3586
      %v3725 = vmul.f32 %v3438, %v3591
      %v3726 = vmul.f32 %v3439, %v3596
      %v3727 = vmul.f32 %v3440, %v3601
      %v3728 = vmul.f32 %v3441, %v3606
      %v3729 = vmul.f32 %v3442, %v3611
      %v3730 = vmul.f32 %v3443, %v3616
      %v3731 = vmul.f32 %v3444, %v3621
      %v3732 = vmul.f32 %v3445, %v3626
      %v3733 = vmul.f32 %v3446, %v3631
      %v3734 = vmul.f32 %v3447, %v3636
      %v3735 = vmul.f32 %v3448, %v3641
      %v3736 = vmul.f32 %v3449, %v3646
      %v3737 = vmul.f32 %v3450, %v3651
      %v3738 = vmul.f32 %v3451, %v3656
      %v3739 = vmul.f32 %v3452, %v3661
      %v3740 = vmul.f32 %v3453, %v3666
      %v3741 = vmul.f32 %v3454, %v3671
      %v3742 = vmul.f32 %v3455, %v3676
      %v3743 = vmul.f32 %v3456, %v3681
      %v3744 = vmul.f32 %v3457, %v3686
      %v3745 = vmul.f32 %v3458, %v3691
      %v3746 = vmul.f32 %v3459, %v3696
      %v3747 = vmul.f32 %v3460, %v3701
      %v3748 = vmul.f32 %v3461, %v3706
      %v3749 = vadd.f32 %v3708, %v3709
      %v3750 = vadd.f32 %v3749, %v3710
      %v3751 = vadd.f32 %v3750, %v3711
      %v3752 = vadd.f32 %v3751, %v3712
      %v3753 = vadd.f32 %v3752, %v3713
      %v3754 = vadd.f32 %v3753, %v3714
      %v3755 = vadd.f32 %v3754, %v3715
      %v3756 = vadd.f32 %v3755, %v3716
      %v3757 = vadd.f32 %v3756, %v3717
      %v3758 = vadd.f32 %v3757, %v3718
      %v3759 = vadd.f32 %v3758, %v3719
      %v3760 = vadd.f32 %v3759, %v3720
      %v3761 = vadd.f32 %v3760, %v3721
      %v3762 = vadd.f32 %v3761, %v3722
      %v3763 = vadd.f32 %v3762, %v3723
      %v3764 = vadd.f32 %v3763, %v3724
      %v3765 = vadd.f32 %v3764, %v3725
      %v3766 = vadd.f32 %v3765, %v3726
      %v3767 = vadd.f32 %v3766, %v3727
      %v3768 = vadd.f32 %v3767, %v3728
      %v3769 = vadd.f32 %v3768, %v3729
      %v3770 = vadd.f32 %v3769, %v3730
      %v3771 = vadd.f32 %v3770, %v3731
      %v3772 = vadd.f32 %v3771, %v3732
      %v3773 = vadd.f32 %v3772, %v3733
      %v3774 = vadd.f32 %v3773, %v3734
      %v3775 = vadd.f32 %v3774, %v3735
      %v3776 = vadd.f32 %v3775, %v3736
      %v3777 = vadd.f32 %v3776, %v3737
      %v3778 = vadd.f32 %v3777, %v3738
      %v3779 = vadd.f32 %v3778, %v3739
      %v3780 = vadd.f32 %v3779, %v3740
      %v3781 = vadd.f32 %v3780, %v3741
      %v3782 = vadd.f32 %v3781, %v3742
      %v3783 = vadd.f32 %v3782, %v3743
      %v3784 = vadd.f32 %v3783, %v3744
      %v3785 = vadd.f32 %v3784, %v3745
      %v3786 = vadd.f32 %v3785, %v3746
      %v3787 = vadd.f32 %v3786, %v3747
      %v3788 = vadd.f32 %v3787, %v3748
      %v3789 = vrot.slane %v3788, 4
      %v3790 = vadd.f32 %v3788, %v3789
      %v3791 = vrot.slane %v3790, 2
      %v3792 = vadd.f32 %v3790, %v3791
      %v3793 = vrot.slane %v3792, 1
      %v3794 = vadd.f32 %v3792, %v3793
      %3795 = vst [vmem:[%s201] sm:$0x1] %v3794
      %v3796 = vmul.f32 %v3708, %v3421
      %v3797 = vmul.f32 %v3709, %v3422
      %v3798 = vmul.f32 %v3710, %v3423
      %v3799 = vmul.f32 %v3711, %v3424
      %v3800 = vmul.f32 %v3712, %v3425
      %v3801 = vmul.f32 %v3713, %v3426
      %v3802 = vmul.f32 %v3714, %v3427
      %v3803 = vmul.f32 %v3715, %v3428
      %v3804 = vmul.f32 %v3716, %v3429
      %v3805 = vmul.f32 %v3717, %v3430
      %v3806 = vmul.f32 %v3718, %v3431
      %v3807 = vmul.f32 %v3719, %v3432
      %v3808 = vmul.f32 %v3720, %v3433
      %v3809 = vmul.f32 %v3721, %v3434
      %v3810 = vmul.f32 %v3722, %v3435
      %v3811 = vmul.f32 %v3723, %v3436
      %v3812 = vmul.f32 %v3724, %v3437
      %v3813 = vmul.f32 %v3725, %v3438
      %v3814 = vmul.f32 %v3726, %v3439
      %v3815 = vmul.f32 %v3727, %v3440
      %v3816 = vmul.f32 %v3728, %v3441
      %v3817 = vmul.f32 %v3729, %v3442
      %v3818 = vmul.f32 %v3730, %v3443
      %v3819 = vmul.f32 %v3731, %v3444
      %v3820 = vmul.f32 %v3732, %v3445
      %v3821 = vmul.f32 %v3733, %v3446
      %v3822 = vmul.f32 %v3734, %v3447
      %v3823 = vmul.f32 %v3735, %v3448
      %v3824 = vmul.f32 %v3736, %v3449
      %v3825 = vmul.f32 %v3737, %v3450
      %v3826 = vmul.f32 %v3738, %v3451
      %v3827 = vmul.f32 %v3739, %v3452
      %v3828 = vmul.f32 %v3740, %v3453
      %v3829 = vmul.f32 %v3741, %v3454
      %v3830 = vmul.f32 %v3742, %v3455
      %v3831 = vmul.f32 %v3743, %v3456
      %v3832 = vmul.f32 %v3744, %v3457
      %v3833 = vmul.f32 %v3745, %v3458
      %v3834 = vmul.f32 %v3746, %v3459
      %v3835 = vmul.f32 %v3747, %v3460
      %v3836 = vmul.f32 %v3748, %v3461
      %v3837 = vadd.f32 %v3796, %v3797
      %v3838 = vadd.f32 %v3837, %v3798
      %v3839 = vadd.f32 %v3838, %v3799
      %v3840 = vadd.f32 %v3839, %v3800
      %v3841 = vadd.f32 %v3840, %v3801
      %v3842 = vadd.f32 %v3841, %v3802
      %v3843 = vadd.f32 %v3842, %v3803
      %v3844 = vadd.f32 %v3843, %v3804
      %v3845 = vadd.f32 %v3844, %v3805
      %v3846 = vadd.f32 %v3845, %v3806
      %v3847 = vadd.f32 %v3846, %v3807
      %v3848 = vadd.f32 %v3847, %v3808
      %v3849 = vadd.f32 %v3848, %v3809
      %v3850 = vadd.f32 %v3849, %v3810
      %v3851 = vadd.f32 %v3850, %v3811
      %v3852 = vadd.f32 %v3851, %v3812
      %v3853 = vadd.f32 %v3852, %v3813
      %v3854 = vadd.f32 %v3853, %v3814
      %v3855 = vadd.f32 %v3854, %v3815
      %v3856 = vadd.f32 %v3855, %v3816
      %v3857 = vadd.f32 %v3856, %v3817
      %v3858 = vadd.f32 %v3857, %v3818
      %v3859 = vadd.f32 %v3858, %v3819
      %v3860 = vadd.f32 %v3859, %v3820
      %v3861 = vadd.f32 %v3860, %v3821
      %v3862 = vadd.f32 %v3861, %v3822
      %v3863 = vadd.f32 %v3862, %v3823
      %v3864 = vadd.f32 %v3863, %v3824
      %v3865 = vadd.f32 %v3864, %v3825
      %v3866 = vadd.f32 %v3865, %v3826
      %v3867 = vadd.f32 %v3866, %v3827
      %v3868 = vadd.f32 %v3867, %v3828
      %v3869 = vadd.f32 %v3868, %v3829
      %v3870 = vadd.f32 %v3869, %v3830
      %v3871 = vadd.f32 %v3870, %v3831
      %v3872 = vadd.f32 %v3871, %v3832
      %v3873 = vadd.f32 %v3872, %v3833
      %v3874 = vadd.f32 %v3873, %v3834
      %v3875 = vadd.f32 %v3874, %v3835
      %v3876 = vadd.f32 %v3875, %v3836
      %v3877 = vrot.slane %v3876, 4
      %v3878 = vadd.f32 %v3876, %v3877
      %v3879 = vrot.slane %v3878, 2
      %v3880 = vadd.f32 %v3878, %v3879
      %v3881 = vrot.slane %v3880, 1
      %v3882 = vadd.f32 %v3880, %v3881
      %3883 = vst [vmem:[%s204] sm:$0x1] %v3882
      %p3884 = scmp.lt.s32.totalorder %s16, 1
      %s3885 = scalar_select %p3884, %s16, 1
      %s3886 = scalar_lea.vmem %s3, %s3885
      %p3887 = scmp.lt.s32.totalorder %s16, 1
      %s3888 = scalar_select %p3887, %s16, 1
      %s3889 = scalar_lea.vmem %s4, %s3888
      // Predicated region
      $region33: #{conv_module_forward.2} parent=31 // pred_check
        %p3890 = pneg %p102
      $region34: #{conv_module_forward.2} parent=31 // pred_check_branch
        %3892 = sbr.rel (%p3890) target = $region36
      $region35: #{conv_module_forward.2} parent=31 // pred_region
        _
      $region36: #{conv_module_forward.2} parent=31 // pred_fallthru
        _
      // Predicated region
      $region37: #{conv_module_forward.2} parent=31 // pred_check
        %p3893 = pneg %p128
      $region38: #{conv_module_forward.2} parent=31 // pred_check_branch
        %3895 = sbr.rel (%p3893) target = $region40
      $region39: #{conv_module_forward.2} parent=31 // pred_region
        _
      $region40: #{conv_module_forward.2} parent=31 // pred_fallthru
        _
    $region32: #{conv_module_forward.2} parent=5 // pred_fallthru
      _
    %p3896 = scmp.le.s32.totalorder 2, %s11
    // Predicated region
    $region41: #{conv_module_forward.2} parent=5 // pred_check
      %p3897 = pneg %p3896
    $region42: #{conv_module_forward.2} parent=5 // pred_check_branch
      %3899 = sbr.rel (%p3897) target = $region44
    $region43: #{conv_module_forward.2} parent=5 // pred_region
      %s3900 = ssub.s32 %s11, 2
      // Predicated region
      $region45: #{conv_module_forward.2} parent=43 // pred_check
        %p3901 = pneg %p108
      $region46: #{conv_module_forward.2} parent=43 // pred_check_branch
        %3903 = sbr.rel (%p3901) target = $region48
      $region47: #{conv_module_forward.2} parent=43 // pred_region
        %p3904 = scmp.lt.s32.totalorder %s17, 1
        %s3905 = scalar_select %p3904, %s17, 1
        %s3906 = scalar_lea.vmem %s3, %s3905
      $region48: #{conv_module_forward.2} parent=43 // pred_fallthru
        _
      // Predicated region
      $region49: #{conv_module_forward.2} parent=43 // pred_check
        %p3907 = pneg %p134
      $region50: #{conv_module_forward.2} parent=43 // pred_check_branch
        %3909 = sbr.rel (%p3907) target = $region52
      $region51: #{conv_module_forward.2} parent=43 // pred_region
        %p3910 = scmp.lt.s32.totalorder %s17, 1
        %s3911 = scalar_select %p3910, %s17, 1
        %s3912 = scalar_lea.vmem %s4, %s3911
      $region52: #{conv_module_forward.2} parent=43 // pred_fallthru
        _
    $region44: #{conv_module_forward.2} parent=5 // pred_fallthru
      _
  $region6: #{conv_module_forward.2} parent=0 // loop_footer
    %s15 = sadd.s32 1, %s11
  $region7: #{conv_module_forward.2} parent=0 // loop_footer_branch
    %10 = sbr.rel target = $region3
  $region8: #{conv_module_forward.2} parent=0 // loop_exit
    _

</llo_original>
